<compile_context>
chip_gen: v7x
topology: tpu7x:2x2x1
jax: 0.10.0
libtpu: 0.0.40
codegen_flags: <defaults>
</compile_context>

<pallas_src>
import jax
import jax.numpy as jnp
import numpy as np
from jax.experimental import pallas as pl
from jax.experimental.pallas import tpu as pltpu

# Explicit scoped-VMEM limit: comfortably under v7x's 64 MiB physical VMEM and far
# above what these kernels need (worst case ~5 MiB of blocks + double buffers).
_VMEM_LIMIT = 32 * 1024 * 1024


# ----------------------------------------------------------------------------
# Fused conv + bias + ReLU + 2x2/2 maxpool kernel
# ----------------------------------------------------------------------------
def _make_conv_relu_pool_kernel(kh, Hp):
    def kernel(xe_ref, xo_ref, w_ref, b_ref, o_ref):
        # xe_ref / xo_ref : (1, H//2, W*Cin)        even / odd input rows (bf16)
        # w_ref           : (kh, 2, W*Cin, Wp*Cout) banded conv weights   (bf16)
        # b_ref           : (1, Wp*Cout)            bias tiled over pooled cols (f32)
        # o_ref           : (1, Hp, Wp*Cout)        pooled output (bf16)
        pooled = None
        for a in (0, 1):              # pooling row phase
            for pb in (0, 1):         # pooling column phase (baked into w_ref[:, pb])
                acc = None
                for di in range(kh):  # conv row taps
                    s = a + di
                    src = xe_ref if s % 2 == 0 else xo_ref
                    lhs = src[0, s // 2: s // 2 + Hp, :]            # (Hp, W*Cin)
                    part = jnp.dot(lhs, w_ref[di, pb],
                                   preferred_element_type=jnp.float32)
                    acc = part if acc is None else acc + part
                pooled = acc if pooled is None else jnp.maximum(pooled, acc)
        # relu(max(conv) + bias) == max-pool(relu(conv + bias)) since bias is shared
        # across the window and relu is monotonic.
        out = jnp.maximum(pooled + b_ref[...], 0.0)
        o_ref[0] = out.astype(o_ref.dtype)

    return kernel


def conv_relu_pool(x2d, w_band, bias_row):
    """Fused valid conv + bias + ReLU + 2x2/stride-2 maxpool.

    x2d:      (N, H, W*Cin)  NHWC activation (rows on the sublane axis).
    w_band:   (kh, 2, W*Cin, Wp*Cout) banded weights from prepare_params().
    bias_row: (1, Wp*Cout)
    returns   (N, Hp, Wp*Cout) bf16  == NHWC (N, Hp, Wp, Cout) with last 2 dims merged.
    """
    N, H, WC = x2d.shape
    kh = w_band.shape[0]
    WpC = w_band.shape[3]
    Hp = (H - kh + 1) // 2
    H2 = H // 2

    x2d = x2d.astype(jnp.bfloat16)
    xe = x2d[:, 0::2, :]          # even input rows  (N, H//2, W*Cin)
    xo = x2d[:, 1::2, :]          # odd input rows

    return pl.pallas_call(
        _make_conv_relu_pool_kernel(kh, Hp),
        out_shape=jax.ShapeDtypeStruct((N, Hp, WpC), jnp.bfloat16),
        grid=(N,),
        in_specs=[
            pl.BlockSpec((1, H2, WC), lambda n: (n, 0, 0)),
            pl.BlockSpec((1, H2, WC), lambda n: (n, 0, 0)),
            pl.BlockSpec(w_band.shape, lambda n: (0, 0, 0, 0)),   # resident weights
            pl.BlockSpec((1, WpC), lambda n: (0, 0)),
        ],
        out_specs=pl.BlockSpec((1, Hp, WpC), lambda n: (n, 0, 0)),
        compiler_params=pltpu.CompilerParams(
            dimension_semantics=("parallel",),
            vmem_limit_bytes=_VMEM_LIMIT),
    )(xe, xo, w_band, bias_row)


# ----------------------------------------------------------------------------
# M-tiled matmul + bias + ReLU kernel (fc1)
# ----------------------------------------------------------------------------
def _matmul_bias_relu_kernel(a_ref, b_ref, bias_ref, o_ref):
    acc = jnp.dot(a_ref[...], b_ref[...], preferred_element_type=jnp.float32)
    o_ref[...] = jnp.maximum(acc + bias_ref[...], 0.0).astype(o_ref.dtype)


def matmul_bias_relu(a, b, bias, *, block_m=512):
    """relu(a @ b + bias). a: (M, K), b: (K, N) bf16, bias: (1, N) f32. Tiled over M."""
    M, K = a.shape
    K2, N = b.shape
    assert K == K2
    tm = min(block_m, M)
    return pl.pallas_call(
        _matmul_bias_relu_kernel,
        out_shape=jax.ShapeDtypeStruct((M, N), jnp.float32),
        grid=(pl.cdiv(M, tm),),
        in_specs=[
            pl.BlockSpec((tm, K), lambda i: (i, 0)),
            pl.BlockSpec((K, N), lambda i: (0, 0)),
            pl.BlockSpec((1, N), lambda i: (0, 0)),
        ],
        out_specs=pl.BlockSpec((tm, N), lambda i: (i, 0)),
        compiler_params=pltpu.CompilerParams(
            dimension_semantics=("parallel",),
            vmem_limit_bytes=_VMEM_LIMIT),
    )(a.astype(jnp.bfloat16), b, bias)


# ----------------------------------------------------------------------------
# One-time weight preparation (hoisted out of the forward path)
# ----------------------------------------------------------------------------
def _band_conv_weight(w, b, H, W):
    """PyTorch conv weight (Cout, Cin, kh, kw) -> banded matmul weights.

    band[di, pb, j*Cin + c, wp*Cout + o] = w[o, c, di, j - (2*wp + pb)]
    (zero outside the kw window), so a single (W*Cin) input row times band[di, pb]
    yields the di-tap contribution to every pooled-column-phase-pb conv output.
    """
    w = np.asarray(w, np.float32)
    b = np.asarray(b, np.float32)
    Cout, Cin, kh, kw = w.shape
    Wo = W - kw + 1
    Wp = Wo // 2
    band = np.zeros((kh, 2, W * Cin, Wp * Cout), np.float32)
    for di in range(kh):
        for pb in range(2):
            for wp in range(Wp):
                wo = 2 * wp + pb
                for dj in range(kw):
                    j = wo + dj
                    band[di, pb, j * Cin:(j + 1) * Cin,
                         wp * Cout:(wp + 1) * Cout] = w[:, :, di, dj].T
    bias_row = np.tile(b, Wp)[None, :]
    return jnp.asarray(band, jnp.bfloat16), jnp.asarray(bias_row, jnp.float32)


def prepare_params(params, in_hw=32):
    w1, b1, w2, b2, wfc, bfc = params
    H1 = W1 = in_hw
    w1_band, b1_row = _band_conv_weight(w1, b1, H1, W1)
    Hp1, Wp1 = (H1 - w1.shape[2] + 1) // 2, (W1 - w1.shape[3] + 1) // 2   # 14, 14
    w2_band, b2_row = _band_conv_weight(w2, b2, Hp1, Wp1)
    Hp2, Wp2 = (Hp1 - w2.shape[2] + 1) // 2, (Wp1 - w2.shape[3] + 1) // 2  # 5, 5
    C2 = w2.shape[0]                                                       # 50
    # fc1: permute columns from torch.flatten NCHW order (c,h,w) to the NHWC order
    # (h,w,c) our conv kernels emit, and transpose once -> no per-call transposes.
    wfc_np = np.asarray(wfc, np.float32)
    idx = np.arange(C2 * Hp2 * Wp2).reshape(C2, Hp2, Wp2).transpose(1, 2, 0).reshape(-1)
    wfc_t = jnp.asarray(wfc_np[:, idx].T, jnp.bfloat16)        # (Hp2*Wp2*C2, F)
    bfc_row = jnp.asarray(np.asarray(bfc, np.float32)[None, :])
    return dict(w1_band=w1_band, b1_row=b1_row,
                w2_band=w2_band, b2_row=b2_row,
                wfc_t=wfc_t, bfc_row=bfc_row)


# ----------------------------------------------------------------------------
# LeNet forward (Pallas path) and pure-XLA f32 reference
# ----------------------------------------------------------------------------
def lenet_forward(x_nchw, p):
    N, Cin, H, W = x_nchw.shape
    # NCHW -> NHWC flattened to (N, H, W*Cin): channels fastest on the lane axis.
    x2d = jnp.transpose(x_nchw, (0, 2, 3, 1)).reshape(N, H, W * Cin)
    y = conv_relu_pool(x2d, p["w1_band"], p["b1_row"])      # (N, 14, 14*20)
    y = conv_relu_pool(y, p["w2_band"], p["b2_row"])        # (N, 5, 5*50)
    y = y.reshape(N, -1)                                    # (N, 1250), NHWC order
    return matmul_bias_relu(y, p["wfc_t"], p["bfc_row"])    # (N, 500) f32


def lenet_reference(x_nchw, params):
    """f32 reference with PyTorch Conv2d / MaxPool2d / Linear semantics."""
    w1, b1, w2, b2, wfc, bfc = params

    def conv_relu(x, w, b):
        y = jax.lax.conv_general_dilated(
            x, w, window_strides=(1, 1), padding="VALID",
            dimension_numbers=("NCHW", "OIHW", "NCHW"))
        return jnp.maximum(y + b[None, :, None, None], 0.0)

    def pool(x):
        return jax.lax.reduce_window(x, -jnp.inf, jax.lax.max,
                                     (1, 1, 2, 2), (1, 1, 2, 2), "VALID")

    y = pool(conv_relu(x_nchw, w1, b1))
    y = pool(conv_relu(y, w2, b2))
    y = y.reshape(y.shape[0], -1)          # torch.flatten(x, 1) on NCHW
    return jnp.maximum(y @ wfc.T + bfc, 0.0)


def init_params(key, num_channels, feature_size=500):
    """PyTorch-style default init: U(-1/sqrt(fan_in), 1/sqrt(fan_in))."""
    ks = jax.random.split(key, 6)

    def u(k, shape, fan_in):
        bound = 1.0 / np.sqrt(float(fan_in))
        return jax.random.uniform(k, shape, jnp.float32, -bound, bound)

    w1 = u(ks[0], (20, num_channels, 5, 5), num_channels * 25)
    b1 = u(ks[1], (20,), num_channels * 25)
    w2 = u(ks[2], (50, 20, 5, 5), 20 * 25)
    b2 = u(ks[3], (50,), 20 * 25)
    wfc = u(ks[4], (feature_size, 1250), 1250)
    bfc = u(ks[5], (feature_size,), 1250)
    return (w1, b1, w2, b2, wfc, bfc)


if __name__ == "__main__":
    key = jax.random.PRNGKey(0)
    k_x, k_p = jax.random.split(key)

    num_channels = 1
    batch = 4
    # Input must be 32x32 so the feature map reaching fc1 is 50*5*5 = 1250.
    x = jax.random.normal(k_x, (batch, num_channels, 32, 32), jnp.float32)
    params = init_params(k_p, num_channels, feature_size=500)
    prepped = prepare_params(params, in_hw=32)

    fwd = jax.jit(lenet_forward)
    out = jax.block_until_ready(fwd(x, prepped))
    ref = jax.block_until_ready(lenet_reference(x, params))

    assert out.shape == (batch, 500), out.shape
    # bf16 matmul operands (f32 accumulation) vs f32 reference -> loosened tolerance.
    max_err = float(jnp.max(jnp.abs(out - ref)))
    assert jnp.allclose(out, ref, atol=5e-2, rtol=5e-2), f"max abs err {max_err}"
    print("KERNEL_OK")
</pallas_src>

<mosaic_0001>
module attributes {stable_mosaic.version = 11 : i64} {
  func.func @kernel(%arg0: i32, %arg1: memref<1x16x32xbf16, #tpu.memory_space<vmem>>, %arg2: memref<1x16x32xbf16, #tpu.memory_space<vmem>>, %arg3: memref<5x2x32x280xbf16, #tpu.memory_space<vmem>>, %arg4: memref<1x280xf32, #tpu.memory_space<vmem>>, %arg5: memref<1x14x280xbf16, #tpu.memory_space<vmem>>) attributes {dimension_semantics = [#tpu.dimension_semantics<parallel>], iteration_bounds = array<i64: 4>, scalar_prefetch = 0 : i64, scratch_operands = 0 : i64, tpu.core_type = #tpu.core_type<tc>, window_params = [{transform_indices = @transform_0, window_bounds = array<i64: 1, 16, 32>}, {transform_indices = @transform_1, window_bounds = array<i64: 1, 16, 32>}, {pipeline_mode = #tpu.pipeline_mode<synchronous>, transform_indices = @transform_2, window_bounds = array<i64: 5, 2, 32, 280>}, {pipeline_mode = #tpu.pipeline_mode<synchronous>, transform_indices = @transform_3, window_bounds = array<i64: 1, 280>}, {transform_indices = @transform_4, window_bounds = array<i64: 1, 14, 280>}]} {
    %c0 = arith.constant 0 : index
    %c0_0 = arith.constant 0 : index
    %c0_1 = arith.constant 0 : index
    %0 = vector.load %arg1[%c0, %c0_0, %c0_1] : memref<1x16x32xbf16, #tpu.memory_space<vmem>>, vector<1x14x32xbf16>
    %1 = vector.shape_cast %0 : vector<1x14x32xbf16> to vector<14x32xbf16>
    %c0_2 = arith.constant 0 : index
    %c0_3 = arith.constant 0 : index
    %c0_4 = arith.constant 0 : index
    %c0_5 = arith.constant 0 : index
    %2 = vector.load %arg3[%c0_2, %c0_3, %c0_4, %c0_5] : memref<5x2x32x280xbf16, #tpu.memory_space<vmem>>, vector<1x1x32x280xbf16>
    %3 = vector.shape_cast %2 : vector<1x1x32x280xbf16> to vector<32x280xbf16>
    %cst = arith.constant dense<0.000000e+00> : vector<14x280xf32>
    %4 = tpu.matmul %1, %3, %cst {dimension_numbers = #tpu.dot_dimension_numbers<[1], [0], [0], [1], [0, 0, 1, 1], [], []>} : vector<14x32xbf16>, vector<32x280xbf16>, vector<14x280xf32> -> vector<14x280xf32>
    %c0_6 = arith.constant 0 : index
    %c0_7 = arith.constant 0 : index
    %c0_8 = arith.constant 0 : index
    %5 = vector.load %arg2[%c0_6, %c0_7, %c0_8] : memref<1x16x32xbf16, #tpu.memory_space<vmem>>, vector<1x14x32xbf16>
    %6 = vector.shape_cast %5 : vector<1x14x32xbf16> to vector<14x32xbf16>
    %c1 = arith.constant 1 : index
    %c0_9 = arith.constant 0 : index
    %c0_10 = arith.constant 0 : index
    %c0_11 = arith.constant 0 : index
    %7 = vector.load %arg3[%c1, %c0_9, %c0_10, %c0_11] : memref<5x2x32x280xbf16, #tpu.memory_space<vmem>>, vector<1x1x32x280xbf16>
    %8 = vector.shape_cast %7 : vector<1x1x32x280xbf16> to vector<32x280xbf16>
    %cst_12 = arith.constant dense<0.000000e+00> : vector<14x280xf32>
    %9 = tpu.matmul %6, %8, %cst_12 {dimension_numbers = #tpu.dot_dimension_numbers<[1], [0], [0], [1], [0, 0, 1, 1], [], []>} : vector<14x32xbf16>, vector<32x280xbf16>, vector<14x280xf32> -> vector<14x280xf32>
    %10 = arith.addf %4, %9 : vector<14x280xf32>
    %c0_13 = arith.constant 0 : index
    %c1_14 = arith.constant 1 : index
    %c0_15 = arith.constant 0 : index
    %11 = vector.load %arg1[%c0_13, %c1_14, %c0_15] : memref<1x16x32xbf16, #tpu.memory_space<vmem>>, vector<1x14x32xbf16>
    %12 = vector.shape_cast %11 : vector<1x14x32xbf16> to vector<14x32xbf16>
    %c2 = arith.constant 2 : index
    %c0_16 = arith.constant 0 : index
    %c0_17 = arith.constant 0 : index
    %c0_18 = arith.constant 0 : index
    %13 = vector.load %arg3[%c2, %c0_16, %c0_17, %c0_18] : memref<5x2x32x280xbf16, #tpu.memory_space<vmem>>, vector<1x1x32x280xbf16>
    %14 = vector.shape_cast %13 : vector<1x1x32x280xbf16> to vector<32x280xbf16>
    %cst_19 = arith.constant dense<0.000000e+00> : vector<14x280xf32>
    %15 = tpu.matmul %12, %14, %cst_19 {dimension_numbers = #tpu.dot_dimension_numbers<[1], [0], [0], [1], [0, 0, 1, 1], [], []>} : vector<14x32xbf16>, vector<32x280xbf16>, vector<14x280xf32> -> vector<14x280xf32>
    %16 = arith.addf %10, %15 : vector<14x280xf32>
    %c0_20 = arith.constant 0 : index
    %c1_21 = arith.constant 1 : index
    %c0_22 = arith.constant 0 : index
    %17 = vector.load %arg2[%c0_20, %c1_21, %c0_22] : memref<1x16x32xbf16, #tpu.memory_space<vmem>>, vector<1x14x32xbf16>
    %18 = vector.shape_cast %17 : vector<1x14x32xbf16> to vector<14x32xbf16>
    %c3 = arith.constant 3 : index
    %c0_23 = arith.constant 0 : index
    %c0_24 = arith.constant 0 : index
    %c0_25 = arith.constant 0 : index
    %19 = vector.load %arg3[%c3, %c0_23, %c0_24, %c0_25] : memref<5x2x32x280xbf16, #tpu.memory_space<vmem>>, vector<1x1x32x280xbf16>
    %20 = vector.shape_cast %19 : vector<1x1x32x280xbf16> to vector<32x280xbf16>
    %cst_26 = arith.constant dense<0.000000e+00> : vector<14x280xf32>
    %21 = tpu.matmul %18, %20, %cst_26 {dimension_numbers = #tpu.dot_dimension_numbers<[1], [0], [0], [1], [0, 0, 1, 1], [], []>} : vector<14x32xbf16>, vector<32x280xbf16>, vector<14x280xf32> -> vector<14x280xf32>
    %22 = arith.addf %16, %21 : vector<14x280xf32>
    %c0_27 = arith.constant 0 : index
    %c2_28 = arith.constant 2 : index
    %c0_29 = arith.constant 0 : index
    %23 = vector.load %arg1[%c0_27, %c2_28, %c0_29] : memref<1x16x32xbf16, #tpu.memory_space<vmem>>, vector<1x14x32xbf16>
    %24 = vector.shape_cast %23 : vector<1x14x32xbf16> to vector<14x32xbf16>
    %c4 = arith.constant 4 : index
    %c0_30 = arith.constant 0 : index
    %c0_31 = arith.constant 0 : index
    %c0_32 = arith.constant 0 : index
    %25 = vector.load %arg3[%c4, %c0_30, %c0_31, %c0_32] : memref<5x2x32x280xbf16, #tpu.memory_space<vmem>>, vector<1x1x32x280xbf16>
    %26 = vector.shape_cast %25 : vector<1x1x32x280xbf16> to vector<32x280xbf16>
    %cst_33 = arith.constant dense<0.000000e+00> : vector<14x280xf32>
    %27 = tpu.matmul %24, %26, %cst_33 {dimension_numbers = #tpu.dot_dimension_numbers<[1], [0], [0], [1], [0, 0, 1, 1], [], []>} : vector<14x32xbf16>, vector<32x280xbf16>, vector<14x280xf32> -> vector<14x280xf32>
    %28 = arith.addf %22, %27 : vector<14x280xf32>
    %c0_34 = arith.constant 0 : index
    %c0_35 = arith.constant 0 : index
    %c0_36 = arith.constant 0 : index
    %29 = vector.load %arg1[%c0_34, %c0_35, %c0_36] : memref<1x16x32xbf16, #tpu.memory_space<vmem>>, vector<1x14x32xbf16>
    %30 = vector.shape_cast %29 : vector<1x14x32xbf16> to vector<14x32xbf16>
    %c0_37 = arith.constant 0 : index
    %c1_38 = arith.constant 1 : index
    %c0_39 = arith.constant 0 : index
    %c0_40 = arith.constant 0 : index
    %31 = vector.load %arg3[%c0_37, %c1_38, %c0_39, %c0_40] : memref<5x2x32x280xbf16, #tpu.memory_space<vmem>>, vector<1x1x32x280xbf16>
    %32 = vector.shape_cast %31 : vector<1x1x32x280xbf16> to vector<32x280xbf16>
    %cst_41 = arith.constant dense<0.000000e+00> : vector<14x280xf32>
    %33 = tpu.matmul %30, %32, %cst_41 {dimension_numbers = #tpu.dot_dimension_numbers<[1], [0], [0], [1], [0, 0, 1, 1], [], []>} : vector<14x32xbf16>, vector<32x280xbf16>, vector<14x280xf32> -> vector<14x280xf32>
    %c0_42 = arith.constant 0 : index
    %c0_43 = arith.constant 0 : index
    %c0_44 = arith.constant 0 : index
    %34 = vector.load %arg2[%c0_42, %c0_43, %c0_44] : memref<1x16x32xbf16, #tpu.memory_space<vmem>>, vector<1x14x32xbf16>
    %35 = vector.shape_cast %34 : vector<1x14x32xbf16> to vector<14x32xbf16>
    %c1_45 = arith.constant 1 : index
    %c1_46 = arith.constant 1 : index
    %c0_47 = arith.constant 0 : index
    %c0_48 = arith.constant 0 : index
    %36 = vector.load %arg3[%c1_45, %c1_46, %c0_47, %c0_48] : memref<5x2x32x280xbf16, #tpu.memory_space<vmem>>, vector<1x1x32x280xbf16>
    %37 = vector.shape_cast %36 : vector<1x1x32x280xbf16> to vector<32x280xbf16>
    %cst_49 = arith.constant dense<0.000000e+00> : vector<14x280xf32>
    %38 = tpu.matmul %35, %37, %cst_49 {dimension_numbers = #tpu.dot_dimension_numbers<[1], [0], [0], [1], [0, 0, 1, 1], [], []>} : vector<14x32xbf16>, vector<32x280xbf16>, vector<14x280xf32> -> vector<14x280xf32>
    %39 = arith.addf %33, %38 : vector<14x280xf32>
    %c0_50 = arith.constant 0 : index
    %c1_51 = arith.constant 1 : index
    %c0_52 = arith.constant 0 : index
    %40 = vector.load %arg1[%c0_50, %c1_51, %c0_52] : memref<1x16x32xbf16, #tpu.memory_space<vmem>>, vector<1x14x32xbf16>
    %41 = vector.shape_cast %40 : vector<1x14x32xbf16> to vector<14x32xbf16>
    %c2_53 = arith.constant 2 : index
    %c1_54 = arith.constant 1 : index
    %c0_55 = arith.constant 0 : index
    %c0_56 = arith.constant 0 : index
    %42 = vector.load %arg3[%c2_53, %c1_54, %c0_55, %c0_56] : memref<5x2x32x280xbf16, #tpu.memory_space<vmem>>, vector<1x1x32x280xbf16>
    %43 = vector.shape_cast %42 : vector<1x1x32x280xbf16> to vector<32x280xbf16>
    %cst_57 = arith.constant dense<0.000000e+00> : vector<14x280xf32>
    %44 = tpu.matmul %41, %43, %cst_57 {dimension_numbers = #tpu.dot_dimension_numbers<[1], [0], [0], [1], [0, 0, 1, 1], [], []>} : vector<14x32xbf16>, vector<32x280xbf16>, vector<14x280xf32> -> vector<14x280xf32>
    %45 = arith.addf %39, %44 : vector<14x280xf32>
    %c0_58 = arith.constant 0 : index
    %c1_59 = arith.constant 1 : index
    %c0_60 = arith.constant 0 : index
    %46 = vector.load %arg2[%c0_58, %c1_59, %c0_60] : memref<1x16x32xbf16, #tpu.memory_space<vmem>>, vector<1x14x32xbf16>
    %47 = vector.shape_cast %46 : vector<1x14x32xbf16> to vector<14x32xbf16>
    %c3_61 = arith.constant 3 : index
    %c1_62 = arith.constant 1 : index
    %c0_63 = arith.constant 0 : index
    %c0_64 = arith.constant 0 : index
    %48 = vector.load %arg3[%c3_61, %c1_62, %c0_63, %c0_64] : memref<5x2x32x280xbf16, #tpu.memory_space<vmem>>, vector<1x1x32x280xbf16>
    %49 = vector.shape_cast %48 : vector<1x1x32x280xbf16> to vector<32x280xbf16>
    %cst_65 = arith.constant dense<0.000000e+00> : vector<14x280xf32>
    %50 = tpu.matmul %47, %49, %cst_65 {dimension_numbers = #tpu.dot_dimension_numbers<[1], [0], [0], [1], [0, 0, 1, 1], [], []>} : vector<14x32xbf16>, vector<32x280xbf16>, vector<14x280xf32> -> vector<14x280xf32>
    %51 = arith.addf %45, %50 : vector<14x280xf32>
    %c0_66 = arith.constant 0 : index
    %c2_67 = arith.constant 2 : index
    %c0_68 = arith.constant 0 : index
    %52 = vector.load %arg1[%c0_66, %c2_67, %c0_68] : memref<1x16x32xbf16, #tpu.memory_space<vmem>>, vector<1x14x32xbf16>
    %53 = vector.shape_cast %52 : vector<1x14x32xbf16> to vector<14x32xbf16>
    %c4_69 = arith.constant 4 : index
    %c1_70 = arith.constant 1 : index
    %c0_71 = arith.constant 0 : index
    %c0_72 = arith.constant 0 : index
    %54 = vector.load %arg3[%c4_69, %c1_70, %c0_71, %c0_72] : memref<5x2x32x280xbf16, #tpu.memory_space<vmem>>, vector<1x1x32x280xbf16>
    %55 = vector.shape_cast %54 : vector<1x1x32x280xbf16> to vector<32x280xbf16>
    %cst_73 = arith.constant dense<0.000000e+00> : vector<14x280xf32>
    %56 = tpu.matmul %53, %55, %cst_73 {dimension_numbers = #tpu.dot_dimension_numbers<[1], [0], [0], [1], [0, 0, 1, 1], [], []>} : vector<14x32xbf16>, vector<32x280xbf16>, vector<14x280xf32> -> vector<14x280xf32>
    %57 = arith.addf %51, %56 : vector<14x280xf32>
    %58 = arith.maximumf %28, %57 : vector<14x280xf32>
    %c0_74 = arith.constant 0 : index
    %c0_75 = arith.constant 0 : index
    %c0_76 = arith.constant 0 : index
    %59 = vector.load %arg2[%c0_74, %c0_75, %c0_76] : memref<1x16x32xbf16, #tpu.memory_space<vmem>>, vector<1x14x32xbf16>
    %60 = vector.shape_cast %59 : vector<1x14x32xbf16> to vector<14x32xbf16>
    %c0_77 = arith.constant 0 : index
    %c0_78 = arith.constant 0 : index
    %c0_79 = arith.constant 0 : index
    %c0_80 = arith.constant 0 : index
    %61 = vector.load %arg3[%c0_77, %c0_78, %c0_79, %c0_80] : memref<5x2x32x280xbf16, #tpu.memory_space<vmem>>, vector<1x1x32x280xbf16>
    %62 = vector.shape_cast %61 : vector<1x1x32x280xbf16> to vector<32x280xbf16>
    %cst_81 = arith.constant dense<0.000000e+00> : vector<14x280xf32>
    %63 = tpu.matmul %60, %62, %cst_81 {dimension_numbers = #tpu.dot_dimension_numbers<[1], [0], [0], [1], [0, 0, 1, 1], [], []>} : vector<14x32xbf16>, vector<32x280xbf16>, vector<14x280xf32> -> vector<14x280xf32>
    %c0_82 = arith.constant 0 : index
    %c1_83 = arith.constant 1 : index
    %c0_84 = arith.constant 0 : index
    %64 = vector.load %arg1[%c0_82, %c1_83, %c0_84] : memref<1x16x32xbf16, #tpu.memory_space<vmem>>, vector<1x14x32xbf16>
    %65 = vector.shape_cast %64 : vector<1x14x32xbf16> to vector<14x32xbf16>
    %c1_85 = arith.constant 1 : index
    %c0_86 = arith.constant 0 : index
    %c0_87 = arith.constant 0 : index
    %c0_88 = arith.constant 0 : index
    %66 = vector.load %arg3[%c1_85, %c0_86, %c0_87, %c0_88] : memref<5x2x32x280xbf16, #tpu.memory_space<vmem>>, vector<1x1x32x280xbf16>
    %67 = vector.shape_cast %66 : vector<1x1x32x280xbf16> to vector<32x280xbf16>
    %cst_89 = arith.constant dense<0.000000e+00> : vector<14x280xf32>
    %68 = tpu.matmul %65, %67, %cst_89 {dimension_numbers = #tpu.dot_dimension_numbers<[1], [0], [0], [1], [0, 0, 1, 1], [], []>} : vector<14x32xbf16>, vector<32x280xbf16>, vector<14x280xf32> -> vector<14x280xf32>
    %69 = arith.addf %63, %68 : vector<14x280xf32>
    %c0_90 = arith.constant 0 : index
    %c1_91 = arith.constant 1 : index
    %c0_92 = arith.constant 0 : index
    %70 = vector.load %arg2[%c0_90, %c1_91, %c0_92] : memref<1x16x32xbf16, #tpu.memory_space<vmem>>, vector<1x14x32xbf16>
    %71 = vector.shape_cast %70 : vector<1x14x32xbf16> to vector<14x32xbf16>
    %c2_93 = arith.constant 2 : index
    %c0_94 = arith.constant 0 : index
    %c0_95 = arith.constant 0 : index
    %c0_96 = arith.constant 0 : index
    %72 = vector.load %arg3[%c2_93, %c0_94, %c0_95, %c0_96] : memref<5x2x32x280xbf16, #tpu.memory_space<vmem>>, vector<1x1x32x280xbf16>
    %73 = vector.shape_cast %72 : vector<1x1x32x280xbf16> to vector<32x280xbf16>
    %cst_97 = arith.constant dense<0.000000e+00> : vector<14x280xf32>
    %74 = tpu.matmul %71, %73, %cst_97 {dimension_numbers = #tpu.dot_dimension_numbers<[1], [0], [0], [1], [0, 0, 1, 1], [], []>} : vector<14x32xbf16>, vector<32x280xbf16>, vector<14x280xf32> -> vector<14x280xf32>
    %75 = arith.addf %69, %74 : vector<14x280xf32>
    %c0_98 = arith.constant 0 : index
    %c2_99 = arith.constant 2 : index
    %c0_100 = arith.constant 0 : index
    %76 = vector.load %arg1[%c0_98, %c2_99, %c0_100] : memref<1x16x32xbf16, #tpu.memory_space<vmem>>, vector<1x14x32xbf16>
    %77 = vector.shape_cast %76 : vector<1x14x32xbf16> to vector<14x32xbf16>
    %c3_101 = arith.constant 3 : index
    %c0_102 = arith.constant 0 : index
    %c0_103 = arith.constant 0 : index
    %c0_104 = arith.constant 0 : index
    %78 = vector.load %arg3[%c3_101, %c0_102, %c0_103, %c0_104] : memref<5x2x32x280xbf16, #tpu.memory_space<vmem>>, vector<1x1x32x280xbf16>
    %79 = vector.shape_cast %78 : vector<1x1x32x280xbf16> to vector<32x280xbf16>
    %cst_105 = arith.constant dense<0.000000e+00> : vector<14x280xf32>
    %80 = tpu.matmul %77, %79, %cst_105 {dimension_numbers = #tpu.dot_dimension_numbers<[1], [0], [0], [1], [0, 0, 1, 1], [], []>} : vector<14x32xbf16>, vector<32x280xbf16>, vector<14x280xf32> -> vector<14x280xf32>
    %81 = arith.addf %75, %80 : vector<14x280xf32>
    %c0_106 = arith.constant 0 : index
    %c2_107 = arith.constant 2 : index
    %c0_108 = arith.constant 0 : index
    %82 = vector.load %arg2[%c0_106, %c2_107, %c0_108] : memref<1x16x32xbf16, #tpu.memory_space<vmem>>, vector<1x14x32xbf16>
    %83 = vector.shape_cast %82 : vector<1x14x32xbf16> to vector<14x32xbf16>
    %c4_109 = arith.constant 4 : index
    %c0_110 = arith.constant 0 : index
    %c0_111 = arith.constant 0 : index
    %c0_112 = arith.constant 0 : index
    %84 = vector.load %arg3[%c4_109, %c0_110, %c0_111, %c0_112] : memref<5x2x32x280xbf16, #tpu.memory_space<vmem>>, vector<1x1x32x280xbf16>
    %85 = vector.shape_cast %84 : vector<1x1x32x280xbf16> to vector<32x280xbf16>
    %cst_113 = arith.constant dense<0.000000e+00> : vector<14x280xf32>
    %86 = tpu.matmul %83, %85, %cst_113 {dimension_numbers = #tpu.dot_dimension_numbers<[1], [0], [0], [1], [0, 0, 1, 1], [], []>} : vector<14x32xbf16>, vector<32x280xbf16>, vector<14x280xf32> -> vector<14x280xf32>
    %87 = arith.addf %81, %86 : vector<14x280xf32>
    %88 = arith.maximumf %58, %87 : vector<14x280xf32>
    %c0_114 = arith.constant 0 : index
    %c0_115 = arith.constant 0 : index
    %c0_116 = arith.constant 0 : index
    %89 = vector.load %arg2[%c0_114, %c0_115, %c0_116] : memref<1x16x32xbf16, #tpu.memory_space<vmem>>, vector<1x14x32xbf16>
    %90 = vector.shape_cast %89 : vector<1x14x32xbf16> to vector<14x32xbf16>
    %c0_117 = arith.constant 0 : index
    %c1_118 = arith.constant 1 : index
    %c0_119 = arith.constant 0 : index
    %c0_120 = arith.constant 0 : index
    %91 = vector.load %arg3[%c0_117, %c1_118, %c0_119, %c0_120] : memref<5x2x32x280xbf16, #tpu.memory_space<vmem>>, vector<1x1x32x280xbf16>
    %92 = vector.shape_cast %91 : vector<1x1x32x280xbf16> to vector<32x280xbf16>
    %cst_121 = arith.constant dense<0.000000e+00> : vector<14x280xf32>
    %93 = tpu.matmul %90, %92, %cst_121 {dimension_numbers = #tpu.dot_dimension_numbers<[1], [0], [0], [1], [0, 0, 1, 1], [], []>} : vector<14x32xbf16>, vector<32x280xbf16>, vector<14x280xf32> -> vector<14x280xf32>
    %c0_122 = arith.constant 0 : index
    %c1_123 = arith.constant 1 : index
    %c0_124 = arith.constant 0 : index
    %94 = vector.load %arg1[%c0_122, %c1_123, %c0_124] : memref<1x16x32xbf16, #tpu.memory_space<vmem>>, vector<1x14x32xbf16>
    %95 = vector.shape_cast %94 : vector<1x14x32xbf16> to vector<14x32xbf16>
    %c1_125 = arith.constant 1 : index
    %c1_126 = arith.constant 1 : index
    %c0_127 = arith.constant 0 : index
    %c0_128 = arith.constant 0 : index
    %96 = vector.load %arg3[%c1_125, %c1_126, %c0_127, %c0_128] : memref<5x2x32x280xbf16, #tpu.memory_space<vmem>>, vector<1x1x32x280xbf16>
    %97 = vector.shape_cast %96 : vector<1x1x32x280xbf16> to vector<32x280xbf16>
    %cst_129 = arith.constant dense<0.000000e+00> : vector<14x280xf32>
    %98 = tpu.matmul %95, %97, %cst_129 {dimension_numbers = #tpu.dot_dimension_numbers<[1], [0], [0], [1], [0, 0, 1, 1], [], []>} : vector<14x32xbf16>, vector<32x280xbf16>, vector<14x280xf32> -> vector<14x280xf32>
    %99 = arith.addf %93, %98 : vector<14x280xf32>
    %c0_130 = arith.constant 0 : index
    %c1_131 = arith.constant 1 : index
    %c0_132 = arith.constant 0 : index
    %100 = vector.load %arg2[%c0_130, %c1_131, %c0_132] : memref<1x16x32xbf16, #tpu.memory_space<vmem>>, vector<1x14x32xbf16>
    %101 = vector.shape_cast %100 : vector<1x14x32xbf16> to vector<14x32xbf16>
    %c2_133 = arith.constant 2 : index
    %c1_134 = arith.constant 1 : index
    %c0_135 = arith.constant 0 : index
    %c0_136 = arith.constant 0 : index
    %102 = vector.load %arg3[%c2_133, %c1_134, %c0_135, %c0_136] : memref<5x2x32x280xbf16, #tpu.memory_space<vmem>>, vector<1x1x32x280xbf16>
    %103 = vector.shape_cast %102 : vector<1x1x32x280xbf16> to vector<32x280xbf16>
    %cst_137 = arith.constant dense<0.000000e+00> : vector<14x280xf32>
    %104 = tpu.matmul %101, %103, %cst_137 {dimension_numbers = #tpu.dot_dimension_numbers<[1], [0], [0], [1], [0, 0, 1, 1], [], []>} : vector<14x32xbf16>, vector<32x280xbf16>, vector<14x280xf32> -> vector<14x280xf32>
    %105 = arith.addf %99, %104 : vector<14x280xf32>
    %c0_138 = arith.constant 0 : index
    %c2_139 = arith.constant 2 : index
    %c0_140 = arith.constant 0 : index
    %106 = vector.load %arg1[%c0_138, %c2_139, %c0_140] : memref<1x16x32xbf16, #tpu.memory_space<vmem>>, vector<1x14x32xbf16>
    %107 = vector.shape_cast %106 : vector<1x14x32xbf16> to vector<14x32xbf16>
    %c3_141 = arith.constant 3 : index
    %c1_142 = arith.constant 1 : index
    %c0_143 = arith.constant 0 : index
    %c0_144 = arith.constant 0 : index
    %108 = vector.load %arg3[%c3_141, %c1_142, %c0_143, %c0_144] : memref<5x2x32x280xbf16, #tpu.memory_space<vmem>>, vector<1x1x32x280xbf16>
    %109 = vector.shape_cast %108 : vector<1x1x32x280xbf16> to vector<32x280xbf16>
    %cst_145 = arith.constant dense<0.000000e+00> : vector<14x280xf32>
    %110 = tpu.matmul %107, %109, %cst_145 {dimension_numbers = #tpu.dot_dimension_numbers<[1], [0], [0], [1], [0, 0, 1, 1], [], []>} : vector<14x32xbf16>, vector<32x280xbf16>, vector<14x280xf32> -> vector<14x280xf32>
    %111 = arith.addf %105, %110 : vector<14x280xf32>
    %c0_146 = arith.constant 0 : index
    %c2_147 = arith.constant 2 : index
    %c0_148 = arith.constant 0 : index
    %112 = vector.load %arg2[%c0_146, %c2_147, %c0_148] : memref<1x16x32xbf16, #tpu.memory_space<vmem>>, vector<1x14x32xbf16>
    %113 = vector.shape_cast %112 : vector<1x14x32xbf16> to vector<14x32xbf16>
    %c4_149 = arith.constant 4 : index
    %c1_150 = arith.constant 1 : index
    %c0_151 = arith.constant 0 : index
    %c0_152 = arith.constant 0 : index
    %114 = vector.load %arg3[%c4_149, %c1_150, %c0_151, %c0_152] : memref<5x2x32x280xbf16, #tpu.memory_space<vmem>>, vector<1x1x32x280xbf16>
    %115 = vector.shape_cast %114 : vector<1x1x32x280xbf16> to vector<32x280xbf16>
    %cst_153 = arith.constant dense<0.000000e+00> : vector<14x280xf32>
    %116 = tpu.matmul %113, %115, %cst_153 {dimension_numbers = #tpu.dot_dimension_numbers<[1], [0], [0], [1], [0, 0, 1, 1], [], []>} : vector<14x32xbf16>, vector<32x280xbf16>, vector<14x280xf32> -> vector<14x280xf32>
    %117 = arith.addf %111, %116 : vector<14x280xf32>
    %118 = arith.maximumf %88, %117 : vector<14x280xf32>
    %c0_154 = arith.constant 0 : index
    %c0_155 = arith.constant 0 : index
    %119 = vector.load %arg4[%c0_154, %c0_155] : memref<1x280xf32, #tpu.memory_space<vmem>>, vector<1x280xf32>
    %120 = vector.broadcast %119 : vector<1x280xf32> to vector<14x280xf32>
    %121 = arith.addf %118, %120 : vector<14x280xf32>
    %cst_156 = arith.constant 0.000000e+00 : f32
    %122 = vector.broadcast %cst_156 : f32 to vector<14x280xf32>
    %123 = arith.maximumf %121, %122 : vector<14x280xf32>
    %124 = arith.truncf %123 : vector<14x280xf32> to vector<14x280xbf16>
    %c0_157 = arith.constant 0 : index
    %c0_158 = arith.constant 0 : index
    %c0_159 = arith.constant 0 : index
    %125 = vector.load %arg5[%c0_157, %c0_158, %c0_159] : memref<1x14x280xbf16, #tpu.memory_space<vmem>>, vector<1x14x280xbf16>
    %126 = vector.shape_cast %125 : vector<1x14x280xbf16> to vector<14x280xbf16>
    %127 = vector.shape_cast %124 : vector<14x280xbf16> to vector<1x14x280xbf16>
    tpu.vector_store %arg5[%c0_157, %c0_158, %c0_159], %127 {strides = array<i32>} : memref<1x14x280xbf16, #tpu.memory_space<vmem>>, vector<1x14x280xbf16>,
    return
  }
  func.func @transform_0(%arg0: i32) -> (i32, i32, i32) {
    %c0_i32 = arith.constant 0 : i32
    %c0_i32_0 = arith.constant 0 : i32
    %c0_i32_1 = arith.constant 0 : i32
    return %arg0, %c0_i32, %c0_i32_0 : i32, i32, i32
  }
  func.func @transform_1(%arg0: i32) -> (i32, i32, i32) {
    %c0_i32 = arith.constant 0 : i32
    %c0_i32_0 = arith.constant 0 : i32
    %c0_i32_1 = arith.constant 0 : i32
    return %arg0, %c0_i32, %c0_i32_0 : i32, i32, i32
  }
  func.func @transform_2(%arg0: i32) -> (i32, i32, i32, i32) {
    %c0_i32 = arith.constant 0 : i32
    %c0_i32_0 = arith.constant 0 : i32
    %c0_i32_1 = arith.constant 0 : i32
    %c0_i32_2 = arith.constant 0 : i32
    %c0_i32_3 = arith.constant 0 : i32
    return %c0_i32, %c0_i32_0, %c0_i32_1, %c0_i32_2 : i32, i32, i32, i32
  }
  func.func @transform_3(%arg0: i32) -> (i32, i32) {
    %c0_i32 = arith.constant 0 : i32
    %c0_i32_0 = arith.constant 0 : i32
    %c0_i32_1 = arith.constant 0 : i32
    return %c0_i32, %c0_i32_0 : i32, i32
  }
  func.func @transform_4(%arg0: i32) -> (i32, i32, i32) {
    %c0_i32 = arith.constant 0 : i32
    %c0_i32_0 = arith.constant 0 : i32
    %c0_i32_1 = arith.constant 0 : i32
    return %arg0, %c0_i32, %c0_i32_0 : i32, i32, i32
  }
}

module attributes {stable_mosaic.version = 11 : i64} {
  func.func @kernel(%arg0: i32, %arg1: memref<1x7x280xbf16, #tpu.memory_space<vmem>>, %arg2: memref<1x7x280xbf16, #tpu.memory_space<vmem>>, %arg3: memref<5x2x280x250xbf16, #tpu.memory_space<vmem>>, %arg4: memref<1x250xf32, #tpu.memory_space<vmem>>, %arg5: memref<1x5x250xbf16, #tpu.memory_space<vmem>>) attributes {dimension_semantics = [#tpu.dimension_semantics<parallel>], iteration_bounds = array<i64: 4>, scalar_prefetch = 0 : i64, scratch_operands = 0 : i64, tpu.core_type = #tpu.core_type<tc>, window_params = [{transform_indices = @transform_0, window_bounds = array<i64: 1, 7, 280>}, {transform_indices = @transform_1, window_bounds = array<i64: 1, 7, 280>}, {pipeline_mode = #tpu.pipeline_mode<synchronous>, transform_indices = @transform_2, window_bounds = array<i64: 5, 2, 280, 250>}, {pipeline_mode = #tpu.pipeline_mode<synchronous>, transform_indices = @transform_3, window_bounds = array<i64: 1, 250>}, {transform_indices = @transform_4, window_bounds = array<i64: 1, 5, 250>}]} {
    %c0 = arith.constant 0 : index
    %c0_0 = arith.constant 0 : index
    %c0_1 = arith.constant 0 : index
    %0 = vector.load %arg1[%c0, %c0_0, %c0_1] : memref<1x7x280xbf16, #tpu.memory_space<vmem>>, vector<1x5x280xbf16>
    %1 = vector.shape_cast %0 : vector<1x5x280xbf16> to vector<5x280xbf16>
    %c0_2 = arith.constant 0 : index
    %c0_3 = arith.constant 0 : index
    %c0_4 = arith.constant 0 : index
    %c0_5 = arith.constant 0 : index
    %2 = vector.load %arg3[%c0_2, %c0_3, %c0_4, %c0_5] : memref<5x2x280x250xbf16, #tpu.memory_space<vmem>>, vector<1x1x280x250xbf16>
    %3 = vector.shape_cast %2 : vector<1x1x280x250xbf16> to vector<280x250xbf16>
    %cst = arith.constant dense<0.000000e+00> : vector<5x250xf32>
    %4 = tpu.matmul %1, %3, %cst {dimension_numbers = #tpu.dot_dimension_numbers<[1], [0], [0], [1], [0, 0, 1, 1], [], []>} : vector<5x280xbf16>, vector<280x250xbf16>, vector<5x250xf32> -> vector<5x250xf32>
    %c0_6 = arith.constant 0 : index
    %c0_7 = arith.constant 0 : index
    %c0_8 = arith.constant 0 : index
    %5 = vector.load %arg2[%c0_6, %c0_7, %c0_8] : memref<1x7x280xbf16, #tpu.memory_space<vmem>>, vector<1x5x280xbf16>
    %6 = vector.shape_cast %5 : vector<1x5x280xbf16> to vector<5x280xbf16>
    %c1 = arith.constant 1 : index
    %c0_9 = arith.constant 0 : index
    %c0_10 = arith.constant 0 : index
    %c0_11 = arith.constant 0 : index
    %7 = vector.load %arg3[%c1, %c0_9, %c0_10, %c0_11] : memref<5x2x280x250xbf16, #tpu.memory_space<vmem>>, vector<1x1x280x250xbf16>
    %8 = vector.shape_cast %7 : vector<1x1x280x250xbf16> to vector<280x250xbf16>
    %cst_12 = arith.constant dense<0.000000e+00> : vector<5x250xf32>
    %9 = tpu.matmul %6, %8, %cst_12 {dimension_numbers = #tpu.dot_dimension_numbers<[1], [0], [0], [1], [0, 0, 1, 1], [], []>} : vector<5x280xbf16>, vector<280x250xbf16>, vector<5x250xf32> -> vector<5x250xf32>
    %10 = arith.addf %4, %9 : vector<5x250xf32>
    %c0_13 = arith.constant 0 : index
    %c1_14 = arith.constant 1 : index
    %c0_15 = arith.constant 0 : index
    %11 = vector.load %arg1[%c0_13, %c1_14, %c0_15] : memref<1x7x280xbf16, #tpu.memory_space<vmem>>, vector<1x5x280xbf16>
    %12 = vector.shape_cast %11 : vector<1x5x280xbf16> to vector<5x280xbf16>
    %c2 = arith.constant 2 : index
    %c0_16 = arith.constant 0 : index
    %c0_17 = arith.constant 0 : index
    %c0_18 = arith.constant 0 : index
    %13 = vector.load %arg3[%c2, %c0_16, %c0_17, %c0_18] : memref<5x2x280x250xbf16, #tpu.memory_space<vmem>>, vector<1x1x280x250xbf16>
    %14 = vector.shape_cast %13 : vector<1x1x280x250xbf16> to vector<280x250xbf16>
    %cst_19 = arith.constant dense<0.000000e+00> : vector<5x250xf32>
    %15 = tpu.matmul %12, %14, %cst_19 {dimension_numbers = #tpu.dot_dimension_numbers<[1], [0], [0], [1], [0, 0, 1, 1], [], []>} : vector<5x280xbf16>, vector<280x250xbf16>, vector<5x250xf32> -> vector<5x250xf32>
    %16 = arith.addf %10, %15 : vector<5x250xf32>
    %c0_20 = arith.constant 0 : index
    %c1_21 = arith.constant 1 : index
    %c0_22 = arith.constant 0 : index
    %17 = vector.load %arg2[%c0_20, %c1_21, %c0_22] : memref<1x7x280xbf16, #tpu.memory_space<vmem>>, vector<1x5x280xbf16>
    %18 = vector.shape_cast %17 : vector<1x5x280xbf16> to vector<5x280xbf16>
    %c3 = arith.constant 3 : index
    %c0_23 = arith.constant 0 : index
    %c0_24 = arith.constant 0 : index
    %c0_25 = arith.constant 0 : index
    %19 = vector.load %arg3[%c3, %c0_23, %c0_24, %c0_25] : memref<5x2x280x250xbf16, #tpu.memory_space<vmem>>, vector<1x1x280x250xbf16>
    %20 = vector.shape_cast %19 : vector<1x1x280x250xbf16> to vector<280x250xbf16>
    %cst_26 = arith.constant dense<0.000000e+00> : vector<5x250xf32>
    %21 = tpu.matmul %18, %20, %cst_26 {dimension_numbers = #tpu.dot_dimension_numbers<[1], [0], [0], [1], [0, 0, 1, 1], [], []>} : vector<5x280xbf16>, vector<280x250xbf16>, vector<5x250xf32> -> vector<5x250xf32>
    %22 = arith.addf %16, %21 : vector<5x250xf32>
    %c0_27 = arith.constant 0 : index
    %c2_28 = arith.constant 2 : index
    %c0_29 = arith.constant 0 : index
    %23 = vector.load %arg1[%c0_27, %c2_28, %c0_29] : memref<1x7x280xbf16, #tpu.memory_space<vmem>>, vector<1x5x280xbf16>
    %24 = vector.shape_cast %23 : vector<1x5x280xbf16> to vector<5x280xbf16>
    %c4 = arith.constant 4 : index
    %c0_30 = arith.constant 0 : index
    %c0_31 = arith.constant 0 : index
    %c0_32 = arith.constant 0 : index
    %25 = vector.load %arg3[%c4, %c0_30, %c0_31, %c0_32] : memref<5x2x280x250xbf16, #tpu.memory_space<vmem>>, vector<1x1x280x250xbf16>
    %26 = vector.shape_cast %25 : vector<1x1x280x250xbf16> to vector<280x250xbf16>
    %cst_33 = arith.constant dense<0.000000e+00> : vector<5x250xf32>
    %27 = tpu.matmul %24, %26, %cst_33 {dimension_numbers = #tpu.dot_dimension_numbers<[1], [0], [0], [1], [0, 0, 1, 1], [], []>} : vector<5x280xbf16>, vector<280x250xbf16>, vector<5x250xf32> -> vector<5x250xf32>
    %28 = arith.addf %22, %27 : vector<5x250xf32>
    %c0_34 = arith.constant 0 : index
    %c0_35 = arith.constant 0 : index
    %c0_36 = arith.constant 0 : index
    %29 = vector.load %arg1[%c0_34, %c0_35, %c0_36] : memref<1x7x280xbf16, #tpu.memory_space<vmem>>, vector<1x5x280xbf16>
    %30 = vector.shape_cast %29 : vector<1x5x280xbf16> to vector<5x280xbf16>
    %c0_37 = arith.constant 0 : index
    %c1_38 = arith.constant 1 : index
    %c0_39 = arith.constant 0 : index
    %c0_40 = arith.constant 0 : index
    %31 = vector.load %arg3[%c0_37, %c1_38, %c0_39, %c0_40] : memref<5x2x280x250xbf16, #tpu.memory_space<vmem>>, vector<1x1x280x250xbf16>
    %32 = vector.shape_cast %31 : vector<1x1x280x250xbf16> to vector<280x250xbf16>
    %cst_41 = arith.constant dense<0.000000e+00> : vector<5x250xf32>
    %33 = tpu.matmul %30, %32, %cst_41 {dimension_numbers = #tpu.dot_dimension_numbers<[1], [0], [0], [1], [0, 0, 1, 1], [], []>} : vector<5x280xbf16>, vector<280x250xbf16>, vector<5x250xf32> -> vector<5x250xf32>
    %c0_42 = arith.constant 0 : index
    %c0_43 = arith.constant 0 : index
    %c0_44 = arith.constant 0 : index
    %34 = vector.load %arg2[%c0_42, %c0_43, %c0_44] : memref<1x7x280xbf16, #tpu.memory_space<vmem>>, vector<1x5x280xbf16>
    %35 = vector.shape_cast %34 : vector<1x5x280xbf16> to vector<5x280xbf16>
    %c1_45 = arith.constant 1 : index
    %c1_46 = arith.constant 1 : index
    %c0_47 = arith.constant 0 : index
    %c0_48 = arith.constant 0 : index
    %36 = vector.load %arg3[%c1_45, %c1_46, %c0_47, %c0_48] : memref<5x2x280x250xbf16, #tpu.memory_space<vmem>>, vector<1x1x280x250xbf16>
    %37 = vector.shape_cast %36 : vector<1x1x280x250xbf16> to vector<280x250xbf16>
    %cst_49 = arith.constant dense<0.000000e+00> : vector<5x250xf32>
    %38 = tpu.matmul %35, %37, %cst_49 {dimension_numbers = #tpu.dot_dimension_numbers<[1], [0], [0], [1], [0, 0, 1, 1], [], []>} : vector<5x280xbf16>, vector<280x250xbf16>, vector<5x250xf32> -> vector<5x250xf32>
    %39 = arith.addf %33, %38 : vector<5x250xf32>
    %c0_50 = arith.constant 0 : index
    %c1_51 = arith.constant 1 : index
    %c0_52 = arith.constant 0 : index
    %40 = vector.load %arg1[%c0_50, %c1_51, %c0_52] : memref<1x7x280xbf16, #tpu.memory_space<vmem>>, vector<1x5x280xbf16>
    %41 = vector.shape_cast %40 : vector<1x5x280xbf16> to vector<5x280xbf16>
    %c2_53 = arith.constant 2 : index
    %c1_54 = arith.constant 1 : index
    %c0_55 = arith.constant 0 : index
    %c0_56 = arith.constant 0 : index
    %42 = vector.load %arg3[%c2_53, %c1_54, %c0_55, %c0_56] : memref<5x2x280x250xbf16, #tpu.memory_space<vmem>>, vector<1x1x280x250xbf16>
    %43 = vector.shape_cast %42 : vector<1x1x280x250xbf16> to vector<280x250xbf16>
    %cst_57 = arith.constant dense<0.000000e+00> : vector<5x250xf32>
    %44 = tpu.matmul %41, %43, %cst_57 {dimension_numbers = #tpu.dot_dimension_numbers<[1], [0], [0], [1], [0, 0, 1, 1], [], []>} : vector<5x280xbf16>, vector<280x250xbf16>, vector<5x250xf32> -> vector<5x250xf32>
    %45 = arith.addf %39, %44 : vector<5x250xf32>
    %c0_58 = arith.constant 0 : index
    %c1_59 = arith.constant 1 : index
    %c0_60 = arith.constant 0 : index
    %46 = vector.load %arg2[%c0_58, %c1_59, %c0_60] : memref<1x7x280xbf16, #tpu.memory_space<vmem>>, vector<1x5x280xbf16>
    %47 = vector.shape_cast %46 : vector<1x5x280xbf16> to vector<5x280xbf16>
    %c3_61 = arith.constant 3 : index
    %c1_62 = arith.constant 1 : index
    %c0_63 = arith.constant 0 : index
    %c0_64 = arith.constant 0 : index
    %48 = vector.load %arg3[%c3_61, %c1_62, %c0_63, %c0_64] : memref<5x2x280x250xbf16, #tpu.memory_space<vmem>>, vector<1x1x280x250xbf16>
    %49 = vector.shape_cast %48 : vector<1x1x280x250xbf16> to vector<280x250xbf16>
    %cst_65 = arith.constant dense<0.000000e+00> : vector<5x250xf32>
    %50 = tpu.matmul %47, %49, %cst_65 {dimension_numbers = #tpu.dot_dimension_numbers<[1], [0], [0], [1], [0, 0, 1, 1], [], []>} : vector<5x280xbf16>, vector<280x250xbf16>, vector<5x250xf32> -> vector<5x250xf32>
    %51 = arith.addf %45, %50 : vector<5x250xf32>
    %c0_66 = arith.constant 0 : index
    %c2_67 = arith.constant 2 : index
    %c0_68 = arith.constant 0 : index
    %52 = vector.load %arg1[%c0_66, %c2_67, %c0_68] : memref<1x7x280xbf16, #tpu.memory_space<vmem>>, vector<1x5x280xbf16>
    %53 = vector.shape_cast %52 : vector<1x5x280xbf16> to vector<5x280xbf16>
    %c4_69 = arith.constant 4 : index
    %c1_70 = arith.constant 1 : index
    %c0_71 = arith.constant 0 : index
    %c0_72 = arith.constant 0 : index
    %54 = vector.load %arg3[%c4_69, %c1_70, %c0_71, %c0_72] : memref<5x2x280x250xbf16, #tpu.memory_space<vmem>>, vector<1x1x280x250xbf16>
    %55 = vector.shape_cast %54 : vector<1x1x280x250xbf16> to vector<280x250xbf16>
    %cst_73 = arith.constant dense<0.000000e+00> : vector<5x250xf32>
    %56 = tpu.matmul %53, %55, %cst_73 {dimension_numbers = #tpu.dot_dimension_numbers<[1], [0], [0], [1], [0, 0, 1, 1], [], []>} : vector<5x280xbf16>, vector<280x250xbf16>, vector<5x250xf32> -> vector<5x250xf32>
    %57 = arith.addf %51, %56 : vector<5x250xf32>
    %58 = arith.maximumf %28, %57 : vector<5x250xf32>
    %c0_74 = arith.constant 0 : index
    %c0_75 = arith.constant 0 : index
    %c0_76 = arith.constant 0 : index
    %59 = vector.load %arg2[%c0_74, %c0_75, %c0_76] : memref<1x7x280xbf16, #tpu.memory_space<vmem>>, vector<1x5x280xbf16>
    %60 = vector.shape_cast %59 : vector<1x5x280xbf16> to vector<5x280xbf16>
    %c0_77 = arith.constant 0 : index
    %c0_78 = arith.constant 0 : index
    %c0_79 = arith.constant 0 : index
    %c0_80 = arith.constant 0 : index
    %61 = vector.load %arg3[%c0_77, %c0_78, %c0_79, %c0_80] : memref<5x2x280x250xbf16, #tpu.memory_space<vmem>>, vector<1x1x280x250xbf16>
    %62 = vector.shape_cast %61 : vector<1x1x280x250xbf16> to vector<280x250xbf16>
    %cst_81 = arith.constant dense<0.000000e+00> : vector<5x250xf32>
    %63 = tpu.matmul %60, %62, %cst_81 {dimension_numbers = #tpu.dot_dimension_numbers<[1], [0], [0], [1], [0, 0, 1, 1], [], []>} : vector<5x280xbf16>, vector<280x250xbf16>, vector<5x250xf32> -> vector<5x250xf32>
    %c0_82 = arith.constant 0 : index
    %c1_83 = arith.constant 1 : index
    %c0_84 = arith.constant 0 : index
    %64 = vector.load %arg1[%c0_82, %c1_83, %c0_84] : memref<1x7x280xbf16, #tpu.memory_space<vmem>>, vector<1x5x280xbf16>
    %65 = vector.shape_cast %64 : vector<1x5x280xbf16> to vector<5x280xbf16>
    %c1_85 = arith.constant 1 : index
    %c0_86 = arith.constant 0 : index
    %c0_87 = arith.constant 0 : index
    %c0_88 = arith.constant 0 : index
    %66 = vector.load %arg3[%c1_85, %c0_86, %c0_87, %c0_88] : memref<5x2x280x250xbf16, #tpu.memory_space<vmem>>, vector<1x1x280x250xbf16>
    %67 = vector.shape_cast %66 : vector<1x1x280x250xbf16> to vector<280x250xbf16>
    %cst_89 = arith.constant dense<0.000000e+00> : vector<5x250xf32>
    %68 = tpu.matmul %65, %67, %cst_89 {dimension_numbers = #tpu.dot_dimension_numbers<[1], [0], [0], [1], [0, 0, 1, 1], [], []>} : vector<5x280xbf16>, vector<280x250xbf16>, vector<5x250xf32> -> vector<5x250xf32>
    %69 = arith.addf %63, %68 : vector<5x250xf32>
    %c0_90 = arith.constant 0 : index
    %c1_91 = arith.constant 1 : index
    %c0_92 = arith.constant 0 : index
    %70 = vector.load %arg2[%c0_90, %c1_91, %c0_92] : memref<1x7x280xbf16, #tpu.memory_space<vmem>>, vector<1x5x280xbf16>
    %71 = vector.shape_cast %70 : vector<1x5x280xbf16> to vector<5x280xbf16>
    %c2_93 = arith.constant 2 : index
    %c0_94 = arith.constant 0 : index
    %c0_95 = arith.constant 0 : index
    %c0_96 = arith.constant 0 : index
    %72 = vector.load %arg3[%c2_93, %c0_94, %c0_95, %c0_96] : memref<5x2x280x250xbf16, #tpu.memory_space<vmem>>, vector<1x1x280x250xbf16>
    %73 = vector.shape_cast %72 : vector<1x1x280x250xbf16> to vector<280x250xbf16>
    %cst_97 = arith.constant dense<0.000000e+00> : vector<5x250xf32>
    %74 = tpu.matmul %71, %73, %cst_97 {dimension_numbers = #tpu.dot_dimension_numbers<[1], [0], [0], [1], [0, 0, 1, 1], [], []>} : vector<5x280xbf16>, vector<280x250xbf16>, vector<5x250xf32> -> vector<5x250xf32>
    %75 = arith.addf %69, %74 : vector<5x250xf32>
    %c0_98 = arith.constant 0 : index
    %c2_99 = arith.constant 2 : index
    %c0_100 = arith.constant 0 : index
    %76 = vector.load %arg1[%c0_98, %c2_99, %c0_100] : memref<1x7x280xbf16, #tpu.memory_space<vmem>>, vector<1x5x280xbf16>
    %77 = vector.shape_cast %76 : vector<1x5x280xbf16> to vector<5x280xbf16>
    %c3_101 = arith.constant 3 : index
    %c0_102 = arith.constant 0 : index
    %c0_103 = arith.constant 0 : index
    %c0_104 = arith.constant 0 : index
    %78 = vector.load %arg3[%c3_101, %c0_102, %c0_103, %c0_104] : memref<5x2x280x250xbf16, #tpu.memory_space<vmem>>, vector<1x1x280x250xbf16>
    %79 = vector.shape_cast %78 : vector<1x1x280x250xbf16> to vector<280x250xbf16>
    %cst_105 = arith.constant dense<0.000000e+00> : vector<5x250xf32>
    %80 = tpu.matmul %77, %79, %cst_105 {dimension_numbers = #tpu.dot_dimension_numbers<[1], [0], [0], [1], [0, 0, 1, 1], [], []>} : vector<5x280xbf16>, vector<280x250xbf16>, vector<5x250xf32> -> vector<5x250xf32>
    %81 = arith.addf %75, %80 : vector<5x250xf32>
    %c0_106 = arith.constant 0 : index
    %c2_107 = arith.constant 2 : index
    %c0_108 = arith.constant 0 : index
    %82 = vector.load %arg2[%c0_106, %c2_107, %c0_108] : memref<1x7x280xbf16, #tpu.memory_space<vmem>>, vector<1x5x280xbf16>
    %83 = vector.shape_cast %82 : vector<1x5x280xbf16> to vector<5x280xbf16>
    %c4_109 = arith.constant 4 : index
    %c0_110 = arith.constant 0 : index
    %c0_111 = arith.constant 0 : index
    %c0_112 = arith.constant 0 : index
    %84 = vector.load %arg3[%c4_109, %c0_110, %c0_111, %c0_112] : memref<5x2x280x250xbf16, #tpu.memory_space<vmem>>, vector<1x1x280x250xbf16>
    %85 = vector.shape_cast %84 : vector<1x1x280x250xbf16> to vector<280x250xbf16>
    %cst_113 = arith.constant dense<0.000000e+00> : vector<5x250xf32>
    %86 = tpu.matmul %83, %85, %cst_113 {dimension_numbers = #tpu.dot_dimension_numbers<[1], [0], [0], [1], [0, 0, 1, 1], [], []>} : vector<5x280xbf16>, vector<280x250xbf16>, vector<5x250xf32> -> vector<5x250xf32>
    %87 = arith.addf %81, %86 : vector<5x250xf32>
    %88 = arith.maximumf %58, %87 : vector<5x250xf32>
    %c0_114 = arith.constant 0 : index
    %c0_115 = arith.constant 0 : index
    %c0_116 = arith.constant 0 : index
    %89 = vector.load %arg2[%c0_114, %c0_115, %c0_116] : memref<1x7x280xbf16, #tpu.memory_space<vmem>>, vector<1x5x280xbf16>
    %90 = vector.shape_cast %89 : vector<1x5x280xbf16> to vector<5x280xbf16>
    %c0_117 = arith.constant 0 : index
    %c1_118 = arith.constant 1 : index
    %c0_119 = arith.constant 0 : index
    %c0_120 = arith.constant 0 : index
    %91 = vector.load %arg3[%c0_117, %c1_118, %c0_119, %c0_120] : memref<5x2x280x250xbf16, #tpu.memory_space<vmem>>, vector<1x1x280x250xbf16>
    %92 = vector.shape_cast %91 : vector<1x1x280x250xbf16> to vector<280x250xbf16>
    %cst_121 = arith.constant dense<0.000000e+00> : vector<5x250xf32>
    %93 = tpu.matmul %90, %92, %cst_121 {dimension_numbers = #tpu.dot_dimension_numbers<[1], [0], [0], [1], [0, 0, 1, 1], [], []>} : vector<5x280xbf16>, vector<280x250xbf16>, vector<5x250xf32> -> vector<5x250xf32>
    %c0_122 = arith.constant 0 : index
    %c1_123 = arith.constant 1 : index
    %c0_124 = arith.constant 0 : index
    %94 = vector.load %arg1[%c0_122, %c1_123, %c0_124] : memref<1x7x280xbf16, #tpu.memory_space<vmem>>, vector<1x5x280xbf16>
    %95 = vector.shape_cast %94 : vector<1x5x280xbf16> to vector<5x280xbf16>
    %c1_125 = arith.constant 1 : index
    %c1_126 = arith.constant 1 : index
    %c0_127 = arith.constant 0 : index
    %c0_128 = arith.constant 0 : index
    %96 = vector.load %arg3[%c1_125, %c1_126, %c0_127, %c0_128] : memref<5x2x280x250xbf16, #tpu.memory_space<vmem>>, vector<1x1x280x250xbf16>
    %97 = vector.shape_cast %96 : vector<1x1x280x250xbf16> to vector<280x250xbf16>
    %cst_129 = arith.constant dense<0.000000e+00> : vector<5x250xf32>
    %98 = tpu.matmul %95, %97, %cst_129 {dimension_numbers = #tpu.dot_dimension_numbers<[1], [0], [0], [1], [0, 0, 1, 1], [], []>} : vector<5x280xbf16>, vector<280x250xbf16>, vector<5x250xf32> -> vector<5x250xf32>
    %99 = arith.addf %93, %98 : vector<5x250xf32>
    %c0_130 = arith.constant 0 : index
    %c1_131 = arith.constant 1 : index
    %c0_132 = arith.constant 0 : index
    %100 = vector.load %arg2[%c0_130, %c1_131, %c0_132] : memref<1x7x280xbf16, #tpu.memory_space<vmem>>, vector<1x5x280xbf16>
    %101 = vector.shape_cast %100 : vector<1x5x280xbf16> to vector<5x280xbf16>
    %c2_133 = arith.constant 2 : index
    %c1_134 = arith.constant 1 : index
    %c0_135 = arith.constant 0 : index
    %c0_136 = arith.constant 0 : index
    %102 = vector.load %arg3[%c2_133, %c1_134, %c0_135, %c0_136] : memref<5x2x280x250xbf16, #tpu.memory_space<vmem>>, vector<1x1x280x250xbf16>
    %103 = vector.shape_cast %102 : vector<1x1x280x250xbf16> to vector<280x250xbf16>
    %cst_137 = arith.constant dense<0.000000e+00> : vector<5x250xf32>
    %104 = tpu.matmul %101, %103, %cst_137 {dimension_numbers = #tpu.dot_dimension_numbers<[1], [0], [0], [1], [0, 0, 1, 1], [], []>} : vector<5x280xbf16>, vector<280x250xbf16>, vector<5x250xf32> -> vector<5x250xf32>
    %105 = arith.addf %99, %104 : vector<5x250xf32>
    %c0_138 = arith.constant 0 : index
    %c2_139 = arith.constant 2 : index
    %c0_140 = arith.constant 0 : index
    %106 = vector.load %arg1[%c0_138, %c2_139, %c0_140] : memref<1x7x280xbf16, #tpu.memory_space<vmem>>, vector<1x5x280xbf16>
    %107 = vector.shape_cast %106 : vector<1x5x280xbf16> to vector<5x280xbf16>
    %c3_141 = arith.constant 3 : index
    %c1_142 = arith.constant 1 : index
    %c0_143 = arith.constant 0 : index
    %c0_144 = arith.constant 0 : index
    %108 = vector.load %arg3[%c3_141, %c1_142, %c0_143, %c0_144] : memref<5x2x280x250xbf16, #tpu.memory_space<vmem>>, vector<1x1x280x250xbf16>
    %109 = vector.shape_cast %108 : vector<1x1x280x250xbf16> to vector<280x250xbf16>
    %cst_145 = arith.constant dense<0.000000e+00> : vector<5x250xf32>
    %110 = tpu.matmul %107, %109, %cst_145 {dimension_numbers = #tpu.dot_dimension_numbers<[1], [0], [0], [1], [0, 0, 1, 1], [], []>} : vector<5x280xbf16>, vector<280x250xbf16>, vector<5x250xf32> -> vector<5x250xf32>
    %111 = arith.addf %105, %110 : vector<5x250xf32>
    %c0_146 = arith.constant 0 : index
    %c2_147 = arith.constant 2 : index
    %c0_148 = arith.constant 0 : index
    %112 = vector.load %arg2[%c0_146, %c2_147, %c0_148] : memref<1x7x280xbf16, #tpu.memory_space<vmem>>, vector<1x5x280xbf16>
    %113 = vector.shape_cast %112 : vector<1x5x280xbf16> to vector<5x280xbf16>
    %c4_149 = arith.constant 4 : index
    %c1_150 = arith.constant 1 : index
    %c0_151 = arith.constant 0 : index
    %c0_152 = arith.constant 0 : index
    %114 = vector.load %arg3[%c4_149, %c1_150, %c0_151, %c0_152] : memref<5x2x280x250xbf16, #tpu.memory_space<vmem>>, vector<1x1x280x250xbf16>
    %115 = vector.shape_cast %114 : vector<1x1x280x250xbf16> to vector<280x250xbf16>
    %cst_153 = arith.constant dense<0.000000e+00> : vector<5x250xf32>
    %116 = tpu.matmul %113, %115, %cst_153 {dimension_numbers = #tpu.dot_dimension_numbers<[1], [0], [0], [1], [0, 0, 1, 1], [], []>} : vector<5x280xbf16>, vector<280x250xbf16>, vector<5x250xf32> -> vector<5x250xf32>
    %117 = arith.addf %111, %116 : vector<5x250xf32>
    %118 = arith.maximumf %88, %117 : vector<5x250xf32>
    %c0_154 = arith.constant 0 : index
    %c0_155 = arith.constant 0 : index
    %119 = vector.load %arg4[%c0_154, %c0_155] : memref<1x250xf32, #tpu.memory_space<vmem>>, vector<1x250xf32>
    %120 = vector.broadcast %119 : vector<1x250xf32> to vector<5x250xf32>
    %121 = arith.addf %118, %120 : vector<5x250xf32>
    %cst_156 = arith.constant 0.000000e+00 : f32
    %122 = vector.broadcast %cst_156 : f32 to vector<5x250xf32>
    %123 = arith.maximumf %121, %122 : vector<5x250xf32>
    %124 = arith.truncf %123 : vector<5x250xf32> to vector<5x250xbf16>
    %c0_157 = arith.constant 0 : index
    %c0_158 = arith.constant 0 : index
    %c0_159 = arith.constant 0 : index
    %125 = vector.load %arg5[%c0_157, %c0_158, %c0_159] : memref<1x5x250xbf16, #tpu.memory_space<vmem>>, vector<1x5x250xbf16>
    %126 = vector.shape_cast %125 : vector<1x5x250xbf16> to vector<5x250xbf16>
    %127 = vector.shape_cast %124 : vector<5x250xbf16> to vector<1x5x250xbf16>
    tpu.vector_store %arg5[%c0_157, %c0_158, %c0_159], %127 {strides = array<i32>} : memref<1x5x250xbf16, #tpu.memory_space<vmem>>, vector<1x5x250xbf16>,
    return
  }
  func.func @transform_0(%arg0: i32) -> (i32, i32, i32) {
    %c0_i32 = arith.constant 0 : i32
    %c0_i32_0 = arith.constant 0 : i32
    %c0_i32_1 = arith.constant 0 : i32
    return %arg0, %c0_i32, %c0_i32_0 : i32, i32, i32
  }
  func.func @transform_1(%arg0: i32) -> (i32, i32, i32) {
    %c0_i32 = arith.constant 0 : i32
    %c0_i32_0 = arith.constant 0 : i32
    %c0_i32_1 = arith.constant 0 : i32
    return %arg0, %c0_i32, %c0_i32_0 : i32, i32, i32
  }
  func.func @transform_2(%arg0: i32) -> (i32, i32, i32, i32) {
    %c0_i32 = arith.constant 0 : i32
    %c0_i32_0 = arith.constant 0 : i32
    %c0_i32_1 = arith.constant 0 : i32
    %c0_i32_2 = arith.constant 0 : i32
    %c0_i32_3 = arith.constant 0 : i32
    return %c0_i32, %c0_i32_0, %c0_i32_1, %c0_i32_2 : i32, i32, i32, i32
  }
  func.func @transform_3(%arg0: i32) -> (i32, i32) {
    %c0_i32 = arith.constant 0 : i32
    %c0_i32_0 = arith.constant 0 : i32
    %c0_i32_1 = arith.constant 0 : i32
    return %c0_i32, %c0_i32_0 : i32, i32
  }
  func.func @transform_4(%arg0: i32) -> (i32, i32, i32) {
    %c0_i32 = arith.constant 0 : i32
    %c0_i32_0 = arith.constant 0 : i32
    %c0_i32_1 = arith.constant 0 : i32
    return %arg0, %c0_i32, %c0_i32_0 : i32, i32, i32
  }
}

module attributes {stable_mosaic.version = 11 : i64} {
  func.func @_matmul_bias_relu_kernel(%arg0: i32, %arg1: memref<4x1250xbf16, #tpu.memory_space<vmem>>, %arg2: memref<1250x500xbf16, #tpu.memory_space<vmem>>, %arg3: memref<1x500xf32, #tpu.memory_space<vmem>>, %arg4: memref<4x500xf32, #tpu.memory_space<vmem>>) attributes {dimension_semantics = [#tpu.dimension_semantics<parallel>], iteration_bounds = array<i64: 1>, scalar_prefetch = 0 : i64, scratch_operands = 0 : i64, tpu.core_type = #tpu.core_type<tc>, window_params = [{transform_indices = @transform_0, window_bounds = array<i64: 4, 1250>}, {pipeline_mode = #tpu.pipeline_mode<synchronous>, transform_indices = @transform_1, window_bounds = array<i64: 1250, 500>}, {pipeline_mode = #tpu.pipeline_mode<synchronous>, transform_indices = @transform_2, window_bounds = array<i64: 1, 500>}, {transform_indices = @transform_3, window_bounds = array<i64: 4, 500>}]} {
    %c0 = arith.constant 0 : index
    %c0_0 = arith.constant 0 : index
    %0 = vector.load %arg1[%c0, %c0_0] : memref<4x1250xbf16, #tpu.memory_space<vmem>>, vector<4x1250xbf16>
    %c0_1 = arith.constant 0 : index
    %c0_2 = arith.constant 0 : index
    %1 = vector.load %arg2[%c0_1, %c0_2] : memref<1250x500xbf16, #tpu.memory_space<vmem>>, vector<1250x500xbf16>
    %cst = arith.constant dense<0.000000e+00> : vector<4x500xf32>
    %2 = tpu.matmul %0, %1, %cst {dimension_numbers = #tpu.dot_dimension_numbers<[1], [0], [0], [1], [0, 0, 1, 1], [], []>} : vector<4x1250xbf16>, vector<1250x500xbf16>, vector<4x500xf32> -> vector<4x500xf32>
    %c0_3 = arith.constant 0 : index
    %c0_4 = arith.constant 0 : index
    %3 = vector.load %arg3[%c0_3, %c0_4] : memref<1x500xf32, #tpu.memory_space<vmem>>, vector<1x500xf32>
    %4 = vector.broadcast %3 : vector<1x500xf32> to vector<4x500xf32>
    %5 = arith.addf %2, %4 : vector<4x500xf32>
    %cst_5 = arith.constant 0.000000e+00 : f32
    %6 = vector.broadcast %cst_5 : f32 to vector<4x500xf32>
    %7 = arith.maximumf %5, %6 : vector<4x500xf32>
    %c0_6 = arith.constant 0 : index
    %c0_7 = arith.constant 0 : index
    %8 = vector.load %arg4[%c0_6, %c0_7] : memref<4x500xf32, #tpu.memory_space<vmem>>, vector<4x500xf32>
    tpu.vector_store %arg4[%c0_6, %c0_7], %7 {strides = array<i32>} : memref<4x500xf32, #tpu.memory_space<vmem>>, vector<4x500xf32>,
    return
  }
  func.func @transform_0(%arg0: i32) -> (i32, i32) {
    %c0_i32 = arith.constant 0 : i32
    %c0_i32_0 = arith.constant 0 : i32
    return %arg0, %c0_i32 : i32, i32
  }
  func.func @transform_1(%arg0: i32) -> (i32, i32) {
    %c0_i32 = arith.constant 0 : i32
    %c0_i32_0 = arith.constant 0 : i32
    %c0_i32_1 = arith.constant 0 : i32
    return %c0_i32, %c0_i32_0 : i32, i32
  }
  func.func @transform_2(%arg0: i32) -> (i32, i32) {
    %c0_i32 = arith.constant 0 : i32
    %c0_i32_0 = arith.constant 0 : i32
    %c0_i32_1 = arith.constant 0 : i32
    return %c0_i32, %c0_i32_0 : i32, i32
  }
  func.func @transform_3(%arg0: i32) -> (i32, i32) {
    %c0_i32 = arith.constant 0 : i32
    %c0_i32_0 = arith.constant 0 : i32
    return %arg0, %c0_i32 : i32, i32
  }
}

</mosaic_0001>

<llo_original>
// kernel: lenet_forward.3
$region0: #{lenet_forward.3}
  #allocation0 [shape = 'u32[]', space=smem, size = 0x4, offset = 0x4, fixed_abs, tag = 'smem constant byte address 0x4 - core index']
  #allocation1 [shape = 'u32[144,128]{1,0:T(1,128)}', space=vmem, size = 0x12000, scoped, tag = 'internal scratch']
  %s0 = inlined_call_operand.vmem [shape: bf16[4,16,32], index: 0, kind: input, shape index: {}]
  %s1 = inlined_call_operand.vmem [shape: bf16[4,16,32], index: 1, kind: input, shape index: {}]
  %s2 = inlined_call_operand.hbm [shape: bf16[5,2,32,280], index: 2, kind: input, shape index: {}]
  %s3 = inlined_call_operand.hbm [shape: f32[1,280], index: 3, kind: input, shape index: {}]
  %s4 = inlined_call_operand.vmem [shape: bf16[4,14,280], index: 4, kind: output, shape index: {}]
  %s5 = sld [smem:[#allocation0]]
  $region57: #{lenet_forward.3} parent=0
    _
  %s7 = ssub.s32 1, %s5
  %s8 = scalar_select 0, %s7, %s5
  $region1: #{lenet_forward.3} parent=0
    #allocation2 [shape = 'u8[245760]{0}', space=vmem, size = 0x3c000, scoped, tag = 'input window, operand 2, single buffered']
    #allocation3 [shape = 's32[2]{0}', space=sflag, size = 0x8, scoped, tag = 'scoped memory for lenet_forward.3']
    #allocation4 [shape = 'u8[1536]{0}', space=vmem, size = 0x800, scoped, tag = 'input window, operand 3, single buffered']
    #allocation5 [shape = 's32[1]{0}', space=sflag, size = 0x4, scoped, tag = 'scoped memory for lenet_forward.3']
    %9 = vsyncpa [#allocation3], 0
    %10 = vsyncpa [#allocation5], 0
    loop: start=0, step=1, limit=6
    $region2: #{lenet_forward.3} parent=1 // loop_pre_header
      _
    $region3: #{lenet_forward.3} parent=1 // loop_header
      %s12 = sphi 0, %s16
      %p13 = scmp.ge.s32.totalorder %s12, 6
      %s22 = sphi 0, %s24
      %s25 = sphi 0, %s22
      %s26 = sphi 0, %s25
      %s42 = sphi 0, %s26
      %s48 = sphi 0, %s50
      %s51 = sphi 0, %s48
      %s52 = sphi 0, %s51
      %s68 = sphi 0, %s52
      %s72 = sphi 0, %s72
      %s74 = sphi 0, %s72
      %s75 = sphi 0, %s74
      %s89 = sphi 0, %s75
      %s93 = sphi 0, %s93
      %s95 = sphi 0, %s93
      %s96 = sphi 0, %s95
      %s110 = sphi 0, %s96
      %s116 = sphi 0, %s118
      %s119 = sphi 0, %s116
      %s120 = sphi 0, %s119
      %s136 = sphi 0, %s120
    $region4: #{lenet_forward.3} parent=1 // loop_header_branch
      %15 = sbr.rel (%p13) target = $region8
    $region5: #{lenet_forward.3} parent=1 // loop_body
      %s17 = ssub.s32 %s12, 1
      %s18 = ssub.s32 %s12, 2
      %s19 = sadd.s32 %s12, 1
      %s20 = ssub.s32 %s12, %s19
      %p21 = scmp.eq.s32.totalorder %s20, 0
      %s23 = sadd.s32 %s22, 1
      %s24 = scalar_select %p21, %s22, %s23
      %p27 = pneg %p21
      %p28 = scmp.eq.s32.totalorder %s12, 3
      %p29 = por %p27, %p28
      %p30 = scmp.ne.s32.totalorder %s22, %s25
      %p31 = scmp.eq.s32.totalorder %s12, 0
      %p32 = por %p30, %p31
      %p33 = scmp.ne.s32.totalorder %s22, %s25
      %p34 = scmp.eq.s32.totalorder %s17, 3
      %p35 = por %p33, %p34
      %p36 = scmp.ne.s32.totalorder %s25, %s26
      %p37 = scmp.eq.s32.totalorder %s17, 0
      %p38 = por %p36, %p37
      %p39 = scmp.ne.s32.totalorder %s25, %s26
      %p40 = scmp.eq.s32.totalorder %s18, 3
      %p41 = por %p39, %p40
      %p43 = scmp.ne.s32.totalorder %s26, %s42
      %p44 = scmp.eq.s32.totalorder %s18, 0
      %p45 = por %p43, %p44
      %s46 = ssub.s32 %s12, %s19
      %p47 = scmp.eq.s32.totalorder %s46, 0
      %s49 = sadd.s32 %s48, 1
      %s50 = scalar_select %p47, %s48, %s49
      %p53 = pneg %p47
      %p54 = scmp.eq.s32.totalorder %s12, 3
      %p55 = por %p53, %p54
      %p56 = scmp.ne.s32.totalorder %s48, %s51
      %p57 = scmp.eq.s32.totalorder %s12, 0
      %p58 = por %p56, %p57
      %p59 = scmp.ne.s32.totalorder %s48, %s51
      %p60 = scmp.eq.s32.totalorder %s17, 3
      %p61 = por %p59, %p60
      %p62 = scmp.ne.s32.totalorder %s51, %s52
      %p63 = scmp.eq.s32.totalorder %s17, 0
      %p64 = por %p62, %p63
      %p65 = scmp.ne.s32.totalorder %s51, %s52
      %p66 = scmp.eq.s32.totalorder %s18, 3
      %p67 = por %p65, %p66
      %p69 = scmp.ne.s32.totalorder %s52, %s68
      %p70 = scmp.eq.s32.totalorder %s18, 0
      %p71 = por %p69, %p70
      %s73 = sadd.s32 %s72, 1
      %p76 = scmp.eq.s32.totalorder %s12, 3
      %p77 = scmp.ne.s32.totalorder %s72, %s74
      %p78 = scmp.eq.s32.totalorder %s12, 0
      %p79 = por %p77, %p78
      %p80 = scmp.ne.s32.totalorder %s72, %s74
      %p81 = scmp.eq.s32.totalorder %s17, 3
      %p82 = por %p80, %p81
      %p83 = scmp.ne.s32.totalorder %s74, %s75
      %p84 = scmp.eq.s32.totalorder %s17, 0
      %p85 = por %p83, %p84
      %p86 = scmp.ne.s32.totalorder %s74, %s75
      %p87 = scmp.eq.s32.totalorder %s18, 3
      %p88 = por %p86, %p87
      %p90 = scmp.ne.s32.totalorder %s75, %s89
      %p91 = scmp.eq.s32.totalorder %s18, 0
      %p92 = por %p90, %p91
      %s94 = sadd.s32 %s93, 1
      %p97 = scmp.eq.s32.totalorder %s12, 3
      %p98 = scmp.ne.s32.totalorder %s93, %s95
      %p99 = scmp.eq.s32.totalorder %s12, 0
      %p100 = por %p98, %p99
      %p101 = scmp.ne.s32.totalorder %s93, %s95
      %p102 = scmp.eq.s32.totalorder %s17, 3
      %p103 = por %p101, %p102
      %p104 = scmp.ne.s32.totalorder %s95, %s96
      %p105 = scmp.eq.s32.totalorder %s17, 0
      %p106 = por %p104, %p105
      %p107 = scmp.ne.s32.totalorder %s95, %s96
      %p108 = scmp.eq.s32.totalorder %s18, 3
      %p109 = por %p107, %p108
      %p111 = scmp.ne.s32.totalorder %s96, %s110
      %p112 = scmp.eq.s32.totalorder %s18, 0
      %p113 = por %p111, %p112
      %s114 = ssub.s32 %s12, %s19
      %p115 = scmp.eq.s32.totalorder %s114, 0
      %s117 = sadd.s32 %s116, 1
      %s118 = scalar_select %p115, %s116, %s117
      %p121 = pneg %p115
      %p122 = scmp.eq.s32.totalorder %s12, 3
      %p123 = por %p121, %p122
      %p124 = scmp.ne.s32.totalorder %s116, %s119
      %p125 = scmp.eq.s32.totalorder %s12, 0
      %p126 = por %p124, %p125
      %p127 = scmp.ne.s32.totalorder %s116, %s119
      %p128 = scmp.eq.s32.totalorder %s17, 3
      %p129 = por %p127, %p128
      %p130 = scmp.ne.s32.totalorder %s119, %s120
      %p131 = scmp.eq.s32.totalorder %s17, 0
      %p132 = por %p130, %p131
      %p133 = scmp.ne.s32.totalorder %s119, %s120
      %p134 = scmp.eq.s32.totalorder %s18, 3
      %p135 = por %p133, %p134
      %p137 = scmp.ne.s32.totalorder %s120, %s136
      %p138 = scmp.eq.s32.totalorder %s18, 0
      %p139 = por %p137, %p138
      %p140 = scmp.le.s32.totalorder 1, %s12
      %p141 = scmp.lt.s32.totalorder %s12, 5
      %p142 = pnand %p140, %p141
      %p143 = pneg %p142
      // Predicated region
      $region9: #{lenet_forward.3} parent=5 // pred_check
        _
      $region10: #{lenet_forward.3} parent=5 // pred_check_branch
        %145 = sbr.rel (%p142) target = $region12
      $region11: #{lenet_forward.3} parent=5 // pred_region
        %s146 = ssub.s32 %s12, 1
        // Predicated region
        $region13: #{lenet_forward.3} parent=11 // pred_check
          %p147 = pneg %p85
        $region14: #{lenet_forward.3} parent=11 // pred_check_branch
          %149 = sbr.rel (%p147) target = $region16
        $region15: #{lenet_forward.3} parent=11 // pred_region
          %s151 = ssub.s32 7680, 7680
          %152 = vsyncadd [#allocation3], %s151
          %s153 = sshll.u32 [#allocation2], 4
          %s154 = int_to_ptr.vmem [resolvable:$true] %s153
          %159 = dma.hbm_to_vmem [thread:$0]  %s2, 7680, %s154, [#allocation3], 192, 192, 12
        $region16: #{lenet_forward.3} parent=11 // pred_fallthru
          _
        // Predicated region
        $region17: #{lenet_forward.3} parent=11 // pred_check
          %p160 = pneg %p106
        $region18: #{lenet_forward.3} parent=11 // pred_check_branch
          %162 = sbr.rel (%p160) target = $region20
        $region19: #{lenet_forward.3} parent=11 // pred_region
          %s164 = ssub.s32 48, 48
          %165 = vsyncadd [#allocation5], %s164
          %s167 = sshll.u32 [#allocation4], 4
          %s168 = int_to_ptr.vmem [resolvable:$true] %s167
          %170 = dma.hbm_to_vmem [thread:$0]  %s3, 48, %s168, [#allocation5]
        $region20: #{lenet_forward.3} parent=11 // pred_fallthru
          _
      $region12: #{lenet_forward.3} parent=5 // pred_fallthru
        _
      %p171 = scmp.lt.s32.totalorder %s12, 4
      // Predicated region
      $region21: #{lenet_forward.3} parent=5 // pred_check
        %p172 = pneg %p171
      $region22: #{lenet_forward.3} parent=5 // pred_check_branch
        %174 = sbr.rel (%p172) target = $region24
      $region23: #{lenet_forward.3} parent=5 // pred_region
        // Predicated region
        $region25: #{lenet_forward.3} parent=23 // pred_check
          %p175 = pneg %p32
        $region26: #{lenet_forward.3} parent=23 // pred_check_branch
          %177 = sbr.rel (%p175) target = $region28
        $region27: #{lenet_forward.3} parent=23 // pred_region
          %p178 = scmp.lt.s32.totalorder %s12, 3
          %s179 = scalar_select %p178, %s12, 3
          %s180 = smul.addr %s179, 2
          %s181 = smul.addr %s180, 4
          %s182 = scalar_lea.vmem %s0, %s181
        $region28: #{lenet_forward.3} parent=23 // pred_fallthru
          _
        // Predicated region
        $region29: #{lenet_forward.3} parent=23 // pred_check
          %p183 = pneg %p58
        $region30: #{lenet_forward.3} parent=23 // pred_check_branch
          %185 = sbr.rel (%p183) target = $region32
        $region31: #{lenet_forward.3} parent=23 // pred_region
          %p186 = scmp.lt.s32.totalorder %s12, 3
          %s187 = scalar_select %p186, %s12, 3
          %s188 = smul.addr %s187, 2
          %s189 = smul.addr %s188, 4
          %s190 = scalar_lea.vmem %s1, %s189
        $region32: #{lenet_forward.3} parent=23 // pred_fallthru
          _
      $region24: #{lenet_forward.3} parent=5 // pred_fallthru
        _
      %p191 = scmp.le.s32.totalorder 1, %s12
      %p192 = scmp.lt.s32.totalorder %s12, 5
      %p193 = pnand %p191, %p192
      %p194 = pneg %p193
      // Predicated region
      $region33: #{lenet_forward.3} parent=5 // pred_check
        _
      $region34: #{lenet_forward.3} parent=5 // pred_check_branch
        %196 = sbr.rel (%p193) target = $region36
      $region35: #{lenet_forward.3} parent=5 // pred_region
        %s197 = ssub.s32 %s12, 1
        // Predicated region
        $region37: #{lenet_forward.3} parent=35 // pred_check
          %p198 = pneg %p85
        $region38: #{lenet_forward.3} parent=35 // pred_check_branch
          %200 = sbr.rel (%p198) target = $region40
        $region39: #{lenet_forward.3} parent=35 // pred_region
          %201 = dma.done [#allocation3], 7680
        $region40: #{lenet_forward.3} parent=35 // pred_fallthru
          _
        // Predicated region
        $region41: #{lenet_forward.3} parent=35 // pred_check
          %p202 = pneg %p106
        $region42: #{lenet_forward.3} parent=35 // pred_check_branch
          %204 = sbr.rel (%p202) target = $region44
        $region43: #{lenet_forward.3} parent=35 // pred_region
          %205 = dma.done [#allocation5], 48
        $region44: #{lenet_forward.3} parent=35 // pred_fallthru
          _
        %p206 = scmp.lt.s32.totalorder %s17, 3
        %s207 = scalar_select %p206, %s17, 3
        %s208 = smul.addr %s207, 2
        %s209 = smul.addr %s208, 4
        %s210 = scalar_lea.vmem %s0, %s209
        %p211 = pneg %p38
        %p212 = pneg %p35
        %p213 = scmp.lt.s32.totalorder %s17, 3
        %s214 = scalar_select %p213, %s17, 3
        %s215 = smul.addr %s214, 2
        %s216 = smul.addr %s215, 4
        %s217 = scalar_lea.vmem %s1, %s216
        %p218 = pneg %p64
        %p219 = pneg %p61
        %p220 = pneg %p85
        %p221 = pneg %p82
        %p222 = pneg %p106
        %p223 = pneg %p103
        %p224 = pneg %p132
        %p225 = pneg %p129
        %p226 = scmp.lt.s32.totalorder %s17, 3
        %s227 = scalar_select %p226, %s17, 3
        %s228 = smul.addr %s227, 6
        %s229 = smul.addr %s228, 4
        %s230 = scalar_lea.vmem %s4, %s229
        %p231 = scmp.lt.s32.totalorder %s17, 3
        %s232 = scalar_select %p231, %s17, 3
        %s233 = smul.addr %s232, 2
        %s234 = smul.addr %s233, 4
        %s235 = scalar_lea.vmem %s0, %s234
        %p236 = scmp.lt.s32.totalorder %s17, 3
        %s237 = scalar_select %p236, %s17, 3
        %s238 = smul.addr %s237, 2
        %s239 = smul.addr %s238, 4
        %s240 = scalar_lea.vmem %s1, %s239
        %p241 = scmp.lt.s32.totalorder %s17, 3
        %s242 = scalar_select %p241, %s17, 3
        %s243 = smul.addr %s242, 6
        %s244 = smul.addr %s243, 4
        %s245 = scalar_lea.vmem %s4, %s244
        %v247 = vld [vmem:[%s235] sm:$0xf]
        %v248 = vld [vmem:[%s235 + $0x4] sm:$0x7]
        %v249 = vld [vmem:[#allocation2] sm:$0xff]
        %v250 = vld [vmem:[#allocation2 + $0x8] sm:$0xf]
        %v251 = vld [vmem:[#allocation2 + $0xc] sm:$0xff]
        %v252 = vld [vmem:[#allocation2 + $0x14] sm:$0xf]
        %v253 = vld [vmem:[#allocation2 + $0x18] sm:$0xff]
        %v254 = vld [vmem:[#allocation2 + $0x20] sm:$0xf]
        %v255 = vld [vmem:[#allocation2 + $0x24] sm:$0xff]
        %v256 = vld [vmem:[#allocation2 + $0x2c] sm:$0xf]
        %v257 = vld [vmem:[%s240] sm:$0xf]
        %v258 = vld [vmem:[%s240 + $0x4] sm:$0x7]
        %s259 = scalar_lea.vmem [#allocation2], 96
        %v260 = vld [vmem:[%s259] sm:$0xff]
        %v261 = vld [vmem:[%s259 + $0x8] sm:$0xf]
        %v262 = vld [vmem:[%s259 + $0xc] sm:$0xff]
        %v263 = vld [vmem:[%s259 + $0x14] sm:$0xf]
        %v264 = vld [vmem:[%s259 + $0x18] sm:$0xff]
        %v265 = vld [vmem:[%s259 + $0x20] sm:$0xf]
        %v266 = vld [vmem:[%s259 + $0x24] sm:$0xff]
        %v267 = vld [vmem:[%s259 + $0x2c] sm:$0xf]
        %v270 = vunpack.c.l.b16 %v257
        %v271 = vunpack.c.l.b16 %v258
        %v272 = vpack.c.b16 %v271, %v270
        %v281 = vunpack.c.l.b16 %v260
        %v282 = vunpack.c.h.b16 %v260
        %v283 = vunpack.c.l.b16 %v261
        %v284 = vunpack.c.l.b16 %v262
        %v285 = vunpack.c.h.b16 %v262
        %v286 = vunpack.c.l.b16 %v263
        %v287 = vunpack.c.l.b16 %v264
        %v288 = vunpack.c.h.b16 %v264
        %v289 = vunpack.c.l.b16 %v265
        %v290 = vunpack.c.l.b16 %v266
        %v291 = vunpack.c.h.b16 %v266
        %v292 = vunpack.c.l.b16 %v267
        %v293 = vpack.c.b16 %v284, %v281
        %v294 = vpack.c.b16 %v285, %v282
        %v295 = vpack.c.b16 %v286, %v283
        %v296 = vpack.c.b16 %v290, %v287
        %v297 = vpack.c.b16 %v291, %v288
        %v298 = vpack.c.b16 %v292, %v289
        %vm305 = vcmask 261120
        %v307 = vsel %vm305, %v272, 0
        %309 = vmatprep.subr.bf16.mxu0 %v294
        %310 = vmatpush1.bf16.msra.mxu0 %v293
        %311 = vmatprep.subr.bf16.mxu0 %v297
        %312 = vmatpush1.bf16.msra.mxu0 %v296
        %313 = vmatprep.subr.bf16.mxu0 0
        %314 = vmatpush1.bf16.msra.mxu0 0
        %315 = vmatprep.subr.bf16.mxu0 0
        %316 = vmatpush1.bf16.msra.mxu0 0
        %317 = vmatprep.subr.bf16.mxu0 0
        %318 = vmatpush1.bf16.msra.mxu0 0
        %319 = vmatprep.subr.bf16.mxu0 0
        %320 = vmatpush1.bf16.msra.mxu0 0
        %321 = vmatprep.subr.bf16.mxu0 0
        %322 = vmatpush1.bf16.msra.mxu0 0
        %323 = vmatprep.subr.bf16.mxu0 0
        %324 = vmatpush1.bf16.msra.mxu0 0
        %325 = vmatprep.subr.bf16.mxu0 0
        %326 = vmatpush1.bf16.msra.mxu0 0
        %327 = vmatprep.subr.bf16.mxu0 0
        %328 = vmatpush1.bf16.msra.mxu0 0
        %329 = vmatprep.subr.bf16.mxu0 0
        %330 = vmatpush1.bf16.msra.mxu0 0
        %331 = vmatprep.subr.bf16.mxu0 0
        %332 = vmatpush1.bf16.msra.mxu0 0
        %333 = vmatprep.subr.bf16.mxu0 0
        %334 = vmatpush1.bf16.msra.mxu0 0
        %335 = vmatprep.subr.bf16.mxu0 0
        %336 = vmatpush1.bf16.msra.mxu0 0
        %337 = vmatprep.subr.bf16.mxu0 0
        %338 = vmatpush1.bf16.msra.mxu0 0
        %339 = vmatprep.subr.bf16.mxu0 0
        %340 = vmatpush1.bf16.msra.mxu0 0
        %341 = vmatprep.mubr.bf16.mxu0 0
        %342 = vmatmul.mubr.bf16.gmra.mrb[0].mxu0 %v307
        %v343 = vpop.f32.mrb[0].mxu0
        %v344 = vadd.f32 0.0, %v343
        %v345 = vpop.f32.mrb[0].mxu0
        %v346 = vadd.f32 0.0, %v345
        %v347 = vpop.f32.mrb[0].mxu0
        %v348 = vadd.f32 0.0, %v347
        %v349 = vpop.f32.mrb[0].mxu0
        %v350 = vadd.f32 0.0, %v349
        %351 = vdwg.mxu0
        %352 = vmatprep.subr.bf16.mxu0 0
        %353 = vmatpush1.bf16.msra.mxu0 %v295
        %354 = vmatprep.subr.bf16.mxu0 0
        %355 = vmatpush1.bf16.msra.mxu0 %v298
        %356 = vmatprep.subr.bf16.mxu0 0
        %357 = vmatpush1.bf16.msra.mxu0 0
        %358 = vmatprep.subr.bf16.mxu0 0
        %359 = vmatpush1.bf16.msra.mxu0 0
        %360 = vmatprep.subr.bf16.mxu0 0
        %361 = vmatpush1.bf16.msra.mxu0 0
        %362 = vmatprep.subr.bf16.mxu0 0
        %363 = vmatpush1.bf16.msra.mxu0 0
        %364 = vmatprep.subr.bf16.mxu0 0
        %365 = vmatpush1.bf16.msra.mxu0 0
        %366 = vmatprep.subr.bf16.mxu0 0
        %367 = vmatpush1.bf16.msra.mxu0 0
        %368 = vmatprep.subr.bf16.mxu0 0
        %369 = vmatpush1.bf16.msra.mxu0 0
        %370 = vmatprep.subr.bf16.mxu0 0
        %371 = vmatpush1.bf16.msra.mxu0 0
        %372 = vmatprep.subr.bf16.mxu0 0
        %373 = vmatpush1.bf16.msra.mxu0 0
        %374 = vmatprep.subr.bf16.mxu0 0
        %375 = vmatpush1.bf16.msra.mxu0 0
        %376 = vmatprep.subr.bf16.mxu0 0
        %377 = vmatpush1.bf16.msra.mxu0 0
        %378 = vmatprep.subr.bf16.mxu0 0
        %379 = vmatpush1.bf16.msra.mxu0 0
        %380 = vmatprep.subr.bf16.mxu0 0
        %381 = vmatpush1.bf16.msra.mxu0 0
        %382 = vmatprep.subr.bf16.mxu0 0
        %383 = vmatpush1.bf16.msra.mxu0 0
        %384 = vmatprep.mubr.bf16.mxu0 0
        %385 = vmatmul.mubr.bf16.gmra.mrb[0].mxu0 %v307
        %v386 = vpop.f32.mrb[0].mxu0
        %v387 = vadd.f32 0.0, %v386
        %v388 = vpop.f32.mrb[0].mxu0
        %v389 = vpop.f32.mrb[0].mxu0
        %v390 = vadd.f32 0.0, %v389
        %v391 = vpop.f32.mrb[0].mxu0
        %392 = vdwg.mxu0
        %v395 = vunpack.c.l.b16 %v247
        %v396 = vunpack.c.l.b16 %v248
        %v397 = vpack.c.b16 %v396, %v395
        %v406 = vunpack.c.l.b16 %v249
        %v407 = vunpack.c.h.b16 %v249
        %v408 = vunpack.c.l.b16 %v250
        %v409 = vunpack.c.l.b16 %v251
        %v410 = vunpack.c.h.b16 %v251
        %v411 = vunpack.c.l.b16 %v252
        %v412 = vunpack.c.l.b16 %v253
        %v413 = vunpack.c.h.b16 %v253
        %v414 = vunpack.c.l.b16 %v254
        %v415 = vunpack.c.l.b16 %v255
        %v416 = vunpack.c.h.b16 %v255
        %v417 = vunpack.c.l.b16 %v256
        %v418 = vpack.c.b16 %v409, %v406
        %v419 = vpack.c.b16 %v410, %v407
        %v420 = vpack.c.b16 %v411, %v408
        %v421 = vpack.c.b16 %v415, %v412
        %v422 = vpack.c.b16 %v416, %v413
        %v423 = vpack.c.b16 %v417, %v414
        %v431 = vsel %vm305, %v397, 0
        %433 = vmatprep.subr.bf16.mxu0 %v419
        %434 = vmatpush1.bf16.msra.mxu0 %v418
        %435 = vmatprep.subr.bf16.mxu0 %v422
        %436 = vmatpush1.bf16.msra.mxu0 %v421
        %437 = vmatprep.subr.bf16.mxu0 0
        %438 = vmatpush1.bf16.msra.mxu0 0
        %439 = vmatprep.subr.bf16.mxu0 0
        %440 = vmatpush1.bf16.msra.mxu0 0
        %441 = vmatprep.subr.bf16.mxu0 0
        %442 = vmatpush1.bf16.msra.mxu0 0
        %443 = vmatprep.subr.bf16.mxu0 0
        %444 = vmatpush1.bf16.msra.mxu0 0
        %445 = vmatprep.subr.bf16.mxu0 0
        %446 = vmatpush1.bf16.msra.mxu0 0
        %447 = vmatprep.subr.bf16.mxu0 0
        %448 = vmatpush1.bf16.msra.mxu0 0
        %449 = vmatprep.subr.bf16.mxu0 0
        %450 = vmatpush1.bf16.msra.mxu0 0
        %451 = vmatprep.subr.bf16.mxu0 0
        %452 = vmatpush1.bf16.msra.mxu0 0
        %453 = vmatprep.subr.bf16.mxu0 0
        %454 = vmatpush1.bf16.msra.mxu0 0
        %455 = vmatprep.subr.bf16.mxu0 0
        %456 = vmatpush1.bf16.msra.mxu0 0
        %457 = vmatprep.subr.bf16.mxu0 0
        %458 = vmatpush1.bf16.msra.mxu0 0
        %459 = vmatprep.subr.bf16.mxu0 0
        %460 = vmatpush1.bf16.msra.mxu0 0
        %461 = vmatprep.subr.bf16.mxu0 0
        %462 = vmatpush1.bf16.msra.mxu0 0
        %463 = vmatprep.subr.bf16.mxu0 0
        %464 = vmatpush1.bf16.msra.mxu0 0
        %465 = vmatprep.mubr.bf16.mxu0 0
        %466 = vmatmul.mubr.bf16.gmra.mrb[0].mxu0 %v431
        %v467 = vpop.f32.mrb[0].mxu0
        %v468 = vadd.f32 %v344, %v467
        %v469 = vpop.f32.mrb[0].mxu0
        %v470 = vadd.f32 %v346, %v469
        %v471 = vpop.f32.mrb[0].mxu0
        %v472 = vadd.f32 %v348, %v471
        %v473 = vpop.f32.mrb[0].mxu0
        %v474 = vadd.f32 %v350, %v473
        %475 = vdwg.mxu0
        %476 = vmatprep.subr.bf16.mxu0 0
        %477 = vmatpush1.bf16.msra.mxu0 %v420
        %478 = vmatprep.subr.bf16.mxu0 0
        %479 = vmatpush1.bf16.msra.mxu0 %v423
        %480 = vmatprep.subr.bf16.mxu0 0
        %481 = vmatpush1.bf16.msra.mxu0 0
        %482 = vmatprep.subr.bf16.mxu0 0
        %483 = vmatpush1.bf16.msra.mxu0 0
        %484 = vmatprep.subr.bf16.mxu0 0
        %485 = vmatpush1.bf16.msra.mxu0 0
        %486 = vmatprep.subr.bf16.mxu0 0
        %487 = vmatpush1.bf16.msra.mxu0 0
        %488 = vmatprep.subr.bf16.mxu0 0
        %489 = vmatpush1.bf16.msra.mxu0 0
        %490 = vmatprep.subr.bf16.mxu0 0
        %491 = vmatpush1.bf16.msra.mxu0 0
        %492 = vmatprep.subr.bf16.mxu0 0
        %493 = vmatpush1.bf16.msra.mxu0 0
        %494 = vmatprep.subr.bf16.mxu0 0
        %495 = vmatpush1.bf16.msra.mxu0 0
        %496 = vmatprep.subr.bf16.mxu0 0
        %497 = vmatpush1.bf16.msra.mxu0 0
        %498 = vmatprep.subr.bf16.mxu0 0
        %499 = vmatpush1.bf16.msra.mxu0 0
        %500 = vmatprep.subr.bf16.mxu0 0
        %501 = vmatpush1.bf16.msra.mxu0 0
        %502 = vmatprep.subr.bf16.mxu0 0
        %503 = vmatpush1.bf16.msra.mxu0 0
        %504 = vmatprep.subr.bf16.mxu0 0
        %505 = vmatpush1.bf16.msra.mxu0 0
        %506 = vmatprep.subr.bf16.mxu0 0
        %507 = vmatpush1.bf16.msra.mxu0 0
        %508 = vmatprep.mubr.bf16.mxu0 0
        %509 = vmatmul.mubr.bf16.gmra.mrb[0].mxu0 %v431
        %v510 = vpop.f32.mrb[0].mxu0
        %v511 = vadd.f32 %v387, %v510
        %v512 = vpop.f32.mrb[0].mxu0
        %v513 = vpop.f32.mrb[0].mxu0
        %v514 = vadd.f32 %v390, %v513
        %v515 = vpop.f32.mrb[0].mxu0
        %516 = vdwg.mxu0
        %v517 = vld [vmem:[%s235 + $0x4] sm:$0xf]
        %s518 = scalar_lea.vmem [#allocation2], 192
        %v519 = vld [vmem:[%s518] sm:$0xff]
        %v520 = vld [vmem:[%s518 + $0x8] sm:$0xf]
        %v521 = vld [vmem:[%s518 + $0xc] sm:$0xff]
        %v522 = vld [vmem:[%s518 + $0x14] sm:$0xf]
        %v523 = vld [vmem:[%s518 + $0x18] sm:$0xff]
        %v524 = vld [vmem:[%s518 + $0x20] sm:$0xf]
        %v525 = vld [vmem:[%s518 + $0x24] sm:$0xff]
        %v526 = vld [vmem:[%s518 + $0x2c] sm:$0xf]
        %v528 = vunpack.c.l.b16 %v517
        %v529 = vpack.c.b16 %v528, %v395
        %v531 = vshrl.u32 %v529, 16
        %v533 = vshll.u32 %v529, 16
        %v535 = vrot.slane %v533, 1
        %v536 = vor.u32 %v531, %v535
        %v545 = vunpack.c.l.b16 %v519
        %v546 = vunpack.c.h.b16 %v519
        %v547 = vunpack.c.l.b16 %v520
        %v548 = vunpack.c.l.b16 %v521
        %v549 = vunpack.c.h.b16 %v521
        %v550 = vunpack.c.l.b16 %v522
        %v551 = vunpack.c.l.b16 %v523
        %v552 = vunpack.c.h.b16 %v523
        %v553 = vunpack.c.l.b16 %v524
        %v554 = vunpack.c.l.b16 %v525
        %v555 = vunpack.c.h.b16 %v525
        %v556 = vunpack.c.l.b16 %v526
        %v557 = vpack.c.b16 %v548, %v545
        %v558 = vpack.c.b16 %v549, %v546
        %v559 = vpack.c.b16 %v550, %v547
        %v560 = vpack.c.b16 %v554, %v551
        %v561 = vpack.c.b16 %v555, %v552
        %v562 = vpack.c.b16 %v556, %v553
        %v570 = vsel %vm305, %v536, 0
        %572 = vmatprep.subr.bf16.mxu0 %v558
        %573 = vmatpush1.bf16.msra.mxu0 %v557
        %574 = vmatprep.subr.bf16.mxu0 %v561
        %575 = vmatpush1.bf16.msra.mxu0 %v560
        %576 = vmatprep.subr.bf16.mxu0 0
        %577 = vmatpush1.bf16.msra.mxu0 0
        %578 = vmatprep.subr.bf16.mxu0 0
        %579 = vmatpush1.bf16.msra.mxu0 0
        %580 = vmatprep.subr.bf16.mxu0 0
        %581 = vmatpush1.bf16.msra.mxu0 0
        %582 = vmatprep.subr.bf16.mxu0 0
        %583 = vmatpush1.bf16.msra.mxu0 0
        %584 = vmatprep.subr.bf16.mxu0 0
        %585 = vmatpush1.bf16.msra.mxu0 0
        %586 = vmatprep.subr.bf16.mxu0 0
        %587 = vmatpush1.bf16.msra.mxu0 0
        %588 = vmatprep.subr.bf16.mxu0 0
        %589 = vmatpush1.bf16.msra.mxu0 0
        %590 = vmatprep.subr.bf16.mxu0 0
        %591 = vmatpush1.bf16.msra.mxu0 0
        %592 = vmatprep.subr.bf16.mxu0 0
        %593 = vmatpush1.bf16.msra.mxu0 0
        %594 = vmatprep.subr.bf16.mxu0 0
        %595 = vmatpush1.bf16.msra.mxu0 0
        %596 = vmatprep.subr.bf16.mxu0 0
        %597 = vmatpush1.bf16.msra.mxu0 0
        %598 = vmatprep.subr.bf16.mxu0 0
        %599 = vmatpush1.bf16.msra.mxu0 0
        %600 = vmatprep.subr.bf16.mxu0 0
        %601 = vmatpush1.bf16.msra.mxu0 0
        %602 = vmatprep.subr.bf16.mxu0 0
        %603 = vmatpush1.bf16.msra.mxu0 0
        %604 = vmatprep.mubr.bf16.mxu0 0
        %605 = vmatmul.mubr.bf16.gmra.mrb[0].mxu0 %v570
        %v606 = vpop.f32.mrb[0].mxu0
        %v607 = vadd.f32 0.0, %v606
        %v608 = vpop.f32.mrb[0].mxu0
        %v609 = vadd.f32 0.0, %v608
        %v610 = vpop.f32.mrb[0].mxu0
        %v611 = vadd.f32 0.0, %v610
        %v612 = vpop.f32.mrb[0].mxu0
        %v613 = vadd.f32 0.0, %v612
        %614 = vdwg.mxu0
        %615 = vmatprep.subr.bf16.mxu0 0
        %616 = vmatpush1.bf16.msra.mxu0 %v559
        %617 = vmatprep.subr.bf16.mxu0 0
        %618 = vmatpush1.bf16.msra.mxu0 %v562
        %619 = vmatprep.subr.bf16.mxu0 0
        %620 = vmatpush1.bf16.msra.mxu0 0
        %621 = vmatprep.subr.bf16.mxu0 0
        %622 = vmatpush1.bf16.msra.mxu0 0
        %623 = vmatprep.subr.bf16.mxu0 0
        %624 = vmatpush1.bf16.msra.mxu0 0
        %625 = vmatprep.subr.bf16.mxu0 0
        %626 = vmatpush1.bf16.msra.mxu0 0
        %627 = vmatprep.subr.bf16.mxu0 0
        %628 = vmatpush1.bf16.msra.mxu0 0
        %629 = vmatprep.subr.bf16.mxu0 0
        %630 = vmatpush1.bf16.msra.mxu0 0
        %631 = vmatprep.subr.bf16.mxu0 0
        %632 = vmatpush1.bf16.msra.mxu0 0
        %633 = vmatprep.subr.bf16.mxu0 0
        %634 = vmatpush1.bf16.msra.mxu0 0
        %635 = vmatprep.subr.bf16.mxu0 0
        %636 = vmatpush1.bf16.msra.mxu0 0
        %637 = vmatprep.subr.bf16.mxu0 0
        %638 = vmatpush1.bf16.msra.mxu0 0
        %639 = vmatprep.subr.bf16.mxu0 0
        %640 = vmatpush1.bf16.msra.mxu0 0
        %641 = vmatprep.subr.bf16.mxu0 0
        %642 = vmatpush1.bf16.msra.mxu0 0
        %643 = vmatprep.subr.bf16.mxu0 0
        %644 = vmatpush1.bf16.msra.mxu0 0
        %645 = vmatprep.subr.bf16.mxu0 0
        %646 = vmatpush1.bf16.msra.mxu0 0
        %647 = vmatprep.mubr.bf16.mxu0 0
        %648 = vmatmul.mubr.bf16.gmra.mrb[0].mxu0 %v570
        %v649 = vpop.f32.mrb[0].mxu0
        %v650 = vadd.f32 0.0, %v649
        %v651 = vpop.f32.mrb[0].mxu0
        %v652 = vpop.f32.mrb[0].mxu0
        %v653 = vadd.f32 0.0, %v652
        %v654 = vpop.f32.mrb[0].mxu0
        %655 = vdwg.mxu0
        %v656 = vadd.f32 %v468, %v607
        %v657 = vadd.f32 %v470, %v609
        %v658 = vadd.f32 %v511, %v650
        %v659 = vadd.f32 %v472, %v611
        %v660 = vadd.f32 %v474, %v613
        %v661 = vadd.f32 %v514, %v653
        %v662 = vld [vmem:[%s240 + $0x4] sm:$0xf]
        %s663 = scalar_lea.vmem [#allocation2], 288
        %v664 = vld [vmem:[%s663] sm:$0xff]
        %v665 = vld [vmem:[%s663 + $0x8] sm:$0xf]
        %v666 = vld [vmem:[%s663 + $0xc] sm:$0xff]
        %v667 = vld [vmem:[%s663 + $0x14] sm:$0xf]
        %v668 = vld [vmem:[%s663 + $0x18] sm:$0xff]
        %v669 = vld [vmem:[%s663 + $0x20] sm:$0xf]
        %v670 = vld [vmem:[%s663 + $0x24] sm:$0xff]
        %v671 = vld [vmem:[%s663 + $0x2c] sm:$0xf]
        %v673 = vunpack.c.l.b16 %v662
        %v674 = vpack.c.b16 %v673, %v270
        %v676 = vshrl.u32 %v674, 16
        %v678 = vshll.u32 %v674, 16
        %v680 = vrot.slane %v678, 1
        %v681 = vor.u32 %v676, %v680
        %v690 = vunpack.c.l.b16 %v664
        %v691 = vunpack.c.h.b16 %v664
        %v692 = vunpack.c.l.b16 %v665
        %v693 = vunpack.c.l.b16 %v666
        %v694 = vunpack.c.h.b16 %v666
        %v695 = vunpack.c.l.b16 %v667
        %v696 = vunpack.c.l.b16 %v668
        %v697 = vunpack.c.h.b16 %v668
        %v698 = vunpack.c.l.b16 %v669
        %v699 = vunpack.c.l.b16 %v670
        %v700 = vunpack.c.h.b16 %v670
        %v701 = vunpack.c.l.b16 %v671
        %v702 = vpack.c.b16 %v693, %v690
        %v703 = vpack.c.b16 %v694, %v691
        %v704 = vpack.c.b16 %v695, %v692
        %v705 = vpack.c.b16 %v699, %v696
        %v706 = vpack.c.b16 %v700, %v697
        %v707 = vpack.c.b16 %v701, %v698
        %v715 = vsel %vm305, %v681, 0
        %717 = vmatprep.subr.bf16.mxu0 %v703
        %718 = vmatpush1.bf16.msra.mxu0 %v702
        %719 = vmatprep.subr.bf16.mxu0 %v706
        %720 = vmatpush1.bf16.msra.mxu0 %v705
        %721 = vmatprep.subr.bf16.mxu0 0
        %722 = vmatpush1.bf16.msra.mxu0 0
        %723 = vmatprep.subr.bf16.mxu0 0
        %724 = vmatpush1.bf16.msra.mxu0 0
        %725 = vmatprep.subr.bf16.mxu0 0
        %726 = vmatpush1.bf16.msra.mxu0 0
        %727 = vmatprep.subr.bf16.mxu0 0
        %728 = vmatpush1.bf16.msra.mxu0 0
        %729 = vmatprep.subr.bf16.mxu0 0
        %730 = vmatpush1.bf16.msra.mxu0 0
        %731 = vmatprep.subr.bf16.mxu0 0
        %732 = vmatpush1.bf16.msra.mxu0 0
        %733 = vmatprep.subr.bf16.mxu0 0
        %734 = vmatpush1.bf16.msra.mxu0 0
        %735 = vmatprep.subr.bf16.mxu0 0
        %736 = vmatpush1.bf16.msra.mxu0 0
        %737 = vmatprep.subr.bf16.mxu0 0
        %738 = vmatpush1.bf16.msra.mxu0 0
        %739 = vmatprep.subr.bf16.mxu0 0
        %740 = vmatpush1.bf16.msra.mxu0 0
        %741 = vmatprep.subr.bf16.mxu0 0
        %742 = vmatpush1.bf16.msra.mxu0 0
        %743 = vmatprep.subr.bf16.mxu0 0
        %744 = vmatpush1.bf16.msra.mxu0 0
        %745 = vmatprep.subr.bf16.mxu0 0
        %746 = vmatpush1.bf16.msra.mxu0 0
        %747 = vmatprep.subr.bf16.mxu0 0
        %748 = vmatpush1.bf16.msra.mxu0 0
        %749 = vmatprep.mubr.bf16.mxu0 0
        %750 = vmatmul.mubr.bf16.gmra.mrb[0].mxu0 %v715
        %v751 = vpop.f32.mrb[0].mxu0
        %v752 = vadd.f32 0.0, %v751
        %v753 = vpop.f32.mrb[0].mxu0
        %v754 = vadd.f32 0.0, %v753
        %v755 = vpop.f32.mrb[0].mxu0
        %v756 = vadd.f32 0.0, %v755
        %v757 = vpop.f32.mrb[0].mxu0
        %v758 = vadd.f32 0.0, %v757
        %759 = vdwg.mxu0
        %760 = vmatprep.subr.bf16.mxu0 0
        %761 = vmatpush1.bf16.msra.mxu0 %v704
        %762 = vmatprep.subr.bf16.mxu0 0
        %763 = vmatpush1.bf16.msra.mxu0 %v707
        %764 = vmatprep.subr.bf16.mxu0 0
        %765 = vmatpush1.bf16.msra.mxu0 0
        %766 = vmatprep.subr.bf16.mxu0 0
        %767 = vmatpush1.bf16.msra.mxu0 0
        %768 = vmatprep.subr.bf16.mxu0 0
        %769 = vmatpush1.bf16.msra.mxu0 0
        %770 = vmatprep.subr.bf16.mxu0 0
        %771 = vmatpush1.bf16.msra.mxu0 0
        %772 = vmatprep.subr.bf16.mxu0 0
        %773 = vmatpush1.bf16.msra.mxu0 0
        %774 = vmatprep.subr.bf16.mxu0 0
        %775 = vmatpush1.bf16.msra.mxu0 0
        %776 = vmatprep.subr.bf16.mxu0 0
        %777 = vmatpush1.bf16.msra.mxu0 0
        %778 = vmatprep.subr.bf16.mxu0 0
        %779 = vmatpush1.bf16.msra.mxu0 0
        %780 = vmatprep.subr.bf16.mxu0 0
        %781 = vmatpush1.bf16.msra.mxu0 0
        %782 = vmatprep.subr.bf16.mxu0 0
        %783 = vmatpush1.bf16.msra.mxu0 0
        %784 = vmatprep.subr.bf16.mxu0 0
        %785 = vmatpush1.bf16.msra.mxu0 0
        %786 = vmatprep.subr.bf16.mxu0 0
        %787 = vmatpush1.bf16.msra.mxu0 0
        %788 = vmatprep.subr.bf16.mxu0 0
        %789 = vmatpush1.bf16.msra.mxu0 0
        %790 = vmatprep.subr.bf16.mxu0 0
        %791 = vmatpush1.bf16.msra.mxu0 0
        %792 = vmatprep.mubr.bf16.mxu0 0
        %793 = vmatmul.mubr.bf16.gmra.mrb[0].mxu0 %v715
        %v794 = vpop.f32.mrb[0].mxu0
        %v795 = vadd.f32 0.0, %v794
        %v796 = vpop.f32.mrb[0].mxu0
        %v797 = vpop.f32.mrb[0].mxu0
        %v798 = vadd.f32 0.0, %v797
        %v799 = vpop.f32.mrb[0].mxu0
        %800 = vdwg.mxu0
        %v801 = vadd.f32 %v656, %v752
        %v802 = vadd.f32 %v657, %v754
        %v803 = vadd.f32 %v658, %v795
        %v804 = vadd.f32 %v659, %v756
        %v805 = vadd.f32 %v660, %v758
        %v806 = vadd.f32 %v661, %v798
        %v807 = vld [vmem:[%s235] sm:$0xe]
        %s808 = scalar_lea.vmem [#allocation2], 384
        %v809 = vld [vmem:[%s808] sm:$0xff]
        %v810 = vld [vmem:[%s808 + $0x8] sm:$0xf]
        %v811 = vld [vmem:[%s808 + $0xc] sm:$0xff]
        %v812 = vld [vmem:[%s808 + $0x14] sm:$0xf]
        %v813 = vld [vmem:[%s808 + $0x18] sm:$0xff]
        %v814 = vld [vmem:[%s808 + $0x20] sm:$0xf]
        %v815 = vld [vmem:[%s808 + $0x24] sm:$0xff]
        %v816 = vld [vmem:[%s808 + $0x2c] sm:$0xf]
        %v818 = vunpack.c.l.b16 %v807
        %v819 = vpack.c.b16 %v528, %v818
        %v820 = vrot.slane %v819, 1
        %v829 = vunpack.c.l.b16 %v809
        %v830 = vunpack.c.h.b16 %v809
        %v831 = vunpack.c.l.b16 %v810
        %v832 = vunpack.c.l.b16 %v811
        %v833 = vunpack.c.h.b16 %v811
        %v834 = vunpack.c.l.b16 %v812
        %v835 = vunpack.c.l.b16 %v813
        %v836 = vunpack.c.h.b16 %v813
        %v837 = vunpack.c.l.b16 %v814
        %v838 = vunpack.c.l.b16 %v815
        %v839 = vunpack.c.h.b16 %v815
        %v840 = vunpack.c.l.b16 %v816
        %v841 = vpack.c.b16 %v832, %v829
        %v842 = vpack.c.b16 %v833, %v830
        %v843 = vpack.c.b16 %v834, %v831
        %v844 = vpack.c.b16 %v838, %v835
        %v845 = vpack.c.b16 %v839, %v836
        %v846 = vpack.c.b16 %v840, %v837
        %v854 = vsel %vm305, %v820, 0
        %856 = vmatprep.subr.bf16.mxu0 %v842
        %857 = vmatpush1.bf16.msra.mxu0 %v841
        %858 = vmatprep.subr.bf16.mxu0 %v845
        %859 = vmatpush1.bf16.msra.mxu0 %v844
        %860 = vmatprep.subr.bf16.mxu0 0
        %861 = vmatpush1.bf16.msra.mxu0 0
        %862 = vmatprep.subr.bf16.mxu0 0
        %863 = vmatpush1.bf16.msra.mxu0 0
        %864 = vmatprep.subr.bf16.mxu0 0
        %865 = vmatpush1.bf16.msra.mxu0 0
        %866 = vmatprep.subr.bf16.mxu0 0
        %867 = vmatpush1.bf16.msra.mxu0 0
        %868 = vmatprep.subr.bf16.mxu0 0
        %869 = vmatpush1.bf16.msra.mxu0 0
        %870 = vmatprep.subr.bf16.mxu0 0
        %871 = vmatpush1.bf16.msra.mxu0 0
        %872 = vmatprep.subr.bf16.mxu0 0
        %873 = vmatpush1.bf16.msra.mxu0 0
        %874 = vmatprep.subr.bf16.mxu0 0
        %875 = vmatpush1.bf16.msra.mxu0 0
        %876 = vmatprep.subr.bf16.mxu0 0
        %877 = vmatpush1.bf16.msra.mxu0 0
        %878 = vmatprep.subr.bf16.mxu0 0
        %879 = vmatpush1.bf16.msra.mxu0 0
        %880 = vmatprep.subr.bf16.mxu0 0
        %881 = vmatpush1.bf16.msra.mxu0 0
        %882 = vmatprep.subr.bf16.mxu0 0
        %883 = vmatpush1.bf16.msra.mxu0 0
        %884 = vmatprep.subr.bf16.mxu0 0
        %885 = vmatpush1.bf16.msra.mxu0 0
        %886 = vmatprep.subr.bf16.mxu0 0
        %887 = vmatpush1.bf16.msra.mxu0 0
        %888 = vmatprep.mubr.bf16.mxu0 0
        %889 = vmatmul.mubr.bf16.gmra.mrb[0].mxu0 %v854
        %v890 = vpop.f32.mrb[0].mxu0
        %v891 = vadd.f32 0.0, %v890
        %v892 = vpop.f32.mrb[0].mxu0
        %v893 = vadd.f32 0.0, %v892
        %v894 = vpop.f32.mrb[0].mxu0
        %v895 = vadd.f32 0.0, %v894
        %v896 = vpop.f32.mrb[0].mxu0
        %v897 = vadd.f32 0.0, %v896
        %898 = vdwg.mxu0
        %899 = vmatprep.subr.bf16.mxu0 0
        %900 = vmatpush1.bf16.msra.mxu0 %v843
        %901 = vmatprep.subr.bf16.mxu0 0
        %902 = vmatpush1.bf16.msra.mxu0 %v846
        %903 = vmatprep.subr.bf16.mxu0 0
        %904 = vmatpush1.bf16.msra.mxu0 0
        %905 = vmatprep.subr.bf16.mxu0 0
        %906 = vmatpush1.bf16.msra.mxu0 0
        %907 = vmatprep.subr.bf16.mxu0 0
        %908 = vmatpush1.bf16.msra.mxu0 0
        %909 = vmatprep.subr.bf16.mxu0 0
        %910 = vmatpush1.bf16.msra.mxu0 0
        %911 = vmatprep.subr.bf16.mxu0 0
        %912 = vmatpush1.bf16.msra.mxu0 0
        %913 = vmatprep.subr.bf16.mxu0 0
        %914 = vmatpush1.bf16.msra.mxu0 0
        %915 = vmatprep.subr.bf16.mxu0 0
        %916 = vmatpush1.bf16.msra.mxu0 0
        %917 = vmatprep.subr.bf16.mxu0 0
        %918 = vmatpush1.bf16.msra.mxu0 0
        %919 = vmatprep.subr.bf16.mxu0 0
        %920 = vmatpush1.bf16.msra.mxu0 0
        %921 = vmatprep.subr.bf16.mxu0 0
        %922 = vmatpush1.bf16.msra.mxu0 0
        %923 = vmatprep.subr.bf16.mxu0 0
        %924 = vmatpush1.bf16.msra.mxu0 0
        %925 = vmatprep.subr.bf16.mxu0 0
        %926 = vmatpush1.bf16.msra.mxu0 0
        %927 = vmatprep.subr.bf16.mxu0 0
        %928 = vmatpush1.bf16.msra.mxu0 0
        %929 = vmatprep.subr.bf16.mxu0 0
        %930 = vmatpush1.bf16.msra.mxu0 0
        %931 = vmatprep.mubr.bf16.mxu0 0
        %932 = vmatmul.mubr.bf16.gmra.mrb[0].mxu0 %v854
        %v933 = vpop.f32.mrb[0].mxu0
        %v934 = vadd.f32 0.0, %v933
        %v935 = vpop.f32.mrb[0].mxu0
        %v936 = vpop.f32.mrb[0].mxu0
        %v937 = vadd.f32 0.0, %v936
        %v938 = vpop.f32.mrb[0].mxu0
        %939 = vdwg.mxu0
        %v940 = vadd.f32 %v801, %v891
        %v941 = vadd.f32 %v802, %v893
        %v942 = vadd.f32 %v803, %v934
        %v943 = vadd.f32 %v804, %v895
        %v944 = vadd.f32 %v805, %v897
        %v945 = vadd.f32 %v806, %v937
        %s946 = scalar_lea.vmem [#allocation2], 48
        %v947 = vld [vmem:[%s946] sm:$0xff]
        %v948 = vld [vmem:[%s946 + $0x8] sm:$0xf]
        %v949 = vld [vmem:[%s946 + $0xc] sm:$0xff]
        %v950 = vld [vmem:[%s946 + $0x14] sm:$0xf]
        %v951 = vld [vmem:[%s946 + $0x18] sm:$0xff]
        %v952 = vld [vmem:[%s946 + $0x20] sm:$0xf]
        %v953 = vld [vmem:[%s946 + $0x24] sm:$0xff]
        %v954 = vld [vmem:[%s946 + $0x2c] sm:$0xf]
        %s955 = scalar_lea.vmem [#allocation2], 144
        %v956 = vld [vmem:[%s955] sm:$0xff]
        %v957 = vld [vmem:[%s955 + $0x8] sm:$0xf]
        %v958 = vld [vmem:[%s955 + $0xc] sm:$0xff]
        %v959 = vld [vmem:[%s955 + $0x14] sm:$0xf]
        %v960 = vld [vmem:[%s955 + $0x18] sm:$0xff]
        %v961 = vld [vmem:[%s955 + $0x20] sm:$0xf]
        %v962 = vld [vmem:[%s955 + $0x24] sm:$0xff]
        %v963 = vld [vmem:[%s955 + $0x2c] sm:$0xf]
        %v972 = vunpack.c.l.b16 %v956
        %v973 = vunpack.c.h.b16 %v956
        %v974 = vunpack.c.l.b16 %v957
        %v975 = vunpack.c.l.b16 %v958
        %v976 = vunpack.c.h.b16 %v958
        %v977 = vunpack.c.l.b16 %v959
        %v978 = vunpack.c.l.b16 %v960
        %v979 = vunpack.c.h.b16 %v960
        %v980 = vunpack.c.l.b16 %v961
        %v981 = vunpack.c.l.b16 %v962
        %v982 = vunpack.c.h.b16 %v962
        %v983 = vunpack.c.l.b16 %v963
        %v984 = vpack.c.b16 %v975, %v972
        %v985 = vpack.c.b16 %v976, %v973
        %v986 = vpack.c.b16 %v977, %v974
        %v987 = vpack.c.b16 %v981, %v978
        %v988 = vpack.c.b16 %v982, %v979
        %v989 = vpack.c.b16 %v983, %v980
        %996 = vmatprep.subr.bf16.mxu0 %v985
        %997 = vmatpush1.bf16.msra.mxu0 %v984
        %998 = vmatprep.subr.bf16.mxu0 %v988
        %999 = vmatpush1.bf16.msra.mxu0 %v987
        %1000 = vmatprep.subr.bf16.mxu0 0
        %1001 = vmatpush1.bf16.msra.mxu0 0
        %1002 = vmatprep.subr.bf16.mxu0 0
        %1003 = vmatpush1.bf16.msra.mxu0 0
        %1004 = vmatprep.subr.bf16.mxu0 0
        %1005 = vmatpush1.bf16.msra.mxu0 0
        %1006 = vmatprep.subr.bf16.mxu0 0
        %1007 = vmatpush1.bf16.msra.mxu0 0
        %1008 = vmatprep.subr.bf16.mxu0 0
        %1009 = vmatpush1.bf16.msra.mxu0 0
        %1010 = vmatprep.subr.bf16.mxu0 0
        %1011 = vmatpush1.bf16.msra.mxu0 0
        %1012 = vmatprep.subr.bf16.mxu0 0
        %1013 = vmatpush1.bf16.msra.mxu0 0
        %1014 = vmatprep.subr.bf16.mxu0 0
        %1015 = vmatpush1.bf16.msra.mxu0 0
        %1016 = vmatprep.subr.bf16.mxu0 0
        %1017 = vmatpush1.bf16.msra.mxu0 0
        %1018 = vmatprep.subr.bf16.mxu0 0
        %1019 = vmatpush1.bf16.msra.mxu0 0
        %1020 = vmatprep.subr.bf16.mxu0 0
        %1021 = vmatpush1.bf16.msra.mxu0 0
        %1022 = vmatprep.subr.bf16.mxu0 0
        %1023 = vmatpush1.bf16.msra.mxu0 0
        %1024 = vmatprep.subr.bf16.mxu0 0
        %1025 = vmatpush1.bf16.msra.mxu0 0
        %1026 = vmatprep.subr.bf16.mxu0 0
        %1027 = vmatpush1.bf16.msra.mxu0 0
        %1028 = vmatprep.mubr.bf16.mxu0 0
        %1029 = vmatmul.mubr.bf16.gmra.mrb[0].mxu0 %v307
        %v1030 = vpop.f32.mrb[0].mxu0
        %v1031 = vadd.f32 0.0, %v1030
        %v1032 = vpop.f32.mrb[0].mxu0
        %v1033 = vadd.f32 0.0, %v1032
        %v1034 = vpop.f32.mrb[0].mxu0
        %v1035 = vadd.f32 0.0, %v1034
        %v1036 = vpop.f32.mrb[0].mxu0
        %v1037 = vadd.f32 0.0, %v1036
        %1038 = vdwg.mxu0
        %1039 = vmatprep.subr.bf16.mxu0 0
        %1040 = vmatpush1.bf16.msra.mxu0 %v986
        %1041 = vmatprep.subr.bf16.mxu0 0
        %1042 = vmatpush1.bf16.msra.mxu0 %v989
        %1043 = vmatprep.subr.bf16.mxu0 0
        %1044 = vmatpush1.bf16.msra.mxu0 0
        %1045 = vmatprep.subr.bf16.mxu0 0
        %1046 = vmatpush1.bf16.msra.mxu0 0
        %1047 = vmatprep.subr.bf16.mxu0 0
        %1048 = vmatpush1.bf16.msra.mxu0 0
        %1049 = vmatprep.subr.bf16.mxu0 0
        %1050 = vmatpush1.bf16.msra.mxu0 0
        %1051 = vmatprep.subr.bf16.mxu0 0
        %1052 = vmatpush1.bf16.msra.mxu0 0
        %1053 = vmatprep.subr.bf16.mxu0 0
        %1054 = vmatpush1.bf16.msra.mxu0 0
        %1055 = vmatprep.subr.bf16.mxu0 0
        %1056 = vmatpush1.bf16.msra.mxu0 0
        %1057 = vmatprep.subr.bf16.mxu0 0
        %1058 = vmatpush1.bf16.msra.mxu0 0
        %1059 = vmatprep.subr.bf16.mxu0 0
        %1060 = vmatpush1.bf16.msra.mxu0 0
        %1061 = vmatprep.subr.bf16.mxu0 0
        %1062 = vmatpush1.bf16.msra.mxu0 0
        %1063 = vmatprep.subr.bf16.mxu0 0
        %1064 = vmatpush1.bf16.msra.mxu0 0
        %1065 = vmatprep.subr.bf16.mxu0 0
        %1066 = vmatpush1.bf16.msra.mxu0 0
        %1067 = vmatprep.subr.bf16.mxu0 0
        %1068 = vmatpush1.bf16.msra.mxu0 0
        %1069 = vmatprep.subr.bf16.mxu0 0
        %1070 = vmatpush1.bf16.msra.mxu0 0
        %1071 = vmatprep.mubr.bf16.mxu0 0
        %1072 = vmatmul.mubr.bf16.gmra.mrb[0].mxu0 %v307
        %v1073 = vpop.f32.mrb[0].mxu0
        %v1074 = vadd.f32 0.0, %v1073
        %v1075 = vpop.f32.mrb[0].mxu0
        %v1076 = vpop.f32.mrb[0].mxu0
        %v1077 = vadd.f32 0.0, %v1076
        %v1078 = vpop.f32.mrb[0].mxu0
        %1079 = vdwg.mxu0
        %v1088 = vunpack.c.l.b16 %v947
        %v1089 = vunpack.c.h.b16 %v947
        %v1090 = vunpack.c.l.b16 %v948
        %v1091 = vunpack.c.l.b16 %v949
        %v1092 = vunpack.c.h.b16 %v949
        %v1093 = vunpack.c.l.b16 %v950
        %v1094 = vunpack.c.l.b16 %v951
        %v1095 = vunpack.c.h.b16 %v951
        %v1096 = vunpack.c.l.b16 %v952
        %v1097 = vunpack.c.l.b16 %v953
        %v1098 = vunpack.c.h.b16 %v953
        %v1099 = vunpack.c.l.b16 %v954
        %v1100 = vpack.c.b16 %v1091, %v1088
        %v1101 = vpack.c.b16 %v1092, %v1089
        %v1102 = vpack.c.b16 %v1093, %v1090
        %v1103 = vpack.c.b16 %v1097, %v1094
        %v1104 = vpack.c.b16 %v1098, %v1095
        %v1105 = vpack.c.b16 %v1099, %v1096
        %1112 = vmatprep.subr.bf16.mxu0 %v1101
        %1113 = vmatpush1.bf16.msra.mxu0 %v1100
        %1114 = vmatprep.subr.bf16.mxu0 %v1104
        %1115 = vmatpush1.bf16.msra.mxu0 %v1103
        %1116 = vmatprep.subr.bf16.mxu0 0
        %1117 = vmatpush1.bf16.msra.mxu0 0
        %1118 = vmatprep.subr.bf16.mxu0 0
        %1119 = vmatpush1.bf16.msra.mxu0 0
        %1120 = vmatprep.subr.bf16.mxu0 0
        %1121 = vmatpush1.bf16.msra.mxu0 0
        %1122 = vmatprep.subr.bf16.mxu0 0
        %1123 = vmatpush1.bf16.msra.mxu0 0
        %1124 = vmatprep.subr.bf16.mxu0 0
        %1125 = vmatpush1.bf16.msra.mxu0 0
        %1126 = vmatprep.subr.bf16.mxu0 0
        %1127 = vmatpush1.bf16.msra.mxu0 0
        %1128 = vmatprep.subr.bf16.mxu0 0
        %1129 = vmatpush1.bf16.msra.mxu0 0
        %1130 = vmatprep.subr.bf16.mxu0 0
        %1131 = vmatpush1.bf16.msra.mxu0 0
        %1132 = vmatprep.subr.bf16.mxu0 0
        %1133 = vmatpush1.bf16.msra.mxu0 0
        %1134 = vmatprep.subr.bf16.mxu0 0
        %1135 = vmatpush1.bf16.msra.mxu0 0
        %1136 = vmatprep.subr.bf16.mxu0 0
        %1137 = vmatpush1.bf16.msra.mxu0 0
        %1138 = vmatprep.subr.bf16.mxu0 0
        %1139 = vmatpush1.bf16.msra.mxu0 0
        %1140 = vmatprep.subr.bf16.mxu0 0
        %1141 = vmatpush1.bf16.msra.mxu0 0
        %1142 = vmatprep.subr.bf16.mxu0 0
        %1143 = vmatpush1.bf16.msra.mxu0 0
        %1144 = vmatprep.mubr.bf16.mxu0 0
        %1145 = vmatmul.mubr.bf16.gmra.mrb[0].mxu0 %v431
        %v1146 = vpop.f32.mrb[0].mxu0
        %v1147 = vadd.f32 %v1031, %v1146
        %v1148 = vpop.f32.mrb[0].mxu0
        %v1149 = vadd.f32 %v1033, %v1148
        %v1150 = vpop.f32.mrb[0].mxu0
        %v1151 = vadd.f32 %v1035, %v1150
        %v1152 = vpop.f32.mrb[0].mxu0
        %v1153 = vadd.f32 %v1037, %v1152
        %1154 = vdwg.mxu0
        %1155 = vmatprep.subr.bf16.mxu0 0
        %1156 = vmatpush1.bf16.msra.mxu0 %v1102
        %1157 = vmatprep.subr.bf16.mxu0 0
        %1158 = vmatpush1.bf16.msra.mxu0 %v1105
        %1159 = vmatprep.subr.bf16.mxu0 0
        %1160 = vmatpush1.bf16.msra.mxu0 0
        %1161 = vmatprep.subr.bf16.mxu0 0
        %1162 = vmatpush1.bf16.msra.mxu0 0
        %1163 = vmatprep.subr.bf16.mxu0 0
        %1164 = vmatpush1.bf16.msra.mxu0 0
        %1165 = vmatprep.subr.bf16.mxu0 0
        %1166 = vmatpush1.bf16.msra.mxu0 0
        %1167 = vmatprep.subr.bf16.mxu0 0
        %1168 = vmatpush1.bf16.msra.mxu0 0
        %1169 = vmatprep.subr.bf16.mxu0 0
        %1170 = vmatpush1.bf16.msra.mxu0 0
        %1171 = vmatprep.subr.bf16.mxu0 0
        %1172 = vmatpush1.bf16.msra.mxu0 0
        %1173 = vmatprep.subr.bf16.mxu0 0
        %1174 = vmatpush1.bf16.msra.mxu0 0
        %1175 = vmatprep.subr.bf16.mxu0 0
        %1176 = vmatpush1.bf16.msra.mxu0 0
        %1177 = vmatprep.subr.bf16.mxu0 0
        %1178 = vmatpush1.bf16.msra.mxu0 0
        %1179 = vmatprep.subr.bf16.mxu0 0
        %1180 = vmatpush1.bf16.msra.mxu0 0
        %1181 = vmatprep.subr.bf16.mxu0 0
        %1182 = vmatpush1.bf16.msra.mxu0 0
        %1183 = vmatprep.subr.bf16.mxu0 0
        %1184 = vmatpush1.bf16.msra.mxu0 0
        %1185 = vmatprep.subr.bf16.mxu0 0
        %1186 = vmatpush1.bf16.msra.mxu0 0
        %1187 = vmatprep.mubr.bf16.mxu0 0
        %1188 = vmatmul.mubr.bf16.gmra.mrb[0].mxu0 %v431
        %v1189 = vpop.f32.mrb[0].mxu0
        %v1190 = vadd.f32 %v1074, %v1189
        %v1191 = vpop.f32.mrb[0].mxu0
        %v1192 = vpop.f32.mrb[0].mxu0
        %v1193 = vadd.f32 %v1077, %v1192
        %v1194 = vpop.f32.mrb[0].mxu0
        %1195 = vdwg.mxu0
        %s1196 = scalar_lea.vmem [#allocation2], 240
        %v1197 = vld [vmem:[%s1196] sm:$0xff]
        %v1198 = vld [vmem:[%s1196 + $0x8] sm:$0xf]
        %v1199 = vld [vmem:[%s1196 + $0xc] sm:$0xff]
        %v1200 = vld [vmem:[%s1196 + $0x14] sm:$0xf]
        %v1201 = vld [vmem:[%s1196 + $0x18] sm:$0xff]
        %v1202 = vld [vmem:[%s1196 + $0x20] sm:$0xf]
        %v1203 = vld [vmem:[%s1196 + $0x24] sm:$0xff]
        %v1204 = vld [vmem:[%s1196 + $0x2c] sm:$0xf]
        %v1213 = vunpack.c.l.b16 %v1197
        %v1214 = vunpack.c.h.b16 %v1197
        %v1215 = vunpack.c.l.b16 %v1198
        %v1216 = vunpack.c.l.b16 %v1199
        %v1217 = vunpack.c.h.b16 %v1199
        %v1218 = vunpack.c.l.b16 %v1200
        %v1219 = vunpack.c.l.b16 %v1201
        %v1220 = vunpack.c.h.b16 %v1201
        %v1221 = vunpack.c.l.b16 %v1202
        %v1222 = vunpack.c.l.b16 %v1203
        %v1223 = vunpack.c.h.b16 %v1203
        %v1224 = vunpack.c.l.b16 %v1204
        %v1225 = vpack.c.b16 %v1216, %v1213
        %v1226 = vpack.c.b16 %v1217, %v1214
        %v1227 = vpack.c.b16 %v1218, %v1215
        %v1228 = vpack.c.b16 %v1222, %v1219
        %v1229 = vpack.c.b16 %v1223, %v1220
        %v1230 = vpack.c.b16 %v1224, %v1221
        %1237 = vmatprep.subr.bf16.mxu0 %v1226
        %1238 = vmatpush1.bf16.msra.mxu0 %v1225
        %1239 = vmatprep.subr.bf16.mxu0 %v1229
        %1240 = vmatpush1.bf16.msra.mxu0 %v1228
        %1241 = vmatprep.subr.bf16.mxu0 0
        %1242 = vmatpush1.bf16.msra.mxu0 0
        %1243 = vmatprep.subr.bf16.mxu0 0
        %1244 = vmatpush1.bf16.msra.mxu0 0
        %1245 = vmatprep.subr.bf16.mxu0 0
        %1246 = vmatpush1.bf16.msra.mxu0 0
        %1247 = vmatprep.subr.bf16.mxu0 0
        %1248 = vmatpush1.bf16.msra.mxu0 0
        %1249 = vmatprep.subr.bf16.mxu0 0
        %1250 = vmatpush1.bf16.msra.mxu0 0
        %1251 = vmatprep.subr.bf16.mxu0 0
        %1252 = vmatpush1.bf16.msra.mxu0 0
        %1253 = vmatprep.subr.bf16.mxu0 0
        %1254 = vmatpush1.bf16.msra.mxu0 0
        %1255 = vmatprep.subr.bf16.mxu0 0
        %1256 = vmatpush1.bf16.msra.mxu0 0
        %1257 = vmatprep.subr.bf16.mxu0 0
        %1258 = vmatpush1.bf16.msra.mxu0 0
        %1259 = vmatprep.subr.bf16.mxu0 0
        %1260 = vmatpush1.bf16.msra.mxu0 0
        %1261 = vmatprep.subr.bf16.mxu0 0
        %1262 = vmatpush1.bf16.msra.mxu0 0
        %1263 = vmatprep.subr.bf16.mxu0 0
        %1264 = vmatpush1.bf16.msra.mxu0 0
        %1265 = vmatprep.subr.bf16.mxu0 0
        %1266 = vmatpush1.bf16.msra.mxu0 0
        %1267 = vmatprep.subr.bf16.mxu0 0
        %1268 = vmatpush1.bf16.msra.mxu0 0
        %1269 = vmatprep.mubr.bf16.mxu0 0
        %1270 = vmatmul.mubr.bf16.gmra.mrb[0].mxu0 %v570
        %v1271 = vpop.f32.mrb[0].mxu0
        %v1272 = vadd.f32 0.0, %v1271
        %v1273 = vpop.f32.mrb[0].mxu0
        %v1274 = vadd.f32 0.0, %v1273
        %v1275 = vpop.f32.mrb[0].mxu0
        %v1276 = vadd.f32 0.0, %v1275
        %v1277 = vpop.f32.mrb[0].mxu0
        %v1278 = vadd.f32 0.0, %v1277
        %1279 = vdwg.mxu0
        %1280 = vmatprep.subr.bf16.mxu0 0
        %1281 = vmatpush1.bf16.msra.mxu0 %v1227
        %1282 = vmatprep.subr.bf16.mxu0 0
        %1283 = vmatpush1.bf16.msra.mxu0 %v1230
        %1284 = vmatprep.subr.bf16.mxu0 0
        %1285 = vmatpush1.bf16.msra.mxu0 0
        %1286 = vmatprep.subr.bf16.mxu0 0
        %1287 = vmatpush1.bf16.msra.mxu0 0
        %1288 = vmatprep.subr.bf16.mxu0 0
        %1289 = vmatpush1.bf16.msra.mxu0 0
        %1290 = vmatprep.subr.bf16.mxu0 0
        %1291 = vmatpush1.bf16.msra.mxu0 0
        %1292 = vmatprep.subr.bf16.mxu0 0
        %1293 = vmatpush1.bf16.msra.mxu0 0
        %1294 = vmatprep.subr.bf16.mxu0 0
        %1295 = vmatpush1.bf16.msra.mxu0 0
        %1296 = vmatprep.subr.bf16.mxu0 0
        %1297 = vmatpush1.bf16.msra.mxu0 0
        %1298 = vmatprep.subr.bf16.mxu0 0
        %1299 = vmatpush1.bf16.msra.mxu0 0
        %1300 = vmatprep.subr.bf16.mxu0 0
        %1301 = vmatpush1.bf16.msra.mxu0 0
        %1302 = vmatprep.subr.bf16.mxu0 0
        %1303 = vmatpush1.bf16.msra.mxu0 0
        %1304 = vmatprep.subr.bf16.mxu0 0
        %1305 = vmatpush1.bf16.msra.mxu0 0
        %1306 = vmatprep.subr.bf16.mxu0 0
        %1307 = vmatpush1.bf16.msra.mxu0 0
        %1308 = vmatprep.subr.bf16.mxu0 0
        %1309 = vmatpush1.bf16.msra.mxu0 0
        %1310 = vmatprep.subr.bf16.mxu0 0
        %1311 = vmatpush1.bf16.msra.mxu0 0
        %1312 = vmatprep.mubr.bf16.mxu0 0
        %1313 = vmatmul.mubr.bf16.gmra.mrb[0].mxu0 %v570
        %v1314 = vpop.f32.mrb[0].mxu0
        %v1315 = vadd.f32 0.0, %v1314
        %v1316 = vpop.f32.mrb[0].mxu0
        %v1317 = vpop.f32.mrb[0].mxu0
        %v1318 = vadd.f32 0.0, %v1317
        %v1319 = vpop.f32.mrb[0].mxu0
        %1320 = vdwg.mxu0
        %v1321 = vadd.f32 %v1147, %v1272
        %v1322 = vadd.f32 %v1149, %v1274
        %v1323 = vadd.f32 %v1190, %v1315
        %v1324 = vadd.f32 %v1151, %v1276
        %v1325 = vadd.f32 %v1153, %v1278
        %v1326 = vadd.f32 %v1193, %v1318
        %s1327 = scalar_lea.vmem [#allocation2], 336
        %v1328 = vld [vmem:[%s1327] sm:$0xff]
        %v1329 = vld [vmem:[%s1327 + $0x8] sm:$0xf]
        %v1330 = vld [vmem:[%s1327 + $0xc] sm:$0xff]
        %v1331 = vld [vmem:[%s1327 + $0x14] sm:$0xf]
        %v1332 = vld [vmem:[%s1327 + $0x18] sm:$0xff]
        %v1333 = vld [vmem:[%s1327 + $0x20] sm:$0xf]
        %v1334 = vld [vmem:[%s1327 + $0x24] sm:$0xff]
        %v1335 = vld [vmem:[%s1327 + $0x2c] sm:$0xf]
        %v1344 = vunpack.c.l.b16 %v1328
        %v1345 = vunpack.c.h.b16 %v1328
        %v1346 = vunpack.c.l.b16 %v1329
        %v1347 = vunpack.c.l.b16 %v1330
        %v1348 = vunpack.c.h.b16 %v1330
        %v1349 = vunpack.c.l.b16 %v1331
        %v1350 = vunpack.c.l.b16 %v1332
        %v1351 = vunpack.c.h.b16 %v1332
        %v1352 = vunpack.c.l.b16 %v1333
        %v1353 = vunpack.c.l.b16 %v1334
        %v1354 = vunpack.c.h.b16 %v1334
        %v1355 = vunpack.c.l.b16 %v1335
        %v1356 = vpack.c.b16 %v1347, %v1344
        %v1357 = vpack.c.b16 %v1348, %v1345
        %v1358 = vpack.c.b16 %v1349, %v1346
        %v1359 = vpack.c.b16 %v1353, %v1350
        %v1360 = vpack.c.b16 %v1354, %v1351
        %v1361 = vpack.c.b16 %v1355, %v1352
        %1368 = vmatprep.subr.bf16.mxu0 %v1357
        %1369 = vmatpush1.bf16.msra.mxu0 %v1356
        %1370 = vmatprep.subr.bf16.mxu0 %v1360
        %1371 = vmatpush1.bf16.msra.mxu0 %v1359
        %1372 = vmatprep.subr.bf16.mxu0 0
        %1373 = vmatpush1.bf16.msra.mxu0 0
        %1374 = vmatprep.subr.bf16.mxu0 0
        %1375 = vmatpush1.bf16.msra.mxu0 0
        %1376 = vmatprep.subr.bf16.mxu0 0
        %1377 = vmatpush1.bf16.msra.mxu0 0
        %1378 = vmatprep.subr.bf16.mxu0 0
        %1379 = vmatpush1.bf16.msra.mxu0 0
        %1380 = vmatprep.subr.bf16.mxu0 0
        %1381 = vmatpush1.bf16.msra.mxu0 0
        %1382 = vmatprep.subr.bf16.mxu0 0
        %1383 = vmatpush1.bf16.msra.mxu0 0
        %1384 = vmatprep.subr.bf16.mxu0 0
        %1385 = vmatpush1.bf16.msra.mxu0 0
        %1386 = vmatprep.subr.bf16.mxu0 0
        %1387 = vmatpush1.bf16.msra.mxu0 0
        %1388 = vmatprep.subr.bf16.mxu0 0
        %1389 = vmatpush1.bf16.msra.mxu0 0
        %1390 = vmatprep.subr.bf16.mxu0 0
        %1391 = vmatpush1.bf16.msra.mxu0 0
        %1392 = vmatprep.subr.bf16.mxu0 0
        %1393 = vmatpush1.bf16.msra.mxu0 0
        %1394 = vmatprep.subr.bf16.mxu0 0
        %1395 = vmatpush1.bf16.msra.mxu0 0
        %1396 = vmatprep.subr.bf16.mxu0 0
        %1397 = vmatpush1.bf16.msra.mxu0 0
        %1398 = vmatprep.subr.bf16.mxu0 0
        %1399 = vmatpush1.bf16.msra.mxu0 0
        %1400 = vmatprep.mubr.bf16.mxu0 0
        %1401 = vmatmul.mubr.bf16.gmra.mrb[0].mxu0 %v715
        %v1402 = vpop.f32.mrb[0].mxu0
        %v1403 = vadd.f32 0.0, %v1402
        %v1404 = vpop.f32.mrb[0].mxu0
        %v1405 = vadd.f32 0.0, %v1404
        %v1406 = vpop.f32.mrb[0].mxu0
        %v1407 = vadd.f32 0.0, %v1406
        %v1408 = vpop.f32.mrb[0].mxu0
        %v1409 = vadd.f32 0.0, %v1408
        %1410 = vdwg.mxu0
        %1411 = vmatprep.subr.bf16.mxu0 0
        %1412 = vmatpush1.bf16.msra.mxu0 %v1358
        %1413 = vmatprep.subr.bf16.mxu0 0
        %1414 = vmatpush1.bf16.msra.mxu0 %v1361
        %1415 = vmatprep.subr.bf16.mxu0 0
        %1416 = vmatpush1.bf16.msra.mxu0 0
        %1417 = vmatprep.subr.bf16.mxu0 0
        %1418 = vmatpush1.bf16.msra.mxu0 0
        %1419 = vmatprep.subr.bf16.mxu0 0
        %1420 = vmatpush1.bf16.msra.mxu0 0
        %1421 = vmatprep.subr.bf16.mxu0 0
        %1422 = vmatpush1.bf16.msra.mxu0 0
        %1423 = vmatprep.subr.bf16.mxu0 0
        %1424 = vmatpush1.bf16.msra.mxu0 0
        %1425 = vmatprep.subr.bf16.mxu0 0
        %1426 = vmatpush1.bf16.msra.mxu0 0
        %1427 = vmatprep.subr.bf16.mxu0 0
        %1428 = vmatpush1.bf16.msra.mxu0 0
        %1429 = vmatprep.subr.bf16.mxu0 0
        %1430 = vmatpush1.bf16.msra.mxu0 0
        %1431 = vmatprep.subr.bf16.mxu0 0
        %1432 = vmatpush1.bf16.msra.mxu0 0
        %1433 = vmatprep.subr.bf16.mxu0 0
        %1434 = vmatpush1.bf16.msra.mxu0 0
        %1435 = vmatprep.subr.bf16.mxu0 0
        %1436 = vmatpush1.bf16.msra.mxu0 0
        %1437 = vmatprep.subr.bf16.mxu0 0
        %1438 = vmatpush1.bf16.msra.mxu0 0
        %1439 = vmatprep.subr.bf16.mxu0 0
        %1440 = vmatpush1.bf16.msra.mxu0 0
        %1441 = vmatprep.subr.bf16.mxu0 0
        %1442 = vmatpush1.bf16.msra.mxu0 0
        %1443 = vmatprep.mubr.bf16.mxu0 0
        %1444 = vmatmul.mubr.bf16.gmra.mrb[0].mxu0 %v715
        %v1445 = vpop.f32.mrb[0].mxu0
        %v1446 = vadd.f32 0.0, %v1445
        %v1447 = vpop.f32.mrb[0].mxu0
        %v1448 = vpop.f32.mrb[0].mxu0
        %v1449 = vadd.f32 0.0, %v1448
        %v1450 = vpop.f32.mrb[0].mxu0
        %1451 = vdwg.mxu0
        %v1452 = vadd.f32 %v1321, %v1403
        %v1453 = vadd.f32 %v1322, %v1405
        %v1454 = vadd.f32 %v1323, %v1446
        %v1455 = vadd.f32 %v1324, %v1407
        %v1456 = vadd.f32 %v1325, %v1409
        %v1457 = vadd.f32 %v1326, %v1449
        %s1458 = scalar_lea.vmem [#allocation2], 432
        %v1459 = vld [vmem:[%s1458] sm:$0xff]
        %v1460 = vld [vmem:[%s1458 + $0x8] sm:$0xf]
        %v1461 = vld [vmem:[%s1458 + $0xc] sm:$0xff]
        %v1462 = vld [vmem:[%s1458 + $0x14] sm:$0xf]
        %v1463 = vld [vmem:[%s1458 + $0x18] sm:$0xff]
        %v1464 = vld [vmem:[%s1458 + $0x20] sm:$0xf]
        %v1465 = vld [vmem:[%s1458 + $0x24] sm:$0xff]
        %v1466 = vld [vmem:[%s1458 + $0x2c] sm:$0xf]
        %v1475 = vunpack.c.l.b16 %v1459
        %v1476 = vunpack.c.h.b16 %v1459
        %v1477 = vunpack.c.l.b16 %v1460
        %v1478 = vunpack.c.l.b16 %v1461
        %v1479 = vunpack.c.h.b16 %v1461
        %v1480 = vunpack.c.l.b16 %v1462
        %v1481 = vunpack.c.l.b16 %v1463
        %v1482 = vunpack.c.h.b16 %v1463
        %v1483 = vunpack.c.l.b16 %v1464
        %v1484 = vunpack.c.l.b16 %v1465
        %v1485 = vunpack.c.h.b16 %v1465
        %v1486 = vunpack.c.l.b16 %v1466
        %v1487 = vpack.c.b16 %v1478, %v1475
        %v1488 = vpack.c.b16 %v1479, %v1476
        %v1489 = vpack.c.b16 %v1480, %v1477
        %v1490 = vpack.c.b16 %v1484, %v1481
        %v1491 = vpack.c.b16 %v1485, %v1482
        %v1492 = vpack.c.b16 %v1486, %v1483
        %1499 = vmatprep.subr.bf16.mxu0 %v1488
        %1500 = vmatpush1.bf16.msra.mxu0 %v1487
        %1501 = vmatprep.subr.bf16.mxu0 %v1491
        %1502 = vmatpush1.bf16.msra.mxu0 %v1490
        %1503 = vmatprep.subr.bf16.mxu0 0
        %1504 = vmatpush1.bf16.msra.mxu0 0
        %1505 = vmatprep.subr.bf16.mxu0 0
        %1506 = vmatpush1.bf16.msra.mxu0 0
        %1507 = vmatprep.subr.bf16.mxu0 0
        %1508 = vmatpush1.bf16.msra.mxu0 0
        %1509 = vmatprep.subr.bf16.mxu0 0
        %1510 = vmatpush1.bf16.msra.mxu0 0
        %1511 = vmatprep.subr.bf16.mxu0 0
        %1512 = vmatpush1.bf16.msra.mxu0 0
        %1513 = vmatprep.subr.bf16.mxu0 0
        %1514 = vmatpush1.bf16.msra.mxu0 0
        %1515 = vmatprep.subr.bf16.mxu0 0
        %1516 = vmatpush1.bf16.msra.mxu0 0
        %1517 = vmatprep.subr.bf16.mxu0 0
        %1518 = vmatpush1.bf16.msra.mxu0 0
        %1519 = vmatprep.subr.bf16.mxu0 0
        %1520 = vmatpush1.bf16.msra.mxu0 0
        %1521 = vmatprep.subr.bf16.mxu0 0
        %1522 = vmatpush1.bf16.msra.mxu0 0
        %1523 = vmatprep.subr.bf16.mxu0 0
        %1524 = vmatpush1.bf16.msra.mxu0 0
        %1525 = vmatprep.subr.bf16.mxu0 0
        %1526 = vmatpush1.bf16.msra.mxu0 0
        %1527 = vmatprep.subr.bf16.mxu0 0
        %1528 = vmatpush1.bf16.msra.mxu0 0
        %1529 = vmatprep.subr.bf16.mxu0 0
        %1530 = vmatpush1.bf16.msra.mxu0 0
        %1531 = vmatprep.mubr.bf16.mxu0 0
        %1532 = vmatmul.mubr.bf16.gmra.mrb[0].mxu0 %v854
        %v1533 = vpop.f32.mrb[0].mxu0
        %v1534 = vadd.f32 0.0, %v1533
        %v1535 = vpop.f32.mrb[0].mxu0
        %v1536 = vadd.f32 0.0, %v1535
        %v1537 = vpop.f32.mrb[0].mxu0
        %v1538 = vadd.f32 0.0, %v1537
        %v1539 = vpop.f32.mrb[0].mxu0
        %v1540 = vadd.f32 0.0, %v1539
        %1541 = vdwg.mxu0
        %1542 = vmatprep.subr.bf16.mxu0 0
        %1543 = vmatpush1.bf16.msra.mxu0 %v1489
        %1544 = vmatprep.subr.bf16.mxu0 0
        %1545 = vmatpush1.bf16.msra.mxu0 %v1492
        %1546 = vmatprep.subr.bf16.mxu0 0
        %1547 = vmatpush1.bf16.msra.mxu0 0
        %1548 = vmatprep.subr.bf16.mxu0 0
        %1549 = vmatpush1.bf16.msra.mxu0 0
        %1550 = vmatprep.subr.bf16.mxu0 0
        %1551 = vmatpush1.bf16.msra.mxu0 0
        %1552 = vmatprep.subr.bf16.mxu0 0
        %1553 = vmatpush1.bf16.msra.mxu0 0
        %1554 = vmatprep.subr.bf16.mxu0 0
        %1555 = vmatpush1.bf16.msra.mxu0 0
        %1556 = vmatprep.subr.bf16.mxu0 0
        %1557 = vmatpush1.bf16.msra.mxu0 0
        %1558 = vmatprep.subr.bf16.mxu0 0
        %1559 = vmatpush1.bf16.msra.mxu0 0
        %1560 = vmatprep.subr.bf16.mxu0 0
        %1561 = vmatpush1.bf16.msra.mxu0 0
        %1562 = vmatprep.subr.bf16.mxu0 0
        %1563 = vmatpush1.bf16.msra.mxu0 0
        %1564 = vmatprep.subr.bf16.mxu0 0
        %1565 = vmatpush1.bf16.msra.mxu0 0
        %1566 = vmatprep.subr.bf16.mxu0 0
        %1567 = vmatpush1.bf16.msra.mxu0 0
        %1568 = vmatprep.subr.bf16.mxu0 0
        %1569 = vmatpush1.bf16.msra.mxu0 0
        %1570 = vmatprep.subr.bf16.mxu0 0
        %1571 = vmatpush1.bf16.msra.mxu0 0
        %1572 = vmatprep.subr.bf16.mxu0 0
        %1573 = vmatpush1.bf16.msra.mxu0 0
        %1574 = vmatprep.mubr.bf16.mxu0 0
        %1575 = vmatmul.mubr.bf16.gmra.mrb[0].mxu0 %v854
        %v1576 = vpop.f32.mrb[0].mxu0
        %v1577 = vadd.f32 0.0, %v1576
        %v1578 = vpop.f32.mrb[0].mxu0
        %v1579 = vpop.f32.mrb[0].mxu0
        %v1580 = vadd.f32 0.0, %v1579
        %v1581 = vpop.f32.mrb[0].mxu0
        %1582 = vdwg.mxu0
        %v1583 = vadd.f32 %v1452, %v1534
        %v1584 = vadd.f32 %v1453, %v1536
        %v1585 = vadd.f32 %v1454, %v1577
        %v1586 = vadd.f32 %v1455, %v1538
        %v1587 = vadd.f32 %v1456, %v1540
        %v1588 = vadd.f32 %v1457, %v1580
        %v1589 = vmax.f32 %v940, %v1583
        %v1590 = vmax.f32 %v941, %v1584
        %v1591 = vmax.f32 %v942, %v1585
        %v1592 = vmax.f32 %v943, %v1586
        %v1593 = vmax.f32 %v944, %v1587
        %v1594 = vmax.f32 %v945, %v1588
        %1595 = vmatprep.subr.bf16.mxu0 %v294
        %1596 = vmatpush1.bf16.msra.mxu0 %v293
        %1597 = vmatprep.subr.bf16.mxu0 %v297
        %1598 = vmatpush1.bf16.msra.mxu0 %v296
        %1599 = vmatprep.subr.bf16.mxu0 0
        %1600 = vmatpush1.bf16.msra.mxu0 0
        %1601 = vmatprep.subr.bf16.mxu0 0
        %1602 = vmatpush1.bf16.msra.mxu0 0
        %1603 = vmatprep.subr.bf16.mxu0 0
        %1604 = vmatpush1.bf16.msra.mxu0 0
        %1605 = vmatprep.subr.bf16.mxu0 0
        %1606 = vmatpush1.bf16.msra.mxu0 0
        %1607 = vmatprep.subr.bf16.mxu0 0
        %1608 = vmatpush1.bf16.msra.mxu0 0
        %1609 = vmatprep.subr.bf16.mxu0 0
        %1610 = vmatpush1.bf16.msra.mxu0 0
        %1611 = vmatprep.subr.bf16.mxu0 0
        %1612 = vmatpush1.bf16.msra.mxu0 0
        %1613 = vmatprep.subr.bf16.mxu0 0
        %1614 = vmatpush1.bf16.msra.mxu0 0
        %1615 = vmatprep.subr.bf16.mxu0 0
        %1616 = vmatpush1.bf16.msra.mxu0 0
        %1617 = vmatprep.subr.bf16.mxu0 0
        %1618 = vmatpush1.bf16.msra.mxu0 0
        %1619 = vmatprep.subr.bf16.mxu0 0
        %1620 = vmatpush1.bf16.msra.mxu0 0
        %1621 = vmatprep.subr.bf16.mxu0 0
        %1622 = vmatpush1.bf16.msra.mxu0 0
        %1623 = vmatprep.subr.bf16.mxu0 0
        %1624 = vmatpush1.bf16.msra.mxu0 0
        %1625 = vmatprep.subr.bf16.mxu0 0
        %1626 = vmatpush1.bf16.msra.mxu0 0
        %1627 = vmatprep.mubr.bf16.mxu0 0
        %1628 = vmatmul.mubr.bf16.gmra.mrb[0].mxu0 %v570
        %v1629 = vpop.f32.mrb[0].mxu0
        %v1630 = vadd.f32 0.0, %v1629
        %v1631 = vpop.f32.mrb[0].mxu0
        %v1632 = vadd.f32 0.0, %v1631
        %v1633 = vpop.f32.mrb[0].mxu0
        %v1634 = vadd.f32 0.0, %v1633
        %v1635 = vpop.f32.mrb[0].mxu0
        %v1636 = vadd.f32 0.0, %v1635
        %1637 = vdwg.mxu0
        %1638 = vmatprep.subr.bf16.mxu0 0
        %1639 = vmatpush1.bf16.msra.mxu0 %v295
        %1640 = vmatprep.subr.bf16.mxu0 0
        %1641 = vmatpush1.bf16.msra.mxu0 %v298
        %1642 = vmatprep.subr.bf16.mxu0 0
        %1643 = vmatpush1.bf16.msra.mxu0 0
        %1644 = vmatprep.subr.bf16.mxu0 0
        %1645 = vmatpush1.bf16.msra.mxu0 0
        %1646 = vmatprep.subr.bf16.mxu0 0
        %1647 = vmatpush1.bf16.msra.mxu0 0
        %1648 = vmatprep.subr.bf16.mxu0 0
        %1649 = vmatpush1.bf16.msra.mxu0 0
        %1650 = vmatprep.subr.bf16.mxu0 0
        %1651 = vmatpush1.bf16.msra.mxu0 0
        %1652 = vmatprep.subr.bf16.mxu0 0
        %1653 = vmatpush1.bf16.msra.mxu0 0
        %1654 = vmatprep.subr.bf16.mxu0 0
        %1655 = vmatpush1.bf16.msra.mxu0 0
        %1656 = vmatprep.subr.bf16.mxu0 0
        %1657 = vmatpush1.bf16.msra.mxu0 0
        %1658 = vmatprep.subr.bf16.mxu0 0
        %1659 = vmatpush1.bf16.msra.mxu0 0
        %1660 = vmatprep.subr.bf16.mxu0 0
        %1661 = vmatpush1.bf16.msra.mxu0 0
        %1662 = vmatprep.subr.bf16.mxu0 0
        %1663 = vmatpush1.bf16.msra.mxu0 0
        %1664 = vmatprep.subr.bf16.mxu0 0
        %1665 = vmatpush1.bf16.msra.mxu0 0
        %1666 = vmatprep.subr.bf16.mxu0 0
        %1667 = vmatpush1.bf16.msra.mxu0 0
        %1668 = vmatprep.subr.bf16.mxu0 0
        %1669 = vmatpush1.bf16.msra.mxu0 0
        %1670 = vmatprep.mubr.bf16.mxu0 0
        %1671 = vmatmul.mubr.bf16.gmra.mrb[0].mxu0 %v570
        %v1672 = vpop.f32.mrb[0].mxu0
        %v1673 = vadd.f32 0.0, %v1672
        %v1674 = vpop.f32.mrb[0].mxu0
        %v1675 = vpop.f32.mrb[0].mxu0
        %v1676 = vadd.f32 0.0, %v1675
        %v1677 = vpop.f32.mrb[0].mxu0
        %1678 = vdwg.mxu0
        %1679 = vmatprep.subr.bf16.mxu0 %v419
        %1680 = vmatpush1.bf16.msra.mxu0 %v418
        %1681 = vmatprep.subr.bf16.mxu0 %v422
        %1682 = vmatpush1.bf16.msra.mxu0 %v421
        %1683 = vmatprep.subr.bf16.mxu0 0
        %1684 = vmatpush1.bf16.msra.mxu0 0
        %1685 = vmatprep.subr.bf16.mxu0 0
        %1686 = vmatpush1.bf16.msra.mxu0 0
        %1687 = vmatprep.subr.bf16.mxu0 0
        %1688 = vmatpush1.bf16.msra.mxu0 0
        %1689 = vmatprep.subr.bf16.mxu0 0
        %1690 = vmatpush1.bf16.msra.mxu0 0
        %1691 = vmatprep.subr.bf16.mxu0 0
        %1692 = vmatpush1.bf16.msra.mxu0 0
        %1693 = vmatprep.subr.bf16.mxu0 0
        %1694 = vmatpush1.bf16.msra.mxu0 0
        %1695 = vmatprep.subr.bf16.mxu0 0
        %1696 = vmatpush1.bf16.msra.mxu0 0
        %1697 = vmatprep.subr.bf16.mxu0 0
        %1698 = vmatpush1.bf16.msra.mxu0 0
        %1699 = vmatprep.subr.bf16.mxu0 0
        %1700 = vmatpush1.bf16.msra.mxu0 0
        %1701 = vmatprep.subr.bf16.mxu0 0
        %1702 = vmatpush1.bf16.msra.mxu0 0
        %1703 = vmatprep.subr.bf16.mxu0 0
        %1704 = vmatpush1.bf16.msra.mxu0 0
        %1705 = vmatprep.subr.bf16.mxu0 0
        %1706 = vmatpush1.bf16.msra.mxu0 0
        %1707 = vmatprep.subr.bf16.mxu0 0
        %1708 = vmatpush1.bf16.msra.mxu0 0
        %1709 = vmatprep.subr.bf16.mxu0 0
        %1710 = vmatpush1.bf16.msra.mxu0 0
        %1711 = vmatprep.mubr.bf16.mxu0 0
        %1712 = vmatmul.mubr.bf16.gmra.mrb[0].mxu0 %v307
        %v1713 = vpop.f32.mrb[0].mxu0
        %v1714 = vadd.f32 %v1630, %v1713
        %v1715 = vpop.f32.mrb[0].mxu0
        %v1716 = vadd.f32 %v1632, %v1715
        %v1717 = vpop.f32.mrb[0].mxu0
        %v1718 = vadd.f32 %v1634, %v1717
        %v1719 = vpop.f32.mrb[0].mxu0
        %v1720 = vadd.f32 %v1636, %v1719
        %1721 = vdwg.mxu0
        %1722 = vmatprep.subr.bf16.mxu0 0
        %1723 = vmatpush1.bf16.msra.mxu0 %v420
        %1724 = vmatprep.subr.bf16.mxu0 0
        %1725 = vmatpush1.bf16.msra.mxu0 %v423
        %1726 = vmatprep.subr.bf16.mxu0 0
        %1727 = vmatpush1.bf16.msra.mxu0 0
        %1728 = vmatprep.subr.bf16.mxu0 0
        %1729 = vmatpush1.bf16.msra.mxu0 0
        %1730 = vmatprep.subr.bf16.mxu0 0
        %1731 = vmatpush1.bf16.msra.mxu0 0
        %1732 = vmatprep.subr.bf16.mxu0 0
        %1733 = vmatpush1.bf16.msra.mxu0 0
        %1734 = vmatprep.subr.bf16.mxu0 0
        %1735 = vmatpush1.bf16.msra.mxu0 0
        %1736 = vmatprep.subr.bf16.mxu0 0
        %1737 = vmatpush1.bf16.msra.mxu0 0
        %1738 = vmatprep.subr.bf16.mxu0 0
        %1739 = vmatpush1.bf16.msra.mxu0 0
        %1740 = vmatprep.subr.bf16.mxu0 0
        %1741 = vmatpush1.bf16.msra.mxu0 0
        %1742 = vmatprep.subr.bf16.mxu0 0
        %1743 = vmatpush1.bf16.msra.mxu0 0
        %1744 = vmatprep.subr.bf16.mxu0 0
        %1745 = vmatpush1.bf16.msra.mxu0 0
        %1746 = vmatprep.subr.bf16.mxu0 0
        %1747 = vmatpush1.bf16.msra.mxu0 0
        %1748 = vmatprep.subr.bf16.mxu0 0
        %1749 = vmatpush1.bf16.msra.mxu0 0
        %1750 = vmatprep.subr.bf16.mxu0 0
        %1751 = vmatpush1.bf16.msra.mxu0 0
        %1752 = vmatprep.subr.bf16.mxu0 0
        %1753 = vmatpush1.bf16.msra.mxu0 0
        %1754 = vmatprep.mubr.bf16.mxu0 0
        %1755 = vmatmul.mubr.bf16.gmra.mrb[0].mxu0 %v307
        %v1756 = vpop.f32.mrb[0].mxu0
        %v1757 = vadd.f32 %v1673, %v1756
        %v1758 = vpop.f32.mrb[0].mxu0
        %v1759 = vpop.f32.mrb[0].mxu0
        %v1760 = vadd.f32 %v1676, %v1759
        %v1761 = vpop.f32.mrb[0].mxu0
        %1762 = vdwg.mxu0
        %1763 = vmatprep.subr.bf16.mxu0 %v558
        %1764 = vmatpush1.bf16.msra.mxu0 %v557
        %1765 = vmatprep.subr.bf16.mxu0 %v561
        %1766 = vmatpush1.bf16.msra.mxu0 %v560
        %1767 = vmatprep.subr.bf16.mxu0 0
        %1768 = vmatpush1.bf16.msra.mxu0 0
        %1769 = vmatprep.subr.bf16.mxu0 0
        %1770 = vmatpush1.bf16.msra.mxu0 0
        %1771 = vmatprep.subr.bf16.mxu0 0
        %1772 = vmatpush1.bf16.msra.mxu0 0
        %1773 = vmatprep.subr.bf16.mxu0 0
        %1774 = vmatpush1.bf16.msra.mxu0 0
        %1775 = vmatprep.subr.bf16.mxu0 0
        %1776 = vmatpush1.bf16.msra.mxu0 0
        %1777 = vmatprep.subr.bf16.mxu0 0
        %1778 = vmatpush1.bf16.msra.mxu0 0
        %1779 = vmatprep.subr.bf16.mxu0 0
        %1780 = vmatpush1.bf16.msra.mxu0 0
        %1781 = vmatprep.subr.bf16.mxu0 0
        %1782 = vmatpush1.bf16.msra.mxu0 0
        %1783 = vmatprep.subr.bf16.mxu0 0
        %1784 = vmatpush1.bf16.msra.mxu0 0
        %1785 = vmatprep.subr.bf16.mxu0 0
        %1786 = vmatpush1.bf16.msra.mxu0 0
        %1787 = vmatprep.subr.bf16.mxu0 0
        %1788 = vmatpush1.bf16.msra.mxu0 0
        %1789 = vmatprep.subr.bf16.mxu0 0
        %1790 = vmatpush1.bf16.msra.mxu0 0
        %1791 = vmatprep.subr.bf16.mxu0 0
        %1792 = vmatpush1.bf16.msra.mxu0 0
        %1793 = vmatprep.subr.bf16.mxu0 0
        %1794 = vmatpush1.bf16.msra.mxu0 0
        %1795 = vmatprep.mubr.bf16.mxu0 0
        %1796 = vmatmul.mubr.bf16.gmra.mrb[0].mxu0 %v715
        %v1797 = vpop.f32.mrb[0].mxu0
        %v1798 = vadd.f32 0.0, %v1797
        %v1799 = vpop.f32.mrb[0].mxu0
        %v1800 = vadd.f32 0.0, %v1799
        %v1801 = vpop.f32.mrb[0].mxu0
        %v1802 = vadd.f32 0.0, %v1801
        %v1803 = vpop.f32.mrb[0].mxu0
        %v1804 = vadd.f32 0.0, %v1803
        %1805 = vdwg.mxu0
        %1806 = vmatprep.subr.bf16.mxu0 0
        %1807 = vmatpush1.bf16.msra.mxu0 %v559
        %1808 = vmatprep.subr.bf16.mxu0 0
        %1809 = vmatpush1.bf16.msra.mxu0 %v562
        %1810 = vmatprep.subr.bf16.mxu0 0
        %1811 = vmatpush1.bf16.msra.mxu0 0
        %1812 = vmatprep.subr.bf16.mxu0 0
        %1813 = vmatpush1.bf16.msra.mxu0 0
        %1814 = vmatprep.subr.bf16.mxu0 0
        %1815 = vmatpush1.bf16.msra.mxu0 0
        %1816 = vmatprep.subr.bf16.mxu0 0
        %1817 = vmatpush1.bf16.msra.mxu0 0
        %1818 = vmatprep.subr.bf16.mxu0 0
        %1819 = vmatpush1.bf16.msra.mxu0 0
        %1820 = vmatprep.subr.bf16.mxu0 0
        %1821 = vmatpush1.bf16.msra.mxu0 0
        %1822 = vmatprep.subr.bf16.mxu0 0
        %1823 = vmatpush1.bf16.msra.mxu0 0
        %1824 = vmatprep.subr.bf16.mxu0 0
        %1825 = vmatpush1.bf16.msra.mxu0 0
        %1826 = vmatprep.subr.bf16.mxu0 0
        %1827 = vmatpush1.bf16.msra.mxu0 0
        %1828 = vmatprep.subr.bf16.mxu0 0
        %1829 = vmatpush1.bf16.msra.mxu0 0
        %1830 = vmatprep.subr.bf16.mxu0 0
        %1831 = vmatpush1.bf16.msra.mxu0 0
        %1832 = vmatprep.subr.bf16.mxu0 0
        %1833 = vmatpush1.bf16.msra.mxu0 0
        %1834 = vmatprep.subr.bf16.mxu0 0
        %1835 = vmatpush1.bf16.msra.mxu0 0
        %1836 = vmatprep.subr.bf16.mxu0 0
        %1837 = vmatpush1.bf16.msra.mxu0 0
        %1838 = vmatprep.mubr.bf16.mxu0 0
        %1839 = vmatmul.mubr.bf16.gmra.mrb[0].mxu0 %v715
        %v1840 = vpop.f32.mrb[0].mxu0
        %v1841 = vadd.f32 0.0, %v1840
        %v1842 = vpop.f32.mrb[0].mxu0
        %v1843 = vpop.f32.mrb[0].mxu0
        %v1844 = vadd.f32 0.0, %v1843
        %v1845 = vpop.f32.mrb[0].mxu0
        %1846 = vdwg.mxu0
        %v1847 = vadd.f32 %v1714, %v1798
        %v1848 = vadd.f32 %v1716, %v1800
        %v1849 = vadd.f32 %v1757, %v1841
        %v1850 = vadd.f32 %v1718, %v1802
        %v1851 = vadd.f32 %v1720, %v1804
        %v1852 = vadd.f32 %v1760, %v1844
        %1853 = vmatprep.subr.bf16.mxu0 %v703
        %1854 = vmatpush1.bf16.msra.mxu0 %v702
        %1855 = vmatprep.subr.bf16.mxu0 %v706
        %1856 = vmatpush1.bf16.msra.mxu0 %v705
        %1857 = vmatprep.subr.bf16.mxu0 0
        %1858 = vmatpush1.bf16.msra.mxu0 0
        %1859 = vmatprep.subr.bf16.mxu0 0
        %1860 = vmatpush1.bf16.msra.mxu0 0
        %1861 = vmatprep.subr.bf16.mxu0 0
        %1862 = vmatpush1.bf16.msra.mxu0 0
        %1863 = vmatprep.subr.bf16.mxu0 0
        %1864 = vmatpush1.bf16.msra.mxu0 0
        %1865 = vmatprep.subr.bf16.mxu0 0
        %1866 = vmatpush1.bf16.msra.mxu0 0
        %1867 = vmatprep.subr.bf16.mxu0 0
        %1868 = vmatpush1.bf16.msra.mxu0 0
        %1869 = vmatprep.subr.bf16.mxu0 0
        %1870 = vmatpush1.bf16.msra.mxu0 0
        %1871 = vmatprep.subr.bf16.mxu0 0
        %1872 = vmatpush1.bf16.msra.mxu0 0
        %1873 = vmatprep.subr.bf16.mxu0 0
        %1874 = vmatpush1.bf16.msra.mxu0 0
        %1875 = vmatprep.subr.bf16.mxu0 0
        %1876 = vmatpush1.bf16.msra.mxu0 0
        %1877 = vmatprep.subr.bf16.mxu0 0
        %1878 = vmatpush1.bf16.msra.mxu0 0
        %1879 = vmatprep.subr.bf16.mxu0 0
        %1880 = vmatpush1.bf16.msra.mxu0 0
        %1881 = vmatprep.subr.bf16.mxu0 0
        %1882 = vmatpush1.bf16.msra.mxu0 0
        %1883 = vmatprep.subr.bf16.mxu0 0
        %1884 = vmatpush1.bf16.msra.mxu0 0
        %1885 = vmatprep.mubr.bf16.mxu0 0
        %1886 = vmatmul.mubr.bf16.gmra.mrb[0].mxu0 %v854
        %v1887 = vpop.f32.mrb[0].mxu0
        %v1888 = vadd.f32 0.0, %v1887
        %v1889 = vpop.f32.mrb[0].mxu0
        %v1890 = vadd.f32 0.0, %v1889
        %v1891 = vpop.f32.mrb[0].mxu0
        %v1892 = vadd.f32 0.0, %v1891
        %v1893 = vpop.f32.mrb[0].mxu0
        %v1894 = vadd.f32 0.0, %v1893
        %1895 = vdwg.mxu0
        %1896 = vmatprep.subr.bf16.mxu0 0
        %1897 = vmatpush1.bf16.msra.mxu0 %v704
        %1898 = vmatprep.subr.bf16.mxu0 0
        %1899 = vmatpush1.bf16.msra.mxu0 %v707
        %1900 = vmatprep.subr.bf16.mxu0 0
        %1901 = vmatpush1.bf16.msra.mxu0 0
        %1902 = vmatprep.subr.bf16.mxu0 0
        %1903 = vmatpush1.bf16.msra.mxu0 0
        %1904 = vmatprep.subr.bf16.mxu0 0
        %1905 = vmatpush1.bf16.msra.mxu0 0
        %1906 = vmatprep.subr.bf16.mxu0 0
        %1907 = vmatpush1.bf16.msra.mxu0 0
        %1908 = vmatprep.subr.bf16.mxu0 0
        %1909 = vmatpush1.bf16.msra.mxu0 0
        %1910 = vmatprep.subr.bf16.mxu0 0
        %1911 = vmatpush1.bf16.msra.mxu0 0
        %1912 = vmatprep.subr.bf16.mxu0 0
        %1913 = vmatpush1.bf16.msra.mxu0 0
        %1914 = vmatprep.subr.bf16.mxu0 0
        %1915 = vmatpush1.bf16.msra.mxu0 0
        %1916 = vmatprep.subr.bf16.mxu0 0
        %1917 = vmatpush1.bf16.msra.mxu0 0
        %1918 = vmatprep.subr.bf16.mxu0 0
        %1919 = vmatpush1.bf16.msra.mxu0 0
        %1920 = vmatprep.subr.bf16.mxu0 0
        %1921 = vmatpush1.bf16.msra.mxu0 0
        %1922 = vmatprep.subr.bf16.mxu0 0
        %1923 = vmatpush1.bf16.msra.mxu0 0
        %1924 = vmatprep.subr.bf16.mxu0 0
        %1925 = vmatpush1.bf16.msra.mxu0 0
        %1926 = vmatprep.subr.bf16.mxu0 0
        %1927 = vmatpush1.bf16.msra.mxu0 0
        %1928 = vmatprep.mubr.bf16.mxu0 0
        %1929 = vmatmul.mubr.bf16.gmra.mrb[0].mxu0 %v854
        %v1930 = vpop.f32.mrb[0].mxu0
        %v1931 = vadd.f32 0.0, %v1930
        %v1932 = vpop.f32.mrb[0].mxu0
        %v1933 = vpop.f32.mrb[0].mxu0
        %v1934 = vadd.f32 0.0, %v1933
        %v1935 = vpop.f32.mrb[0].mxu0
        %1936 = vdwg.mxu0
        %v1937 = vadd.f32 %v1847, %v1888
        %v1938 = vadd.f32 %v1848, %v1890
        %v1939 = vadd.f32 %v1849, %v1931
        %v1940 = vadd.f32 %v1850, %v1892
        %v1941 = vadd.f32 %v1851, %v1894
        %v1942 = vadd.f32 %v1852, %v1934
        %v1943 = vld [vmem:[%s240] sm:$0xe]
        %v1945 = vunpack.c.l.b16 %v1943
        %v1946 = vpack.c.b16 %v673, %v1945
        %v1947 = vrot.slane %v1946, 1
        %v1949 = vsel %vm305, %v1947, 0
        %1951 = vmatprep.subr.bf16.mxu0 %v842
        %1952 = vmatpush1.bf16.msra.mxu0 %v841
        %1953 = vmatprep.subr.bf16.mxu0 %v845
        %1954 = vmatpush1.bf16.msra.mxu0 %v844
        %1955 = vmatprep.subr.bf16.mxu0 0
        %1956 = vmatpush1.bf16.msra.mxu0 0
        %1957 = vmatprep.subr.bf16.mxu0 0
        %1958 = vmatpush1.bf16.msra.mxu0 0
        %1959 = vmatprep.subr.bf16.mxu0 0
        %1960 = vmatpush1.bf16.msra.mxu0 0
        %1961 = vmatprep.subr.bf16.mxu0 0
        %1962 = vmatpush1.bf16.msra.mxu0 0
        %1963 = vmatprep.subr.bf16.mxu0 0
        %1964 = vmatpush1.bf16.msra.mxu0 0
        %1965 = vmatprep.subr.bf16.mxu0 0
        %1966 = vmatpush1.bf16.msra.mxu0 0
        %1967 = vmatprep.subr.bf16.mxu0 0
        %1968 = vmatpush1.bf16.msra.mxu0 0
        %1969 = vmatprep.subr.bf16.mxu0 0
        %1970 = vmatpush1.bf16.msra.mxu0 0
        %1971 = vmatprep.subr.bf16.mxu0 0
        %1972 = vmatpush1.bf16.msra.mxu0 0
        %1973 = vmatprep.subr.bf16.mxu0 0
        %1974 = vmatpush1.bf16.msra.mxu0 0
        %1975 = vmatprep.subr.bf16.mxu0 0
        %1976 = vmatpush1.bf16.msra.mxu0 0
        %1977 = vmatprep.subr.bf16.mxu0 0
        %1978 = vmatpush1.bf16.msra.mxu0 0
        %1979 = vmatprep.subr.bf16.mxu0 0
        %1980 = vmatpush1.bf16.msra.mxu0 0
        %1981 = vmatprep.subr.bf16.mxu0 0
        %1982 = vmatpush1.bf16.msra.mxu0 0
        %1983 = vmatprep.mubr.bf16.mxu0 0
        %1984 = vmatmul.mubr.bf16.gmra.mrb[0].mxu0 %v1949
        %v1985 = vpop.f32.mrb[0].mxu0
        %v1986 = vadd.f32 0.0, %v1985
        %v1987 = vpop.f32.mrb[0].mxu0
        %v1988 = vadd.f32 0.0, %v1987
        %v1989 = vpop.f32.mrb[0].mxu0
        %v1990 = vadd.f32 0.0, %v1989
        %v1991 = vpop.f32.mrb[0].mxu0
        %v1992 = vadd.f32 0.0, %v1991
        %1993 = vdwg.mxu0
        %1994 = vmatprep.subr.bf16.mxu0 0
        %1995 = vmatpush1.bf16.msra.mxu0 %v843
        %1996 = vmatprep.subr.bf16.mxu0 0
        %1997 = vmatpush1.bf16.msra.mxu0 %v846
        %1998 = vmatprep.subr.bf16.mxu0 0
        %1999 = vmatpush1.bf16.msra.mxu0 0
        %2000 = vmatprep.subr.bf16.mxu0 0
        %2001 = vmatpush1.bf16.msra.mxu0 0
        %2002 = vmatprep.subr.bf16.mxu0 0
        %2003 = vmatpush1.bf16.msra.mxu0 0
        %2004 = vmatprep.subr.bf16.mxu0 0
        %2005 = vmatpush1.bf16.msra.mxu0 0
        %2006 = vmatprep.subr.bf16.mxu0 0
        %2007 = vmatpush1.bf16.msra.mxu0 0
        %2008 = vmatprep.subr.bf16.mxu0 0
        %2009 = vmatpush1.bf16.msra.mxu0 0
        %2010 = vmatprep.subr.bf16.mxu0 0
        %2011 = vmatpush1.bf16.msra.mxu0 0
        %2012 = vmatprep.subr.bf16.mxu0 0
        %2013 = vmatpush1.bf16.msra.mxu0 0
        %2014 = vmatprep.subr.bf16.mxu0 0
        %2015 = vmatpush1.bf16.msra.mxu0 0
        %2016 = vmatprep.subr.bf16.mxu0 0
        %2017 = vmatpush1.bf16.msra.mxu0 0
        %2018 = vmatprep.subr.bf16.mxu0 0
        %2019 = vmatpush1.bf16.msra.mxu0 0
        %2020 = vmatprep.subr.bf16.mxu0 0
        %2021 = vmatpush1.bf16.msra.mxu0 0
        %2022 = vmatprep.subr.bf16.mxu0 0
        %2023 = vmatpush1.bf16.msra.mxu0 0
        %2024 = vmatprep.subr.bf16.mxu0 0
        %2025 = vmatpush1.bf16.msra.mxu0 0
        %2026 = vmatprep.mubr.bf16.mxu0 0
        %2027 = vmatmul.mubr.bf16.gmra.mrb[0].mxu0 %v1949
        %v2028 = vpop.f32.mrb[0].mxu0
        %v2029 = vadd.f32 0.0, %v2028
        %v2030 = vpop.f32.mrb[0].mxu0
        %v2031 = vpop.f32.mrb[0].mxu0
        %v2032 = vadd.f32 0.0, %v2031
        %v2033 = vpop.f32.mrb[0].mxu0
        %2034 = vdwg.mxu0
        %v2035 = vadd.f32 %v1937, %v1986
        %v2036 = vadd.f32 %v1938, %v1988
        %v2037 = vadd.f32 %v1939, %v2029
        %v2038 = vadd.f32 %v1940, %v1990
        %v2039 = vadd.f32 %v1941, %v1992
        %v2040 = vadd.f32 %v1942, %v2032
        %v2041 = vmax.f32 %v1589, %v2035
        %v2042 = vmax.f32 %v1590, %v2036
        %v2043 = vmax.f32 %v1591, %v2037
        %v2044 = vmax.f32 %v1592, %v2038
        %v2045 = vmax.f32 %v1593, %v2039
        %v2046 = vmax.f32 %v1594, %v2040
        %2047 = vmatprep.subr.bf16.mxu0 %v985
        %2048 = vmatpush1.bf16.msra.mxu0 %v984
        %2049 = vmatprep.subr.bf16.mxu0 %v988
        %2050 = vmatpush1.bf16.msra.mxu0 %v987
        %2051 = vmatprep.subr.bf16.mxu0 0
        %2052 = vmatpush1.bf16.msra.mxu0 0
        %2053 = vmatprep.subr.bf16.mxu0 0
        %2054 = vmatpush1.bf16.msra.mxu0 0
        %2055 = vmatprep.subr.bf16.mxu0 0
        %2056 = vmatpush1.bf16.msra.mxu0 0
        %2057 = vmatprep.subr.bf16.mxu0 0
        %2058 = vmatpush1.bf16.msra.mxu0 0
        %2059 = vmatprep.subr.bf16.mxu0 0
        %2060 = vmatpush1.bf16.msra.mxu0 0
        %2061 = vmatprep.subr.bf16.mxu0 0
        %2062 = vmatpush1.bf16.msra.mxu0 0
        %2063 = vmatprep.subr.bf16.mxu0 0
        %2064 = vmatpush1.bf16.msra.mxu0 0
        %2065 = vmatprep.subr.bf16.mxu0 0
        %2066 = vmatpush1.bf16.msra.mxu0 0
        %2067 = vmatprep.subr.bf16.mxu0 0
        %2068 = vmatpush1.bf16.msra.mxu0 0
        %2069 = vmatprep.subr.bf16.mxu0 0
        %2070 = vmatpush1.bf16.msra.mxu0 0
        %2071 = vmatprep.subr.bf16.mxu0 0
        %2072 = vmatpush1.bf16.msra.mxu0 0
        %2073 = vmatprep.subr.bf16.mxu0 0
        %2074 = vmatpush1.bf16.msra.mxu0 0
        %2075 = vmatprep.subr.bf16.mxu0 0
        %2076 = vmatpush1.bf16.msra.mxu0 0
        %2077 = vmatprep.subr.bf16.mxu0 0
        %2078 = vmatpush1.bf16.msra.mxu0 0
        %2079 = vmatprep.mubr.bf16.mxu0 0
        %2080 = vmatmul.mubr.bf16.gmra.mrb[0].mxu0 %v570
        %v2081 = vpop.f32.mrb[0].mxu0
        %v2082 = vadd.f32 0.0, %v2081
        %v2083 = vpop.f32.mrb[0].mxu0
        %v2084 = vadd.f32 0.0, %v2083
        %v2085 = vpop.f32.mrb[0].mxu0
        %v2086 = vadd.f32 0.0, %v2085
        %v2087 = vpop.f32.mrb[0].mxu0
        %v2088 = vadd.f32 0.0, %v2087
        %2089 = vdwg.mxu0
        %2090 = vmatprep.subr.bf16.mxu0 0
        %2091 = vmatpush1.bf16.msra.mxu0 %v986
        %2092 = vmatprep.subr.bf16.mxu0 0
        %2093 = vmatpush1.bf16.msra.mxu0 %v989
        %2094 = vmatprep.subr.bf16.mxu0 0
        %2095 = vmatpush1.bf16.msra.mxu0 0
        %2096 = vmatprep.subr.bf16.mxu0 0
        %2097 = vmatpush1.bf16.msra.mxu0 0
        %2098 = vmatprep.subr.bf16.mxu0 0
        %2099 = vmatpush1.bf16.msra.mxu0 0
        %2100 = vmatprep.subr.bf16.mxu0 0
        %2101 = vmatpush1.bf16.msra.mxu0 0
        %2102 = vmatprep.subr.bf16.mxu0 0
        %2103 = vmatpush1.bf16.msra.mxu0 0
        %2104 = vmatprep.subr.bf16.mxu0 0
        %2105 = vmatpush1.bf16.msra.mxu0 0
        %2106 = vmatprep.subr.bf16.mxu0 0
        %2107 = vmatpush1.bf16.msra.mxu0 0
        %2108 = vmatprep.subr.bf16.mxu0 0
        %2109 = vmatpush1.bf16.msra.mxu0 0
        %2110 = vmatprep.subr.bf16.mxu0 0
        %2111 = vmatpush1.bf16.msra.mxu0 0
        %2112 = vmatprep.subr.bf16.mxu0 0
        %2113 = vmatpush1.bf16.msra.mxu0 0
        %2114 = vmatprep.subr.bf16.mxu0 0
        %2115 = vmatpush1.bf16.msra.mxu0 0
        %2116 = vmatprep.subr.bf16.mxu0 0
        %2117 = vmatpush1.bf16.msra.mxu0 0
        %2118 = vmatprep.subr.bf16.mxu0 0
        %2119 = vmatpush1.bf16.msra.mxu0 0
        %2120 = vmatprep.subr.bf16.mxu0 0
        %2121 = vmatpush1.bf16.msra.mxu0 0
        %2122 = vmatprep.mubr.bf16.mxu0 0
        %2123 = vmatmul.mubr.bf16.gmra.mrb[0].mxu0 %v570
        %v2124 = vpop.f32.mrb[0].mxu0
        %v2125 = vadd.f32 0.0, %v2124
        %v2126 = vpop.f32.mrb[0].mxu0
        %v2127 = vpop.f32.mrb[0].mxu0
        %v2128 = vadd.f32 0.0, %v2127
        %v2129 = vpop.f32.mrb[0].mxu0
        %2130 = vdwg.mxu0
        %2131 = vmatprep.subr.bf16.mxu0 %v1101
        %2132 = vmatpush1.bf16.msra.mxu0 %v1100
        %2133 = vmatprep.subr.bf16.mxu0 %v1104
        %2134 = vmatpush1.bf16.msra.mxu0 %v1103
        %2135 = vmatprep.subr.bf16.mxu0 0
        %2136 = vmatpush1.bf16.msra.mxu0 0
        %2137 = vmatprep.subr.bf16.mxu0 0
        %2138 = vmatpush1.bf16.msra.mxu0 0
        %2139 = vmatprep.subr.bf16.mxu0 0
        %2140 = vmatpush1.bf16.msra.mxu0 0
        %2141 = vmatprep.subr.bf16.mxu0 0
        %2142 = vmatpush1.bf16.msra.mxu0 0
        %2143 = vmatprep.subr.bf16.mxu0 0
        %2144 = vmatpush1.bf16.msra.mxu0 0
        %2145 = vmatprep.subr.bf16.mxu0 0
        %2146 = vmatpush1.bf16.msra.mxu0 0
        %2147 = vmatprep.subr.bf16.mxu0 0
        %2148 = vmatpush1.bf16.msra.mxu0 0
        %2149 = vmatprep.subr.bf16.mxu0 0
        %2150 = vmatpush1.bf16.msra.mxu0 0
        %2151 = vmatprep.subr.bf16.mxu0 0
        %2152 = vmatpush1.bf16.msra.mxu0 0
        %2153 = vmatprep.subr.bf16.mxu0 0
        %2154 = vmatpush1.bf16.msra.mxu0 0
        %2155 = vmatprep.subr.bf16.mxu0 0
        %2156 = vmatpush1.bf16.msra.mxu0 0
        %2157 = vmatprep.subr.bf16.mxu0 0
        %2158 = vmatpush1.bf16.msra.mxu0 0
        %2159 = vmatprep.subr.bf16.mxu0 0
        %2160 = vmatpush1.bf16.msra.mxu0 0
        %2161 = vmatprep.subr.bf16.mxu0 0
        %2162 = vmatpush1.bf16.msra.mxu0 0
        %2163 = vmatprep.mubr.bf16.mxu0 0
        %2164 = vmatmul.mubr.bf16.gmra.mrb[0].mxu0 %v307
        %v2165 = vpop.f32.mrb[0].mxu0
        %v2166 = vadd.f32 %v2082, %v2165
        %v2167 = vpop.f32.mrb[0].mxu0
        %v2168 = vadd.f32 %v2084, %v2167
        %v2169 = vpop.f32.mrb[0].mxu0
        %v2170 = vadd.f32 %v2086, %v2169
        %v2171 = vpop.f32.mrb[0].mxu0
        %v2172 = vadd.f32 %v2088, %v2171
        %2173 = vdwg.mxu0
        %2174 = vmatprep.subr.bf16.mxu0 0
        %2175 = vmatpush1.bf16.msra.mxu0 %v1102
        %2176 = vmatprep.subr.bf16.mxu0 0
        %2177 = vmatpush1.bf16.msra.mxu0 %v1105
        %2178 = vmatprep.subr.bf16.mxu0 0
        %2179 = vmatpush1.bf16.msra.mxu0 0
        %2180 = vmatprep.subr.bf16.mxu0 0
        %2181 = vmatpush1.bf16.msra.mxu0 0
        %2182 = vmatprep.subr.bf16.mxu0 0
        %2183 = vmatpush1.bf16.msra.mxu0 0
        %2184 = vmatprep.subr.bf16.mxu0 0
        %2185 = vmatpush1.bf16.msra.mxu0 0
        %2186 = vmatprep.subr.bf16.mxu0 0
        %2187 = vmatpush1.bf16.msra.mxu0 0
        %2188 = vmatprep.subr.bf16.mxu0 0
        %2189 = vmatpush1.bf16.msra.mxu0 0
        %2190 = vmatprep.subr.bf16.mxu0 0
        %2191 = vmatpush1.bf16.msra.mxu0 0
        %2192 = vmatprep.subr.bf16.mxu0 0
        %2193 = vmatpush1.bf16.msra.mxu0 0
        %2194 = vmatprep.subr.bf16.mxu0 0
        %2195 = vmatpush1.bf16.msra.mxu0 0
        %2196 = vmatprep.subr.bf16.mxu0 0
        %2197 = vmatpush1.bf16.msra.mxu0 0
        %2198 = vmatprep.subr.bf16.mxu0 0
        %2199 = vmatpush1.bf16.msra.mxu0 0
        %2200 = vmatprep.subr.bf16.mxu0 0
        %2201 = vmatpush1.bf16.msra.mxu0 0
        %2202 = vmatprep.subr.bf16.mxu0 0
        %2203 = vmatpush1.bf16.msra.mxu0 0
        %2204 = vmatprep.subr.bf16.mxu0 0
        %2205 = vmatpush1.bf16.msra.mxu0 0
        %2206 = vmatprep.mubr.bf16.mxu0 0
        %2207 = vmatmul.mubr.bf16.gmra.mrb[0].mxu0 %v307
        %v2208 = vpop.f32.mrb[0].mxu0
        %v2209 = vadd.f32 %v2125, %v2208
        %v2210 = vpop.f32.mrb[0].mxu0
        %v2211 = vpop.f32.mrb[0].mxu0
        %v2212 = vadd.f32 %v2128, %v2211
        %v2213 = vpop.f32.mrb[0].mxu0
        %2214 = vdwg.mxu0
        %2215 = vmatprep.subr.bf16.mxu0 %v1226
        %2216 = vmatpush1.bf16.msra.mxu0 %v1225
        %2217 = vmatprep.subr.bf16.mxu0 %v1229
        %2218 = vmatpush1.bf16.msra.mxu0 %v1228
        %2219 = vmatprep.subr.bf16.mxu0 0
        %2220 = vmatpush1.bf16.msra.mxu0 0
        %2221 = vmatprep.subr.bf16.mxu0 0
        %2222 = vmatpush1.bf16.msra.mxu0 0
        %2223 = vmatprep.subr.bf16.mxu0 0
        %2224 = vmatpush1.bf16.msra.mxu0 0
        %2225 = vmatprep.subr.bf16.mxu0 0
        %2226 = vmatpush1.bf16.msra.mxu0 0
        %2227 = vmatprep.subr.bf16.mxu0 0
        %2228 = vmatpush1.bf16.msra.mxu0 0
        %2229 = vmatprep.subr.bf16.mxu0 0
        %2230 = vmatpush1.bf16.msra.mxu0 0
        %2231 = vmatprep.subr.bf16.mxu0 0
        %2232 = vmatpush1.bf16.msra.mxu0 0
        %2233 = vmatprep.subr.bf16.mxu0 0
        %2234 = vmatpush1.bf16.msra.mxu0 0
        %2235 = vmatprep.subr.bf16.mxu0 0
        %2236 = vmatpush1.bf16.msra.mxu0 0
        %2237 = vmatprep.subr.bf16.mxu0 0
        %2238 = vmatpush1.bf16.msra.mxu0 0
        %2239 = vmatprep.subr.bf16.mxu0 0
        %2240 = vmatpush1.bf16.msra.mxu0 0
        %2241 = vmatprep.subr.bf16.mxu0 0
        %2242 = vmatpush1.bf16.msra.mxu0 0
        %2243 = vmatprep.subr.bf16.mxu0 0
        %2244 = vmatpush1.bf16.msra.mxu0 0
        %2245 = vmatprep.subr.bf16.mxu0 0
        %2246 = vmatpush1.bf16.msra.mxu0 0
        %2247 = vmatprep.mubr.bf16.mxu0 0
        %2248 = vmatmul.mubr.bf16.gmra.mrb[0].mxu0 %v715
        %v2249 = vpop.f32.mrb[0].mxu0
        %v2250 = vadd.f32 0.0, %v2249
        %v2251 = vpop.f32.mrb[0].mxu0
        %v2252 = vadd.f32 0.0, %v2251
        %v2253 = vpop.f32.mrb[0].mxu0
        %v2254 = vadd.f32 0.0, %v2253
        %v2255 = vpop.f32.mrb[0].mxu0
        %v2256 = vadd.f32 0.0, %v2255
        %2257 = vdwg.mxu0
        %2258 = vmatprep.subr.bf16.mxu0 0
        %2259 = vmatpush1.bf16.msra.mxu0 %v1227
        %2260 = vmatprep.subr.bf16.mxu0 0
        %2261 = vmatpush1.bf16.msra.mxu0 %v1230
        %2262 = vmatprep.subr.bf16.mxu0 0
        %2263 = vmatpush1.bf16.msra.mxu0 0
        %2264 = vmatprep.subr.bf16.mxu0 0
        %2265 = vmatpush1.bf16.msra.mxu0 0
        %2266 = vmatprep.subr.bf16.mxu0 0
        %2267 = vmatpush1.bf16.msra.mxu0 0
        %2268 = vmatprep.subr.bf16.mxu0 0
        %2269 = vmatpush1.bf16.msra.mxu0 0
        %2270 = vmatprep.subr.bf16.mxu0 0
        %2271 = vmatpush1.bf16.msra.mxu0 0
        %2272 = vmatprep.subr.bf16.mxu0 0
        %2273 = vmatpush1.bf16.msra.mxu0 0
        %2274 = vmatprep.subr.bf16.mxu0 0
        %2275 = vmatpush1.bf16.msra.mxu0 0
        %2276 = vmatprep.subr.bf16.mxu0 0
        %2277 = vmatpush1.bf16.msra.mxu0 0
        %2278 = vmatprep.subr.bf16.mxu0 0
        %2279 = vmatpush1.bf16.msra.mxu0 0
        %2280 = vmatprep.subr.bf16.mxu0 0
        %2281 = vmatpush1.bf16.msra.mxu0 0
        %2282 = vmatprep.subr.bf16.mxu0 0
        %2283 = vmatpush1.bf16.msra.mxu0 0
        %2284 = vmatprep.subr.bf16.mxu0 0
        %2285 = vmatpush1.bf16.msra.mxu0 0
        %2286 = vmatprep.subr.bf16.mxu0 0
        %2287 = vmatpush1.bf16.msra.mxu0 0
        %2288 = vmatprep.subr.bf16.mxu0 0
        %2289 = vmatpush1.bf16.msra.mxu0 0
        %2290 = vmatprep.mubr.bf16.mxu0 0
        %2291 = vmatmul.mubr.bf16.gmra.mrb[0].mxu0 %v715
        %v2292 = vpop.f32.mrb[0].mxu0
        %v2293 = vadd.f32 0.0, %v2292
        %v2294 = vpop.f32.mrb[0].mxu0
        %v2295 = vpop.f32.mrb[0].mxu0
        %v2296 = vadd.f32 0.0, %v2295
        %v2297 = vpop.f32.mrb[0].mxu0
        %2298 = vdwg.mxu0
        %v2299 = vadd.f32 %v2166, %v2250
        %v2300 = vadd.f32 %v2168, %v2252
        %v2301 = vadd.f32 %v2209, %v2293
        %v2302 = vadd.f32 %v2170, %v2254
        %v2303 = vadd.f32 %v2172, %v2256
        %v2304 = vadd.f32 %v2212, %v2296
        %2305 = vmatprep.subr.bf16.mxu0 %v1357
        %2306 = vmatpush1.bf16.msra.mxu0 %v1356
        %2307 = vmatprep.subr.bf16.mxu0 %v1360
        %2308 = vmatpush1.bf16.msra.mxu0 %v1359
        %2309 = vmatprep.subr.bf16.mxu0 0
        %2310 = vmatpush1.bf16.msra.mxu0 0
        %2311 = vmatprep.subr.bf16.mxu0 0
        %2312 = vmatpush1.bf16.msra.mxu0 0
        %2313 = vmatprep.subr.bf16.mxu0 0
        %2314 = vmatpush1.bf16.msra.mxu0 0
        %2315 = vmatprep.subr.bf16.mxu0 0
        %2316 = vmatpush1.bf16.msra.mxu0 0
        %2317 = vmatprep.subr.bf16.mxu0 0
        %2318 = vmatpush1.bf16.msra.mxu0 0
        %2319 = vmatprep.subr.bf16.mxu0 0
        %2320 = vmatpush1.bf16.msra.mxu0 0
        %2321 = vmatprep.subr.bf16.mxu0 0
        %2322 = vmatpush1.bf16.msra.mxu0 0
        %2323 = vmatprep.subr.bf16.mxu0 0
        %2324 = vmatpush1.bf16.msra.mxu0 0
        %2325 = vmatprep.subr.bf16.mxu0 0
        %2326 = vmatpush1.bf16.msra.mxu0 0
        %2327 = vmatprep.subr.bf16.mxu0 0
        %2328 = vmatpush1.bf16.msra.mxu0 0
        %2329 = vmatprep.subr.bf16.mxu0 0
        %2330 = vmatpush1.bf16.msra.mxu0 0
        %2331 = vmatprep.subr.bf16.mxu0 0
        %2332 = vmatpush1.bf16.msra.mxu0 0
        %2333 = vmatprep.subr.bf16.mxu0 0
        %2334 = vmatpush1.bf16.msra.mxu0 0
        %2335 = vmatprep.subr.bf16.mxu0 0
        %2336 = vmatpush1.bf16.msra.mxu0 0
        %2337 = vmatprep.mubr.bf16.mxu0 0
        %2338 = vmatmul.mubr.bf16.gmra.mrb[0].mxu0 %v854
        %v2339 = vpop.f32.mrb[0].mxu0
        %v2340 = vadd.f32 0.0, %v2339
        %v2341 = vpop.f32.mrb[0].mxu0
        %v2342 = vadd.f32 0.0, %v2341
        %v2343 = vpop.f32.mrb[0].mxu0
        %v2344 = vadd.f32 0.0, %v2343
        %v2345 = vpop.f32.mrb[0].mxu0
        %v2346 = vadd.f32 0.0, %v2345
        %2347 = vdwg.mxu0
        %2348 = vmatprep.subr.bf16.mxu0 0
        %2349 = vmatpush1.bf16.msra.mxu0 %v1358
        %2350 = vmatprep.subr.bf16.mxu0 0
        %2351 = vmatpush1.bf16.msra.mxu0 %v1361
        %2352 = vmatprep.subr.bf16.mxu0 0
        %2353 = vmatpush1.bf16.msra.mxu0 0
        %2354 = vmatprep.subr.bf16.mxu0 0
        %2355 = vmatpush1.bf16.msra.mxu0 0
        %2356 = vmatprep.subr.bf16.mxu0 0
        %2357 = vmatpush1.bf16.msra.mxu0 0
        %2358 = vmatprep.subr.bf16.mxu0 0
        %2359 = vmatpush1.bf16.msra.mxu0 0
        %2360 = vmatprep.subr.bf16.mxu0 0
        %2361 = vmatpush1.bf16.msra.mxu0 0
        %2362 = vmatprep.subr.bf16.mxu0 0
        %2363 = vmatpush1.bf16.msra.mxu0 0
        %2364 = vmatprep.subr.bf16.mxu0 0
        %2365 = vmatpush1.bf16.msra.mxu0 0
        %2366 = vmatprep.subr.bf16.mxu0 0
        %2367 = vmatpush1.bf16.msra.mxu0 0
        %2368 = vmatprep.subr.bf16.mxu0 0
        %2369 = vmatpush1.bf16.msra.mxu0 0
        %2370 = vmatprep.subr.bf16.mxu0 0
        %2371 = vmatpush1.bf16.msra.mxu0 0
        %2372 = vmatprep.subr.bf16.mxu0 0
        %2373 = vmatpush1.bf16.msra.mxu0 0
        %2374 = vmatprep.subr.bf16.mxu0 0
        %2375 = vmatpush1.bf16.msra.mxu0 0
        %2376 = vmatprep.subr.bf16.mxu0 0
        %2377 = vmatpush1.bf16.msra.mxu0 0
        %2378 = vmatprep.subr.bf16.mxu0 0
        %2379 = vmatpush1.bf16.msra.mxu0 0
        %2380 = vmatprep.mubr.bf16.mxu0 0
        %2381 = vmatmul.mubr.bf16.gmra.mrb[0].mxu0 %v854
        %v2382 = vpop.f32.mrb[0].mxu0
        %v2383 = vadd.f32 0.0, %v2382
        %v2384 = vpop.f32.mrb[0].mxu0
        %v2385 = vpop.f32.mrb[0].mxu0
        %v2386 = vadd.f32 0.0, %v2385
        %v2387 = vpop.f32.mrb[0].mxu0
        %2388 = vdwg.mxu0
        %v2389 = vadd.f32 %v2299, %v2340
        %v2390 = vadd.f32 %v2300, %v2342
        %v2391 = vadd.f32 %v2301, %v2383
        %v2392 = vadd.f32 %v2302, %v2344
        %v2393 = vadd.f32 %v2303, %v2346
        %v2394 = vadd.f32 %v2304, %v2386
        %2395 = vmatprep.subr.bf16.mxu0 %v1488
        %2396 = vmatpush1.bf16.msra.mxu0 %v1487
        %2397 = vmatprep.subr.bf16.mxu0 %v1491
        %2398 = vmatpush1.bf16.msra.mxu0 %v1490
        %2399 = vmatprep.subr.bf16.mxu0 0
        %2400 = vmatpush1.bf16.msra.mxu0 0
        %2401 = vmatprep.subr.bf16.mxu0 0
        %2402 = vmatpush1.bf16.msra.mxu0 0
        %2403 = vmatprep.subr.bf16.mxu0 0
        %2404 = vmatpush1.bf16.msra.mxu0 0
        %2405 = vmatprep.subr.bf16.mxu0 0
        %2406 = vmatpush1.bf16.msra.mxu0 0
        %2407 = vmatprep.subr.bf16.mxu0 0
        %2408 = vmatpush1.bf16.msra.mxu0 0
        %2409 = vmatprep.subr.bf16.mxu0 0
        %2410 = vmatpush1.bf16.msra.mxu0 0
        %2411 = vmatprep.subr.bf16.mxu0 0
        %2412 = vmatpush1.bf16.msra.mxu0 0
        %2413 = vmatprep.subr.bf16.mxu0 0
        %2414 = vmatpush1.bf16.msra.mxu0 0
        %2415 = vmatprep.subr.bf16.mxu0 0
        %2416 = vmatpush1.bf16.msra.mxu0 0
        %2417 = vmatprep.subr.bf16.mxu0 0
        %2418 = vmatpush1.bf16.msra.mxu0 0
        %2419 = vmatprep.subr.bf16.mxu0 0
        %2420 = vmatpush1.bf16.msra.mxu0 0
        %2421 = vmatprep.subr.bf16.mxu0 0
        %2422 = vmatpush1.bf16.msra.mxu0 0
        %2423 = vmatprep.subr.bf16.mxu0 0
        %2424 = vmatpush1.bf16.msra.mxu0 0
        %2425 = vmatprep.subr.bf16.mxu0 0
        %2426 = vmatpush1.bf16.msra.mxu0 0
        %2427 = vmatprep.mubr.bf16.mxu0 0
        %2428 = vmatmul.mubr.bf16.gmra.mrb[0].mxu0 %v1949
        %v2429 = vpop.f32.mrb[0].mxu0
        %v2430 = vadd.f32 0.0, %v2429
        %v2431 = vpop.f32.mrb[0].mxu0
        %v2432 = vadd.f32 0.0, %v2431
        %v2433 = vpop.f32.mrb[0].mxu0
        %v2434 = vadd.f32 0.0, %v2433
        %v2435 = vpop.f32.mrb[0].mxu0
        %v2436 = vadd.f32 0.0, %v2435
        %2437 = vdwg.mxu0
        %2438 = vmatprep.subr.bf16.mxu0 0
        %2439 = vmatpush1.bf16.msra.mxu0 %v1489
        %2440 = vmatprep.subr.bf16.mxu0 0
        %2441 = vmatpush1.bf16.msra.mxu0 %v1492
        %2442 = vmatprep.subr.bf16.mxu0 0
        %2443 = vmatpush1.bf16.msra.mxu0 0
        %2444 = vmatprep.subr.bf16.mxu0 0
        %2445 = vmatpush1.bf16.msra.mxu0 0
        %2446 = vmatprep.subr.bf16.mxu0 0
        %2447 = vmatpush1.bf16.msra.mxu0 0
        %2448 = vmatprep.subr.bf16.mxu0 0
        %2449 = vmatpush1.bf16.msra.mxu0 0
        %2450 = vmatprep.subr.bf16.mxu0 0
        %2451 = vmatpush1.bf16.msra.mxu0 0
        %2452 = vmatprep.subr.bf16.mxu0 0
        %2453 = vmatpush1.bf16.msra.mxu0 0
        %2454 = vmatprep.subr.bf16.mxu0 0
        %2455 = vmatpush1.bf16.msra.mxu0 0
        %2456 = vmatprep.subr.bf16.mxu0 0
        %2457 = vmatpush1.bf16.msra.mxu0 0
        %2458 = vmatprep.subr.bf16.mxu0 0
        %2459 = vmatpush1.bf16.msra.mxu0 0
        %2460 = vmatprep.subr.bf16.mxu0 0
        %2461 = vmatpush1.bf16.msra.mxu0 0
        %2462 = vmatprep.subr.bf16.mxu0 0
        %2463 = vmatpush1.bf16.msra.mxu0 0
        %2464 = vmatprep.subr.bf16.mxu0 0
        %2465 = vmatpush1.bf16.msra.mxu0 0
        %2466 = vmatprep.subr.bf16.mxu0 0
        %2467 = vmatpush1.bf16.msra.mxu0 0
        %2468 = vmatprep.subr.bf16.mxu0 0
        %2469 = vmatpush1.bf16.msra.mxu0 0
        %2470 = vmatprep.mubr.bf16.mxu0 0
        %2471 = vmatmul.mubr.bf16.gmra.mrb[0].mxu0 %v1949
        %v2472 = vpop.f32.mrb[0].mxu0
        %v2473 = vadd.f32 0.0, %v2472
        %v2474 = vpop.f32.mrb[0].mxu0
        %v2475 = vpop.f32.mrb[0].mxu0
        %v2476 = vadd.f32 0.0, %v2475
        %v2477 = vpop.f32.mrb[0].mxu0
        %2478 = vdwg.mxu0
        %v2479 = vadd.f32 %v2389, %v2430
        %v2480 = vadd.f32 %v2390, %v2432
        %v2481 = vadd.f32 %v2391, %v2473
        %v2482 = vadd.f32 %v2392, %v2434
        %v2483 = vadd.f32 %v2393, %v2436
        %v2484 = vadd.f32 %v2394, %v2476
        %v2485 = vmax.f32 %v2041, %v2479
        %v2486 = vmax.f32 %v2042, %v2480
        %v2487 = vmax.f32 %v2043, %v2481
        %v2488 = vmax.f32 %v2044, %v2482
        %v2489 = vmax.f32 %v2045, %v2483
        %v2490 = vmax.f32 %v2046, %v2484
        %v2491 = vld [vmem:[#allocation4] sm:$0x7]
        %v2493 = vlaneseq
        %v2494 = vshrl.u32 %v2493, 7
        %v2495 = vsub.s32 0, %v2494
        %v2496 = vrot.slane %v2491, %v2495
        %v2497 = vlaneseq
        %v2498 = vshrl.u32 %v2497, 7
        %v2499 = vsub.s32 1, %v2498
        %v2500 = vrot.slane %v2491, %v2499
        %v2501 = vlaneseq
        %v2502 = vshrl.u32 %v2501, 7
        %v2503 = vsub.s32 2, %v2502
        %v2504 = vrot.slane %v2491, %v2503
        %v2508 = vadd.f32 %v2485, %v2496
        %v2509 = vadd.f32 %v2486, %v2500
        %v2510 = vadd.f32 %v2487, %v2504
        %v2511 = vadd.f32 %v2488, %v2496
        %v2512 = vadd.f32 %v2489, %v2500
        %v2513 = vadd.f32 %v2490, %v2504
        %v2514 = vmax.f32 %v2508, 0.0
        %v2515 = vmax.f32 %v2509, 0.0
        %v2516 = vmax.f32 %v2510, 0.0
        %v2517 = vmax.f32 %v2511, 0.0
        %v2518 = vmax.f32 %v2512, 0.0
        %v2519 = vmax.f32 %v2513, 0.0
        %v2520 = vpack.c.bf16 %v2517, %v2514
        %v2521 = vpack.c.bf16 %v2518, %v2515
        %v2522 = vpack.c.bf16 %v2519, %v2516
        %v2526 = vunpack.c.l.b16 %v2520
        %v2527 = vunpack.c.l.b16 %v2521
        %v2528 = vunpack.c.l.b16 %v2522
        %v2529 = vunpack.c.h.b16 %v2520
        %v2530 = vunpack.c.h.b16 %v2521
        %v2531 = vunpack.c.h.b16 %v2522
        %v2532 = vpack.c.b16 %v2527, %v2526
        %v2533 = vpack.c.b16 %v2528, %v2528
        %v2534 = vpack.c.b16 %v2530, %v2529
        %v2535 = vpack.c.b16 %v2531, %v2531
        %2540 = vst [vmem:[%s245] sm:$0xff] %v2532
        %vm2541 = vcmask 191488
        %2542 = vst.msk [vmem:[%s245 + $0x8] sm:$0xf] %vm2541, %v2533
        %2543 = vst [vmem:[%s245 + $0xc] sm:$0x77] %v2534
        %vm2544 = vcmask 190464
        %2545 = vst.msk [vmem:[%s245 + $0x14] sm:$0x7] %vm2544, %v2535
        %p2546 = scmp.lt.s32.totalorder %s17, 3
        %s2547 = scalar_select %p2546, %s17, 3
        %s2548 = smul.addr %s2547, 6
        %s2549 = smul.addr %s2548, 4
        %s2550 = scalar_lea.vmem %s4, %s2549
        // Predicated region
        $region45: #{lenet_forward.3} parent=35 // pred_check
          %p2551 = pneg %p129
        $region46: #{lenet_forward.3} parent=35 // pred_check_branch
          %2553 = sbr.rel (%p2551) target = $region48
        $region47: #{lenet_forward.3} parent=35 // pred_region
          _
        $region48: #{lenet_forward.3} parent=35 // pred_fallthru
          _
      $region36: #{lenet_forward.3} parent=5 // pred_fallthru
        _
      %p2554 = scmp.le.s32.totalorder 2, %s12
      // Predicated region
      $region49: #{lenet_forward.3} parent=5 // pred_check
        %p2555 = pneg %p2554
      $region50: #{lenet_forward.3} parent=5 // pred_check_branch
        %2557 = sbr.rel (%p2555) target = $region52
      $region51: #{lenet_forward.3} parent=5 // pred_region
        %s2558 = ssub.s32 %s12, 2
        // Predicated region
        $region53: #{lenet_forward.3} parent=51 // pred_check
          %p2559 = pneg %p135
        $region54: #{lenet_forward.3} parent=51 // pred_check_branch
          %2561 = sbr.rel (%p2559) target = $region56
        $region55: #{lenet_forward.3} parent=51 // pred_region
          %p2562 = scmp.lt.s32.totalorder %s18, 3
          %s2563 = scalar_select %p2562, %s18, 3
          %s2564 = smul.addr %s2563, 6
          %s2565 = smul.addr %s2564, 4
          %s2566 = scalar_lea.vmem %s4, %s2565
        $region56: #{lenet_forward.3} parent=51 // pred_fallthru
          _
      $region52: #{lenet_forward.3} parent=5 // pred_fallthru
        _
    $region6: #{lenet_forward.3} parent=1 // loop_footer
      %s16 = sadd.s32 1, %s12
    $region7: #{lenet_forward.3} parent=1 // loop_footer_branch
      %11 = sbr.rel target = $region3
    $region8: #{lenet_forward.3} parent=1 // loop_exit
      _
    %2567 = vsyncpa [#allocation3], 1
    %s2568 = scalar_lea.sflag [#allocation3], 1
    %2569 = vsyncpa %s2568, 1
    %2570 = vsyncpa [#allocation5], 1

// kernel: lenet_forward.5
$region0: #{lenet_forward.5}
  #allocation0 [shape = 'u32[]', space=smem, size = 0x4, offset = 0x4, fixed_abs, tag = 'smem constant byte address 0x4 - core index']
  #allocation1 [shape = 'u32[144,128]{1,0:T(1,128)}', space=vmem, size = 0x12000, scoped, tag = 'internal scratch']
  %s0 = inlined_call_operand.vmem [shape: bf16[4,1250], index: 0, kind: input, shape index: {}]
  %s1 = inlined_call_operand.vmem [shape: bf16[1250,500], index: 1, kind: input, shape index: {}]
  %s2 = inlined_call_operand.vmem [shape: f32[1,500], index: 2, kind: input, shape index: {}]
  %s3 = inlined_call_operand.hbm [shape: f32[4,500], index: 3, kind: output, shape index: {}]
  %s4 = sld [smem:[#allocation0]]
  $region22: #{lenet_forward.5} parent=0
    _
  %s6 = ssub.s32 1, %s4
  %s7 = scalar_select 0, %s6, %s4
  $region1: #{lenet_forward.5} parent=0
    #allocation2 [shape = 'u8[8192]{0}', space=vmem, size = 0x2000, scoped, tag = 'output window, operand 0, single buffered']
    #allocation3 [shape = 's32[1]{0}', space=sflag, size = 0x4, scoped, tag = 'scoped memory for lenet_forward.5']
    %8 = vsyncpa [#allocation3], 0
    // Predicated region
    $region2: #{lenet_forward.5} parent=1 // pred_check
      _
    $region3: #{lenet_forward.5} parent=1 // pred_check_branch
      %10 = sbr.rel (0) target = $region5
    $region4: #{lenet_forward.5} parent=1 // pred_region
      _
    $region5: #{lenet_forward.5} parent=1 // pred_fallthru
      _
    // Predicated region
    $region6: #{lenet_forward.5} parent=1 // pred_check
      _
    $region7: #{lenet_forward.5} parent=1 // pred_check_branch
      %12 = sbr.rel (0) target = $region9
    $region8: #{lenet_forward.5} parent=1 // pred_region
      _
    $region9: #{lenet_forward.5} parent=1 // pred_fallthru
      _
    // Predicated region
    $region10: #{lenet_forward.5} parent=1 // pred_check
      _
    $region11: #{lenet_forward.5} parent=1 // pred_check_branch
      %14 = sbr.rel (0) target = $region13
    $region12: #{lenet_forward.5} parent=1 // pred_region
      _
    $region13: #{lenet_forward.5} parent=1 // pred_fallthru
      _
    %v16 = vld [vmem:[%s0] sm:$0xff]
    %v17 = vld [vmem:[%s0 + $0x8] sm:$0xff]
    %v18 = vld [vmem:[%s0 + $0x10] sm:$0xf]
    %v19 = vld [vmem:[%s1] sm:$0xff]
    %v20 = vld [vmem:[%s1 + $0x8] sm:$0xff]
    %v21 = vld [vmem:[%s1 + $0x10] sm:$0xff]
    %v22 = vld [vmem:[%s1 + $0x18] sm:$0xff]
    %v23 = vld [vmem:[%s1 + $0x20] sm:$0xff]
    %v24 = vld [vmem:[%s1 + $0x28] sm:$0xff]
    %v25 = vld [vmem:[%s1 + $0x30] sm:$0xff]
    %v26 = vld [vmem:[%s1 + $0x38] sm:$0xff]
    %v27 = vld [vmem:[%s1 + $0x40] sm:$0xff]
    %v28 = vld [vmem:[%s1 + $0x48] sm:$0xff]
    %v29 = vld [vmem:[%s1 + $0x50] sm:$0xff]
    %v30 = vld [vmem:[%s1 + $0x58] sm:$0xff]
    %v31 = vld [vmem:[%s1 + $0x60] sm:$0xff]
    %v32 = vld [vmem:[%s1 + $0x68] sm:$0xff]
    %v33 = vld [vmem:[%s1 + $0x70] sm:$0xff]
    %v34 = vld [vmem:[%s1 + $0x78] sm:$0xff]
    %v35 = vld [vmem:[%s1 + $0x80] sm:$0xff]
    %v36 = vld [vmem:[%s1 + $0x88] sm:$0xff]
    %v37 = vld [vmem:[%s1 + $0x90] sm:$0xff]
    %v38 = vld [vmem:[%s1 + $0x98] sm:$0xff]
    %v39 = vld [vmem:[%s1 + $0xa0] sm:$0xff]
    %v40 = vld [vmem:[%s1 + $0xa8] sm:$0xff]
    %v41 = vld [vmem:[%s1 + $0xb0] sm:$0xff]
    %v42 = vld [vmem:[%s1 + $0xb8] sm:$0xff]
    %v43 = vld [vmem:[%s1 + $0xc0] sm:$0xff]
    %v44 = vld [vmem:[%s1 + $0xc8] sm:$0xff]
    %v45 = vld [vmem:[%s1 + $0xd0] sm:$0xff]
    %v46 = vld [vmem:[%s1 + $0xd8] sm:$0xff]
    %v47 = vld [vmem:[%s1 + $0xe0] sm:$0xff]
    %v48 = vld [vmem:[%s1 + $0xe8] sm:$0xff]
    %v49 = vld [vmem:[%s1 + $0xf0] sm:$0xff]
    %v50 = vld [vmem:[%s1 + $0xf8] sm:$0xff]
    %v51 = vld [vmem:[%s1 + $0x100] sm:$0xff]
    %v52 = vld [vmem:[%s1 + $0x108] sm:$0xff]
    %v53 = vld [vmem:[%s1 + $0x110] sm:$0xff]
    %v54 = vld [vmem:[%s1 + $0x118] sm:$0xff]
    %v55 = vld [vmem:[%s1 + $0x120] sm:$0xff]
    %v56 = vld [vmem:[%s1 + $0x128] sm:$0xff]
    %v57 = vld [vmem:[%s1 + $0x130] sm:$0xff]
    %v58 = vld [vmem:[%s1 + $0x138] sm:$0xff]
    %v59 = vld [vmem:[%s1 + $0x140] sm:$0xff]
    %v60 = vld [vmem:[%s1 + $0x148] sm:$0xff]
    %v61 = vld [vmem:[%s1 + $0x150] sm:$0xff]
    %v62 = vld [vmem:[%s1 + $0x158] sm:$0xff]
    %v63 = vld [vmem:[%s1 + $0x160] sm:$0xff]
    %v64 = vld [vmem:[%s1 + $0x168] sm:$0xff]
    %v65 = vld [vmem:[%s1 + $0x170] sm:$0xff]
    %v66 = vld [vmem:[%s1 + $0x178] sm:$0xff]
    %v67 = vld [vmem:[%s1 + $0x180] sm:$0xff]
    %v68 = vld [vmem:[%s1 + $0x188] sm:$0xff]
    %v69 = vld [vmem:[%s1 + $0x190] sm:$0xff]
    %v70 = vld [vmem:[%s1 + $0x198] sm:$0xff]
    %v71 = vld [vmem:[%s1 + $0x1a0] sm:$0xff]
    %v72 = vld [vmem:[%s1 + $0x1a8] sm:$0xff]
    %v73 = vld [vmem:[%s1 + $0x1b0] sm:$0xff]
    %v74 = vld [vmem:[%s1 + $0x1b8] sm:$0xff]
    %v75 = vld [vmem:[%s1 + $0x1c0] sm:$0xff]
    %v76 = vld [vmem:[%s1 + $0x1c8] sm:$0xff]
    %v77 = vld [vmem:[%s1 + $0x1d0] sm:$0xff]
    %v78 = vld [vmem:[%s1 + $0x1d8] sm:$0xff]
    %v79 = vld [vmem:[%s1 + $0x1e0] sm:$0xff]
    %v80 = vld [vmem:[%s1 + $0x1e8] sm:$0xff]
    %v81 = vld [vmem:[%s1 + $0x1f0] sm:$0xff]
    %v82 = vld [vmem:[%s1 + $0x1f8] sm:$0xff]
    %v83 = vld [vmem:[%s1 + $0x200] sm:$0xff]
    %v84 = vld [vmem:[%s1 + $0x208] sm:$0xff]
    %v85 = vld [vmem:[%s1 + $0x210] sm:$0xff]
    %v86 = vld [vmem:[%s1 + $0x218] sm:$0xff]
    %v87 = vld [vmem:[%s1 + $0x220] sm:$0xff]
    %v88 = vld [vmem:[%s1 + $0x228] sm:$0xff]
    %v89 = vld [vmem:[%s1 + $0x230] sm:$0xff]
    %v90 = vld [vmem:[%s1 + $0x238] sm:$0xff]
    %v91 = vld [vmem:[%s1 + $0x240] sm:$0xff]
    %v92 = vld [vmem:[%s1 + $0x248] sm:$0xff]
    %v93 = vld [vmem:[%s1 + $0x250] sm:$0xff]
    %v94 = vld [vmem:[%s1 + $0x258] sm:$0xff]
    %v95 = vld [vmem:[%s1 + $0x260] sm:$0xff]
    %v96 = vld [vmem:[%s1 + $0x268] sm:$0xff]
    %v97 = vld [vmem:[%s1 + $0x270] sm:$0xff]
    %v98 = vld [vmem:[%s1 + $0x278] sm:$0xff]
    %v99 = vld [vmem:[%s1 + $0x280] sm:$0xff]
    %v100 = vld [vmem:[%s1 + $0x288] sm:$0xff]
    %v101 = vld [vmem:[%s1 + $0x290] sm:$0xff]
    %v102 = vld [vmem:[%s1 + $0x298] sm:$0xff]
    %v103 = vld [vmem:[%s1 + $0x2a0] sm:$0xff]
    %v104 = vld [vmem:[%s1 + $0x2a8] sm:$0xff]
    %v105 = vld [vmem:[%s1 + $0x2b0] sm:$0xff]
    %v106 = vld [vmem:[%s1 + $0x2b8] sm:$0xff]
    %v107 = vld [vmem:[%s1 + $0x2c0] sm:$0xff]
    %v108 = vld [vmem:[%s1 + $0x2c8] sm:$0xff]
    %v109 = vld [vmem:[%s1 + $0x2d0] sm:$0xff]
    %v110 = vld [vmem:[%s1 + $0x2d8] sm:$0xff]
    %v111 = vld [vmem:[%s1 + $0x2e0] sm:$0xff]
    %v112 = vld [vmem:[%s1 + $0x2e8] sm:$0xff]
    %v113 = vld [vmem:[%s1 + $0x2f0] sm:$0xff]
    %v114 = vld [vmem:[%s1 + $0x2f8] sm:$0xff]
    %v115 = vld [vmem:[%s1 + $0x300] sm:$0xff]
    %v116 = vld [vmem:[%s1 + $0x308] sm:$0xff]
    %v117 = vld [vmem:[%s1 + $0x310] sm:$0xff]
    %v118 = vld [vmem:[%s1 + $0x318] sm:$0xff]
    %v119 = vld [vmem:[%s1 + $0x320] sm:$0xff]
    %v120 = vld [vmem:[%s1 + $0x328] sm:$0xff]
    %v121 = vld [vmem:[%s1 + $0x330] sm:$0xff]
    %v122 = vld [vmem:[%s1 + $0x338] sm:$0xff]
    %v123 = vld [vmem:[%s1 + $0x340] sm:$0xff]
    %v124 = vld [vmem:[%s1 + $0x348] sm:$0xff]
    %v125 = vld [vmem:[%s1 + $0x350] sm:$0xff]
    %v126 = vld [vmem:[%s1 + $0x358] sm:$0xff]
    %v127 = vld [vmem:[%s1 + $0x360] sm:$0xff]
    %v128 = vld [vmem:[%s1 + $0x368] sm:$0xff]
    %v129 = vld [vmem:[%s1 + $0x370] sm:$0xff]
    %v130 = vld [vmem:[%s1 + $0x378] sm:$0xff]
    %v131 = vld [vmem:[%s1 + $0x380] sm:$0xff]
    %v132 = vld [vmem:[%s1 + $0x388] sm:$0xff]
    %v133 = vld [vmem:[%s1 + $0x390] sm:$0xff]
    %v134 = vld [vmem:[%s1 + $0x398] sm:$0xff]
    %v135 = vld [vmem:[%s1 + $0x3a0] sm:$0xff]
    %v136 = vld [vmem:[%s1 + $0x3a8] sm:$0xff]
    %v137 = vld [vmem:[%s1 + $0x3b0] sm:$0xff]
    %v138 = vld [vmem:[%s1 + $0x3b8] sm:$0xff]
    %v139 = vld [vmem:[%s1 + $0x3c0] sm:$0xff]
    %v140 = vld [vmem:[%s1 + $0x3c8] sm:$0xff]
    %v141 = vld [vmem:[%s1 + $0x3d0] sm:$0xff]
    %v142 = vld [vmem:[%s1 + $0x3d8] sm:$0xff]
    %v143 = vld [vmem:[%s1 + $0x3e0] sm:$0xff]
    %v144 = vld [vmem:[%s1 + $0x3e8] sm:$0xff]
    %v145 = vld [vmem:[%s1 + $0x3f0] sm:$0xff]
    %v146 = vld [vmem:[%s1 + $0x3f8] sm:$0xff]
    %v147 = vld [vmem:[%s1 + $0x400] sm:$0xff]
    %v148 = vld [vmem:[%s1 + $0x408] sm:$0xff]
    %v149 = vld [vmem:[%s1 + $0x410] sm:$0xff]
    %v150 = vld [vmem:[%s1 + $0x418] sm:$0xff]
    %v151 = vld [vmem:[%s1 + $0x420] sm:$0xff]
    %v152 = vld [vmem:[%s1 + $0x428] sm:$0xff]
    %v153 = vld [vmem:[%s1 + $0x430] sm:$0xff]
    %v154 = vld [vmem:[%s1 + $0x438] sm:$0xff]
    %v155 = vld [vmem:[%s1 + $0x440] sm:$0xff]
    %v156 = vld [vmem:[%s1 + $0x448] sm:$0xff]
    %v157 = vld [vmem:[%s1 + $0x450] sm:$0xff]
    %v158 = vld [vmem:[%s1 + $0x458] sm:$0xff]
    %v159 = vld [vmem:[%s1 + $0x460] sm:$0xff]
    %v160 = vld [vmem:[%s1 + $0x468] sm:$0xff]
    %v161 = vld [vmem:[%s1 + $0x470] sm:$0xff]
    %v162 = vld [vmem:[%s1 + $0x478] sm:$0xff]
    %v163 = vld [vmem:[%s1 + $0x480] sm:$0xff]
    %v164 = vld [vmem:[%s1 + $0x488] sm:$0xff]
    %v165 = vld [vmem:[%s1 + $0x490] sm:$0xff]
    %v166 = vld [vmem:[%s1 + $0x498] sm:$0xff]
    %v167 = vld [vmem:[%s1 + $0x4a0] sm:$0xff]
    %v168 = vld [vmem:[%s1 + $0x4a8] sm:$0xff]
    %v169 = vld [vmem:[%s1 + $0x4b0] sm:$0xff]
    %v170 = vld [vmem:[%s1 + $0x4b8] sm:$0xff]
    %v171 = vld [vmem:[%s1 + $0x4c0] sm:$0xff]
    %v172 = vld [vmem:[%s1 + $0x4c8] sm:$0xff]
    %v173 = vld [vmem:[%s1 + $0x4d0] sm:$0xff]
    %v174 = vld [vmem:[%s1 + $0x4d8] sm:$0xff]
    %v175 = vld [vmem:[%s1 + $0x4e0] sm:$0xff]
    %v176 = vld [vmem:[%s1 + $0x4e8] sm:$0xff]
    %v177 = vld [vmem:[%s1 + $0x4f0] sm:$0xff]
    %v178 = vld [vmem:[%s1 + $0x4f8] sm:$0xff]
    %v179 = vld [vmem:[%s1 + $0x500] sm:$0xff]
    %v180 = vld [vmem:[%s1 + $0x508] sm:$0xff]
    %v181 = vld [vmem:[%s1 + $0x510] sm:$0xff]
    %v182 = vld [vmem:[%s1 + $0x518] sm:$0xff]
    %v183 = vld [vmem:[%s1 + $0x520] sm:$0xff]
    %v184 = vld [vmem:[%s1 + $0x528] sm:$0xff]
    %v185 = vld [vmem:[%s1 + $0x530] sm:$0xff]
    %v186 = vld [vmem:[%s1 + $0x538] sm:$0xff]
    %v187 = vld [vmem:[%s1 + $0x540] sm:$0xff]
    %v188 = vld [vmem:[%s1 + $0x548] sm:$0xff]
    %v189 = vld [vmem:[%s1 + $0x550] sm:$0xff]
    %v190 = vld [vmem:[%s1 + $0x558] sm:$0xff]
    %v191 = vld [vmem:[%s1 + $0x560] sm:$0xff]
    %v192 = vld [vmem:[%s1 + $0x568] sm:$0xff]
    %v193 = vld [vmem:[%s1 + $0x570] sm:$0xff]
    %v194 = vld [vmem:[%s1 + $0x578] sm:$0xff]
    %v195 = vld [vmem:[%s1 + $0x580] sm:$0xff]
    %v196 = vld [vmem:[%s1 + $0x588] sm:$0xff]
    %v197 = vld [vmem:[%s1 + $0x590] sm:$0xff]
    %v198 = vld [vmem:[%s1 + $0x598] sm:$0xff]
    %v199 = vld [vmem:[%s1 + $0x5a0] sm:$0xff]
    %v200 = vld [vmem:[%s1 + $0x5a8] sm:$0xff]
    %v201 = vld [vmem:[%s1 + $0x5b0] sm:$0xff]
    %v202 = vld [vmem:[%s1 + $0x5b8] sm:$0xff]
    %v203 = vld [vmem:[%s1 + $0x5c0] sm:$0xff]
    %v204 = vld [vmem:[%s1 + $0x5c8] sm:$0xff]
    %v205 = vld [vmem:[%s1 + $0x5d0] sm:$0xff]
    %v206 = vld [vmem:[%s1 + $0x5d8] sm:$0xff]
    %v207 = vld [vmem:[%s1 + $0x5e0] sm:$0xff]
    %v208 = vld [vmem:[%s1 + $0x5e8] sm:$0xff]
    %v209 = vld [vmem:[%s1 + $0x5f0] sm:$0xff]
    %v210 = vld [vmem:[%s1 + $0x5f8] sm:$0xff]
    %v211 = vld [vmem:[%s1 + $0x600] sm:$0xff]
    %v212 = vld [vmem:[%s1 + $0x608] sm:$0xff]
    %v213 = vld [vmem:[%s1 + $0x610] sm:$0xff]
    %v214 = vld [vmem:[%s1 + $0x618] sm:$0xff]
    %v215 = vld [vmem:[%s1 + $0x620] sm:$0xff]
    %v216 = vld [vmem:[%s1 + $0x628] sm:$0xff]
    %v217 = vld [vmem:[%s1 + $0x630] sm:$0xff]
    %v218 = vld [vmem:[%s1 + $0x638] sm:$0xff]
    %v219 = vld [vmem:[%s1 + $0x640] sm:$0xff]
    %v220 = vld [vmem:[%s1 + $0x648] sm:$0xff]
    %v221 = vld [vmem:[%s1 + $0x650] sm:$0xff]
    %v222 = vld [vmem:[%s1 + $0x658] sm:$0xff]
    %v223 = vld [vmem:[%s1 + $0x660] sm:$0xff]
    %v224 = vld [vmem:[%s1 + $0x668] sm:$0xff]
    %v225 = vld [vmem:[%s1 + $0x670] sm:$0xff]
    %v226 = vld [vmem:[%s1 + $0x678] sm:$0xff]
    %v227 = vld [vmem:[%s1 + $0x680] sm:$0xff]
    %v228 = vld [vmem:[%s1 + $0x688] sm:$0xff]
    %v229 = vld [vmem:[%s1 + $0x690] sm:$0xff]
    %v230 = vld [vmem:[%s1 + $0x698] sm:$0xff]
    %v231 = vld [vmem:[%s1 + $0x6a0] sm:$0xff]
    %v232 = vld [vmem:[%s1 + $0x6a8] sm:$0xff]
    %v233 = vld [vmem:[%s1 + $0x6b0] sm:$0xff]
    %v234 = vld [vmem:[%s1 + $0x6b8] sm:$0xff]
    %v235 = vld [vmem:[%s1 + $0x6c0] sm:$0xff]
    %v236 = vld [vmem:[%s1 + $0x6c8] sm:$0xff]
    %v237 = vld [vmem:[%s1 + $0x6d0] sm:$0xff]
    %v238 = vld [vmem:[%s1 + $0x6d8] sm:$0xff]
    %v239 = vld [vmem:[%s1 + $0x6e0] sm:$0xff]
    %v240 = vld [vmem:[%s1 + $0x6e8] sm:$0xff]
    %v241 = vld [vmem:[%s1 + $0x6f0] sm:$0xff]
    %v242 = vld [vmem:[%s1 + $0x6f8] sm:$0xff]
    %v243 = vld [vmem:[%s1 + $0x700] sm:$0xff]
    %v244 = vld [vmem:[%s1 + $0x708] sm:$0xff]
    %v245 = vld [vmem:[%s1 + $0x710] sm:$0xff]
    %v246 = vld [vmem:[%s1 + $0x718] sm:$0xff]
    %v247 = vld [vmem:[%s1 + $0x720] sm:$0xff]
    %v248 = vld [vmem:[%s1 + $0x728] sm:$0xff]
    %v249 = vld [vmem:[%s1 + $0x730] sm:$0xff]
    %v250 = vld [vmem:[%s1 + $0x738] sm:$0xff]
    %v251 = vld [vmem:[%s1 + $0x740] sm:$0xff]
    %v252 = vld [vmem:[%s1 + $0x748] sm:$0xff]
    %v253 = vld [vmem:[%s1 + $0x750] sm:$0xff]
    %v254 = vld [vmem:[%s1 + $0x758] sm:$0xff]
    %v255 = vld [vmem:[%s1 + $0x760] sm:$0xff]
    %v256 = vld [vmem:[%s1 + $0x768] sm:$0xff]
    %v257 = vld [vmem:[%s1 + $0x770] sm:$0xff]
    %v258 = vld [vmem:[%s1 + $0x778] sm:$0xff]
    %v259 = vld [vmem:[%s1 + $0x780] sm:$0xff]
    %v260 = vld [vmem:[%s1 + $0x788] sm:$0xff]
    %v261 = vld [vmem:[%s1 + $0x790] sm:$0xff]
    %v262 = vld [vmem:[%s1 + $0x798] sm:$0xff]
    %v263 = vld [vmem:[%s1 + $0x7a0] sm:$0xff]
    %v264 = vld [vmem:[%s1 + $0x7a8] sm:$0xff]
    %v265 = vld [vmem:[%s1 + $0x7b0] sm:$0xff]
    %v266 = vld [vmem:[%s1 + $0x7b8] sm:$0xff]
    %v267 = vld [vmem:[%s1 + $0x7c0] sm:$0xff]
    %v268 = vld [vmem:[%s1 + $0x7c8] sm:$0xff]
    %v269 = vld [vmem:[%s1 + $0x7d0] sm:$0xff]
    %v270 = vld [vmem:[%s1 + $0x7d8] sm:$0xff]
    %v271 = vld [vmem:[%s1 + $0x7e0] sm:$0xff]
    %v272 = vld [vmem:[%s1 + $0x7e8] sm:$0xff]
    %v273 = vld [vmem:[%s1 + $0x7f0] sm:$0xff]
    %v274 = vld [vmem:[%s1 + $0x7f8] sm:$0xff]
    %v275 = vld [vmem:[%s1 + $0x800] sm:$0xff]
    %v276 = vld [vmem:[%s1 + $0x808] sm:$0xff]
    %v277 = vld [vmem:[%s1 + $0x810] sm:$0xff]
    %v278 = vld [vmem:[%s1 + $0x818] sm:$0xff]
    %v279 = vld [vmem:[%s1 + $0x820] sm:$0xff]
    %v280 = vld [vmem:[%s1 + $0x828] sm:$0xff]
    %v281 = vld [vmem:[%s1 + $0x830] sm:$0xff]
    %v282 = vld [vmem:[%s1 + $0x838] sm:$0xff]
    %v283 = vld [vmem:[%s1 + $0x840] sm:$0xff]
    %v284 = vld [vmem:[%s1 + $0x848] sm:$0xff]
    %v285 = vld [vmem:[%s1 + $0x850] sm:$0xff]
    %v286 = vld [vmem:[%s1 + $0x858] sm:$0xff]
    %v287 = vld [vmem:[%s1 + $0x860] sm:$0xff]
    %v288 = vld [vmem:[%s1 + $0x868] sm:$0xff]
    %v289 = vld [vmem:[%s1 + $0x870] sm:$0xff]
    %v290 = vld [vmem:[%s1 + $0x878] sm:$0xff]
    %v291 = vld [vmem:[%s1 + $0x880] sm:$0xff]
    %v292 = vld [vmem:[%s1 + $0x888] sm:$0xff]
    %v293 = vld [vmem:[%s1 + $0x890] sm:$0xff]
    %v294 = vld [vmem:[%s1 + $0x898] sm:$0xff]
    %v295 = vld [vmem:[%s1 + $0x8a0] sm:$0xff]
    %v296 = vld [vmem:[%s1 + $0x8a8] sm:$0xff]
    %v297 = vld [vmem:[%s1 + $0x8b0] sm:$0xff]
    %v298 = vld [vmem:[%s1 + $0x8b8] sm:$0xff]
    %v299 = vld [vmem:[%s1 + $0x8c0] sm:$0xff]
    %v300 = vld [vmem:[%s1 + $0x8c8] sm:$0xff]
    %v301 = vld [vmem:[%s1 + $0x8d0] sm:$0xff]
    %v302 = vld [vmem:[%s1 + $0x8d8] sm:$0xff]
    %v303 = vld [vmem:[%s1 + $0x8e0] sm:$0xff]
    %v304 = vld [vmem:[%s1 + $0x8e8] sm:$0xff]
    %v305 = vld [vmem:[%s1 + $0x8f0] sm:$0xff]
    %v306 = vld [vmem:[%s1 + $0x8f8] sm:$0xff]
    %v307 = vld [vmem:[%s1 + $0x900] sm:$0xff]
    %v308 = vld [vmem:[%s1 + $0x908] sm:$0xff]
    %v309 = vld [vmem:[%s1 + $0x910] sm:$0xff]
    %v310 = vld [vmem:[%s1 + $0x918] sm:$0xff]
    %v311 = vld [vmem:[%s1 + $0x920] sm:$0xff]
    %v312 = vld [vmem:[%s1 + $0x928] sm:$0xff]
    %v313 = vld [vmem:[%s1 + $0x930] sm:$0xff]
    %v314 = vld [vmem:[%s1 + $0x938] sm:$0xff]
    %v315 = vld [vmem:[%s1 + $0x940] sm:$0xff]
    %v316 = vld [vmem:[%s1 + $0x948] sm:$0xff]
    %v317 = vld [vmem:[%s1 + $0x950] sm:$0xff]
    %v318 = vld [vmem:[%s1 + $0x958] sm:$0xff]
    %v319 = vld [vmem:[%s1 + $0x960] sm:$0xff]
    %v320 = vld [vmem:[%s1 + $0x968] sm:$0xff]
    %v321 = vld [vmem:[%s1 + $0x970] sm:$0xff]
    %v322 = vld [vmem:[%s1 + $0x978] sm:$0xff]
    %v323 = vld [vmem:[%s1 + $0x980] sm:$0xff]
    %v324 = vld [vmem:[%s1 + $0x988] sm:$0xff]
    %v325 = vld [vmem:[%s1 + $0x990] sm:$0xff]
    %v326 = vld [vmem:[%s1 + $0x998] sm:$0xff]
    %v327 = vld [vmem:[%s1 + $0x9a0] sm:$0xff]
    %v328 = vld [vmem:[%s1 + $0x9a8] sm:$0xff]
    %v329 = vld [vmem:[%s1 + $0x9b0] sm:$0xff]
    %v330 = vld [vmem:[%s1 + $0x9b8] sm:$0xff]
    %v331 = vld [vmem:[%s1 + $0x9c0] sm:$0x11]
    %v332 = vld [vmem:[%s1 + $0x9c8] sm:$0x11]
    %v333 = vld [vmem:[%s2] sm:$0xf]
    %v335 = vlaneseq
    %v336 = vshrl.u32 %v335, 7
    %v337 = vsub.s32 0, %v336
    %v338 = vrot.slane %v333, %v337
    %v339 = vlaneseq
    %v340 = vshrl.u32 %v339, 7
    %v341 = vsub.s32 1, %v340
    %v342 = vrot.slane %v333, %v341
    %v343 = vlaneseq
    %v344 = vshrl.u32 %v343, 7
    %v345 = vsub.s32 2, %v344
    %v346 = vrot.slane %v333, %v345
    %v347 = vlaneseq
    %v348 = vshrl.u32 %v347, 7
    %v349 = vsub.s32 3, %v348
    %v350 = vrot.slane %v333, %v349
    %v358 = vcombine.high %v16, %v16
    %v360 = vunpack.c.l.s4 1983009808
    %v361 = vunpack.c.0.s8 %v360
    %v362 = vlaneseq
    %v363 = vshrl.u32 %v362, 7
    %v364 = vsub.s32 %v361, %v363
    %v365 = vrot.slane %v16, %v364
    %v367 = vunpack.c.l.s4 1983009808
    %v368 = vunpack.c.0.s8 %v367
    %v369 = vlaneseq
    %v370 = vshrl.u32 %v369, 7
    %v371 = vsub.s32 %v368, %v370
    %v372 = vrot.slane %v358, %v371
    %v373 = vcombine.high %v365, %v365
    %v374 = vcombine.high %v372, %v372
    %v375 = vcombine.high %v17, %v17
    %v377 = vunpack.c.l.s4 1983009808
    %v378 = vunpack.c.0.s8 %v377
    %v379 = vlaneseq
    %v380 = vshrl.u32 %v379, 7
    %v381 = vsub.s32 %v378, %v380
    %v382 = vrot.slane %v17, %v381
    %v384 = vunpack.c.l.s4 1983009808
    %v385 = vunpack.c.0.s8 %v384
    %v386 = vlaneseq
    %v387 = vshrl.u32 %v386, 7
    %v388 = vsub.s32 %v385, %v387
    %v389 = vrot.slane %v375, %v388
    %v390 = vcombine.high %v382, %v382
    %v391 = vcombine.high %v389, %v389
    %v393 = vunpack.c.l.s4 1983009808
    %v394 = vunpack.c.0.s8 %v393
    %v395 = vlaneseq
    %v396 = vshrl.u32 %v395, 7
    %v397 = vsub.s32 %v394, %v396
    %v398 = vrot.slane %v18, %v397
    %v399 = vcombine.high %v398, %v398
    %v723 = vunpack.c.l.b16 %v19
    %v724 = vunpack.c.h.b16 %v19
    %v725 = vunpack.c.l.b16 %v20
    %v726 = vunpack.c.h.b16 %v20
    %v727 = vunpack.c.l.b16 %v21
    %v728 = vunpack.c.h.b16 %v21
    %v729 = vunpack.c.l.b16 %v22
    %v730 = vunpack.c.h.b16 %v22
    %v731 = vunpack.c.l.b16 %v23
    %v732 = vunpack.c.h.b16 %v23
    %v733 = vunpack.c.l.b16 %v24
    %v734 = vunpack.c.h.b16 %v24
    %v735 = vunpack.c.l.b16 %v25
    %v736 = vunpack.c.h.b16 %v25
    %v737 = vunpack.c.l.b16 %v26
    %v738 = vunpack.c.h.b16 %v26
    %v739 = vunpack.c.l.b16 %v27
    %v740 = vunpack.c.h.b16 %v27
    %v741 = vunpack.c.l.b16 %v28
    %v742 = vunpack.c.h.b16 %v28
    %v743 = vunpack.c.l.b16 %v29
    %v744 = vunpack.c.h.b16 %v29
    %v745 = vunpack.c.l.b16 %v30
    %v746 = vunpack.c.h.b16 %v30
    %v747 = vunpack.c.l.b16 %v31
    %v748 = vunpack.c.h.b16 %v31
    %v749 = vunpack.c.l.b16 %v32
    %v750 = vunpack.c.h.b16 %v32
    %v751 = vunpack.c.l.b16 %v33
    %v752 = vunpack.c.h.b16 %v33
    %v753 = vunpack.c.l.b16 %v34
    %v754 = vunpack.c.h.b16 %v34
    %v755 = vunpack.c.l.b16 %v35
    %v756 = vunpack.c.h.b16 %v35
    %v757 = vunpack.c.l.b16 %v36
    %v758 = vunpack.c.h.b16 %v36
    %v759 = vunpack.c.l.b16 %v37
    %v760 = vunpack.c.h.b16 %v37
    %v761 = vunpack.c.l.b16 %v38
    %v762 = vunpack.c.h.b16 %v38
    %v763 = vunpack.c.l.b16 %v39
    %v764 = vunpack.c.h.b16 %v39
    %v765 = vunpack.c.l.b16 %v40
    %v766 = vunpack.c.h.b16 %v40
    %v767 = vunpack.c.l.b16 %v41
    %v768 = vunpack.c.h.b16 %v41
    %v769 = vunpack.c.l.b16 %v42
    %v770 = vunpack.c.h.b16 %v42
    %v771 = vunpack.c.l.b16 %v43
    %v772 = vunpack.c.h.b16 %v43
    %v773 = vunpack.c.l.b16 %v44
    %v774 = vunpack.c.h.b16 %v44
    %v775 = vunpack.c.l.b16 %v45
    %v776 = vunpack.c.h.b16 %v45
    %v777 = vunpack.c.l.b16 %v46
    %v778 = vunpack.c.h.b16 %v46
    %v779 = vunpack.c.l.b16 %v47
    %v780 = vunpack.c.h.b16 %v47
    %v781 = vunpack.c.l.b16 %v48
    %v782 = vunpack.c.h.b16 %v48
    %v783 = vunpack.c.l.b16 %v49
    %v784 = vunpack.c.h.b16 %v49
    %v785 = vunpack.c.l.b16 %v50
    %v786 = vunpack.c.h.b16 %v50
    %v787 = vunpack.c.l.b16 %v51
    %v788 = vunpack.c.h.b16 %v51
    %v789 = vunpack.c.l.b16 %v52
    %v790 = vunpack.c.h.b16 %v52
    %v791 = vunpack.c.l.b16 %v53
    %v792 = vunpack.c.h.b16 %v53
    %v793 = vunpack.c.l.b16 %v54
    %v794 = vunpack.c.h.b16 %v54
    %v795 = vunpack.c.l.b16 %v55
    %v796 = vunpack.c.h.b16 %v55
    %v797 = vunpack.c.l.b16 %v56
    %v798 = vunpack.c.h.b16 %v56
    %v799 = vunpack.c.l.b16 %v57
    %v800 = vunpack.c.h.b16 %v57
    %v801 = vunpack.c.l.b16 %v58
    %v802 = vunpack.c.h.b16 %v58
    %v803 = vunpack.c.l.b16 %v59
    %v804 = vunpack.c.h.b16 %v59
    %v805 = vunpack.c.l.b16 %v60
    %v806 = vunpack.c.h.b16 %v60
    %v807 = vunpack.c.l.b16 %v61
    %v808 = vunpack.c.h.b16 %v61
    %v809 = vunpack.c.l.b16 %v62
    %v810 = vunpack.c.h.b16 %v62
    %v811 = vunpack.c.l.b16 %v63
    %v812 = vunpack.c.h.b16 %v63
    %v813 = vunpack.c.l.b16 %v64
    %v814 = vunpack.c.h.b16 %v64
    %v815 = vunpack.c.l.b16 %v65
    %v816 = vunpack.c.h.b16 %v65
    %v817 = vunpack.c.l.b16 %v66
    %v818 = vunpack.c.h.b16 %v66
    %v819 = vunpack.c.l.b16 %v67
    %v820 = vunpack.c.h.b16 %v67
    %v821 = vunpack.c.l.b16 %v68
    %v822 = vunpack.c.h.b16 %v68
    %v823 = vunpack.c.l.b16 %v69
    %v824 = vunpack.c.h.b16 %v69
    %v825 = vunpack.c.l.b16 %v70
    %v826 = vunpack.c.h.b16 %v70
    %v827 = vunpack.c.l.b16 %v71
    %v828 = vunpack.c.h.b16 %v71
    %v829 = vunpack.c.l.b16 %v72
    %v830 = vunpack.c.h.b16 %v72
    %v831 = vunpack.c.l.b16 %v73
    %v832 = vunpack.c.h.b16 %v73
    %v833 = vunpack.c.l.b16 %v74
    %v834 = vunpack.c.h.b16 %v74
    %v835 = vunpack.c.l.b16 %v75
    %v836 = vunpack.c.h.b16 %v75
    %v837 = vunpack.c.l.b16 %v76
    %v838 = vunpack.c.h.b16 %v76
    %v839 = vunpack.c.l.b16 %v77
    %v840 = vunpack.c.h.b16 %v77
    %v841 = vunpack.c.l.b16 %v78
    %v842 = vunpack.c.h.b16 %v78
    %v843 = vunpack.c.l.b16 %v79
    %v844 = vunpack.c.h.b16 %v79
    %v845 = vunpack.c.l.b16 %v80
    %v846 = vunpack.c.h.b16 %v80
    %v847 = vunpack.c.l.b16 %v81
    %v848 = vunpack.c.h.b16 %v81
    %v849 = vunpack.c.l.b16 %v82
    %v850 = vunpack.c.h.b16 %v82
    %v851 = vunpack.c.l.b16 %v83
    %v852 = vunpack.c.h.b16 %v83
    %v853 = vunpack.c.l.b16 %v84
    %v854 = vunpack.c.h.b16 %v84
    %v855 = vunpack.c.l.b16 %v85
    %v856 = vunpack.c.h.b16 %v85
    %v857 = vunpack.c.l.b16 %v86
    %v858 = vunpack.c.h.b16 %v86
    %v859 = vunpack.c.l.b16 %v87
    %v860 = vunpack.c.h.b16 %v87
    %v861 = vunpack.c.l.b16 %v88
    %v862 = vunpack.c.h.b16 %v88
    %v863 = vunpack.c.l.b16 %v89
    %v864 = vunpack.c.h.b16 %v89
    %v865 = vunpack.c.l.b16 %v90
    %v866 = vunpack.c.h.b16 %v90
    %v867 = vunpack.c.l.b16 %v91
    %v868 = vunpack.c.h.b16 %v91
    %v869 = vunpack.c.l.b16 %v92
    %v870 = vunpack.c.h.b16 %v92
    %v871 = vunpack.c.l.b16 %v93
    %v872 = vunpack.c.h.b16 %v93
    %v873 = vunpack.c.l.b16 %v94
    %v874 = vunpack.c.h.b16 %v94
    %v875 = vunpack.c.l.b16 %v95
    %v876 = vunpack.c.h.b16 %v95
    %v877 = vunpack.c.l.b16 %v96
    %v878 = vunpack.c.h.b16 %v96
    %v879 = vunpack.c.l.b16 %v97
    %v880 = vunpack.c.h.b16 %v97
    %v881 = vunpack.c.l.b16 %v98
    %v882 = vunpack.c.h.b16 %v98
    %v883 = vunpack.c.l.b16 %v99
    %v884 = vunpack.c.h.b16 %v99
    %v885 = vunpack.c.l.b16 %v100
    %v886 = vunpack.c.h.b16 %v100
    %v887 = vunpack.c.l.b16 %v101
    %v888 = vunpack.c.h.b16 %v101
    %v889 = vunpack.c.l.b16 %v102
    %v890 = vunpack.c.h.b16 %v102
    %v891 = vunpack.c.l.b16 %v103
    %v892 = vunpack.c.h.b16 %v103
    %v893 = vunpack.c.l.b16 %v104
    %v894 = vunpack.c.h.b16 %v104
    %v895 = vunpack.c.l.b16 %v105
    %v896 = vunpack.c.h.b16 %v105
    %v897 = vunpack.c.l.b16 %v106
    %v898 = vunpack.c.h.b16 %v106
    %v899 = vunpack.c.l.b16 %v107
    %v900 = vunpack.c.h.b16 %v107
    %v901 = vunpack.c.l.b16 %v108
    %v902 = vunpack.c.h.b16 %v108
    %v903 = vunpack.c.l.b16 %v109
    %v904 = vunpack.c.h.b16 %v109
    %v905 = vunpack.c.l.b16 %v110
    %v906 = vunpack.c.h.b16 %v110
    %v907 = vunpack.c.l.b16 %v111
    %v908 = vunpack.c.h.b16 %v111
    %v909 = vunpack.c.l.b16 %v112
    %v910 = vunpack.c.h.b16 %v112
    %v911 = vunpack.c.l.b16 %v113
    %v912 = vunpack.c.h.b16 %v113
    %v913 = vunpack.c.l.b16 %v114
    %v914 = vunpack.c.h.b16 %v114
    %v915 = vunpack.c.l.b16 %v115
    %v916 = vunpack.c.h.b16 %v115
    %v917 = vunpack.c.l.b16 %v116
    %v918 = vunpack.c.h.b16 %v116
    %v919 = vunpack.c.l.b16 %v117
    %v920 = vunpack.c.h.b16 %v117
    %v921 = vunpack.c.l.b16 %v118
    %v922 = vunpack.c.h.b16 %v118
    %v923 = vunpack.c.l.b16 %v119
    %v924 = vunpack.c.h.b16 %v119
    %v925 = vunpack.c.l.b16 %v120
    %v926 = vunpack.c.h.b16 %v120
    %v927 = vunpack.c.l.b16 %v121
    %v928 = vunpack.c.h.b16 %v121
    %v929 = vunpack.c.l.b16 %v122
    %v930 = vunpack.c.h.b16 %v122
    %v931 = vunpack.c.l.b16 %v123
    %v932 = vunpack.c.h.b16 %v123
    %v933 = vunpack.c.l.b16 %v124
    %v934 = vunpack.c.h.b16 %v124
    %v935 = vunpack.c.l.b16 %v125
    %v936 = vunpack.c.h.b16 %v125
    %v937 = vunpack.c.l.b16 %v126
    %v938 = vunpack.c.h.b16 %v126
    %v939 = vunpack.c.l.b16 %v127
    %v940 = vunpack.c.h.b16 %v127
    %v941 = vunpack.c.l.b16 %v128
    %v942 = vunpack.c.h.b16 %v128
    %v943 = vunpack.c.l.b16 %v129
    %v944 = vunpack.c.h.b16 %v129
    %v945 = vunpack.c.l.b16 %v130
    %v946 = vunpack.c.h.b16 %v130
    %v947 = vunpack.c.l.b16 %v131
    %v948 = vunpack.c.h.b16 %v131
    %v949 = vunpack.c.l.b16 %v132
    %v950 = vunpack.c.h.b16 %v132
    %v951 = vunpack.c.l.b16 %v133
    %v952 = vunpack.c.h.b16 %v133
    %v953 = vunpack.c.l.b16 %v134
    %v954 = vunpack.c.h.b16 %v134
    %v955 = vunpack.c.l.b16 %v135
    %v956 = vunpack.c.h.b16 %v135
    %v957 = vunpack.c.l.b16 %v136
    %v958 = vunpack.c.h.b16 %v136
    %v959 = vunpack.c.l.b16 %v137
    %v960 = vunpack.c.h.b16 %v137
    %v961 = vunpack.c.l.b16 %v138
    %v962 = vunpack.c.h.b16 %v138
    %v963 = vunpack.c.l.b16 %v139
    %v964 = vunpack.c.h.b16 %v139
    %v965 = vunpack.c.l.b16 %v140
    %v966 = vunpack.c.h.b16 %v140
    %v967 = vunpack.c.l.b16 %v141
    %v968 = vunpack.c.h.b16 %v141
    %v969 = vunpack.c.l.b16 %v142
    %v970 = vunpack.c.h.b16 %v142
    %v971 = vunpack.c.l.b16 %v143
    %v972 = vunpack.c.h.b16 %v143
    %v973 = vunpack.c.l.b16 %v144
    %v974 = vunpack.c.h.b16 %v144
    %v975 = vunpack.c.l.b16 %v145
    %v976 = vunpack.c.h.b16 %v145
    %v977 = vunpack.c.l.b16 %v146
    %v978 = vunpack.c.h.b16 %v146
    %v979 = vunpack.c.l.b16 %v147
    %v980 = vunpack.c.h.b16 %v147
    %v981 = vunpack.c.l.b16 %v148
    %v982 = vunpack.c.h.b16 %v148
    %v983 = vunpack.c.l.b16 %v149
    %v984 = vunpack.c.h.b16 %v149
    %v985 = vunpack.c.l.b16 %v150
    %v986 = vunpack.c.h.b16 %v150
    %v987 = vunpack.c.l.b16 %v151
    %v988 = vunpack.c.h.b16 %v151
    %v989 = vunpack.c.l.b16 %v152
    %v990 = vunpack.c.h.b16 %v152
    %v991 = vunpack.c.l.b16 %v153
    %v992 = vunpack.c.h.b16 %v153
    %v993 = vunpack.c.l.b16 %v154
    %v994 = vunpack.c.h.b16 %v154
    %v995 = vunpack.c.l.b16 %v155
    %v996 = vunpack.c.h.b16 %v155
    %v997 = vunpack.c.l.b16 %v156
    %v998 = vunpack.c.h.b16 %v156
    %v999 = vunpack.c.l.b16 %v157
    %v1000 = vunpack.c.h.b16 %v157
    %v1001 = vunpack.c.l.b16 %v158
    %v1002 = vunpack.c.h.b16 %v158
    %v1003 = vunpack.c.l.b16 %v159
    %v1004 = vunpack.c.h.b16 %v159
    %v1005 = vunpack.c.l.b16 %v160
    %v1006 = vunpack.c.h.b16 %v160
    %v1007 = vunpack.c.l.b16 %v161
    %v1008 = vunpack.c.h.b16 %v161
    %v1009 = vunpack.c.l.b16 %v162
    %v1010 = vunpack.c.h.b16 %v162
    %v1011 = vunpack.c.l.b16 %v163
    %v1012 = vunpack.c.h.b16 %v163
    %v1013 = vunpack.c.l.b16 %v164
    %v1014 = vunpack.c.h.b16 %v164
    %v1015 = vunpack.c.l.b16 %v165
    %v1016 = vunpack.c.h.b16 %v165
    %v1017 = vunpack.c.l.b16 %v166
    %v1018 = vunpack.c.h.b16 %v166
    %v1019 = vunpack.c.l.b16 %v167
    %v1020 = vunpack.c.h.b16 %v167
    %v1021 = vunpack.c.l.b16 %v168
    %v1022 = vunpack.c.h.b16 %v168
    %v1023 = vunpack.c.l.b16 %v169
    %v1024 = vunpack.c.h.b16 %v169
    %v1025 = vunpack.c.l.b16 %v170
    %v1026 = vunpack.c.h.b16 %v170
    %v1027 = vunpack.c.l.b16 %v171
    %v1028 = vunpack.c.h.b16 %v171
    %v1029 = vunpack.c.l.b16 %v172
    %v1030 = vunpack.c.h.b16 %v172
    %v1031 = vunpack.c.l.b16 %v173
    %v1032 = vunpack.c.h.b16 %v173
    %v1033 = vunpack.c.l.b16 %v174
    %v1034 = vunpack.c.h.b16 %v174
    %v1035 = vunpack.c.l.b16 %v175
    %v1036 = vunpack.c.h.b16 %v175
    %v1037 = vunpack.c.l.b16 %v176
    %v1038 = vunpack.c.h.b16 %v176
    %v1039 = vunpack.c.l.b16 %v177
    %v1040 = vunpack.c.h.b16 %v177
    %v1041 = vunpack.c.l.b16 %v178
    %v1042 = vunpack.c.h.b16 %v178
    %v1043 = vunpack.c.l.b16 %v179
    %v1044 = vunpack.c.h.b16 %v179
    %v1045 = vunpack.c.l.b16 %v180
    %v1046 = vunpack.c.h.b16 %v180
    %v1047 = vunpack.c.l.b16 %v181
    %v1048 = vunpack.c.h.b16 %v181
    %v1049 = vunpack.c.l.b16 %v182
    %v1050 = vunpack.c.h.b16 %v182
    %v1051 = vunpack.c.l.b16 %v183
    %v1052 = vunpack.c.h.b16 %v183
    %v1053 = vunpack.c.l.b16 %v184
    %v1054 = vunpack.c.h.b16 %v184
    %v1055 = vunpack.c.l.b16 %v185
    %v1056 = vunpack.c.h.b16 %v185
    %v1057 = vunpack.c.l.b16 %v186
    %v1058 = vunpack.c.h.b16 %v186
    %v1059 = vunpack.c.l.b16 %v187
    %v1060 = vunpack.c.h.b16 %v187
    %v1061 = vunpack.c.l.b16 %v188
    %v1062 = vunpack.c.h.b16 %v188
    %v1063 = vunpack.c.l.b16 %v189
    %v1064 = vunpack.c.h.b16 %v189
    %v1065 = vunpack.c.l.b16 %v190
    %v1066 = vunpack.c.h.b16 %v190
    %v1067 = vunpack.c.l.b16 %v191
    %v1068 = vunpack.c.h.b16 %v191
    %v1069 = vunpack.c.l.b16 %v192
    %v1070 = vunpack.c.h.b16 %v192
    %v1071 = vunpack.c.l.b16 %v193
    %v1072 = vunpack.c.h.b16 %v193
    %v1073 = vunpack.c.l.b16 %v194
    %v1074 = vunpack.c.h.b16 %v194
    %v1075 = vunpack.c.l.b16 %v195
    %v1076 = vunpack.c.h.b16 %v195
    %v1077 = vunpack.c.l.b16 %v196
    %v1078 = vunpack.c.h.b16 %v196
    %v1079 = vunpack.c.l.b16 %v197
    %v1080 = vunpack.c.h.b16 %v197
    %v1081 = vunpack.c.l.b16 %v198
    %v1082 = vunpack.c.h.b16 %v198
    %v1083 = vunpack.c.l.b16 %v199
    %v1084 = vunpack.c.h.b16 %v199
    %v1085 = vunpack.c.l.b16 %v200
    %v1086 = vunpack.c.h.b16 %v200
    %v1087 = vunpack.c.l.b16 %v201
    %v1088 = vunpack.c.h.b16 %v201
    %v1089 = vunpack.c.l.b16 %v202
    %v1090 = vunpack.c.h.b16 %v202
    %v1091 = vunpack.c.l.b16 %v203
    %v1092 = vunpack.c.h.b16 %v203
    %v1093 = vunpack.c.l.b16 %v204
    %v1094 = vunpack.c.h.b16 %v204
    %v1095 = vunpack.c.l.b16 %v205
    %v1096 = vunpack.c.h.b16 %v205
    %v1097 = vunpack.c.l.b16 %v206
    %v1098 = vunpack.c.h.b16 %v206
    %v1099 = vunpack.c.l.b16 %v207
    %v1100 = vunpack.c.h.b16 %v207
    %v1101 = vunpack.c.l.b16 %v208
    %v1102 = vunpack.c.h.b16 %v208
    %v1103 = vunpack.c.l.b16 %v209
    %v1104 = vunpack.c.h.b16 %v209
    %v1105 = vunpack.c.l.b16 %v210
    %v1106 = vunpack.c.h.b16 %v210
    %v1107 = vunpack.c.l.b16 %v211
    %v1108 = vunpack.c.h.b16 %v211
    %v1109 = vunpack.c.l.b16 %v212
    %v1110 = vunpack.c.h.b16 %v212
    %v1111 = vunpack.c.l.b16 %v213
    %v1112 = vunpack.c.h.b16 %v213
    %v1113 = vunpack.c.l.b16 %v214
    %v1114 = vunpack.c.h.b16 %v214
    %v1115 = vunpack.c.l.b16 %v215
    %v1116 = vunpack.c.h.b16 %v215
    %v1117 = vunpack.c.l.b16 %v216
    %v1118 = vunpack.c.h.b16 %v216
    %v1119 = vunpack.c.l.b16 %v217
    %v1120 = vunpack.c.h.b16 %v217
    %v1121 = vunpack.c.l.b16 %v218
    %v1122 = vunpack.c.h.b16 %v218
    %v1123 = vunpack.c.l.b16 %v219
    %v1124 = vunpack.c.h.b16 %v219
    %v1125 = vunpack.c.l.b16 %v220
    %v1126 = vunpack.c.h.b16 %v220
    %v1127 = vunpack.c.l.b16 %v221
    %v1128 = vunpack.c.h.b16 %v221
    %v1129 = vunpack.c.l.b16 %v222
    %v1130 = vunpack.c.h.b16 %v222
    %v1131 = vunpack.c.l.b16 %v223
    %v1132 = vunpack.c.h.b16 %v223
    %v1133 = vunpack.c.l.b16 %v224
    %v1134 = vunpack.c.h.b16 %v224
    %v1135 = vunpack.c.l.b16 %v225
    %v1136 = vunpack.c.h.b16 %v225
    %v1137 = vunpack.c.l.b16 %v226
    %v1138 = vunpack.c.h.b16 %v226
    %v1139 = vunpack.c.l.b16 %v227
    %v1140 = vunpack.c.h.b16 %v227
    %v1141 = vunpack.c.l.b16 %v228
    %v1142 = vunpack.c.h.b16 %v228
    %v1143 = vunpack.c.l.b16 %v229
    %v1144 = vunpack.c.h.b16 %v229
    %v1145 = vunpack.c.l.b16 %v230
    %v1146 = vunpack.c.h.b16 %v230
    %v1147 = vunpack.c.l.b16 %v231
    %v1148 = vunpack.c.h.b16 %v231
    %v1149 = vunpack.c.l.b16 %v232
    %v1150 = vunpack.c.h.b16 %v232
    %v1151 = vunpack.c.l.b16 %v233
    %v1152 = vunpack.c.h.b16 %v233
    %v1153 = vunpack.c.l.b16 %v234
    %v1154 = vunpack.c.h.b16 %v234
    %v1155 = vunpack.c.l.b16 %v235
    %v1156 = vunpack.c.h.b16 %v235
    %v1157 = vunpack.c.l.b16 %v236
    %v1158 = vunpack.c.h.b16 %v236
    %v1159 = vunpack.c.l.b16 %v237
    %v1160 = vunpack.c.h.b16 %v237
    %v1161 = vunpack.c.l.b16 %v238
    %v1162 = vunpack.c.h.b16 %v238
    %v1163 = vunpack.c.l.b16 %v239
    %v1164 = vunpack.c.h.b16 %v239
    %v1165 = vunpack.c.l.b16 %v240
    %v1166 = vunpack.c.h.b16 %v240
    %v1167 = vunpack.c.l.b16 %v241
    %v1168 = vunpack.c.h.b16 %v241
    %v1169 = vunpack.c.l.b16 %v242
    %v1170 = vunpack.c.h.b16 %v242
    %v1171 = vunpack.c.l.b16 %v243
    %v1172 = vunpack.c.h.b16 %v243
    %v1173 = vunpack.c.l.b16 %v244
    %v1174 = vunpack.c.h.b16 %v244
    %v1175 = vunpack.c.l.b16 %v245
    %v1176 = vunpack.c.h.b16 %v245
    %v1177 = vunpack.c.l.b16 %v246
    %v1178 = vunpack.c.h.b16 %v246
    %v1179 = vunpack.c.l.b16 %v247
    %v1180 = vunpack.c.h.b16 %v247
    %v1181 = vunpack.c.l.b16 %v248
    %v1182 = vunpack.c.h.b16 %v248
    %v1183 = vunpack.c.l.b16 %v249
    %v1184 = vunpack.c.h.b16 %v249
    %v1185 = vunpack.c.l.b16 %v250
    %v1186 = vunpack.c.h.b16 %v250
    %v1187 = vunpack.c.l.b16 %v251
    %v1188 = vunpack.c.h.b16 %v251
    %v1189 = vunpack.c.l.b16 %v252
    %v1190 = vunpack.c.h.b16 %v252
    %v1191 = vunpack.c.l.b16 %v253
    %v1192 = vunpack.c.h.b16 %v253
    %v1193 = vunpack.c.l.b16 %v254
    %v1194 = vunpack.c.h.b16 %v254
    %v1195 = vunpack.c.l.b16 %v255
    %v1196 = vunpack.c.h.b16 %v255
    %v1197 = vunpack.c.l.b16 %v256
    %v1198 = vunpack.c.h.b16 %v256
    %v1199 = vunpack.c.l.b16 %v257
    %v1200 = vunpack.c.h.b16 %v257
    %v1201 = vunpack.c.l.b16 %v258
    %v1202 = vunpack.c.h.b16 %v258
    %v1203 = vunpack.c.l.b16 %v259
    %v1204 = vunpack.c.h.b16 %v259
    %v1205 = vunpack.c.l.b16 %v260
    %v1206 = vunpack.c.h.b16 %v260
    %v1207 = vunpack.c.l.b16 %v261
    %v1208 = vunpack.c.h.b16 %v261
    %v1209 = vunpack.c.l.b16 %v262
    %v1210 = vunpack.c.h.b16 %v262
    %v1211 = vunpack.c.l.b16 %v263
    %v1212 = vunpack.c.h.b16 %v263
    %v1213 = vunpack.c.l.b16 %v264
    %v1214 = vunpack.c.h.b16 %v264
    %v1215 = vunpack.c.l.b16 %v265
    %v1216 = vunpack.c.h.b16 %v265
    %v1217 = vunpack.c.l.b16 %v266
    %v1218 = vunpack.c.h.b16 %v266
    %v1219 = vunpack.c.l.b16 %v267
    %v1220 = vunpack.c.h.b16 %v267
    %v1221 = vunpack.c.l.b16 %v268
    %v1222 = vunpack.c.h.b16 %v268
    %v1223 = vunpack.c.l.b16 %v269
    %v1224 = vunpack.c.h.b16 %v269
    %v1225 = vunpack.c.l.b16 %v270
    %v1226 = vunpack.c.h.b16 %v270
    %v1227 = vunpack.c.l.b16 %v271
    %v1228 = vunpack.c.h.b16 %v271
    %v1229 = vunpack.c.l.b16 %v272
    %v1230 = vunpack.c.h.b16 %v272
    %v1231 = vunpack.c.l.b16 %v273
    %v1232 = vunpack.c.h.b16 %v273
    %v1233 = vunpack.c.l.b16 %v274
    %v1234 = vunpack.c.h.b16 %v274
    %v1235 = vunpack.c.l.b16 %v275
    %v1236 = vunpack.c.h.b16 %v275
    %v1237 = vunpack.c.l.b16 %v276
    %v1238 = vunpack.c.h.b16 %v276
    %v1239 = vunpack.c.l.b16 %v277
    %v1240 = vunpack.c.h.b16 %v277
    %v1241 = vunpack.c.l.b16 %v278
    %v1242 = vunpack.c.h.b16 %v278
    %v1243 = vunpack.c.l.b16 %v279
    %v1244 = vunpack.c.h.b16 %v279
    %v1245 = vunpack.c.l.b16 %v280
    %v1246 = vunpack.c.h.b16 %v280
    %v1247 = vunpack.c.l.b16 %v281
    %v1248 = vunpack.c.h.b16 %v281
    %v1249 = vunpack.c.l.b16 %v282
    %v1250 = vunpack.c.h.b16 %v282
    %v1251 = vunpack.c.l.b16 %v283
    %v1252 = vunpack.c.h.b16 %v283
    %v1253 = vunpack.c.l.b16 %v284
    %v1254 = vunpack.c.h.b16 %v284
    %v1255 = vunpack.c.l.b16 %v285
    %v1256 = vunpack.c.h.b16 %v285
    %v1257 = vunpack.c.l.b16 %v286
    %v1258 = vunpack.c.h.b16 %v286
    %v1259 = vunpack.c.l.b16 %v287
    %v1260 = vunpack.c.h.b16 %v287
    %v1261 = vunpack.c.l.b16 %v288
    %v1262 = vunpack.c.h.b16 %v288
    %v1263 = vunpack.c.l.b16 %v289
    %v1264 = vunpack.c.h.b16 %v289
    %v1265 = vunpack.c.l.b16 %v290
    %v1266 = vunpack.c.h.b16 %v290
    %v1267 = vunpack.c.l.b16 %v291
    %v1268 = vunpack.c.h.b16 %v291
    %v1269 = vunpack.c.l.b16 %v292
    %v1270 = vunpack.c.h.b16 %v292
    %v1271 = vunpack.c.l.b16 %v293
    %v1272 = vunpack.c.h.b16 %v293
    %v1273 = vunpack.c.l.b16 %v294
    %v1274 = vunpack.c.h.b16 %v294
    %v1275 = vunpack.c.l.b16 %v295
    %v1276 = vunpack.c.h.b16 %v295
    %v1277 = vunpack.c.l.b16 %v296
    %v1278 = vunpack.c.h.b16 %v296
    %v1279 = vunpack.c.l.b16 %v297
    %v1280 = vunpack.c.h.b16 %v297
    %v1281 = vunpack.c.l.b16 %v298
    %v1282 = vunpack.c.h.b16 %v298
    %v1283 = vunpack.c.l.b16 %v299
    %v1284 = vunpack.c.h.b16 %v299
    %v1285 = vunpack.c.l.b16 %v300
    %v1286 = vunpack.c.h.b16 %v300
    %v1287 = vunpack.c.l.b16 %v301
    %v1288 = vunpack.c.h.b16 %v301
    %v1289 = vunpack.c.l.b16 %v302
    %v1290 = vunpack.c.h.b16 %v302
    %v1291 = vunpack.c.l.b16 %v303
    %v1292 = vunpack.c.h.b16 %v303
    %v1293 = vunpack.c.l.b16 %v304
    %v1294 = vunpack.c.h.b16 %v304
    %v1295 = vunpack.c.l.b16 %v305
    %v1296 = vunpack.c.h.b16 %v305
    %v1297 = vunpack.c.l.b16 %v306
    %v1298 = vunpack.c.h.b16 %v306
    %v1299 = vunpack.c.l.b16 %v307
    %v1300 = vunpack.c.h.b16 %v307
    %v1301 = vunpack.c.l.b16 %v308
    %v1302 = vunpack.c.h.b16 %v308
    %v1303 = vunpack.c.l.b16 %v309
    %v1304 = vunpack.c.h.b16 %v309
    %v1305 = vunpack.c.l.b16 %v310
    %v1306 = vunpack.c.h.b16 %v310
    %v1307 = vunpack.c.l.b16 %v311
    %v1308 = vunpack.c.h.b16 %v311
    %v1309 = vunpack.c.l.b16 %v312
    %v1310 = vunpack.c.h.b16 %v312
    %v1311 = vunpack.c.l.b16 %v313
    %v1312 = vunpack.c.h.b16 %v313
    %v1313 = vunpack.c.l.b16 %v314
    %v1314 = vunpack.c.h.b16 %v314
    %v1315 = vunpack.c.l.b16 %v315
    %v1316 = vunpack.c.h.b16 %v315
    %v1317 = vunpack.c.l.b16 %v316
    %v1318 = vunpack.c.h.b16 %v316
    %v1319 = vunpack.c.l.b16 %v317
    %v1320 = vunpack.c.h.b16 %v317
    %v1321 = vunpack.c.l.b16 %v318
    %v1322 = vunpack.c.h.b16 %v318
    %v1323 = vunpack.c.l.b16 %v319
    %v1324 = vunpack.c.h.b16 %v319
    %v1325 = vunpack.c.l.b16 %v320
    %v1326 = vunpack.c.h.b16 %v320
    %v1327 = vunpack.c.l.b16 %v321
    %v1328 = vunpack.c.h.b16 %v321
    %v1329 = vunpack.c.l.b16 %v322
    %v1330 = vunpack.c.h.b16 %v322
    %v1331 = vunpack.c.l.b16 %v323
    %v1332 = vunpack.c.h.b16 %v323
    %v1333 = vunpack.c.l.b16 %v324
    %v1334 = vunpack.c.h.b16 %v324
    %v1335 = vunpack.c.l.b16 %v325
    %v1336 = vunpack.c.h.b16 %v325
    %v1337 = vunpack.c.l.b16 %v326
    %v1338 = vunpack.c.h.b16 %v326
    %v1339 = vunpack.c.l.b16 %v327
    %v1340 = vunpack.c.h.b16 %v327
    %v1341 = vunpack.c.l.b16 %v328
    %v1342 = vunpack.c.h.b16 %v328
    %v1343 = vunpack.c.l.b16 %v329
    %v1344 = vunpack.c.h.b16 %v329
    %v1345 = vunpack.c.l.b16 %v330
    %v1346 = vunpack.c.h.b16 %v330
    %v1347 = vunpack.c.l.b16 %v331
    %v1348 = vunpack.c.h.b16 %v331
    %v1349 = vunpack.c.l.b16 %v332
    %v1350 = vunpack.c.h.b16 %v332
    %v1351 = vpack.c.b16 %v727, %v723
    %v1352 = vpack.c.b16 %v728, %v724
    %v1353 = vpack.c.b16 %v729, %v725
    %v1354 = vpack.c.b16 %v730, %v726
    %v1355 = vpack.c.b16 %v735, %v731
    %v1356 = vpack.c.b16 %v736, %v732
    %v1357 = vpack.c.b16 %v737, %v733
    %v1358 = vpack.c.b16 %v738, %v734
    %v1359 = vpack.c.b16 %v743, %v739
    %v1360 = vpack.c.b16 %v744, %v740
    %v1361 = vpack.c.b16 %v745, %v741
    %v1362 = vpack.c.b16 %v746, %v742
    %v1363 = vpack.c.b16 %v751, %v747
    %v1364 = vpack.c.b16 %v752, %v748
    %v1365 = vpack.c.b16 %v753, %v749
    %v1366 = vpack.c.b16 %v754, %v750
    %v1367 = vpack.c.b16 %v759, %v755
    %v1368 = vpack.c.b16 %v760, %v756
    %v1369 = vpack.c.b16 %v761, %v757
    %v1370 = vpack.c.b16 %v762, %v758
    %v1371 = vpack.c.b16 %v767, %v763
    %v1372 = vpack.c.b16 %v768, %v764
    %v1373 = vpack.c.b16 %v769, %v765
    %v1374 = vpack.c.b16 %v770, %v766
    %v1375 = vpack.c.b16 %v775, %v771
    %v1376 = vpack.c.b16 %v776, %v772
    %v1377 = vpack.c.b16 %v777, %v773
    %v1378 = vpack.c.b16 %v778, %v774
    %v1379 = vpack.c.b16 %v783, %v779
    %v1380 = vpack.c.b16 %v784, %v780
    %v1381 = vpack.c.b16 %v785, %v781
    %v1382 = vpack.c.b16 %v786, %v782
    %v1383 = vpack.c.b16 %v791, %v787
    %v1384 = vpack.c.b16 %v792, %v788
    %v1385 = vpack.c.b16 %v793, %v789
    %v1386 = vpack.c.b16 %v794, %v790
    %v1387 = vpack.c.b16 %v799, %v795
    %v1388 = vpack.c.b16 %v800, %v796
    %v1389 = vpack.c.b16 %v801, %v797
    %v1390 = vpack.c.b16 %v802, %v798
    %v1391 = vpack.c.b16 %v807, %v803
    %v1392 = vpack.c.b16 %v808, %v804
    %v1393 = vpack.c.b16 %v809, %v805
    %v1394 = vpack.c.b16 %v810, %v806
    %v1395 = vpack.c.b16 %v815, %v811
    %v1396 = vpack.c.b16 %v816, %v812
    %v1397 = vpack.c.b16 %v817, %v813
    %v1398 = vpack.c.b16 %v818, %v814
    %v1399 = vpack.c.b16 %v823, %v819
    %v1400 = vpack.c.b16 %v824, %v820
    %v1401 = vpack.c.b16 %v825, %v821
    %v1402 = vpack.c.b16 %v826, %v822
    %v1403 = vpack.c.b16 %v831, %v827
    %v1404 = vpack.c.b16 %v832, %v828
    %v1405 = vpack.c.b16 %v833, %v829
    %v1406 = vpack.c.b16 %v834, %v830
    %v1407 = vpack.c.b16 %v839, %v835
    %v1408 = vpack.c.b16 %v840, %v836
    %v1409 = vpack.c.b16 %v841, %v837
    %v1410 = vpack.c.b16 %v842, %v838
    %v1411 = vpack.c.b16 %v847, %v843
    %v1412 = vpack.c.b16 %v848, %v844
    %v1413 = vpack.c.b16 %v849, %v845
    %v1414 = vpack.c.b16 %v850, %v846
    %v1415 = vpack.c.b16 %v855, %v851
    %v1416 = vpack.c.b16 %v856, %v852
    %v1417 = vpack.c.b16 %v857, %v853
    %v1418 = vpack.c.b16 %v858, %v854
    %v1419 = vpack.c.b16 %v863, %v859
    %v1420 = vpack.c.b16 %v864, %v860
    %v1421 = vpack.c.b16 %v865, %v861
    %v1422 = vpack.c.b16 %v866, %v862
    %v1423 = vpack.c.b16 %v871, %v867
    %v1424 = vpack.c.b16 %v872, %v868
    %v1425 = vpack.c.b16 %v873, %v869
    %v1426 = vpack.c.b16 %v874, %v870
    %v1427 = vpack.c.b16 %v879, %v875
    %v1428 = vpack.c.b16 %v880, %v876
    %v1429 = vpack.c.b16 %v881, %v877
    %v1430 = vpack.c.b16 %v882, %v878
    %v1431 = vpack.c.b16 %v887, %v883
    %v1432 = vpack.c.b16 %v888, %v884
    %v1433 = vpack.c.b16 %v889, %v885
    %v1434 = vpack.c.b16 %v890, %v886
    %v1435 = vpack.c.b16 %v895, %v891
    %v1436 = vpack.c.b16 %v896, %v892
    %v1437 = vpack.c.b16 %v897, %v893
    %v1438 = vpack.c.b16 %v898, %v894
    %v1439 = vpack.c.b16 %v903, %v899
    %v1440 = vpack.c.b16 %v904, %v900
    %v1441 = vpack.c.b16 %v905, %v901
    %v1442 = vpack.c.b16 %v906, %v902
    %v1443 = vpack.c.b16 %v911, %v907
    %v1444 = vpack.c.b16 %v912, %v908
    %v1445 = vpack.c.b16 %v913, %v909
    %v1446 = vpack.c.b16 %v914, %v910
    %v1447 = vpack.c.b16 %v919, %v915
    %v1448 = vpack.c.b16 %v920, %v916
    %v1449 = vpack.c.b16 %v921, %v917
    %v1450 = vpack.c.b16 %v922, %v918
    %v1451 = vpack.c.b16 %v927, %v923
    %v1452 = vpack.c.b16 %v928, %v924
    %v1453 = vpack.c.b16 %v929, %v925
    %v1454 = vpack.c.b16 %v930, %v926
    %v1455 = vpack.c.b16 %v935, %v931
    %v1456 = vpack.c.b16 %v936, %v932
    %v1457 = vpack.c.b16 %v937, %v933
    %v1458 = vpack.c.b16 %v938, %v934
    %v1459 = vpack.c.b16 %v943, %v939
    %v1460 = vpack.c.b16 %v944, %v940
    %v1461 = vpack.c.b16 %v945, %v941
    %v1462 = vpack.c.b16 %v946, %v942
    %v1463 = vpack.c.b16 %v951, %v947
    %v1464 = vpack.c.b16 %v952, %v948
    %v1465 = vpack.c.b16 %v953, %v949
    %v1466 = vpack.c.b16 %v954, %v950
    %v1467 = vpack.c.b16 %v959, %v955
    %v1468 = vpack.c.b16 %v960, %v956
    %v1469 = vpack.c.b16 %v961, %v957
    %v1470 = vpack.c.b16 %v962, %v958
    %v1471 = vpack.c.b16 %v967, %v963
    %v1472 = vpack.c.b16 %v968, %v964
    %v1473 = vpack.c.b16 %v969, %v965
    %v1474 = vpack.c.b16 %v970, %v966
    %v1475 = vpack.c.b16 %v975, %v971
    %v1476 = vpack.c.b16 %v976, %v972
    %v1477 = vpack.c.b16 %v977, %v973
    %v1478 = vpack.c.b16 %v978, %v974
    %v1479 = vpack.c.b16 %v983, %v979
    %v1480 = vpack.c.b16 %v984, %v980
    %v1481 = vpack.c.b16 %v985, %v981
    %v1482 = vpack.c.b16 %v986, %v982
    %v1483 = vpack.c.b16 %v991, %v987
    %v1484 = vpack.c.b16 %v992, %v988
    %v1485 = vpack.c.b16 %v993, %v989
    %v1486 = vpack.c.b16 %v994, %v990
    %v1487 = vpack.c.b16 %v999, %v995
    %v1488 = vpack.c.b16 %v1000, %v996
    %v1489 = vpack.c.b16 %v1001, %v997
    %v1490 = vpack.c.b16 %v1002, %v998
    %v1491 = vpack.c.b16 %v1007, %v1003
    %v1492 = vpack.c.b16 %v1008, %v1004
    %v1493 = vpack.c.b16 %v1009, %v1005
    %v1494 = vpack.c.b16 %v1010, %v1006
    %v1495 = vpack.c.b16 %v1015, %v1011
    %v1496 = vpack.c.b16 %v1016, %v1012
    %v1497 = vpack.c.b16 %v1017, %v1013
    %v1498 = vpack.c.b16 %v1018, %v1014
    %v1499 = vpack.c.b16 %v1023, %v1019
    %v1500 = vpack.c.b16 %v1024, %v1020
    %v1501 = vpack.c.b16 %v1025, %v1021
    %v1502 = vpack.c.b16 %v1026, %v1022
    %v1503 = vpack.c.b16 %v1031, %v1027
    %v1504 = vpack.c.b16 %v1032, %v1028
    %v1505 = vpack.c.b16 %v1033, %v1029
    %v1506 = vpack.c.b16 %v1034, %v1030
    %v1507 = vpack.c.b16 %v1039, %v1035
    %v1508 = vpack.c.b16 %v1040, %v1036
    %v1509 = vpack.c.b16 %v1041, %v1037
    %v1510 = vpack.c.b16 %v1042, %v1038
    %v1511 = vpack.c.b16 %v1047, %v1043
    %v1512 = vpack.c.b16 %v1048, %v1044
    %v1513 = vpack.c.b16 %v1049, %v1045
    %v1514 = vpack.c.b16 %v1050, %v1046
    %v1515 = vpack.c.b16 %v1055, %v1051
    %v1516 = vpack.c.b16 %v1056, %v1052
    %v1517 = vpack.c.b16 %v1057, %v1053
    %v1518 = vpack.c.b16 %v1058, %v1054
    %v1519 = vpack.c.b16 %v1063, %v1059
    %v1520 = vpack.c.b16 %v1064, %v1060
    %v1521 = vpack.c.b16 %v1065, %v1061
    %v1522 = vpack.c.b16 %v1066, %v1062
    %v1523 = vpack.c.b16 %v1071, %v1067
    %v1524 = vpack.c.b16 %v1072, %v1068
    %v1525 = vpack.c.b16 %v1073, %v1069
    %v1526 = vpack.c.b16 %v1074, %v1070
    %v1527 = vpack.c.b16 %v1079, %v1075
    %v1528 = vpack.c.b16 %v1080, %v1076
    %v1529 = vpack.c.b16 %v1081, %v1077
    %v1530 = vpack.c.b16 %v1082, %v1078
    %v1531 = vpack.c.b16 %v1087, %v1083
    %v1532 = vpack.c.b16 %v1088, %v1084
    %v1533 = vpack.c.b16 %v1089, %v1085
    %v1534 = vpack.c.b16 %v1090, %v1086
    %v1535 = vpack.c.b16 %v1095, %v1091
    %v1536 = vpack.c.b16 %v1096, %v1092
    %v1537 = vpack.c.b16 %v1097, %v1093
    %v1538 = vpack.c.b16 %v1098, %v1094
    %v1539 = vpack.c.b16 %v1103, %v1099
    %v1540 = vpack.c.b16 %v1104, %v1100
    %v1541 = vpack.c.b16 %v1105, %v1101
    %v1542 = vpack.c.b16 %v1106, %v1102
    %v1543 = vpack.c.b16 %v1111, %v1107
    %v1544 = vpack.c.b16 %v1112, %v1108
    %v1545 = vpack.c.b16 %v1113, %v1109
    %v1546 = vpack.c.b16 %v1114, %v1110
    %v1547 = vpack.c.b16 %v1119, %v1115
    %v1548 = vpack.c.b16 %v1120, %v1116
    %v1549 = vpack.c.b16 %v1121, %v1117
    %v1550 = vpack.c.b16 %v1122, %v1118
    %v1551 = vpack.c.b16 %v1127, %v1123
    %v1552 = vpack.c.b16 %v1128, %v1124
    %v1553 = vpack.c.b16 %v1129, %v1125
    %v1554 = vpack.c.b16 %v1130, %v1126
    %v1555 = vpack.c.b16 %v1135, %v1131
    %v1556 = vpack.c.b16 %v1136, %v1132
    %v1557 = vpack.c.b16 %v1137, %v1133
    %v1558 = vpack.c.b16 %v1138, %v1134
    %v1559 = vpack.c.b16 %v1143, %v1139
    %v1560 = vpack.c.b16 %v1144, %v1140
    %v1561 = vpack.c.b16 %v1145, %v1141
    %v1562 = vpack.c.b16 %v1146, %v1142
    %v1563 = vpack.c.b16 %v1151, %v1147
    %v1564 = vpack.c.b16 %v1152, %v1148
    %v1565 = vpack.c.b16 %v1153, %v1149
    %v1566 = vpack.c.b16 %v1154, %v1150
    %v1567 = vpack.c.b16 %v1159, %v1155
    %v1568 = vpack.c.b16 %v1160, %v1156
    %v1569 = vpack.c.b16 %v1161, %v1157
    %v1570 = vpack.c.b16 %v1162, %v1158
    %v1571 = vpack.c.b16 %v1167, %v1163
    %v1572 = vpack.c.b16 %v1168, %v1164
    %v1573 = vpack.c.b16 %v1169, %v1165
    %v1574 = vpack.c.b16 %v1170, %v1166
    %v1575 = vpack.c.b16 %v1175, %v1171
    %v1576 = vpack.c.b16 %v1176, %v1172
    %v1577 = vpack.c.b16 %v1177, %v1173
    %v1578 = vpack.c.b16 %v1178, %v1174
    %v1579 = vpack.c.b16 %v1183, %v1179
    %v1580 = vpack.c.b16 %v1184, %v1180
    %v1581 = vpack.c.b16 %v1185, %v1181
    %v1582 = vpack.c.b16 %v1186, %v1182
    %v1583 = vpack.c.b16 %v1191, %v1187
    %v1584 = vpack.c.b16 %v1192, %v1188
    %v1585 = vpack.c.b16 %v1193, %v1189
    %v1586 = vpack.c.b16 %v1194, %v1190
    %v1587 = vpack.c.b16 %v1199, %v1195
    %v1588 = vpack.c.b16 %v1200, %v1196
    %v1589 = vpack.c.b16 %v1201, %v1197
    %v1590 = vpack.c.b16 %v1202, %v1198
    %v1591 = vpack.c.b16 %v1207, %v1203
    %v1592 = vpack.c.b16 %v1208, %v1204
    %v1593 = vpack.c.b16 %v1209, %v1205
    %v1594 = vpack.c.b16 %v1210, %v1206
    %v1595 = vpack.c.b16 %v1215, %v1211
    %v1596 = vpack.c.b16 %v1216, %v1212
    %v1597 = vpack.c.b16 %v1217, %v1213
    %v1598 = vpack.c.b16 %v1218, %v1214
    %v1599 = vpack.c.b16 %v1223, %v1219
    %v1600 = vpack.c.b16 %v1224, %v1220
    %v1601 = vpack.c.b16 %v1225, %v1221
    %v1602 = vpack.c.b16 %v1226, %v1222
    %v1603 = vpack.c.b16 %v1231, %v1227
    %v1604 = vpack.c.b16 %v1232, %v1228
    %v1605 = vpack.c.b16 %v1233, %v1229
    %v1606 = vpack.c.b16 %v1234, %v1230
    %v1607 = vpack.c.b16 %v1239, %v1235
    %v1608 = vpack.c.b16 %v1240, %v1236
    %v1609 = vpack.c.b16 %v1241, %v1237
    %v1610 = vpack.c.b16 %v1242, %v1238
    %v1611 = vpack.c.b16 %v1247, %v1243
    %v1612 = vpack.c.b16 %v1248, %v1244
    %v1613 = vpack.c.b16 %v1249, %v1245
    %v1614 = vpack.c.b16 %v1250, %v1246
    %v1615 = vpack.c.b16 %v1255, %v1251
    %v1616 = vpack.c.b16 %v1256, %v1252
    %v1617 = vpack.c.b16 %v1257, %v1253
    %v1618 = vpack.c.b16 %v1258, %v1254
    %v1619 = vpack.c.b16 %v1263, %v1259
    %v1620 = vpack.c.b16 %v1264, %v1260
    %v1621 = vpack.c.b16 %v1265, %v1261
    %v1622 = vpack.c.b16 %v1266, %v1262
    %v1623 = vpack.c.b16 %v1271, %v1267
    %v1624 = vpack.c.b16 %v1272, %v1268
    %v1625 = vpack.c.b16 %v1273, %v1269
    %v1626 = vpack.c.b16 %v1274, %v1270
    %v1627 = vpack.c.b16 %v1279, %v1275
    %v1628 = vpack.c.b16 %v1280, %v1276
    %v1629 = vpack.c.b16 %v1281, %v1277
    %v1630 = vpack.c.b16 %v1282, %v1278
    %v1631 = vpack.c.b16 %v1287, %v1283
    %v1632 = vpack.c.b16 %v1288, %v1284
    %v1633 = vpack.c.b16 %v1289, %v1285
    %v1634 = vpack.c.b16 %v1290, %v1286
    %v1635 = vpack.c.b16 %v1295, %v1291
    %v1636 = vpack.c.b16 %v1296, %v1292
    %v1637 = vpack.c.b16 %v1297, %v1293
    %v1638 = vpack.c.b16 %v1298, %v1294
    %v1639 = vpack.c.b16 %v1303, %v1299
    %v1640 = vpack.c.b16 %v1304, %v1300
    %v1641 = vpack.c.b16 %v1305, %v1301
    %v1642 = vpack.c.b16 %v1306, %v1302
    %v1643 = vpack.c.b16 %v1311, %v1307
    %v1644 = vpack.c.b16 %v1312, %v1308
    %v1645 = vpack.c.b16 %v1313, %v1309
    %v1646 = vpack.c.b16 %v1314, %v1310
    %v1647 = vpack.c.b16 %v1319, %v1315
    %v1648 = vpack.c.b16 %v1320, %v1316
    %v1649 = vpack.c.b16 %v1321, %v1317
    %v1650 = vpack.c.b16 %v1322, %v1318
    %v1651 = vpack.c.b16 %v1327, %v1323
    %v1652 = vpack.c.b16 %v1328, %v1324
    %v1653 = vpack.c.b16 %v1329, %v1325
    %v1654 = vpack.c.b16 %v1330, %v1326
    %v1655 = vpack.c.b16 %v1335, %v1331
    %v1656 = vpack.c.b16 %v1336, %v1332
    %v1657 = vpack.c.b16 %v1337, %v1333
    %v1658 = vpack.c.b16 %v1338, %v1334
    %v1659 = vpack.c.b16 %v1343, %v1339
    %v1660 = vpack.c.b16 %v1344, %v1340
    %v1661 = vpack.c.b16 %v1345, %v1341
    %v1662 = vpack.c.b16 %v1346, %v1342
    %v1663 = vpack.c.b16 %v1347, %v1347
    %v1664 = vpack.c.b16 %v1348, %v1348
    %v1665 = vpack.c.b16 %v1349, %v1349
    %v1666 = vpack.c.b16 %v1350, %v1350
    %vm1979 = vcmask 801792
    %v1981 = vsel %vm1979, %v399, 0
    %vm1983 = vcmask 1040384
    %v1985 = vsel %vm1983, %v1663, 0
    %v1988 = vsel %vm1983, %v1664, 0
    %v1991 = vsel %vm1983, %v1665, 0
    %v1994 = vsel %vm1983, %v1666, 0
    %1996 = vmatprep.subr.bf16.mxu0 %v1352
    %1997 = vmatpush1.bf16.msra.mxu0 %v1351
    %1998 = vmatprep.subr.bf16.mxu0 %v1356
    %1999 = vmatpush1.bf16.msra.mxu0 %v1355
    %2000 = vmatprep.subr.bf16.mxu0 %v1360
    %2001 = vmatpush1.bf16.msra.mxu0 %v1359
    %2002 = vmatprep.subr.bf16.mxu0 %v1364
    %2003 = vmatpush1.bf16.msra.mxu0 %v1363
    %2004 = vmatprep.subr.bf16.mxu0 %v1368
    %2005 = vmatpush1.bf16.msra.mxu0 %v1367
    %2006 = vmatprep.subr.bf16.mxu0 %v1372
    %2007 = vmatpush1.bf16.msra.mxu0 %v1371
    %2008 = vmatprep.subr.bf16.mxu0 %v1376
    %2009 = vmatpush1.bf16.msra.mxu0 %v1375
    %2010 = vmatprep.subr.bf16.mxu0 %v1380
    %2011 = vmatpush1.bf16.msra.mxu0 %v1379
    %2012 = vmatprep.subr.bf16.mxu0 %v1384
    %2013 = vmatpush1.bf16.msra.mxu0 %v1383
    %2014 = vmatprep.subr.bf16.mxu0 %v1388
    %2015 = vmatpush1.bf16.msra.mxu0 %v1387
    %2016 = vmatprep.subr.bf16.mxu0 %v1392
    %2017 = vmatpush1.bf16.msra.mxu0 %v1391
    %2018 = vmatprep.subr.bf16.mxu0 %v1396
    %2019 = vmatpush1.bf16.msra.mxu0 %v1395
    %2020 = vmatprep.subr.bf16.mxu0 %v1400
    %2021 = vmatpush1.bf16.msra.mxu0 %v1399
    %2022 = vmatprep.subr.bf16.mxu0 %v1404
    %2023 = vmatpush1.bf16.msra.mxu0 %v1403
    %2024 = vmatprep.subr.bf16.mxu0 %v1408
    %2025 = vmatpush1.bf16.msra.mxu0 %v1407
    %2026 = vmatprep.subr.bf16.mxu0 %v1412
    %2027 = vmatpush1.bf16.msra.mxu0 %v1411
    %2028 = vmatprep.mubr.bf16.mxu0 %v373
    %2029 = vmatmul.mubr.bf16.gmra.mrb[0].mxu0 %v365
    %v2030 = vpop.f32.mrb[0].mxu0
    %v2031 = vadd.f32 %v338, %v2030
    %v2032 = vpop.f32.mrb[0].mxu0
    %v2033 = vadd.f32 %v342, %v2032
    %v2034 = vpop.f32.mrb[0].mxu0
    %v2035 = vpop.f32.mrb[0].mxu0
    %2036 = vdwg.mxu0
    %2037 = vmatprep.subr.bf16.mxu0 %v1416
    %2038 = vmatpush1.bf16.msra.mxu0 %v1415
    %2039 = vmatprep.subr.bf16.mxu0 %v1420
    %2040 = vmatpush1.bf16.msra.mxu0 %v1419
    %2041 = vmatprep.subr.bf16.mxu0 %v1424
    %2042 = vmatpush1.bf16.msra.mxu0 %v1423
    %2043 = vmatprep.subr.bf16.mxu0 %v1428
    %2044 = vmatpush1.bf16.msra.mxu0 %v1427
    %2045 = vmatprep.subr.bf16.mxu0 %v1432
    %2046 = vmatpush1.bf16.msra.mxu0 %v1431
    %2047 = vmatprep.subr.bf16.mxu0 %v1436
    %2048 = vmatpush1.bf16.msra.mxu0 %v1435
    %2049 = vmatprep.subr.bf16.mxu0 %v1440
    %2050 = vmatpush1.bf16.msra.mxu0 %v1439
    %2051 = vmatprep.subr.bf16.mxu0 %v1444
    %2052 = vmatpush1.bf16.msra.mxu0 %v1443
    %2053 = vmatprep.subr.bf16.mxu0 %v1448
    %2054 = vmatpush1.bf16.msra.mxu0 %v1447
    %2055 = vmatprep.subr.bf16.mxu0 %v1452
    %2056 = vmatpush1.bf16.msra.mxu0 %v1451
    %2057 = vmatprep.subr.bf16.mxu0 %v1456
    %2058 = vmatpush1.bf16.msra.mxu0 %v1455
    %2059 = vmatprep.subr.bf16.mxu0 %v1460
    %2060 = vmatpush1.bf16.msra.mxu0 %v1459
    %2061 = vmatprep.subr.bf16.mxu0 %v1464
    %2062 = vmatpush1.bf16.msra.mxu0 %v1463
    %2063 = vmatprep.subr.bf16.mxu0 %v1468
    %2064 = vmatpush1.bf16.msra.mxu0 %v1467
    %2065 = vmatprep.subr.bf16.mxu0 %v1472
    %2066 = vmatpush1.bf16.msra.mxu0 %v1471
    %2067 = vmatprep.subr.bf16.mxu0 %v1476
    %2068 = vmatpush1.bf16.msra.mxu0 %v1475
    %2069 = vmatprep.mubr.bf16.mxu0 %v374
    %2070 = vmatmul.mubr.bf16.gmra.mrb[0].mxu0 %v372
    %v2071 = vpop.f32.mrb[0].mxu0
    %v2072 = vadd.f32 %v2031, %v2071
    %v2073 = vpop.f32.mrb[0].mxu0
    %v2074 = vadd.f32 %v2033, %v2073
    %v2075 = vpop.f32.mrb[0].mxu0
    %v2076 = vpop.f32.mrb[0].mxu0
    %2077 = vdwg.mxu0
    %2078 = vmatprep.subr.bf16.mxu0 %v1480
    %2079 = vmatpush1.bf16.msra.mxu0 %v1479
    %2080 = vmatprep.subr.bf16.mxu0 %v1484
    %2081 = vmatpush1.bf16.msra.mxu0 %v1483
    %2082 = vmatprep.subr.bf16.mxu0 %v1488
    %2083 = vmatpush1.bf16.msra.mxu0 %v1487
    %2084 = vmatprep.subr.bf16.mxu0 %v1492
    %2085 = vmatpush1.bf16.msra.mxu0 %v1491
    %2086 = vmatprep.subr.bf16.mxu0 %v1496
    %2087 = vmatpush1.bf16.msra.mxu0 %v1495
    %2088 = vmatprep.subr.bf16.mxu0 %v1500
    %2089 = vmatpush1.bf16.msra.mxu0 %v1499
    %2090 = vmatprep.subr.bf16.mxu0 %v1504
    %2091 = vmatpush1.bf16.msra.mxu0 %v1503
    %2092 = vmatprep.subr.bf16.mxu0 %v1508
    %2093 = vmatpush1.bf16.msra.mxu0 %v1507
    %2094 = vmatprep.subr.bf16.mxu0 %v1512
    %2095 = vmatpush1.bf16.msra.mxu0 %v1511
    %2096 = vmatprep.subr.bf16.mxu0 %v1516
    %2097 = vmatpush1.bf16.msra.mxu0 %v1515
    %2098 = vmatprep.subr.bf16.mxu0 %v1520
    %2099 = vmatpush1.bf16.msra.mxu0 %v1519
    %2100 = vmatprep.subr.bf16.mxu0 %v1524
    %2101 = vmatpush1.bf16.msra.mxu0 %v1523
    %2102 = vmatprep.subr.bf16.mxu0 %v1528
    %2103 = vmatpush1.bf16.msra.mxu0 %v1527
    %2104 = vmatprep.subr.bf16.mxu0 %v1532
    %2105 = vmatpush1.bf16.msra.mxu0 %v1531
    %2106 = vmatprep.subr.bf16.mxu0 %v1536
    %2107 = vmatpush1.bf16.msra.mxu0 %v1535
    %2108 = vmatprep.subr.bf16.mxu0 %v1540
    %2109 = vmatpush1.bf16.msra.mxu0 %v1539
    %2110 = vmatprep.mubr.bf16.mxu0 %v390
    %2111 = vmatmul.mubr.bf16.gmra.mrb[0].mxu0 %v382
    %v2112 = vpop.f32.mrb[0].mxu0
    %v2113 = vadd.f32 %v2072, %v2112
    %v2114 = vpop.f32.mrb[0].mxu0
    %v2115 = vadd.f32 %v2074, %v2114
    %v2116 = vpop.f32.mrb[0].mxu0
    %v2117 = vpop.f32.mrb[0].mxu0
    %2118 = vdwg.mxu0
    %2119 = vmatprep.subr.bf16.mxu0 %v1544
    %2120 = vmatpush1.bf16.msra.mxu0 %v1543
    %2121 = vmatprep.subr.bf16.mxu0 %v1548
    %2122 = vmatpush1.bf16.msra.mxu0 %v1547
    %2123 = vmatprep.subr.bf16.mxu0 %v1552
    %2124 = vmatpush1.bf16.msra.mxu0 %v1551
    %2125 = vmatprep.subr.bf16.mxu0 %v1556
    %2126 = vmatpush1.bf16.msra.mxu0 %v1555
    %2127 = vmatprep.subr.bf16.mxu0 %v1560
    %2128 = vmatpush1.bf16.msra.mxu0 %v1559
    %2129 = vmatprep.subr.bf16.mxu0 %v1564
    %2130 = vmatpush1.bf16.msra.mxu0 %v1563
    %2131 = vmatprep.subr.bf16.mxu0 %v1568
    %2132 = vmatpush1.bf16.msra.mxu0 %v1567
    %2133 = vmatprep.subr.bf16.mxu0 %v1572
    %2134 = vmatpush1.bf16.msra.mxu0 %v1571
    %2135 = vmatprep.subr.bf16.mxu0 %v1576
    %2136 = vmatpush1.bf16.msra.mxu0 %v1575
    %2137 = vmatprep.subr.bf16.mxu0 %v1580
    %2138 = vmatpush1.bf16.msra.mxu0 %v1579
    %2139 = vmatprep.subr.bf16.mxu0 %v1584
    %2140 = vmatpush1.bf16.msra.mxu0 %v1583
    %2141 = vmatprep.subr.bf16.mxu0 %v1588
    %2142 = vmatpush1.bf16.msra.mxu0 %v1587
    %2143 = vmatprep.subr.bf16.mxu0 %v1592
    %2144 = vmatpush1.bf16.msra.mxu0 %v1591
    %2145 = vmatprep.subr.bf16.mxu0 %v1596
    %2146 = vmatpush1.bf16.msra.mxu0 %v1595
    %2147 = vmatprep.subr.bf16.mxu0 %v1600
    %2148 = vmatpush1.bf16.msra.mxu0 %v1599
    %2149 = vmatprep.subr.bf16.mxu0 %v1604
    %2150 = vmatpush1.bf16.msra.mxu0 %v1603
    %2151 = vmatprep.mubr.bf16.mxu0 %v391
    %2152 = vmatmul.mubr.bf16.gmra.mrb[0].mxu0 %v389
    %v2153 = vpop.f32.mrb[0].mxu0
    %v2154 = vadd.f32 %v2113, %v2153
    %v2155 = vpop.f32.mrb[0].mxu0
    %v2156 = vadd.f32 %v2115, %v2155
    %v2157 = vpop.f32.mrb[0].mxu0
    %v2158 = vpop.f32.mrb[0].mxu0
    %2159 = vdwg.mxu0
    %2160 = vmatprep.subr.bf16.mxu0 %v1608
    %2161 = vmatpush1.bf16.msra.mxu0 %v1607
    %2162 = vmatprep.subr.bf16.mxu0 %v1612
    %2163 = vmatpush1.bf16.msra.mxu0 %v1611
    %2164 = vmatprep.subr.bf16.mxu0 %v1616
    %2165 = vmatpush1.bf16.msra.mxu0 %v1615
    %2166 = vmatprep.subr.bf16.mxu0 %v1620
    %2167 = vmatpush1.bf16.msra.mxu0 %v1619
    %2168 = vmatprep.subr.bf16.mxu0 %v1624
    %2169 = vmatpush1.bf16.msra.mxu0 %v1623
    %2170 = vmatprep.subr.bf16.mxu0 %v1628
    %2171 = vmatpush1.bf16.msra.mxu0 %v1627
    %2172 = vmatprep.subr.bf16.mxu0 %v1632
    %2173 = vmatpush1.bf16.msra.mxu0 %v1631
    %2174 = vmatprep.subr.bf16.mxu0 %v1636
    %2175 = vmatpush1.bf16.msra.mxu0 %v1635
    %2176 = vmatprep.subr.bf16.mxu0 %v1640
    %2177 = vmatpush1.bf16.msra.mxu0 %v1639
    %2178 = vmatprep.subr.bf16.mxu0 %v1644
    %2179 = vmatpush1.bf16.msra.mxu0 %v1643
    %2180 = vmatprep.subr.bf16.mxu0 %v1648
    %2181 = vmatpush1.bf16.msra.mxu0 %v1647
    %2182 = vmatprep.subr.bf16.mxu0 %v1652
    %2183 = vmatpush1.bf16.msra.mxu0 %v1651
    %2184 = vmatprep.subr.bf16.mxu0 %v1656
    %2185 = vmatpush1.bf16.msra.mxu0 %v1655
    %2186 = vmatprep.subr.bf16.mxu0 %v1660
    %2187 = vmatpush1.bf16.msra.mxu0 %v1659
    %2188 = vmatprep.subr.bf16.mxu0 %v1988
    %2189 = vmatpush1.bf16.msra.mxu0 %v1985
    %2190 = vmatprep.subr.bf16.mxu0 0
    %2191 = vmatpush1.bf16.msra.mxu0 0
    %2192 = vmatprep.mubr.bf16.mxu0 %v1981
    %2193 = vmatmul.mubr.bf16.gmra.mrb[0].mxu0 %v398
    %v2194 = vpop.f32.mrb[0].mxu0
    %v2195 = vadd.f32 %v2154, %v2194
    %v2196 = vpop.f32.mrb[0].mxu0
    %v2197 = vadd.f32 %v2156, %v2196
    %v2198 = vpop.f32.mrb[0].mxu0
    %v2199 = vpop.f32.mrb[0].mxu0
    %2200 = vdwg.mxu0
    %2201 = vmatprep.subr.bf16.mxu0 %v1354
    %2202 = vmatpush1.bf16.msra.mxu0 %v1353
    %2203 = vmatprep.subr.bf16.mxu0 %v1358
    %2204 = vmatpush1.bf16.msra.mxu0 %v1357
    %2205 = vmatprep.subr.bf16.mxu0 %v1362
    %2206 = vmatpush1.bf16.msra.mxu0 %v1361
    %2207 = vmatprep.subr.bf16.mxu0 %v1366
    %2208 = vmatpush1.bf16.msra.mxu0 %v1365
    %2209 = vmatprep.subr.bf16.mxu0 %v1370
    %2210 = vmatpush1.bf16.msra.mxu0 %v1369
    %2211 = vmatprep.subr.bf16.mxu0 %v1374
    %2212 = vmatpush1.bf16.msra.mxu0 %v1373
    %2213 = vmatprep.subr.bf16.mxu0 %v1378
    %2214 = vmatpush1.bf16.msra.mxu0 %v1377
    %2215 = vmatprep.subr.bf16.mxu0 %v1382
    %2216 = vmatpush1.bf16.msra.mxu0 %v1381
    %2217 = vmatprep.subr.bf16.mxu0 %v1386
    %2218 = vmatpush1.bf16.msra.mxu0 %v1385
    %2219 = vmatprep.subr.bf16.mxu0 %v1390
    %2220 = vmatpush1.bf16.msra.mxu0 %v1389
    %2221 = vmatprep.subr.bf16.mxu0 %v1394
    %2222 = vmatpush1.bf16.msra.mxu0 %v1393
    %2223 = vmatprep.subr.bf16.mxu0 %v1398
    %2224 = vmatpush1.bf16.msra.mxu0 %v1397
    %2225 = vmatprep.subr.bf16.mxu0 %v1402
    %2226 = vmatpush1.bf16.msra.mxu0 %v1401
    %2227 = vmatprep.subr.bf16.mxu0 %v1406
    %2228 = vmatpush1.bf16.msra.mxu0 %v1405
    %2229 = vmatprep.subr.bf16.mxu0 %v1410
    %2230 = vmatpush1.bf16.msra.mxu0 %v1409
    %2231 = vmatprep.subr.bf16.mxu0 %v1414
    %2232 = vmatpush1.bf16.msra.mxu0 %v1413
    %2233 = vmatprep.mubr.bf16.mxu0 %v373
    %2234 = vmatmul.mubr.bf16.gmra.mrb[0].mxu0 %v365
    %v2235 = vpop.f32.mrb[0].mxu0
    %v2236 = vadd.f32 %v346, %v2235
    %v2237 = vpop.f32.mrb[0].mxu0
    %v2238 = vadd.f32 %v350, %v2237
    %v2239 = vpop.f32.mrb[0].mxu0
    %v2240 = vpop.f32.mrb[0].mxu0
    %2241 = vdwg.mxu0
    %2242 = vmatprep.subr.bf16.mxu0 %v1418
    %2243 = vmatpush1.bf16.msra.mxu0 %v1417
    %2244 = vmatprep.subr.bf16.mxu0 %v1422
    %2245 = vmatpush1.bf16.msra.mxu0 %v1421
    %2246 = vmatprep.subr.bf16.mxu0 %v1426
    %2247 = vmatpush1.bf16.msra.mxu0 %v1425
    %2248 = vmatprep.subr.bf16.mxu0 %v1430
    %2249 = vmatpush1.bf16.msra.mxu0 %v1429
    %2250 = vmatprep.subr.bf16.mxu0 %v1434
    %2251 = vmatpush1.bf16.msra.mxu0 %v1433
    %2252 = vmatprep.subr.bf16.mxu0 %v1438
    %2253 = vmatpush1.bf16.msra.mxu0 %v1437
    %2254 = vmatprep.subr.bf16.mxu0 %v1442
    %2255 = vmatpush1.bf16.msra.mxu0 %v1441
    %2256 = vmatprep.subr.bf16.mxu0 %v1446
    %2257 = vmatpush1.bf16.msra.mxu0 %v1445
    %2258 = vmatprep.subr.bf16.mxu0 %v1450
    %2259 = vmatpush1.bf16.msra.mxu0 %v1449
    %2260 = vmatprep.subr.bf16.mxu0 %v1454
    %2261 = vmatpush1.bf16.msra.mxu0 %v1453
    %2262 = vmatprep.subr.bf16.mxu0 %v1458
    %2263 = vmatpush1.bf16.msra.mxu0 %v1457
    %2264 = vmatprep.subr.bf16.mxu0 %v1462
    %2265 = vmatpush1.bf16.msra.mxu0 %v1461
    %2266 = vmatprep.subr.bf16.mxu0 %v1466
    %2267 = vmatpush1.bf16.msra.mxu0 %v1465
    %2268 = vmatprep.subr.bf16.mxu0 %v1470
    %2269 = vmatpush1.bf16.msra.mxu0 %v1469
    %2270 = vmatprep.subr.bf16.mxu0 %v1474
    %2271 = vmatpush1.bf16.msra.mxu0 %v1473
    %2272 = vmatprep.subr.bf16.mxu0 %v1478
    %2273 = vmatpush1.bf16.msra.mxu0 %v1477
    %2274 = vmatprep.mubr.bf16.mxu0 %v374
    %2275 = vmatmul.mubr.bf16.gmra.mrb[0].mxu0 %v372
    %v2276 = vpop.f32.mrb[0].mxu0
    %v2277 = vadd.f32 %v2236, %v2276
    %v2278 = vpop.f32.mrb[0].mxu0
    %v2279 = vadd.f32 %v2238, %v2278
    %v2280 = vpop.f32.mrb[0].mxu0
    %v2281 = vpop.f32.mrb[0].mxu0
    %2282 = vdwg.mxu0
    %2283 = vmatprep.subr.bf16.mxu0 %v1482
    %2284 = vmatpush1.bf16.msra.mxu0 %v1481
    %2285 = vmatprep.subr.bf16.mxu0 %v1486
    %2286 = vmatpush1.bf16.msra.mxu0 %v1485
    %2287 = vmatprep.subr.bf16.mxu0 %v1490
    %2288 = vmatpush1.bf16.msra.mxu0 %v1489
    %2289 = vmatprep.subr.bf16.mxu0 %v1494
    %2290 = vmatpush1.bf16.msra.mxu0 %v1493
    %2291 = vmatprep.subr.bf16.mxu0 %v1498
    %2292 = vmatpush1.bf16.msra.mxu0 %v1497
    %2293 = vmatprep.subr.bf16.mxu0 %v1502
    %2294 = vmatpush1.bf16.msra.mxu0 %v1501
    %2295 = vmatprep.subr.bf16.mxu0 %v1506
    %2296 = vmatpush1.bf16.msra.mxu0 %v1505
    %2297 = vmatprep.subr.bf16.mxu0 %v1510
    %2298 = vmatpush1.bf16.msra.mxu0 %v1509
    %2299 = vmatprep.subr.bf16.mxu0 %v1514
    %2300 = vmatpush1.bf16.msra.mxu0 %v1513
    %2301 = vmatprep.subr.bf16.mxu0 %v1518
    %2302 = vmatpush1.bf16.msra.mxu0 %v1517
    %2303 = vmatprep.subr.bf16.mxu0 %v1522
    %2304 = vmatpush1.bf16.msra.mxu0 %v1521
    %2305 = vmatprep.subr.bf16.mxu0 %v1526
    %2306 = vmatpush1.bf16.msra.mxu0 %v1525
    %2307 = vmatprep.subr.bf16.mxu0 %v1530
    %2308 = vmatpush1.bf16.msra.mxu0 %v1529
    %2309 = vmatprep.subr.bf16.mxu0 %v1534
    %2310 = vmatpush1.bf16.msra.mxu0 %v1533
    %2311 = vmatprep.subr.bf16.mxu0 %v1538
    %2312 = vmatpush1.bf16.msra.mxu0 %v1537
    %2313 = vmatprep.subr.bf16.mxu0 %v1542
    %2314 = vmatpush1.bf16.msra.mxu0 %v1541
    %2315 = vmatprep.mubr.bf16.mxu0 %v390
    %2316 = vmatmul.mubr.bf16.gmra.mrb[0].mxu0 %v382
    %v2317 = vpop.f32.mrb[0].mxu0
    %v2318 = vadd.f32 %v2277, %v2317
    %v2319 = vpop.f32.mrb[0].mxu0
    %v2320 = vadd.f32 %v2279, %v2319
    %v2321 = vpop.f32.mrb[0].mxu0
    %v2322 = vpop.f32.mrb[0].mxu0
    %2323 = vdwg.mxu0
    %2324 = vmatprep.subr.bf16.mxu0 %v1546
    %2325 = vmatpush1.bf16.msra.mxu0 %v1545
    %2326 = vmatprep.subr.bf16.mxu0 %v1550
    %2327 = vmatpush1.bf16.msra.mxu0 %v1549
    %2328 = vmatprep.subr.bf16.mxu0 %v1554
    %2329 = vmatpush1.bf16.msra.mxu0 %v1553
    %2330 = vmatprep.subr.bf16.mxu0 %v1558
    %2331 = vmatpush1.bf16.msra.mxu0 %v1557
    %2332 = vmatprep.subr.bf16.mxu0 %v1562
    %2333 = vmatpush1.bf16.msra.mxu0 %v1561
    %2334 = vmatprep.subr.bf16.mxu0 %v1566
    %2335 = vmatpush1.bf16.msra.mxu0 %v1565
    %2336 = vmatprep.subr.bf16.mxu0 %v1570
    %2337 = vmatpush1.bf16.msra.mxu0 %v1569
    %2338 = vmatprep.subr.bf16.mxu0 %v1574
    %2339 = vmatpush1.bf16.msra.mxu0 %v1573
    %2340 = vmatprep.subr.bf16.mxu0 %v1578
    %2341 = vmatpush1.bf16.msra.mxu0 %v1577
    %2342 = vmatprep.subr.bf16.mxu0 %v1582
    %2343 = vmatpush1.bf16.msra.mxu0 %v1581
    %2344 = vmatprep.subr.bf16.mxu0 %v1586
    %2345 = vmatpush1.bf16.msra.mxu0 %v1585
    %2346 = vmatprep.subr.bf16.mxu0 %v1590
    %2347 = vmatpush1.bf16.msra.mxu0 %v1589
    %2348 = vmatprep.subr.bf16.mxu0 %v1594
    %2349 = vmatpush1.bf16.msra.mxu0 %v1593
    %2350 = vmatprep.subr.bf16.mxu0 %v1598
    %2351 = vmatpush1.bf16.msra.mxu0 %v1597
    %2352 = vmatprep.subr.bf16.mxu0 %v1602
    %2353 = vmatpush1.bf16.msra.mxu0 %v1601
    %2354 = vmatprep.subr.bf16.mxu0 %v1606
    %2355 = vmatpush1.bf16.msra.mxu0 %v1605
    %2356 = vmatprep.mubr.bf16.mxu0 %v391
    %2357 = vmatmul.mubr.bf16.gmra.mrb[0].mxu0 %v389
    %v2358 = vpop.f32.mrb[0].mxu0
    %v2359 = vadd.f32 %v2318, %v2358
    %v2360 = vpop.f32.mrb[0].mxu0
    %v2361 = vadd.f32 %v2320, %v2360
    %v2362 = vpop.f32.mrb[0].mxu0
    %v2363 = vpop.f32.mrb[0].mxu0
    %2364 = vdwg.mxu0
    %2365 = vmatprep.subr.bf16.mxu0 %v1610
    %2366 = vmatpush1.bf16.msra.mxu0 %v1609
    %2367 = vmatprep.subr.bf16.mxu0 %v1614
    %2368 = vmatpush1.bf16.msra.mxu0 %v1613
    %2369 = vmatprep.subr.bf16.mxu0 %v1618
    %2370 = vmatpush1.bf16.msra.mxu0 %v1617
    %2371 = vmatprep.subr.bf16.mxu0 %v1622
    %2372 = vmatpush1.bf16.msra.mxu0 %v1621
    %2373 = vmatprep.subr.bf16.mxu0 %v1626
    %2374 = vmatpush1.bf16.msra.mxu0 %v1625
    %2375 = vmatprep.subr.bf16.mxu0 %v1630
    %2376 = vmatpush1.bf16.msra.mxu0 %v1629
    %2377 = vmatprep.subr.bf16.mxu0 %v1634
    %2378 = vmatpush1.bf16.msra.mxu0 %v1633
    %2379 = vmatprep.subr.bf16.mxu0 %v1638
    %2380 = vmatpush1.bf16.msra.mxu0 %v1637
    %2381 = vmatprep.subr.bf16.mxu0 %v1642
    %2382 = vmatpush1.bf16.msra.mxu0 %v1641
    %2383 = vmatprep.subr.bf16.mxu0 %v1646
    %2384 = vmatpush1.bf16.msra.mxu0 %v1645
    %2385 = vmatprep.subr.bf16.mxu0 %v1650
    %2386 = vmatpush1.bf16.msra.mxu0 %v1649
    %2387 = vmatprep.subr.bf16.mxu0 %v1654
    %2388 = vmatpush1.bf16.msra.mxu0 %v1653
    %2389 = vmatprep.subr.bf16.mxu0 %v1658
    %2390 = vmatpush1.bf16.msra.mxu0 %v1657
    %2391 = vmatprep.subr.bf16.mxu0 %v1662
    %2392 = vmatpush1.bf16.msra.mxu0 %v1661
    %2393 = vmatprep.subr.bf16.mxu0 %v1994
    %2394 = vmatpush1.bf16.msra.mxu0 %v1991
    %2395 = vmatprep.subr.bf16.mxu0 0
    %2396 = vmatpush1.bf16.msra.mxu0 0
    %2397 = vmatprep.mubr.bf16.mxu0 %v1981
    %2398 = vmatmul.mubr.bf16.gmra.mrb[0].mxu0 %v398
    %v2399 = vpop.f32.mrb[0].mxu0
    %v2400 = vadd.f32 %v2359, %v2399
    %v2401 = vpop.f32.mrb[0].mxu0
    %v2402 = vadd.f32 %v2361, %v2401
    %v2403 = vpop.f32.mrb[0].mxu0
    %v2404 = vpop.f32.mrb[0].mxu0
    %2405 = vdwg.mxu0
    %v2406 = vmax.f32 %v2195, 0.0
    %v2407 = vmax.f32 %v2197, 0.0
    %v2408 = vmax.f32 %v2400, 0.0
    %v2409 = vmax.f32 %v2402, 0.0
    %v2414 = vcombine.low %v2406, %v2407
    %v2415 = vcombine.low %v2408, %v2409
    %2418 = vst [vmem:[#allocation2] sm:$0xff] %v2414
    %vm2419 = vcmask 1043456
    %vm2420 = vcmask 949252
    %vm2421 = vmor %vm2420, %vm2419
    %2422 = vst.msk [vmem:[#allocation2 + $0x8] sm:$0xff] %vm2421, %v2415
    // Predicated region
    $region14: #{lenet_forward.5} parent=1 // pred_check
      _
    $region15: #{lenet_forward.5} parent=1 // pred_check_branch
      %2424 = sbr.rel (0) target = $region17
    $region16: #{lenet_forward.5} parent=1 // pred_region
      %s2426 = ssub.s32 256, 256
      %2427 = vsyncadd [#allocation3], %s2426
      %s2429 = sshll.u32 [#allocation2], 4
      %s2430 = int_to_ptr.vmem [resolvable:$true] %s2429
      %2432 = dma.vmem_to_hbm [thread:$0]  %s2430, 256, %s3, [#allocation3]
    $region17: #{lenet_forward.5} parent=1 // pred_fallthru
      _
    // Predicated region
    $region18: #{lenet_forward.5} parent=1 // pred_check
      _
    $region19: #{lenet_forward.5} parent=1 // pred_check_branch
      %2434 = sbr.rel (0) target = $region21
    $region20: #{lenet_forward.5} parent=1 // pred_region
      %2435 = dma.done [#allocation3], 256
    $region21: #{lenet_forward.5} parent=1 // pred_fallthru
      _
    %2436 = vsyncpa [#allocation3], 1

// kernel: lenet_forward.4
$region0: #{lenet_forward.4}
  #allocation0 [shape = 'u32[]', space=smem, size = 0x4, offset = 0x4, fixed_abs, tag = 'smem constant byte address 0x4 - core index']
  #allocation1 [shape = 'u32[144,128]{1,0:T(1,128)}', space=vmem, size = 0x12000, scoped, tag = 'internal scratch']
  %s0 = inlined_call_operand.vmem [shape: bf16[4,7,280], index: 0, kind: input, shape index: {}]
  %s1 = inlined_call_operand.vmem [shape: bf16[4,7,280], index: 1, kind: input, shape index: {}]
  %s2 = inlined_call_operand.hbm [shape: bf16[5,2,280,250], index: 2, kind: input, shape index: {}]
  %s3 = inlined_call_operand.hbm [shape: f32[1,250], index: 3, kind: input, shape index: {}]
  %s4 = inlined_call_operand.vmem [shape: bf16[4,5,250], index: 4, kind: output, shape index: {}]
  %s5 = sld [smem:[#allocation0]]
  $region57: #{lenet_forward.4} parent=0
    _
  %s7 = ssub.s32 1, %s5
  %s8 = scalar_select 0, %s7, %s5
  $region1: #{lenet_forward.4} parent=0
    #allocation2 [shape = 'u8[1433600]{0}', space=vmem, size = 0x15e000, scoped, tag = 'input window, operand 2, single buffered']
    #allocation3 [shape = 's32[2]{0}', space=sflag, size = 0x8, scoped, tag = 'scoped memory for lenet_forward.4']
    #allocation4 [shape = 'u8[1024]{0}', space=vmem, size = 0x400, scoped, tag = 'input window, operand 3, single buffered']
    #allocation5 [shape = 's32[1]{0}', space=sflag, size = 0x4, scoped, tag = 'scoped memory for lenet_forward.4']
    %9 = vsyncpa [#allocation3], 0
    %10 = vsyncpa [#allocation5], 0
    loop: start=0, step=1, limit=6
    $region2: #{lenet_forward.4} parent=1 // loop_pre_header
      _
    $region3: #{lenet_forward.4} parent=1 // loop_header
      %s12 = sphi 0, %s16
      %p13 = scmp.ge.s32.totalorder %s12, 6
      %s22 = sphi 0, %s24
      %s25 = sphi 0, %s22
      %s26 = sphi 0, %s25
      %s42 = sphi 0, %s26
      %s48 = sphi 0, %s50
      %s51 = sphi 0, %s48
      %s52 = sphi 0, %s51
      %s68 = sphi 0, %s52
      %s72 = sphi 0, %s72
      %s74 = sphi 0, %s72
      %s75 = sphi 0, %s74
      %s89 = sphi 0, %s75
      %s93 = sphi 0, %s93
      %s95 = sphi 0, %s93
      %s96 = sphi 0, %s95
      %s110 = sphi 0, %s96
      %s116 = sphi 0, %s118
      %s119 = sphi 0, %s116
      %s120 = sphi 0, %s119
      %s136 = sphi 0, %s120
    $region4: #{lenet_forward.4} parent=1 // loop_header_branch
      %15 = sbr.rel (%p13) target = $region8
    $region5: #{lenet_forward.4} parent=1 // loop_body
      %s17 = ssub.s32 %s12, 1
      %s18 = ssub.s32 %s12, 2
      %s19 = sadd.s32 %s12, 1
      %s20 = ssub.s32 %s12, %s19
      %p21 = scmp.eq.s32.totalorder %s20, 0
      %s23 = sadd.s32 %s22, 1
      %s24 = scalar_select %p21, %s22, %s23
      %p27 = pneg %p21
      %p28 = scmp.eq.s32.totalorder %s12, 3
      %p29 = por %p27, %p28
      %p30 = scmp.ne.s32.totalorder %s22, %s25
      %p31 = scmp.eq.s32.totalorder %s12, 0
      %p32 = por %p30, %p31
      %p33 = scmp.ne.s32.totalorder %s22, %s25
      %p34 = scmp.eq.s32.totalorder %s17, 3
      %p35 = por %p33, %p34
      %p36 = scmp.ne.s32.totalorder %s25, %s26
      %p37 = scmp.eq.s32.totalorder %s17, 0
      %p38 = por %p36, %p37
      %p39 = scmp.ne.s32.totalorder %s25, %s26
      %p40 = scmp.eq.s32.totalorder %s18, 3
      %p41 = por %p39, %p40
      %p43 = scmp.ne.s32.totalorder %s26, %s42
      %p44 = scmp.eq.s32.totalorder %s18, 0
      %p45 = por %p43, %p44
      %s46 = ssub.s32 %s12, %s19
      %p47 = scmp.eq.s32.totalorder %s46, 0
      %s49 = sadd.s32 %s48, 1
      %s50 = scalar_select %p47, %s48, %s49
      %p53 = pneg %p47
      %p54 = scmp.eq.s32.totalorder %s12, 3
      %p55 = por %p53, %p54
      %p56 = scmp.ne.s32.totalorder %s48, %s51
      %p57 = scmp.eq.s32.totalorder %s12, 0
      %p58 = por %p56, %p57
      %p59 = scmp.ne.s32.totalorder %s48, %s51
      %p60 = scmp.eq.s32.totalorder %s17, 3
      %p61 = por %p59, %p60
      %p62 = scmp.ne.s32.totalorder %s51, %s52
      %p63 = scmp.eq.s32.totalorder %s17, 0
      %p64 = por %p62, %p63
      %p65 = scmp.ne.s32.totalorder %s51, %s52
      %p66 = scmp.eq.s32.totalorder %s18, 3
      %p67 = por %p65, %p66
      %p69 = scmp.ne.s32.totalorder %s52, %s68
      %p70 = scmp.eq.s32.totalorder %s18, 0
      %p71 = por %p69, %p70
      %s73 = sadd.s32 %s72, 1
      %p76 = scmp.eq.s32.totalorder %s12, 3
      %p77 = scmp.ne.s32.totalorder %s72, %s74
      %p78 = scmp.eq.s32.totalorder %s12, 0
      %p79 = por %p77, %p78
      %p80 = scmp.ne.s32.totalorder %s72, %s74
      %p81 = scmp.eq.s32.totalorder %s17, 3
      %p82 = por %p80, %p81
      %p83 = scmp.ne.s32.totalorder %s74, %s75
      %p84 = scmp.eq.s32.totalorder %s17, 0
      %p85 = por %p83, %p84
      %p86 = scmp.ne.s32.totalorder %s74, %s75
      %p87 = scmp.eq.s32.totalorder %s18, 3
      %p88 = por %p86, %p87
      %p90 = scmp.ne.s32.totalorder %s75, %s89
      %p91 = scmp.eq.s32.totalorder %s18, 0
      %p92 = por %p90, %p91
      %s94 = sadd.s32 %s93, 1
      %p97 = scmp.eq.s32.totalorder %s12, 3
      %p98 = scmp.ne.s32.totalorder %s93, %s95
      %p99 = scmp.eq.s32.totalorder %s12, 0
      %p100 = por %p98, %p99
      %p101 = scmp.ne.s32.totalorder %s93, %s95
      %p102 = scmp.eq.s32.totalorder %s17, 3
      %p103 = por %p101, %p102
      %p104 = scmp.ne.s32.totalorder %s95, %s96
      %p105 = scmp.eq.s32.totalorder %s17, 0
      %p106 = por %p104, %p105
      %p107 = scmp.ne.s32.totalorder %s95, %s96
      %p108 = scmp.eq.s32.totalorder %s18, 3
      %p109 = por %p107, %p108
      %p111 = scmp.ne.s32.totalorder %s96, %s110
      %p112 = scmp.eq.s32.totalorder %s18, 0
      %p113 = por %p111, %p112
      %s114 = ssub.s32 %s12, %s19
      %p115 = scmp.eq.s32.totalorder %s114, 0
      %s117 = sadd.s32 %s116, 1
      %s118 = scalar_select %p115, %s116, %s117
      %p121 = pneg %p115
      %p122 = scmp.eq.s32.totalorder %s12, 3
      %p123 = por %p121, %p122
      %p124 = scmp.ne.s32.totalorder %s116, %s119
      %p125 = scmp.eq.s32.totalorder %s12, 0
      %p126 = por %p124, %p125
      %p127 = scmp.ne.s32.totalorder %s116, %s119
      %p128 = scmp.eq.s32.totalorder %s17, 3
      %p129 = por %p127, %p128
      %p130 = scmp.ne.s32.totalorder %s119, %s120
      %p131 = scmp.eq.s32.totalorder %s17, 0
      %p132 = por %p130, %p131
      %p133 = scmp.ne.s32.totalorder %s119, %s120
      %p134 = scmp.eq.s32.totalorder %s18, 3
      %p135 = por %p133, %p134
      %p137 = scmp.ne.s32.totalorder %s120, %s136
      %p138 = scmp.eq.s32.totalorder %s18, 0
      %p139 = por %p137, %p138
      %p140 = scmp.le.s32.totalorder 1, %s12
      %p141 = scmp.lt.s32.totalorder %s12, 5
      %p142 = pnand %p140, %p141
      %p143 = pneg %p142
      // Predicated region
      $region9: #{lenet_forward.4} parent=5 // pred_check
        _
      $region10: #{lenet_forward.4} parent=5 // pred_check_branch
        %145 = sbr.rel (%p142) target = $region12
      $region11: #{lenet_forward.4} parent=5 // pred_region
        %s146 = ssub.s32 %s12, 1
        // Predicated region
        $region13: #{lenet_forward.4} parent=11 // pred_check
          %p147 = pneg %p85
        $region14: #{lenet_forward.4} parent=11 // pred_check_branch
          %149 = sbr.rel (%p147) target = $region16
        $region15: #{lenet_forward.4} parent=11 // pred_region
          %s151 = ssub.s32 44800, 44800
          %152 = vsyncadd [#allocation3], %s151
          %s153 = sshll.u32 [#allocation2], 4
          %s154 = int_to_ptr.vmem [resolvable:$true] %s153
          %159 = dma.hbm_to_vmem [thread:$0]  %s2, 44800, %s154, [#allocation3], 128, 128, 8
        $region16: #{lenet_forward.4} parent=11 // pred_fallthru
          _
        // Predicated region
        $region17: #{lenet_forward.4} parent=11 // pred_check
          %p160 = pneg %p106
        $region18: #{lenet_forward.4} parent=11 // pred_check_branch
          %162 = sbr.rel (%p160) target = $region20
        $region19: #{lenet_forward.4} parent=11 // pred_region
          %s164 = ssub.s32 32, 32
          %165 = vsyncadd [#allocation5], %s164
          %s167 = sshll.u32 [#allocation4], 4
          %s168 = int_to_ptr.vmem [resolvable:$true] %s167
          %170 = dma.hbm_to_vmem [thread:$0]  %s3, 32, %s168, [#allocation5]
        $region20: #{lenet_forward.4} parent=11 // pred_fallthru
          _
      $region12: #{lenet_forward.4} parent=5 // pred_fallthru
        _
      %p171 = scmp.lt.s32.totalorder %s12, 4
      // Predicated region
      $region21: #{lenet_forward.4} parent=5 // pred_check
        %p172 = pneg %p171
      $region22: #{lenet_forward.4} parent=5 // pred_check_branch
        %174 = sbr.rel (%p172) target = $region24
      $region23: #{lenet_forward.4} parent=5 // pred_region
        // Predicated region
        $region25: #{lenet_forward.4} parent=23 // pred_check
          %p175 = pneg %p32
        $region26: #{lenet_forward.4} parent=23 // pred_check_branch
          %177 = sbr.rel (%p175) target = $region28
        $region27: #{lenet_forward.4} parent=23 // pred_region
          %p178 = scmp.lt.s32.totalorder %s12, 3
          %s179 = scalar_select %p178, %s12, 3
          %s180 = smul.addr %s179, 3
          %s181 = smul.addr %s180, 4
          %s182 = scalar_lea.vmem %s0, %s181
        $region28: #{lenet_forward.4} parent=23 // pred_fallthru
          _
        // Predicated region
        $region29: #{lenet_forward.4} parent=23 // pred_check
          %p183 = pneg %p58
        $region30: #{lenet_forward.4} parent=23 // pred_check_branch
          %185 = sbr.rel (%p183) target = $region32
        $region31: #{lenet_forward.4} parent=23 // pred_region
          %p186 = scmp.lt.s32.totalorder %s12, 3
          %s187 = scalar_select %p186, %s12, 3
          %s188 = smul.addr %s187, 3
          %s189 = smul.addr %s188, 4
          %s190 = scalar_lea.vmem %s1, %s189
        $region32: #{lenet_forward.4} parent=23 // pred_fallthru
          _
      $region24: #{lenet_forward.4} parent=5 // pred_fallthru
        _
      %p191 = scmp.le.s32.totalorder 1, %s12
      %p192 = scmp.lt.s32.totalorder %s12, 5
      %p193 = pnand %p191, %p192
      %p194 = pneg %p193
      // Predicated region
      $region33: #{lenet_forward.4} parent=5 // pred_check
        _
      $region34: #{lenet_forward.4} parent=5 // pred_check_branch
        %196 = sbr.rel (%p193) target = $region36
      $region35: #{lenet_forward.4} parent=5 // pred_region
        %s197 = ssub.s32 %s12, 1
        // Predicated region
        $region37: #{lenet_forward.4} parent=35 // pred_check
          %p198 = pneg %p85
        $region38: #{lenet_forward.4} parent=35 // pred_check_branch
          %200 = sbr.rel (%p198) target = $region40
        $region39: #{lenet_forward.4} parent=35 // pred_region
          %201 = dma.done [#allocation3], 44800
        $region40: #{lenet_forward.4} parent=35 // pred_fallthru
          _
        // Predicated region
        $region41: #{lenet_forward.4} parent=35 // pred_check
          %p202 = pneg %p106
        $region42: #{lenet_forward.4} parent=35 // pred_check_branch
          %204 = sbr.rel (%p202) target = $region44
        $region43: #{lenet_forward.4} parent=35 // pred_region
          %205 = dma.done [#allocation5], 32
        $region44: #{lenet_forward.4} parent=35 // pred_fallthru
          _
        %p206 = scmp.lt.s32.totalorder %s17, 3
        %s207 = scalar_select %p206, %s17, 3
        %s208 = smul.addr %s207, 3
        %s209 = smul.addr %s208, 4
        %s210 = scalar_lea.vmem %s0, %s209
        %p211 = pneg %p38
        %p212 = pneg %p35
        %p213 = scmp.lt.s32.totalorder %s17, 3
        %s214 = scalar_select %p213, %s17, 3
        %s215 = smul.addr %s214, 3
        %s216 = smul.addr %s215, 4
        %s217 = scalar_lea.vmem %s1, %s216
        %p218 = pneg %p64
        %p219 = pneg %p61
        %p220 = pneg %p85
        %p221 = pneg %p82
        %p222 = pneg %p106
        %p223 = pneg %p103
        %p224 = pneg %p132
        %p225 = pneg %p129
        %p226 = scmp.lt.s32.totalorder %s17, 3
        %s227 = scalar_select %p226, %s17, 3
        %s228 = smul.addr %s227, 2
        %s229 = smul.addr %s228, 4
        %s230 = scalar_lea.vmem %s4, %s229
        %p231 = scmp.lt.s32.totalorder %s17, 3
        %s232 = scalar_select %p231, %s17, 3
        %s233 = smul.addr %s232, 3
        %s234 = smul.addr %s233, 4
        %s235 = scalar_lea.vmem %s0, %s234
        %p236 = scmp.lt.s32.totalorder %s17, 3
        %s237 = scalar_select %p236, %s17, 3
        %s238 = smul.addr %s237, 3
        %s239 = smul.addr %s238, 4
        %s240 = scalar_lea.vmem %s1, %s239
        %p241 = scmp.lt.s32.totalorder %s17, 3
        %s242 = scalar_select %p241, %s17, 3
        %s243 = smul.addr %s242, 2
        %s244 = smul.addr %s243, 4
        %s245 = scalar_lea.vmem %s4, %s244
        %v247 = vld [vmem:[%s235] sm:$0x77]
        %v248 = vld [vmem:[%s235 + $0x8] sm:$0x7]
        %v249 = vld [vmem:[#allocation2] sm:$0xff]
        %v250 = vld [vmem:[#allocation2 + $0x8] sm:$0xff]
        %v251 = vld [vmem:[#allocation2 + $0x10] sm:$0xff]
        %v252 = vld [vmem:[#allocation2 + $0x18] sm:$0xff]
        %v253 = vld [vmem:[#allocation2 + $0x20] sm:$0xff]
        %v254 = vld [vmem:[#allocation2 + $0x28] sm:$0xff]
        %v255 = vld [vmem:[#allocation2 + $0x30] sm:$0xff]
        %v256 = vld [vmem:[#allocation2 + $0x38] sm:$0xff]
        %v257 = vld [vmem:[#allocation2 + $0x40] sm:$0xff]
        %v258 = vld [vmem:[#allocation2 + $0x48] sm:$0xff]
        %v259 = vld [vmem:[#allocation2 + $0x50] sm:$0xff]
        %v260 = vld [vmem:[#allocation2 + $0x58] sm:$0xff]
        %v261 = vld [vmem:[#allocation2 + $0x60] sm:$0xff]
        %v262 = vld [vmem:[#allocation2 + $0x68] sm:$0xff]
        %v263 = vld [vmem:[#allocation2 + $0x70] sm:$0xff]
        %v264 = vld [vmem:[#allocation2 + $0x78] sm:$0xff]
        %v265 = vld [vmem:[#allocation2 + $0x80] sm:$0xff]
        %v266 = vld [vmem:[#allocation2 + $0x88] sm:$0xff]
        %v267 = vld [vmem:[#allocation2 + $0x90] sm:$0xff]
        %v268 = vld [vmem:[#allocation2 + $0x98] sm:$0xff]
        %v269 = vld [vmem:[#allocation2 + $0xa0] sm:$0xff]
        %v270 = vld [vmem:[#allocation2 + $0xa8] sm:$0xff]
        %v271 = vld [vmem:[#allocation2 + $0xb0] sm:$0xff]
        %v272 = vld [vmem:[#allocation2 + $0xb8] sm:$0xff]
        %v273 = vld [vmem:[#allocation2 + $0xc0] sm:$0xff]
        %v274 = vld [vmem:[#allocation2 + $0xc8] sm:$0xff]
        %v275 = vld [vmem:[#allocation2 + $0xd0] sm:$0xff]
        %v276 = vld [vmem:[#allocation2 + $0xd8] sm:$0xff]
        %v277 = vld [vmem:[#allocation2 + $0xe0] sm:$0xff]
        %v278 = vld [vmem:[#allocation2 + $0xe8] sm:$0xff]
        %v279 = vld [vmem:[#allocation2 + $0xf0] sm:$0xff]
        %v280 = vld [vmem:[#allocation2 + $0xf8] sm:$0xff]
        %v281 = vld [vmem:[#allocation2 + $0x100] sm:$0xff]
        %v282 = vld [vmem:[#allocation2 + $0x108] sm:$0xff]
        %v283 = vld [vmem:[#allocation2 + $0x110] sm:$0xff]
        %v284 = vld [vmem:[%s240] sm:$0x77]
        %v285 = vld [vmem:[%s240 + $0x8] sm:$0x7]
        %s286 = scalar_lea.vmem [#allocation2], 560
        %v287 = vld [vmem:[%s286] sm:$0xff]
        %v288 = vld [vmem:[%s286 + $0x8] sm:$0xff]
        %v289 = vld [vmem:[%s286 + $0x10] sm:$0xff]
        %v290 = vld [vmem:[%s286 + $0x18] sm:$0xff]
        %v291 = vld [vmem:[%s286 + $0x20] sm:$0xff]
        %v292 = vld [vmem:[%s286 + $0x28] sm:$0xff]
        %v293 = vld [vmem:[%s286 + $0x30] sm:$0xff]
        %v294 = vld [vmem:[%s286 + $0x38] sm:$0xff]
        %v295 = vld [vmem:[%s286 + $0x40] sm:$0xff]
        %v296 = vld [vmem:[%s286 + $0x48] sm:$0xff]
        %v297 = vld [vmem:[%s286 + $0x50] sm:$0xff]
        %v298 = vld [vmem:[%s286 + $0x58] sm:$0xff]
        %v299 = vld [vmem:[%s286 + $0x60] sm:$0xff]
        %v300 = vld [vmem:[%s286 + $0x68] sm:$0xff]
        %v301 = vld [vmem:[%s286 + $0x70] sm:$0xff]
        %v302 = vld [vmem:[%s286 + $0x78] sm:$0xff]
        %v303 = vld [vmem:[%s286 + $0x80] sm:$0xff]
        %v304 = vld [vmem:[%s286 + $0x88] sm:$0xff]
        %v305 = vld [vmem:[%s286 + $0x90] sm:$0xff]
        %v306 = vld [vmem:[%s286 + $0x98] sm:$0xff]
        %v307 = vld [vmem:[%s286 + $0xa0] sm:$0xff]
        %v308 = vld [vmem:[%s286 + $0xa8] sm:$0xff]
        %v309 = vld [vmem:[%s286 + $0xb0] sm:$0xff]
        %v310 = vld [vmem:[%s286 + $0xb8] sm:$0xff]
        %v311 = vld [vmem:[%s286 + $0xc0] sm:$0xff]
        %v312 = vld [vmem:[%s286 + $0xc8] sm:$0xff]
        %v313 = vld [vmem:[%s286 + $0xd0] sm:$0xff]
        %v314 = vld [vmem:[%s286 + $0xd8] sm:$0xff]
        %v315 = vld [vmem:[%s286 + $0xe0] sm:$0xff]
        %v316 = vld [vmem:[%s286 + $0xe8] sm:$0xff]
        %v317 = vld [vmem:[%s286 + $0xf0] sm:$0xff]
        %v318 = vld [vmem:[%s286 + $0xf8] sm:$0xff]
        %v319 = vld [vmem:[%s286 + $0x100] sm:$0xff]
        %v320 = vld [vmem:[%s286 + $0x108] sm:$0xff]
        %v321 = vld [vmem:[%s286 + $0x110] sm:$0xff]
        %v324 = vunpack.c.l.b16 %v284
        %v325 = vunpack.c.h.b16 %v284
        %v326 = vunpack.c.l.b16 %v285
        %v327 = vpack.c.b16 %v324, %v324
        %v328 = vpack.c.b16 %v325, %v325
        %v329 = vpack.c.b16 %v326, %v326
        %v367 = vunpack.c.l.b16 %v287
        %v368 = vunpack.c.h.b16 %v287
        %v369 = vunpack.c.l.b16 %v288
        %v370 = vunpack.c.h.b16 %v288
        %v371 = vunpack.c.l.b16 %v289
        %v372 = vunpack.c.h.b16 %v289
        %v373 = vunpack.c.l.b16 %v290
        %v374 = vunpack.c.h.b16 %v290
        %v375 = vunpack.c.l.b16 %v291
        %v376 = vunpack.c.h.b16 %v291
        %v377 = vunpack.c.l.b16 %v292
        %v378 = vunpack.c.h.b16 %v292
        %v379 = vunpack.c.l.b16 %v293
        %v380 = vunpack.c.h.b16 %v293
        %v381 = vunpack.c.l.b16 %v294
        %v382 = vunpack.c.h.b16 %v294
        %v383 = vunpack.c.l.b16 %v295
        %v384 = vunpack.c.h.b16 %v295
        %v385 = vunpack.c.l.b16 %v296
        %v386 = vunpack.c.h.b16 %v296
        %v387 = vunpack.c.l.b16 %v297
        %v388 = vunpack.c.h.b16 %v297
        %v389 = vunpack.c.l.b16 %v298
        %v390 = vunpack.c.h.b16 %v298
        %v391 = vunpack.c.l.b16 %v299
        %v392 = vunpack.c.h.b16 %v299
        %v393 = vunpack.c.l.b16 %v300
        %v394 = vunpack.c.h.b16 %v300
        %v395 = vunpack.c.l.b16 %v301
        %v396 = vunpack.c.h.b16 %v301
        %v397 = vunpack.c.l.b16 %v302
        %v398 = vunpack.c.h.b16 %v302
        %v399 = vunpack.c.l.b16 %v303
        %v400 = vunpack.c.h.b16 %v303
        %v401 = vunpack.c.l.b16 %v304
        %v402 = vunpack.c.h.b16 %v304
        %v403 = vunpack.c.l.b16 %v305
        %v404 = vunpack.c.h.b16 %v305
        %v405 = vunpack.c.l.b16 %v306
        %v406 = vunpack.c.h.b16 %v306
        %v407 = vunpack.c.l.b16 %v307
        %v408 = vunpack.c.h.b16 %v307
        %v409 = vunpack.c.l.b16 %v308
        %v410 = vunpack.c.h.b16 %v308
        %v411 = vunpack.c.l.b16 %v309
        %v412 = vunpack.c.h.b16 %v309
        %v413 = vunpack.c.l.b16 %v310
        %v414 = vunpack.c.h.b16 %v310
        %v415 = vunpack.c.l.b16 %v311
        %v416 = vunpack.c.h.b16 %v311
        %v417 = vunpack.c.l.b16 %v312
        %v418 = vunpack.c.h.b16 %v312
        %v419 = vunpack.c.l.b16 %v313
        %v420 = vunpack.c.h.b16 %v313
        %v421 = vunpack.c.l.b16 %v314
        %v422 = vunpack.c.h.b16 %v314
        %v423 = vunpack.c.l.b16 %v315
        %v424 = vunpack.c.h.b16 %v315
        %v425 = vunpack.c.l.b16 %v316
        %v426 = vunpack.c.h.b16 %v316
        %v427 = vunpack.c.l.b16 %v317
        %v428 = vunpack.c.h.b16 %v317
        %v429 = vunpack.c.l.b16 %v318
        %v430 = vunpack.c.h.b16 %v318
        %v431 = vunpack.c.l.b16 %v319
        %v432 = vunpack.c.h.b16 %v319
        %v433 = vunpack.c.l.b16 %v320
        %v434 = vunpack.c.h.b16 %v320
        %v435 = vunpack.c.l.b16 %v321
        %v436 = vunpack.c.h.b16 %v321
        %v437 = vpack.c.b16 %v369, %v367
        %v438 = vpack.c.b16 %v370, %v368
        %v439 = vpack.c.b16 %v373, %v371
        %v440 = vpack.c.b16 %v374, %v372
        %v441 = vpack.c.b16 %v377, %v375
        %v442 = vpack.c.b16 %v378, %v376
        %v443 = vpack.c.b16 %v381, %v379
        %v444 = vpack.c.b16 %v382, %v380
        %v445 = vpack.c.b16 %v385, %v383
        %v446 = vpack.c.b16 %v386, %v384
        %v447 = vpack.c.b16 %v389, %v387
        %v448 = vpack.c.b16 %v390, %v388
        %v449 = vpack.c.b16 %v393, %v391
        %v450 = vpack.c.b16 %v394, %v392
        %v451 = vpack.c.b16 %v397, %v395
        %v452 = vpack.c.b16 %v398, %v396
        %v453 = vpack.c.b16 %v401, %v399
        %v454 = vpack.c.b16 %v402, %v400
        %v455 = vpack.c.b16 %v405, %v403
        %v456 = vpack.c.b16 %v406, %v404
        %v457 = vpack.c.b16 %v409, %v407
        %v458 = vpack.c.b16 %v410, %v408
        %v459 = vpack.c.b16 %v413, %v411
        %v460 = vpack.c.b16 %v414, %v412
        %v461 = vpack.c.b16 %v417, %v415
        %v462 = vpack.c.b16 %v418, %v416
        %v463 = vpack.c.b16 %v421, %v419
        %v464 = vpack.c.b16 %v422, %v420
        %v465 = vpack.c.b16 %v425, %v423
        %v466 = vpack.c.b16 %v426, %v424
        %v467 = vpack.c.b16 %v429, %v427
        %v468 = vpack.c.b16 %v430, %v428
        %v469 = vpack.c.b16 %v433, %v431
        %v470 = vpack.c.b16 %v434, %v432
        %v471 = vpack.c.b16 %v435, %v435
        %v472 = vpack.c.b16 %v436, %v436
        %vm507 = vcmask 195584
        %v509 = vsel %vm507, %v329, 0
        %vm511 = vcmask 1043456
        %v513 = vsel %vm511, %v471, 0
        %v516 = vsel %vm511, %v472, 0
        %518 = vmatprep.subr.bf16.mxu0 %v438
        %519 = vmatpush1.bf16.msra.mxu0 %v437
        %520 = vmatprep.subr.bf16.mxu0 %v440
        %521 = vmatpush1.bf16.msra.mxu0 %v439
        %522 = vmatprep.subr.bf16.mxu0 %v442
        %523 = vmatpush1.bf16.msra.mxu0 %v441
        %524 = vmatprep.subr.bf16.mxu0 %v444
        %525 = vmatpush1.bf16.msra.mxu0 %v443
        %526 = vmatprep.subr.bf16.mxu0 %v446
        %527 = vmatpush1.bf16.msra.mxu0 %v445
        %528 = vmatprep.subr.bf16.mxu0 %v448
        %529 = vmatpush1.bf16.msra.mxu0 %v447
        %530 = vmatprep.subr.bf16.mxu0 %v450
        %531 = vmatpush1.bf16.msra.mxu0 %v449
        %532 = vmatprep.subr.bf16.mxu0 %v452
        %533 = vmatpush1.bf16.msra.mxu0 %v451
        %534 = vmatprep.subr.bf16.mxu0 %v454
        %535 = vmatpush1.bf16.msra.mxu0 %v453
        %536 = vmatprep.subr.bf16.mxu0 %v456
        %537 = vmatpush1.bf16.msra.mxu0 %v455
        %538 = vmatprep.subr.bf16.mxu0 %v458
        %539 = vmatpush1.bf16.msra.mxu0 %v457
        %540 = vmatprep.subr.bf16.mxu0 %v460
        %541 = vmatpush1.bf16.msra.mxu0 %v459
        %542 = vmatprep.subr.bf16.mxu0 %v462
        %543 = vmatpush1.bf16.msra.mxu0 %v461
        %544 = vmatprep.subr.bf16.mxu0 %v464
        %545 = vmatpush1.bf16.msra.mxu0 %v463
        %546 = vmatprep.subr.bf16.mxu0 %v466
        %547 = vmatpush1.bf16.msra.mxu0 %v465
        %548 = vmatprep.subr.bf16.mxu0 %v468
        %549 = vmatpush1.bf16.msra.mxu0 %v467
        %550 = vmatprep.mubr.bf16.mxu0 %v328
        %551 = vmatmul.mubr.bf16.gmra.mrb[0].mxu0 %v327
        %v552 = vpop.f32.mrb[0].mxu0
        %v553 = vadd.f32 0.0, %v552
        %v554 = vpop.f32.mrb[0].mxu0
        %v555 = vadd.f32 0.0, %v554
        %v556 = vpop.f32.mrb[0].mxu0
        %v557 = vpop.f32.mrb[0].mxu0
        %558 = vdwg.mxu0
        %559 = vmatprep.subr.bf16.mxu0 %v470
        %560 = vmatpush1.bf16.msra.mxu0 %v469
        %561 = vmatprep.subr.bf16.mxu0 %v516
        %562 = vmatpush1.bf16.msra.mxu0 %v513
        %563 = vmatprep.subr.bf16.mxu0 0
        %564 = vmatpush1.bf16.msra.mxu0 0
        %565 = vmatprep.subr.bf16.mxu0 0
        %566 = vmatpush1.bf16.msra.mxu0 0
        %567 = vmatprep.subr.bf16.mxu0 0
        %568 = vmatpush1.bf16.msra.mxu0 0
        %569 = vmatprep.subr.bf16.mxu0 0
        %570 = vmatpush1.bf16.msra.mxu0 0
        %571 = vmatprep.subr.bf16.mxu0 0
        %572 = vmatpush1.bf16.msra.mxu0 0
        %573 = vmatprep.subr.bf16.mxu0 0
        %574 = vmatpush1.bf16.msra.mxu0 0
        %575 = vmatprep.subr.bf16.mxu0 0
        %576 = vmatpush1.bf16.msra.mxu0 0
        %577 = vmatprep.subr.bf16.mxu0 0
        %578 = vmatpush1.bf16.msra.mxu0 0
        %579 = vmatprep.subr.bf16.mxu0 0
        %580 = vmatpush1.bf16.msra.mxu0 0
        %581 = vmatprep.subr.bf16.mxu0 0
        %582 = vmatpush1.bf16.msra.mxu0 0
        %583 = vmatprep.subr.bf16.mxu0 0
        %584 = vmatpush1.bf16.msra.mxu0 0
        %585 = vmatprep.subr.bf16.mxu0 0
        %586 = vmatpush1.bf16.msra.mxu0 0
        %587 = vmatprep.subr.bf16.mxu0 0
        %588 = vmatpush1.bf16.msra.mxu0 0
        %589 = vmatprep.subr.bf16.mxu0 0
        %590 = vmatpush1.bf16.msra.mxu0 0
        %591 = vmatprep.mubr.bf16.mxu0 0
        %592 = vmatmul.mubr.bf16.gmra.mrb[0].mxu0 %v509
        %v593 = vpop.f32.mrb[0].mxu0
        %v594 = vadd.f32 %v553, %v593
        %v595 = vpop.f32.mrb[0].mxu0
        %v596 = vadd.f32 %v555, %v595
        %v597 = vpop.f32.mrb[0].mxu0
        %v598 = vpop.f32.mrb[0].mxu0
        %599 = vdwg.mxu0
        %v602 = vunpack.c.l.b16 %v247
        %v603 = vunpack.c.h.b16 %v247
        %v604 = vunpack.c.l.b16 %v248
        %v605 = vpack.c.b16 %v602, %v602
        %v606 = vpack.c.b16 %v603, %v603
        %v607 = vpack.c.b16 %v604, %v604
        %v645 = vunpack.c.l.b16 %v249
        %v646 = vunpack.c.h.b16 %v249
        %v647 = vunpack.c.l.b16 %v250
        %v648 = vunpack.c.h.b16 %v250
        %v649 = vunpack.c.l.b16 %v251
        %v650 = vunpack.c.h.b16 %v251
        %v651 = vunpack.c.l.b16 %v252
        %v652 = vunpack.c.h.b16 %v252
        %v653 = vunpack.c.l.b16 %v253
        %v654 = vunpack.c.h.b16 %v253
        %v655 = vunpack.c.l.b16 %v254
        %v656 = vunpack.c.h.b16 %v254
        %v657 = vunpack.c.l.b16 %v255
        %v658 = vunpack.c.h.b16 %v255
        %v659 = vunpack.c.l.b16 %v256
        %v660 = vunpack.c.h.b16 %v256
        %v661 = vunpack.c.l.b16 %v257
        %v662 = vunpack.c.h.b16 %v257
        %v663 = vunpack.c.l.b16 %v258
        %v664 = vunpack.c.h.b16 %v258
        %v665 = vunpack.c.l.b16 %v259
        %v666 = vunpack.c.h.b16 %v259
        %v667 = vunpack.c.l.b16 %v260
        %v668 = vunpack.c.h.b16 %v260
        %v669 = vunpack.c.l.b16 %v261
        %v670 = vunpack.c.h.b16 %v261
        %v671 = vunpack.c.l.b16 %v262
        %v672 = vunpack.c.h.b16 %v262
        %v673 = vunpack.c.l.b16 %v263
        %v674 = vunpack.c.h.b16 %v263
        %v675 = vunpack.c.l.b16 %v264
        %v676 = vunpack.c.h.b16 %v264
        %v677 = vunpack.c.l.b16 %v265
        %v678 = vunpack.c.h.b16 %v265
        %v679 = vunpack.c.l.b16 %v266
        %v680 = vunpack.c.h.b16 %v266
        %v681 = vunpack.c.l.b16 %v267
        %v682 = vunpack.c.h.b16 %v267
        %v683 = vunpack.c.l.b16 %v268
        %v684 = vunpack.c.h.b16 %v268
        %v685 = vunpack.c.l.b16 %v269
        %v686 = vunpack.c.h.b16 %v269
        %v687 = vunpack.c.l.b16 %v270
        %v688 = vunpack.c.h.b16 %v270
        %v689 = vunpack.c.l.b16 %v271
        %v690 = vunpack.c.h.b16 %v271
        %v691 = vunpack.c.l.b16 %v272
        %v692 = vunpack.c.h.b16 %v272
        %v693 = vunpack.c.l.b16 %v273
        %v694 = vunpack.c.h.b16 %v273
        %v695 = vunpack.c.l.b16 %v274
        %v696 = vunpack.c.h.b16 %v274
        %v697 = vunpack.c.l.b16 %v275
        %v698 = vunpack.c.h.b16 %v275
        %v699 = vunpack.c.l.b16 %v276
        %v700 = vunpack.c.h.b16 %v276
        %v701 = vunpack.c.l.b16 %v277
        %v702 = vunpack.c.h.b16 %v277
        %v703 = vunpack.c.l.b16 %v278
        %v704 = vunpack.c.h.b16 %v278
        %v705 = vunpack.c.l.b16 %v279
        %v706 = vunpack.c.h.b16 %v279
        %v707 = vunpack.c.l.b16 %v280
        %v708 = vunpack.c.h.b16 %v280
        %v709 = vunpack.c.l.b16 %v281
        %v710 = vunpack.c.h.b16 %v281
        %v711 = vunpack.c.l.b16 %v282
        %v712 = vunpack.c.h.b16 %v282
        %v713 = vunpack.c.l.b16 %v283
        %v714 = vunpack.c.h.b16 %v283
        %v715 = vpack.c.b16 %v647, %v645
        %v716 = vpack.c.b16 %v648, %v646
        %v717 = vpack.c.b16 %v651, %v649
        %v718 = vpack.c.b16 %v652, %v650
        %v719 = vpack.c.b16 %v655, %v653
        %v720 = vpack.c.b16 %v656, %v654
        %v721 = vpack.c.b16 %v659, %v657
        %v722 = vpack.c.b16 %v660, %v658
        %v723 = vpack.c.b16 %v663, %v661
        %v724 = vpack.c.b16 %v664, %v662
        %v725 = vpack.c.b16 %v667, %v665
        %v726 = vpack.c.b16 %v668, %v666
        %v727 = vpack.c.b16 %v671, %v669
        %v728 = vpack.c.b16 %v672, %v670
        %v729 = vpack.c.b16 %v675, %v673
        %v730 = vpack.c.b16 %v676, %v674
        %v731 = vpack.c.b16 %v679, %v677
        %v732 = vpack.c.b16 %v680, %v678
        %v733 = vpack.c.b16 %v683, %v681
        %v734 = vpack.c.b16 %v684, %v682
        %v735 = vpack.c.b16 %v687, %v685
        %v736 = vpack.c.b16 %v688, %v686
        %v737 = vpack.c.b16 %v691, %v689
        %v738 = vpack.c.b16 %v692, %v690
        %v739 = vpack.c.b16 %v695, %v693
        %v740 = vpack.c.b16 %v696, %v694
        %v741 = vpack.c.b16 %v699, %v697
        %v742 = vpack.c.b16 %v700, %v698
        %v743 = vpack.c.b16 %v703, %v701
        %v744 = vpack.c.b16 %v704, %v702
        %v745 = vpack.c.b16 %v707, %v705
        %v746 = vpack.c.b16 %v708, %v706
        %v747 = vpack.c.b16 %v711, %v709
        %v748 = vpack.c.b16 %v712, %v710
        %v749 = vpack.c.b16 %v713, %v713
        %v750 = vpack.c.b16 %v714, %v714
        %v786 = vsel %vm507, %v607, 0
        %v789 = vsel %vm511, %v749, 0
        %v792 = vsel %vm511, %v750, 0
        %794 = vmatprep.subr.bf16.mxu0 %v716
        %795 = vmatpush1.bf16.msra.mxu0 %v715
        %796 = vmatprep.subr.bf16.mxu0 %v718
        %797 = vmatpush1.bf16.msra.mxu0 %v717
        %798 = vmatprep.subr.bf16.mxu0 %v720
        %799 = vmatpush1.bf16.msra.mxu0 %v719
        %800 = vmatprep.subr.bf16.mxu0 %v722
        %801 = vmatpush1.bf16.msra.mxu0 %v721
        %802 = vmatprep.subr.bf16.mxu0 %v724
        %803 = vmatpush1.bf16.msra.mxu0 %v723
        %804 = vmatprep.subr.bf16.mxu0 %v726
        %805 = vmatpush1.bf16.msra.mxu0 %v725
        %806 = vmatprep.subr.bf16.mxu0 %v728
        %807 = vmatpush1.bf16.msra.mxu0 %v727
        %808 = vmatprep.subr.bf16.mxu0 %v730
        %809 = vmatpush1.bf16.msra.mxu0 %v729
        %810 = vmatprep.subr.bf16.mxu0 %v732
        %811 = vmatpush1.bf16.msra.mxu0 %v731
        %812 = vmatprep.subr.bf16.mxu0 %v734
        %813 = vmatpush1.bf16.msra.mxu0 %v733
        %814 = vmatprep.subr.bf16.mxu0 %v736
        %815 = vmatpush1.bf16.msra.mxu0 %v735
        %816 = vmatprep.subr.bf16.mxu0 %v738
        %817 = vmatpush1.bf16.msra.mxu0 %v737
        %818 = vmatprep.subr.bf16.mxu0 %v740
        %819 = vmatpush1.bf16.msra.mxu0 %v739
        %820 = vmatprep.subr.bf16.mxu0 %v742
        %821 = vmatpush1.bf16.msra.mxu0 %v741
        %822 = vmatprep.subr.bf16.mxu0 %v744
        %823 = vmatpush1.bf16.msra.mxu0 %v743
        %824 = vmatprep.subr.bf16.mxu0 %v746
        %825 = vmatpush1.bf16.msra.mxu0 %v745
        %826 = vmatprep.mubr.bf16.mxu0 %v606
        %827 = vmatmul.mubr.bf16.gmra.mrb[0].mxu0 %v605
        %v828 = vpop.f32.mrb[0].mxu0
        %v829 = vadd.f32 %v594, %v828
        %v830 = vpop.f32.mrb[0].mxu0
        %v831 = vadd.f32 %v596, %v830
        %v832 = vpop.f32.mrb[0].mxu0
        %v833 = vpop.f32.mrb[0].mxu0
        %834 = vdwg.mxu0
        %835 = vmatprep.subr.bf16.mxu0 %v748
        %836 = vmatpush1.bf16.msra.mxu0 %v747
        %837 = vmatprep.subr.bf16.mxu0 %v792
        %838 = vmatpush1.bf16.msra.mxu0 %v789
        %839 = vmatprep.subr.bf16.mxu0 0
        %840 = vmatpush1.bf16.msra.mxu0 0
        %841 = vmatprep.subr.bf16.mxu0 0
        %842 = vmatpush1.bf16.msra.mxu0 0
        %843 = vmatprep.subr.bf16.mxu0 0
        %844 = vmatpush1.bf16.msra.mxu0 0
        %845 = vmatprep.subr.bf16.mxu0 0
        %846 = vmatpush1.bf16.msra.mxu0 0
        %847 = vmatprep.subr.bf16.mxu0 0
        %848 = vmatpush1.bf16.msra.mxu0 0
        %849 = vmatprep.subr.bf16.mxu0 0
        %850 = vmatpush1.bf16.msra.mxu0 0
        %851 = vmatprep.subr.bf16.mxu0 0
        %852 = vmatpush1.bf16.msra.mxu0 0
        %853 = vmatprep.subr.bf16.mxu0 0
        %854 = vmatpush1.bf16.msra.mxu0 0
        %855 = vmatprep.subr.bf16.mxu0 0
        %856 = vmatpush1.bf16.msra.mxu0 0
        %857 = vmatprep.subr.bf16.mxu0 0
        %858 = vmatpush1.bf16.msra.mxu0 0
        %859 = vmatprep.subr.bf16.mxu0 0
        %860 = vmatpush1.bf16.msra.mxu0 0
        %861 = vmatprep.subr.bf16.mxu0 0
        %862 = vmatpush1.bf16.msra.mxu0 0
        %863 = vmatprep.subr.bf16.mxu0 0
        %864 = vmatpush1.bf16.msra.mxu0 0
        %865 = vmatprep.subr.bf16.mxu0 0
        %866 = vmatpush1.bf16.msra.mxu0 0
        %867 = vmatprep.mubr.bf16.mxu0 0
        %868 = vmatmul.mubr.bf16.gmra.mrb[0].mxu0 %v786
        %v869 = vpop.f32.mrb[0].mxu0
        %v870 = vadd.f32 %v829, %v869
        %v871 = vpop.f32.mrb[0].mxu0
        %v872 = vadd.f32 %v831, %v871
        %v873 = vpop.f32.mrb[0].mxu0
        %v874 = vpop.f32.mrb[0].mxu0
        %875 = vdwg.mxu0
        %s876 = scalar_lea.vmem [#allocation2], 1120
        %v877 = vld [vmem:[%s876] sm:$0xff]
        %v878 = vld [vmem:[%s876 + $0x8] sm:$0xff]
        %v879 = vld [vmem:[%s876 + $0x10] sm:$0xff]
        %v880 = vld [vmem:[%s876 + $0x18] sm:$0xff]
        %v881 = vld [vmem:[%s876 + $0x20] sm:$0xff]
        %v882 = vld [vmem:[%s876 + $0x28] sm:$0xff]
        %v883 = vld [vmem:[%s876 + $0x30] sm:$0xff]
        %v884 = vld [vmem:[%s876 + $0x38] sm:$0xff]
        %v885 = vld [vmem:[%s876 + $0x40] sm:$0xff]
        %v886 = vld [vmem:[%s876 + $0x48] sm:$0xff]
        %v887 = vld [vmem:[%s876 + $0x50] sm:$0xff]
        %v888 = vld [vmem:[%s876 + $0x58] sm:$0xff]
        %v889 = vld [vmem:[%s876 + $0x60] sm:$0xff]
        %v890 = vld [vmem:[%s876 + $0x68] sm:$0xff]
        %v891 = vld [vmem:[%s876 + $0x70] sm:$0xff]
        %v892 = vld [vmem:[%s876 + $0x78] sm:$0xff]
        %v893 = vld [vmem:[%s876 + $0x80] sm:$0xff]
        %v894 = vld [vmem:[%s876 + $0x88] sm:$0xff]
        %v895 = vld [vmem:[%s876 + $0x90] sm:$0xff]
        %v896 = vld [vmem:[%s876 + $0x98] sm:$0xff]
        %v897 = vld [vmem:[%s876 + $0xa0] sm:$0xff]
        %v898 = vld [vmem:[%s876 + $0xa8] sm:$0xff]
        %v899 = vld [vmem:[%s876 + $0xb0] sm:$0xff]
        %v900 = vld [vmem:[%s876 + $0xb8] sm:$0xff]
        %v901 = vld [vmem:[%s876 + $0xc0] sm:$0xff]
        %v902 = vld [vmem:[%s876 + $0xc8] sm:$0xff]
        %v903 = vld [vmem:[%s876 + $0xd0] sm:$0xff]
        %v904 = vld [vmem:[%s876 + $0xd8] sm:$0xff]
        %v905 = vld [vmem:[%s876 + $0xe0] sm:$0xff]
        %v906 = vld [vmem:[%s876 + $0xe8] sm:$0xff]
        %v907 = vld [vmem:[%s876 + $0xf0] sm:$0xff]
        %v908 = vld [vmem:[%s876 + $0xf8] sm:$0xff]
        %v909 = vld [vmem:[%s876 + $0x100] sm:$0xff]
        %v910 = vld [vmem:[%s876 + $0x108] sm:$0xff]
        %v911 = vld [vmem:[%s876 + $0x110] sm:$0xff]
        %v913 = vshrl.u32 %v605, 16
        %v915 = vshll.u32 %v605, 16
        %v917 = vrot.slane %v915, 1
        %v918 = vor.u32 %v913, %v917
        %v920 = vshrl.u32 %v606, 16
        %v922 = vshll.u32 %v606, 16
        %v924 = vrot.slane %v922, 1
        %v925 = vor.u32 %v920, %v924
        %v926 = vshrl.u32 %v607, 16
        %v928 = vshll.u32 %v607, 16
        %v930 = vrot.slane %v928, 1
        %v931 = vor.u32 %v926, %v930
        %v969 = vunpack.c.l.b16 %v877
        %v970 = vunpack.c.h.b16 %v877
        %v971 = vunpack.c.l.b16 %v878
        %v972 = vunpack.c.h.b16 %v878
        %v973 = vunpack.c.l.b16 %v879
        %v974 = vunpack.c.h.b16 %v879
        %v975 = vunpack.c.l.b16 %v880
        %v976 = vunpack.c.h.b16 %v880
        %v977 = vunpack.c.l.b16 %v881
        %v978 = vunpack.c.h.b16 %v881
        %v979 = vunpack.c.l.b16 %v882
        %v980 = vunpack.c.h.b16 %v882
        %v981 = vunpack.c.l.b16 %v883
        %v982 = vunpack.c.h.b16 %v883
        %v983 = vunpack.c.l.b16 %v884
        %v984 = vunpack.c.h.b16 %v884
        %v985 = vunpack.c.l.b16 %v885
        %v986 = vunpack.c.h.b16 %v885
        %v987 = vunpack.c.l.b16 %v886
        %v988 = vunpack.c.h.b16 %v886
        %v989 = vunpack.c.l.b16 %v887
        %v990 = vunpack.c.h.b16 %v887
        %v991 = vunpack.c.l.b16 %v888
        %v992 = vunpack.c.h.b16 %v888
        %v993 = vunpack.c.l.b16 %v889
        %v994 = vunpack.c.h.b16 %v889
        %v995 = vunpack.c.l.b16 %v890
        %v996 = vunpack.c.h.b16 %v890
        %v997 = vunpack.c.l.b16 %v891
        %v998 = vunpack.c.h.b16 %v891
        %v999 = vunpack.c.l.b16 %v892
        %v1000 = vunpack.c.h.b16 %v892
        %v1001 = vunpack.c.l.b16 %v893
        %v1002 = vunpack.c.h.b16 %v893
        %v1003 = vunpack.c.l.b16 %v894
        %v1004 = vunpack.c.h.b16 %v894
        %v1005 = vunpack.c.l.b16 %v895
        %v1006 = vunpack.c.h.b16 %v895
        %v1007 = vunpack.c.l.b16 %v896
        %v1008 = vunpack.c.h.b16 %v896
        %v1009 = vunpack.c.l.b16 %v897
        %v1010 = vunpack.c.h.b16 %v897
        %v1011 = vunpack.c.l.b16 %v898
        %v1012 = vunpack.c.h.b16 %v898
        %v1013 = vunpack.c.l.b16 %v899
        %v1014 = vunpack.c.h.b16 %v899
        %v1015 = vunpack.c.l.b16 %v900
        %v1016 = vunpack.c.h.b16 %v900
        %v1017 = vunpack.c.l.b16 %v901
        %v1018 = vunpack.c.h.b16 %v901
        %v1019 = vunpack.c.l.b16 %v902
        %v1020 = vunpack.c.h.b16 %v902
        %v1021 = vunpack.c.l.b16 %v903
        %v1022 = vunpack.c.h.b16 %v903
        %v1023 = vunpack.c.l.b16 %v904
        %v1024 = vunpack.c.h.b16 %v904
        %v1025 = vunpack.c.l.b16 %v905
        %v1026 = vunpack.c.h.b16 %v905
        %v1027 = vunpack.c.l.b16 %v906
        %v1028 = vunpack.c.h.b16 %v906
        %v1029 = vunpack.c.l.b16 %v907
        %v1030 = vunpack.c.h.b16 %v907
        %v1031 = vunpack.c.l.b16 %v908
        %v1032 = vunpack.c.h.b16 %v908
        %v1033 = vunpack.c.l.b16 %v909
        %v1034 = vunpack.c.h.b16 %v909
        %v1035 = vunpack.c.l.b16 %v910
        %v1036 = vunpack.c.h.b16 %v910
        %v1037 = vunpack.c.l.b16 %v911
        %v1038 = vunpack.c.h.b16 %v911
        %v1039 = vpack.c.b16 %v971, %v969
        %v1040 = vpack.c.b16 %v972, %v970
        %v1041 = vpack.c.b16 %v975, %v973
        %v1042 = vpack.c.b16 %v976, %v974
        %v1043 = vpack.c.b16 %v979, %v977
        %v1044 = vpack.c.b16 %v980, %v978
        %v1045 = vpack.c.b16 %v983, %v981
        %v1046 = vpack.c.b16 %v984, %v982
        %v1047 = vpack.c.b16 %v987, %v985
        %v1048 = vpack.c.b16 %v988, %v986
        %v1049 = vpack.c.b16 %v991, %v989
        %v1050 = vpack.c.b16 %v992, %v990
        %v1051 = vpack.c.b16 %v995, %v993
        %v1052 = vpack.c.b16 %v996, %v994
        %v1053 = vpack.c.b16 %v999, %v997
        %v1054 = vpack.c.b16 %v1000, %v998
        %v1055 = vpack.c.b16 %v1003, %v1001
        %v1056 = vpack.c.b16 %v1004, %v1002
        %v1057 = vpack.c.b16 %v1007, %v1005
        %v1058 = vpack.c.b16 %v1008, %v1006
        %v1059 = vpack.c.b16 %v1011, %v1009
        %v1060 = vpack.c.b16 %v1012, %v1010
        %v1061 = vpack.c.b16 %v1015, %v1013
        %v1062 = vpack.c.b16 %v1016, %v1014
        %v1063 = vpack.c.b16 %v1019, %v1017
        %v1064 = vpack.c.b16 %v1020, %v1018
        %v1065 = vpack.c.b16 %v1023, %v1021
        %v1066 = vpack.c.b16 %v1024, %v1022
        %v1067 = vpack.c.b16 %v1027, %v1025
        %v1068 = vpack.c.b16 %v1028, %v1026
        %v1069 = vpack.c.b16 %v1031, %v1029
        %v1070 = vpack.c.b16 %v1032, %v1030
        %v1071 = vpack.c.b16 %v1035, %v1033
        %v1072 = vpack.c.b16 %v1036, %v1034
        %v1073 = vpack.c.b16 %v1037, %v1037
        %v1074 = vpack.c.b16 %v1038, %v1038
        %v1110 = vsel %vm507, %v931, 0
        %v1113 = vsel %vm511, %v1073, 0
        %v1116 = vsel %vm511, %v1074, 0
        %1118 = vmatprep.subr.bf16.mxu0 %v1040
        %1119 = vmatpush1.bf16.msra.mxu0 %v1039
        %1120 = vmatprep.subr.bf16.mxu0 %v1042
        %1121 = vmatpush1.bf16.msra.mxu0 %v1041
        %1122 = vmatprep.subr.bf16.mxu0 %v1044
        %1123 = vmatpush1.bf16.msra.mxu0 %v1043
        %1124 = vmatprep.subr.bf16.mxu0 %v1046
        %1125 = vmatpush1.bf16.msra.mxu0 %v1045
        %1126 = vmatprep.subr.bf16.mxu0 %v1048
        %1127 = vmatpush1.bf16.msra.mxu0 %v1047
        %1128 = vmatprep.subr.bf16.mxu0 %v1050
        %1129 = vmatpush1.bf16.msra.mxu0 %v1049
        %1130 = vmatprep.subr.bf16.mxu0 %v1052
        %1131 = vmatpush1.bf16.msra.mxu0 %v1051
        %1132 = vmatprep.subr.bf16.mxu0 %v1054
        %1133 = vmatpush1.bf16.msra.mxu0 %v1053
        %1134 = vmatprep.subr.bf16.mxu0 %v1056
        %1135 = vmatpush1.bf16.msra.mxu0 %v1055
        %1136 = vmatprep.subr.bf16.mxu0 %v1058
        %1137 = vmatpush1.bf16.msra.mxu0 %v1057
        %1138 = vmatprep.subr.bf16.mxu0 %v1060
        %1139 = vmatpush1.bf16.msra.mxu0 %v1059
        %1140 = vmatprep.subr.bf16.mxu0 %v1062
        %1141 = vmatpush1.bf16.msra.mxu0 %v1061
        %1142 = vmatprep.subr.bf16.mxu0 %v1064
        %1143 = vmatpush1.bf16.msra.mxu0 %v1063
        %1144 = vmatprep.subr.bf16.mxu0 %v1066
        %1145 = vmatpush1.bf16.msra.mxu0 %v1065
        %1146 = vmatprep.subr.bf16.mxu0 %v1068
        %1147 = vmatpush1.bf16.msra.mxu0 %v1067
        %1148 = vmatprep.subr.bf16.mxu0 %v1070
        %1149 = vmatpush1.bf16.msra.mxu0 %v1069
        %1150 = vmatprep.mubr.bf16.mxu0 %v925
        %1151 = vmatmul.mubr.bf16.gmra.mrb[0].mxu0 %v918
        %v1152 = vpop.f32.mrb[0].mxu0
        %v1153 = vadd.f32 0.0, %v1152
        %v1154 = vpop.f32.mrb[0].mxu0
        %v1155 = vadd.f32 0.0, %v1154
        %v1156 = vpop.f32.mrb[0].mxu0
        %v1157 = vpop.f32.mrb[0].mxu0
        %1158 = vdwg.mxu0
        %1159 = vmatprep.subr.bf16.mxu0 %v1072
        %1160 = vmatpush1.bf16.msra.mxu0 %v1071
        %1161 = vmatprep.subr.bf16.mxu0 %v1116
        %1162 = vmatpush1.bf16.msra.mxu0 %v1113
        %1163 = vmatprep.subr.bf16.mxu0 0
        %1164 = vmatpush1.bf16.msra.mxu0 0
        %1165 = vmatprep.subr.bf16.mxu0 0
        %1166 = vmatpush1.bf16.msra.mxu0 0
        %1167 = vmatprep.subr.bf16.mxu0 0
        %1168 = vmatpush1.bf16.msra.mxu0 0
        %1169 = vmatprep.subr.bf16.mxu0 0
        %1170 = vmatpush1.bf16.msra.mxu0 0
        %1171 = vmatprep.subr.bf16.mxu0 0
        %1172 = vmatpush1.bf16.msra.mxu0 0
        %1173 = vmatprep.subr.bf16.mxu0 0
        %1174 = vmatpush1.bf16.msra.mxu0 0
        %1175 = vmatprep.subr.bf16.mxu0 0
        %1176 = vmatpush1.bf16.msra.mxu0 0
        %1177 = vmatprep.subr.bf16.mxu0 0
        %1178 = vmatpush1.bf16.msra.mxu0 0
        %1179 = vmatprep.subr.bf16.mxu0 0
        %1180 = vmatpush1.bf16.msra.mxu0 0
        %1181 = vmatprep.subr.bf16.mxu0 0
        %1182 = vmatpush1.bf16.msra.mxu0 0
        %1183 = vmatprep.subr.bf16.mxu0 0
        %1184 = vmatpush1.bf16.msra.mxu0 0
        %1185 = vmatprep.subr.bf16.mxu0 0
        %1186 = vmatpush1.bf16.msra.mxu0 0
        %1187 = vmatprep.subr.bf16.mxu0 0
        %1188 = vmatpush1.bf16.msra.mxu0 0
        %1189 = vmatprep.subr.bf16.mxu0 0
        %1190 = vmatpush1.bf16.msra.mxu0 0
        %1191 = vmatprep.mubr.bf16.mxu0 0
        %1192 = vmatmul.mubr.bf16.gmra.mrb[0].mxu0 %v1110
        %v1193 = vpop.f32.mrb[0].mxu0
        %v1194 = vadd.f32 %v1153, %v1193
        %v1195 = vpop.f32.mrb[0].mxu0
        %v1196 = vadd.f32 %v1155, %v1195
        %v1197 = vpop.f32.mrb[0].mxu0
        %v1198 = vpop.f32.mrb[0].mxu0
        %1199 = vdwg.mxu0
        %v1200 = vadd.f32 %v870, %v1194
        %v1201 = vadd.f32 %v872, %v1196
        %s1202 = scalar_lea.vmem [#allocation2], 1680
        %v1203 = vld [vmem:[%s1202] sm:$0xff]
        %v1204 = vld [vmem:[%s1202 + $0x8] sm:$0xff]
        %v1205 = vld [vmem:[%s1202 + $0x10] sm:$0xff]
        %v1206 = vld [vmem:[%s1202 + $0x18] sm:$0xff]
        %v1207 = vld [vmem:[%s1202 + $0x20] sm:$0xff]
        %v1208 = vld [vmem:[%s1202 + $0x28] sm:$0xff]
        %v1209 = vld [vmem:[%s1202 + $0x30] sm:$0xff]
        %v1210 = vld [vmem:[%s1202 + $0x38] sm:$0xff]
        %v1211 = vld [vmem:[%s1202 + $0x40] sm:$0xff]
        %v1212 = vld [vmem:[%s1202 + $0x48] sm:$0xff]
        %v1213 = vld [vmem:[%s1202 + $0x50] sm:$0xff]
        %v1214 = vld [vmem:[%s1202 + $0x58] sm:$0xff]
        %v1215 = vld [vmem:[%s1202 + $0x60] sm:$0xff]
        %v1216 = vld [vmem:[%s1202 + $0x68] sm:$0xff]
        %v1217 = vld [vmem:[%s1202 + $0x70] sm:$0xff]
        %v1218 = vld [vmem:[%s1202 + $0x78] sm:$0xff]
        %v1219 = vld [vmem:[%s1202 + $0x80] sm:$0xff]
        %v1220 = vld [vmem:[%s1202 + $0x88] sm:$0xff]
        %v1221 = vld [vmem:[%s1202 + $0x90] sm:$0xff]
        %v1222 = vld [vmem:[%s1202 + $0x98] sm:$0xff]
        %v1223 = vld [vmem:[%s1202 + $0xa0] sm:$0xff]
        %v1224 = vld [vmem:[%s1202 + $0xa8] sm:$0xff]
        %v1225 = vld [vmem:[%s1202 + $0xb0] sm:$0xff]
        %v1226 = vld [vmem:[%s1202 + $0xb8] sm:$0xff]
        %v1227 = vld [vmem:[%s1202 + $0xc0] sm:$0xff]
        %v1228 = vld [vmem:[%s1202 + $0xc8] sm:$0xff]
        %v1229 = vld [vmem:[%s1202 + $0xd0] sm:$0xff]
        %v1230 = vld [vmem:[%s1202 + $0xd8] sm:$0xff]
        %v1231 = vld [vmem:[%s1202 + $0xe0] sm:$0xff]
        %v1232 = vld [vmem:[%s1202 + $0xe8] sm:$0xff]
        %v1233 = vld [vmem:[%s1202 + $0xf0] sm:$0xff]
        %v1234 = vld [vmem:[%s1202 + $0xf8] sm:$0xff]
        %v1235 = vld [vmem:[%s1202 + $0x100] sm:$0xff]
        %v1236 = vld [vmem:[%s1202 + $0x108] sm:$0xff]
        %v1237 = vld [vmem:[%s1202 + $0x110] sm:$0xff]
        %v1239 = vshrl.u32 %v327, 16
        %v1241 = vshll.u32 %v327, 16
        %v1243 = vrot.slane %v1241, 1
        %v1244 = vor.u32 %v1239, %v1243
        %v1246 = vshrl.u32 %v328, 16
        %v1248 = vshll.u32 %v328, 16
        %v1250 = vrot.slane %v1248, 1
        %v1251 = vor.u32 %v1246, %v1250
        %v1252 = vshrl.u32 %v329, 16
        %v1254 = vshll.u32 %v329, 16
        %v1256 = vrot.slane %v1254, 1
        %v1257 = vor.u32 %v1252, %v1256
        %v1295 = vunpack.c.l.b16 %v1203
        %v1296 = vunpack.c.h.b16 %v1203
        %v1297 = vunpack.c.l.b16 %v1204
        %v1298 = vunpack.c.h.b16 %v1204
        %v1299 = vunpack.c.l.b16 %v1205
        %v1300 = vunpack.c.h.b16 %v1205
        %v1301 = vunpack.c.l.b16 %v1206
        %v1302 = vunpack.c.h.b16 %v1206
        %v1303 = vunpack.c.l.b16 %v1207
        %v1304 = vunpack.c.h.b16 %v1207
        %v1305 = vunpack.c.l.b16 %v1208
        %v1306 = vunpack.c.h.b16 %v1208
        %v1307 = vunpack.c.l.b16 %v1209
        %v1308 = vunpack.c.h.b16 %v1209
        %v1309 = vunpack.c.l.b16 %v1210
        %v1310 = vunpack.c.h.b16 %v1210
        %v1311 = vunpack.c.l.b16 %v1211
        %v1312 = vunpack.c.h.b16 %v1211
        %v1313 = vunpack.c.l.b16 %v1212
        %v1314 = vunpack.c.h.b16 %v1212
        %v1315 = vunpack.c.l.b16 %v1213
        %v1316 = vunpack.c.h.b16 %v1213
        %v1317 = vunpack.c.l.b16 %v1214
        %v1318 = vunpack.c.h.b16 %v1214
        %v1319 = vunpack.c.l.b16 %v1215
        %v1320 = vunpack.c.h.b16 %v1215
        %v1321 = vunpack.c.l.b16 %v1216
        %v1322 = vunpack.c.h.b16 %v1216
        %v1323 = vunpack.c.l.b16 %v1217
        %v1324 = vunpack.c.h.b16 %v1217
        %v1325 = vunpack.c.l.b16 %v1218
        %v1326 = vunpack.c.h.b16 %v1218
        %v1327 = vunpack.c.l.b16 %v1219
        %v1328 = vunpack.c.h.b16 %v1219
        %v1329 = vunpack.c.l.b16 %v1220
        %v1330 = vunpack.c.h.b16 %v1220
        %v1331 = vunpack.c.l.b16 %v1221
        %v1332 = vunpack.c.h.b16 %v1221
        %v1333 = vunpack.c.l.b16 %v1222
        %v1334 = vunpack.c.h.b16 %v1222
        %v1335 = vunpack.c.l.b16 %v1223
        %v1336 = vunpack.c.h.b16 %v1223
        %v1337 = vunpack.c.l.b16 %v1224
        %v1338 = vunpack.c.h.b16 %v1224
        %v1339 = vunpack.c.l.b16 %v1225
        %v1340 = vunpack.c.h.b16 %v1225
        %v1341 = vunpack.c.l.b16 %v1226
        %v1342 = vunpack.c.h.b16 %v1226
        %v1343 = vunpack.c.l.b16 %v1227
        %v1344 = vunpack.c.h.b16 %v1227
        %v1345 = vunpack.c.l.b16 %v1228
        %v1346 = vunpack.c.h.b16 %v1228
        %v1347 = vunpack.c.l.b16 %v1229
        %v1348 = vunpack.c.h.b16 %v1229
        %v1349 = vunpack.c.l.b16 %v1230
        %v1350 = vunpack.c.h.b16 %v1230
        %v1351 = vunpack.c.l.b16 %v1231
        %v1352 = vunpack.c.h.b16 %v1231
        %v1353 = vunpack.c.l.b16 %v1232
        %v1354 = vunpack.c.h.b16 %v1232
        %v1355 = vunpack.c.l.b16 %v1233
        %v1356 = vunpack.c.h.b16 %v1233
        %v1357 = vunpack.c.l.b16 %v1234
        %v1358 = vunpack.c.h.b16 %v1234
        %v1359 = vunpack.c.l.b16 %v1235
        %v1360 = vunpack.c.h.b16 %v1235
        %v1361 = vunpack.c.l.b16 %v1236
        %v1362 = vunpack.c.h.b16 %v1236
        %v1363 = vunpack.c.l.b16 %v1237
        %v1364 = vunpack.c.h.b16 %v1237
        %v1365 = vpack.c.b16 %v1297, %v1295
        %v1366 = vpack.c.b16 %v1298, %v1296
        %v1367 = vpack.c.b16 %v1301, %v1299
        %v1368 = vpack.c.b16 %v1302, %v1300
        %v1369 = vpack.c.b16 %v1305, %v1303
        %v1370 = vpack.c.b16 %v1306, %v1304
        %v1371 = vpack.c.b16 %v1309, %v1307
        %v1372 = vpack.c.b16 %v1310, %v1308
        %v1373 = vpack.c.b16 %v1313, %v1311
        %v1374 = vpack.c.b16 %v1314, %v1312
        %v1375 = vpack.c.b16 %v1317, %v1315
        %v1376 = vpack.c.b16 %v1318, %v1316
        %v1377 = vpack.c.b16 %v1321, %v1319
        %v1378 = vpack.c.b16 %v1322, %v1320
        %v1379 = vpack.c.b16 %v1325, %v1323
        %v1380 = vpack.c.b16 %v1326, %v1324
        %v1381 = vpack.c.b16 %v1329, %v1327
        %v1382 = vpack.c.b16 %v1330, %v1328
        %v1383 = vpack.c.b16 %v1333, %v1331
        %v1384 = vpack.c.b16 %v1334, %v1332
        %v1385 = vpack.c.b16 %v1337, %v1335
        %v1386 = vpack.c.b16 %v1338, %v1336
        %v1387 = vpack.c.b16 %v1341, %v1339
        %v1388 = vpack.c.b16 %v1342, %v1340
        %v1389 = vpack.c.b16 %v1345, %v1343
        %v1390 = vpack.c.b16 %v1346, %v1344
        %v1391 = vpack.c.b16 %v1349, %v1347
        %v1392 = vpack.c.b16 %v1350, %v1348
        %v1393 = vpack.c.b16 %v1353, %v1351
        %v1394 = vpack.c.b16 %v1354, %v1352
        %v1395 = vpack.c.b16 %v1357, %v1355
        %v1396 = vpack.c.b16 %v1358, %v1356
        %v1397 = vpack.c.b16 %v1361, %v1359
        %v1398 = vpack.c.b16 %v1362, %v1360
        %v1399 = vpack.c.b16 %v1363, %v1363
        %v1400 = vpack.c.b16 %v1364, %v1364
        %v1436 = vsel %vm507, %v1257, 0
        %v1439 = vsel %vm511, %v1399, 0
        %v1442 = vsel %vm511, %v1400, 0
        %1444 = vmatprep.subr.bf16.mxu0 %v1366
        %1445 = vmatpush1.bf16.msra.mxu0 %v1365
        %1446 = vmatprep.subr.bf16.mxu0 %v1368
        %1447 = vmatpush1.bf16.msra.mxu0 %v1367
        %1448 = vmatprep.subr.bf16.mxu0 %v1370
        %1449 = vmatpush1.bf16.msra.mxu0 %v1369
        %1450 = vmatprep.subr.bf16.mxu0 %v1372
        %1451 = vmatpush1.bf16.msra.mxu0 %v1371
        %1452 = vmatprep.subr.bf16.mxu0 %v1374
        %1453 = vmatpush1.bf16.msra.mxu0 %v1373
        %1454 = vmatprep.subr.bf16.mxu0 %v1376
        %1455 = vmatpush1.bf16.msra.mxu0 %v1375
        %1456 = vmatprep.subr.bf16.mxu0 %v1378
        %1457 = vmatpush1.bf16.msra.mxu0 %v1377
        %1458 = vmatprep.subr.bf16.mxu0 %v1380
        %1459 = vmatpush1.bf16.msra.mxu0 %v1379
        %1460 = vmatprep.subr.bf16.mxu0 %v1382
        %1461 = vmatpush1.bf16.msra.mxu0 %v1381
        %1462 = vmatprep.subr.bf16.mxu0 %v1384
        %1463 = vmatpush1.bf16.msra.mxu0 %v1383
        %1464 = vmatprep.subr.bf16.mxu0 %v1386
        %1465 = vmatpush1.bf16.msra.mxu0 %v1385
        %1466 = vmatprep.subr.bf16.mxu0 %v1388
        %1467 = vmatpush1.bf16.msra.mxu0 %v1387
        %1468 = vmatprep.subr.bf16.mxu0 %v1390
        %1469 = vmatpush1.bf16.msra.mxu0 %v1389
        %1470 = vmatprep.subr.bf16.mxu0 %v1392
        %1471 = vmatpush1.bf16.msra.mxu0 %v1391
        %1472 = vmatprep.subr.bf16.mxu0 %v1394
        %1473 = vmatpush1.bf16.msra.mxu0 %v1393
        %1474 = vmatprep.subr.bf16.mxu0 %v1396
        %1475 = vmatpush1.bf16.msra.mxu0 %v1395
        %1476 = vmatprep.mubr.bf16.mxu0 %v1251
        %1477 = vmatmul.mubr.bf16.gmra.mrb[0].mxu0 %v1244
        %v1478 = vpop.f32.mrb[0].mxu0
        %v1479 = vadd.f32 0.0, %v1478
        %v1480 = vpop.f32.mrb[0].mxu0
        %v1481 = vadd.f32 0.0, %v1480
        %v1482 = vpop.f32.mrb[0].mxu0
        %v1483 = vpop.f32.mrb[0].mxu0
        %1484 = vdwg.mxu0
        %1485 = vmatprep.subr.bf16.mxu0 %v1398
        %1486 = vmatpush1.bf16.msra.mxu0 %v1397
        %1487 = vmatprep.subr.bf16.mxu0 %v1442
        %1488 = vmatpush1.bf16.msra.mxu0 %v1439
        %1489 = vmatprep.subr.bf16.mxu0 0
        %1490 = vmatpush1.bf16.msra.mxu0 0
        %1491 = vmatprep.subr.bf16.mxu0 0
        %1492 = vmatpush1.bf16.msra.mxu0 0
        %1493 = vmatprep.subr.bf16.mxu0 0
        %1494 = vmatpush1.bf16.msra.mxu0 0
        %1495 = vmatprep.subr.bf16.mxu0 0
        %1496 = vmatpush1.bf16.msra.mxu0 0
        %1497 = vmatprep.subr.bf16.mxu0 0
        %1498 = vmatpush1.bf16.msra.mxu0 0
        %1499 = vmatprep.subr.bf16.mxu0 0
        %1500 = vmatpush1.bf16.msra.mxu0 0
        %1501 = vmatprep.subr.bf16.mxu0 0
        %1502 = vmatpush1.bf16.msra.mxu0 0
        %1503 = vmatprep.subr.bf16.mxu0 0
        %1504 = vmatpush1.bf16.msra.mxu0 0
        %1505 = vmatprep.subr.bf16.mxu0 0
        %1506 = vmatpush1.bf16.msra.mxu0 0
        %1507 = vmatprep.subr.bf16.mxu0 0
        %1508 = vmatpush1.bf16.msra.mxu0 0
        %1509 = vmatprep.subr.bf16.mxu0 0
        %1510 = vmatpush1.bf16.msra.mxu0 0
        %1511 = vmatprep.subr.bf16.mxu0 0
        %1512 = vmatpush1.bf16.msra.mxu0 0
        %1513 = vmatprep.subr.bf16.mxu0 0
        %1514 = vmatpush1.bf16.msra.mxu0 0
        %1515 = vmatprep.subr.bf16.mxu0 0
        %1516 = vmatpush1.bf16.msra.mxu0 0
        %1517 = vmatprep.mubr.bf16.mxu0 0
        %1518 = vmatmul.mubr.bf16.gmra.mrb[0].mxu0 %v1436
        %v1519 = vpop.f32.mrb[0].mxu0
        %v1520 = vadd.f32 %v1479, %v1519
        %v1521 = vpop.f32.mrb[0].mxu0
        %v1522 = vadd.f32 %v1481, %v1521
        %v1523 = vpop.f32.mrb[0].mxu0
        %v1524 = vpop.f32.mrb[0].mxu0
        %1525 = vdwg.mxu0
        %v1526 = vadd.f32 %v1200, %v1520
        %v1527 = vadd.f32 %v1201, %v1522
        %v1528 = vld [vmem:[%s235] sm:$0xee]
        %v1529 = vld [vmem:[%s235 + $0x8] sm:$0xe]
        %s1530 = scalar_lea.vmem [#allocation2], 2240
        %v1531 = vld [vmem:[%s1530] sm:$0xff]
        %v1532 = vld [vmem:[%s1530 + $0x8] sm:$0xff]
        %v1533 = vld [vmem:[%s1530 + $0x10] sm:$0xff]
        %v1534 = vld [vmem:[%s1530 + $0x18] sm:$0xff]
        %v1535 = vld [vmem:[%s1530 + $0x20] sm:$0xff]
        %v1536 = vld [vmem:[%s1530 + $0x28] sm:$0xff]
        %v1537 = vld [vmem:[%s1530 + $0x30] sm:$0xff]
        %v1538 = vld [vmem:[%s1530 + $0x38] sm:$0xff]
        %v1539 = vld [vmem:[%s1530 + $0x40] sm:$0xff]
        %v1540 = vld [vmem:[%s1530 + $0x48] sm:$0xff]
        %v1541 = vld [vmem:[%s1530 + $0x50] sm:$0xff]
        %v1542 = vld [vmem:[%s1530 + $0x58] sm:$0xff]
        %v1543 = vld [vmem:[%s1530 + $0x60] sm:$0xff]
        %v1544 = vld [vmem:[%s1530 + $0x68] sm:$0xff]
        %v1545 = vld [vmem:[%s1530 + $0x70] sm:$0xff]
        %v1546 = vld [vmem:[%s1530 + $0x78] sm:$0xff]
        %v1547 = vld [vmem:[%s1530 + $0x80] sm:$0xff]
        %v1548 = vld [vmem:[%s1530 + $0x88] sm:$0xff]
        %v1549 = vld [vmem:[%s1530 + $0x90] sm:$0xff]
        %v1550 = vld [vmem:[%s1530 + $0x98] sm:$0xff]
        %v1551 = vld [vmem:[%s1530 + $0xa0] sm:$0xff]
        %v1552 = vld [vmem:[%s1530 + $0xa8] sm:$0xff]
        %v1553 = vld [vmem:[%s1530 + $0xb0] sm:$0xff]
        %v1554 = vld [vmem:[%s1530 + $0xb8] sm:$0xff]
        %v1555 = vld [vmem:[%s1530 + $0xc0] sm:$0xff]
        %v1556 = vld [vmem:[%s1530 + $0xc8] sm:$0xff]
        %v1557 = vld [vmem:[%s1530 + $0xd0] sm:$0xff]
        %v1558 = vld [vmem:[%s1530 + $0xd8] sm:$0xff]
        %v1559 = vld [vmem:[%s1530 + $0xe0] sm:$0xff]
        %v1560 = vld [vmem:[%s1530 + $0xe8] sm:$0xff]
        %v1561 = vld [vmem:[%s1530 + $0xf0] sm:$0xff]
        %v1562 = vld [vmem:[%s1530 + $0xf8] sm:$0xff]
        %v1563 = vld [vmem:[%s1530 + $0x100] sm:$0xff]
        %v1564 = vld [vmem:[%s1530 + $0x108] sm:$0xff]
        %v1565 = vld [vmem:[%s1530 + $0x110] sm:$0xff]
        %v1568 = vunpack.c.l.b16 %v1528
        %v1569 = vunpack.c.h.b16 %v1528
        %v1570 = vunpack.c.l.b16 %v1529
        %v1571 = vpack.c.b16 %v1568, %v1568
        %v1572 = vpack.c.b16 %v1569, %v1569
        %v1573 = vpack.c.b16 %v1570, %v1570
        %v1574 = vrot.slane %v1571, 1
        %v1575 = vrot.slane %v1572, 1
        %v1576 = vrot.slane %v1573, 1
        %v1614 = vunpack.c.l.b16 %v1531
        %v1615 = vunpack.c.h.b16 %v1531
        %v1616 = vunpack.c.l.b16 %v1532
        %v1617 = vunpack.c.h.b16 %v1532
        %v1618 = vunpack.c.l.b16 %v1533
        %v1619 = vunpack.c.h.b16 %v1533
        %v1620 = vunpack.c.l.b16 %v1534
        %v1621 = vunpack.c.h.b16 %v1534
        %v1622 = vunpack.c.l.b16 %v1535
        %v1623 = vunpack.c.h.b16 %v1535
        %v1624 = vunpack.c.l.b16 %v1536
        %v1625 = vunpack.c.h.b16 %v1536
        %v1626 = vunpack.c.l.b16 %v1537
        %v1627 = vunpack.c.h.b16 %v1537
        %v1628 = vunpack.c.l.b16 %v1538
        %v1629 = vunpack.c.h.b16 %v1538
        %v1630 = vunpack.c.l.b16 %v1539
        %v1631 = vunpack.c.h.b16 %v1539
        %v1632 = vunpack.c.l.b16 %v1540
        %v1633 = vunpack.c.h.b16 %v1540
        %v1634 = vunpack.c.l.b16 %v1541
        %v1635 = vunpack.c.h.b16 %v1541
        %v1636 = vunpack.c.l.b16 %v1542
        %v1637 = vunpack.c.h.b16 %v1542
        %v1638 = vunpack.c.l.b16 %v1543
        %v1639 = vunpack.c.h.b16 %v1543
        %v1640 = vunpack.c.l.b16 %v1544
        %v1641 = vunpack.c.h.b16 %v1544
        %v1642 = vunpack.c.l.b16 %v1545
        %v1643 = vunpack.c.h.b16 %v1545
        %v1644 = vunpack.c.l.b16 %v1546
        %v1645 = vunpack.c.h.b16 %v1546
        %v1646 = vunpack.c.l.b16 %v1547
        %v1647 = vunpack.c.h.b16 %v1547
        %v1648 = vunpack.c.l.b16 %v1548
        %v1649 = vunpack.c.h.b16 %v1548
        %v1650 = vunpack.c.l.b16 %v1549
        %v1651 = vunpack.c.h.b16 %v1549
        %v1652 = vunpack.c.l.b16 %v1550
        %v1653 = vunpack.c.h.b16 %v1550
        %v1654 = vunpack.c.l.b16 %v1551
        %v1655 = vunpack.c.h.b16 %v1551
        %v1656 = vunpack.c.l.b16 %v1552
        %v1657 = vunpack.c.h.b16 %v1552
        %v1658 = vunpack.c.l.b16 %v1553
        %v1659 = vunpack.c.h.b16 %v1553
        %v1660 = vunpack.c.l.b16 %v1554
        %v1661 = vunpack.c.h.b16 %v1554
        %v1662 = vunpack.c.l.b16 %v1555
        %v1663 = vunpack.c.h.b16 %v1555
        %v1664 = vunpack.c.l.b16 %v1556
        %v1665 = vunpack.c.h.b16 %v1556
        %v1666 = vunpack.c.l.b16 %v1557
        %v1667 = vunpack.c.h.b16 %v1557
        %v1668 = vunpack.c.l.b16 %v1558
        %v1669 = vunpack.c.h.b16 %v1558
        %v1670 = vunpack.c.l.b16 %v1559
        %v1671 = vunpack.c.h.b16 %v1559
        %v1672 = vunpack.c.l.b16 %v1560
        %v1673 = vunpack.c.h.b16 %v1560
        %v1674 = vunpack.c.l.b16 %v1561
        %v1675 = vunpack.c.h.b16 %v1561
        %v1676 = vunpack.c.l.b16 %v1562
        %v1677 = vunpack.c.h.b16 %v1562
        %v1678 = vunpack.c.l.b16 %v1563
        %v1679 = vunpack.c.h.b16 %v1563
        %v1680 = vunpack.c.l.b16 %v1564
        %v1681 = vunpack.c.h.b16 %v1564
        %v1682 = vunpack.c.l.b16 %v1565
        %v1683 = vunpack.c.h.b16 %v1565
        %v1684 = vpack.c.b16 %v1616, %v1614
        %v1685 = vpack.c.b16 %v1617, %v1615
        %v1686 = vpack.c.b16 %v1620, %v1618
        %v1687 = vpack.c.b16 %v1621, %v1619
        %v1688 = vpack.c.b16 %v1624, %v1622
        %v1689 = vpack.c.b16 %v1625, %v1623
        %v1690 = vpack.c.b16 %v1628, %v1626
        %v1691 = vpack.c.b16 %v1629, %v1627
        %v1692 = vpack.c.b16 %v1632, %v1630
        %v1693 = vpack.c.b16 %v1633, %v1631
        %v1694 = vpack.c.b16 %v1636, %v1634
        %v1695 = vpack.c.b16 %v1637, %v1635
        %v1696 = vpack.c.b16 %v1640, %v1638
        %v1697 = vpack.c.b16 %v1641, %v1639
        %v1698 = vpack.c.b16 %v1644, %v1642
        %v1699 = vpack.c.b16 %v1645, %v1643
        %v1700 = vpack.c.b16 %v1648, %v1646
        %v1701 = vpack.c.b16 %v1649, %v1647
        %v1702 = vpack.c.b16 %v1652, %v1650
        %v1703 = vpack.c.b16 %v1653, %v1651
        %v1704 = vpack.c.b16 %v1656, %v1654
        %v1705 = vpack.c.b16 %v1657, %v1655
        %v1706 = vpack.c.b16 %v1660, %v1658
        %v1707 = vpack.c.b16 %v1661, %v1659
        %v1708 = vpack.c.b16 %v1664, %v1662
        %v1709 = vpack.c.b16 %v1665, %v1663
        %v1710 = vpack.c.b16 %v1668, %v1666
        %v1711 = vpack.c.b16 %v1669, %v1667
        %v1712 = vpack.c.b16 %v1672, %v1670
        %v1713 = vpack.c.b16 %v1673, %v1671
        %v1714 = vpack.c.b16 %v1676, %v1674
        %v1715 = vpack.c.b16 %v1677, %v1675
        %v1716 = vpack.c.b16 %v1680, %v1678
        %v1717 = vpack.c.b16 %v1681, %v1679
        %v1718 = vpack.c.b16 %v1682, %v1682
        %v1719 = vpack.c.b16 %v1683, %v1683
        %v1755 = vsel %vm507, %v1576, 0
        %v1758 = vsel %vm511, %v1718, 0
        %v1761 = vsel %vm511, %v1719, 0
        %1763 = vmatprep.subr.bf16.mxu0 %v1685
        %1764 = vmatpush1.bf16.msra.mxu0 %v1684
        %1765 = vmatprep.subr.bf16.mxu0 %v1687
        %1766 = vmatpush1.bf16.msra.mxu0 %v1686
        %1767 = vmatprep.subr.bf16.mxu0 %v1689
        %1768 = vmatpush1.bf16.msra.mxu0 %v1688
        %1769 = vmatprep.subr.bf16.mxu0 %v1691
        %1770 = vmatpush1.bf16.msra.mxu0 %v1690
        %1771 = vmatprep.subr.bf16.mxu0 %v1693
        %1772 = vmatpush1.bf16.msra.mxu0 %v1692
        %1773 = vmatprep.subr.bf16.mxu0 %v1695
        %1774 = vmatpush1.bf16.msra.mxu0 %v1694
        %1775 = vmatprep.subr.bf16.mxu0 %v1697
        %1776 = vmatpush1.bf16.msra.mxu0 %v1696
        %1777 = vmatprep.subr.bf16.mxu0 %v1699
        %1778 = vmatpush1.bf16.msra.mxu0 %v1698
        %1779 = vmatprep.subr.bf16.mxu0 %v1701
        %1780 = vmatpush1.bf16.msra.mxu0 %v1700
        %1781 = vmatprep.subr.bf16.mxu0 %v1703
        %1782 = vmatpush1.bf16.msra.mxu0 %v1702
        %1783 = vmatprep.subr.bf16.mxu0 %v1705
        %1784 = vmatpush1.bf16.msra.mxu0 %v1704
        %1785 = vmatprep.subr.bf16.mxu0 %v1707
        %1786 = vmatpush1.bf16.msra.mxu0 %v1706
        %1787 = vmatprep.subr.bf16.mxu0 %v1709
        %1788 = vmatpush1.bf16.msra.mxu0 %v1708
        %1789 = vmatprep.subr.bf16.mxu0 %v1711
        %1790 = vmatpush1.bf16.msra.mxu0 %v1710
        %1791 = vmatprep.subr.bf16.mxu0 %v1713
        %1792 = vmatpush1.bf16.msra.mxu0 %v1712
        %1793 = vmatprep.subr.bf16.mxu0 %v1715
        %1794 = vmatpush1.bf16.msra.mxu0 %v1714
        %1795 = vmatprep.mubr.bf16.mxu0 %v1575
        %1796 = vmatmul.mubr.bf16.gmra.mrb[0].mxu0 %v1574
        %v1797 = vpop.f32.mrb[0].mxu0
        %v1798 = vadd.f32 0.0, %v1797
        %v1799 = vpop.f32.mrb[0].mxu0
        %v1800 = vadd.f32 0.0, %v1799
        %v1801 = vpop.f32.mrb[0].mxu0
        %v1802 = vpop.f32.mrb[0].mxu0
        %1803 = vdwg.mxu0
        %1804 = vmatprep.subr.bf16.mxu0 %v1717
        %1805 = vmatpush1.bf16.msra.mxu0 %v1716
        %1806 = vmatprep.subr.bf16.mxu0 %v1761
        %1807 = vmatpush1.bf16.msra.mxu0 %v1758
        %1808 = vmatprep.subr.bf16.mxu0 0
        %1809 = vmatpush1.bf16.msra.mxu0 0
        %1810 = vmatprep.subr.bf16.mxu0 0
        %1811 = vmatpush1.bf16.msra.mxu0 0
        %1812 = vmatprep.subr.bf16.mxu0 0
        %1813 = vmatpush1.bf16.msra.mxu0 0
        %1814 = vmatprep.subr.bf16.mxu0 0
        %1815 = vmatpush1.bf16.msra.mxu0 0
        %1816 = vmatprep.subr.bf16.mxu0 0
        %1817 = vmatpush1.bf16.msra.mxu0 0
        %1818 = vmatprep.subr.bf16.mxu0 0
        %1819 = vmatpush1.bf16.msra.mxu0 0
        %1820 = vmatprep.subr.bf16.mxu0 0
        %1821 = vmatpush1.bf16.msra.mxu0 0
        %1822 = vmatprep.subr.bf16.mxu0 0
        %1823 = vmatpush1.bf16.msra.mxu0 0
        %1824 = vmatprep.subr.bf16.mxu0 0
        %1825 = vmatpush1.bf16.msra.mxu0 0
        %1826 = vmatprep.subr.bf16.mxu0 0
        %1827 = vmatpush1.bf16.msra.mxu0 0
        %1828 = vmatprep.subr.bf16.mxu0 0
        %1829 = vmatpush1.bf16.msra.mxu0 0
        %1830 = vmatprep.subr.bf16.mxu0 0
        %1831 = vmatpush1.bf16.msra.mxu0 0
        %1832 = vmatprep.subr.bf16.mxu0 0
        %1833 = vmatpush1.bf16.msra.mxu0 0
        %1834 = vmatprep.subr.bf16.mxu0 0
        %1835 = vmatpush1.bf16.msra.mxu0 0
        %1836 = vmatprep.mubr.bf16.mxu0 0
        %1837 = vmatmul.mubr.bf16.gmra.mrb[0].mxu0 %v1755
        %v1838 = vpop.f32.mrb[0].mxu0
        %v1839 = vadd.f32 %v1798, %v1838
        %v1840 = vpop.f32.mrb[0].mxu0
        %v1841 = vadd.f32 %v1800, %v1840
        %v1842 = vpop.f32.mrb[0].mxu0
        %v1843 = vpop.f32.mrb[0].mxu0
        %1844 = vdwg.mxu0
        %v1845 = vadd.f32 %v1526, %v1839
        %v1846 = vadd.f32 %v1527, %v1841
        %s1847 = scalar_lea.vmem [#allocation2], 280
        %v1848 = vld [vmem:[%s1847] sm:$0xff]
        %v1849 = vld [vmem:[%s1847 + $0x8] sm:$0xff]
        %v1850 = vld [vmem:[%s1847 + $0x10] sm:$0xff]
        %v1851 = vld [vmem:[%s1847 + $0x18] sm:$0xff]
        %v1852 = vld [vmem:[%s1847 + $0x20] sm:$0xff]
        %v1853 = vld [vmem:[%s1847 + $0x28] sm:$0xff]
        %v1854 = vld [vmem:[%s1847 + $0x30] sm:$0xff]
        %v1855 = vld [vmem:[%s1847 + $0x38] sm:$0xff]
        %v1856 = vld [vmem:[%s1847 + $0x40] sm:$0xff]
        %v1857 = vld [vmem:[%s1847 + $0x48] sm:$0xff]
        %v1858 = vld [vmem:[%s1847 + $0x50] sm:$0xff]
        %v1859 = vld [vmem:[%s1847 + $0x58] sm:$0xff]
        %v1860 = vld [vmem:[%s1847 + $0x60] sm:$0xff]
        %v1861 = vld [vmem:[%s1847 + $0x68] sm:$0xff]
        %v1862 = vld [vmem:[%s1847 + $0x70] sm:$0xff]
        %v1863 = vld [vmem:[%s1847 + $0x78] sm:$0xff]
        %v1864 = vld [vmem:[%s1847 + $0x80] sm:$0xff]
        %v1865 = vld [vmem:[%s1847 + $0x88] sm:$0xff]
        %v1866 = vld [vmem:[%s1847 + $0x90] sm:$0xff]
        %v1867 = vld [vmem:[%s1847 + $0x98] sm:$0xff]
        %v1868 = vld [vmem:[%s1847 + $0xa0] sm:$0xff]
        %v1869 = vld [vmem:[%s1847 + $0xa8] sm:$0xff]
        %v1870 = vld [vmem:[%s1847 + $0xb0] sm:$0xff]
        %v1871 = vld [vmem:[%s1847 + $0xb8] sm:$0xff]
        %v1872 = vld [vmem:[%s1847 + $0xc0] sm:$0xff]
        %v1873 = vld [vmem:[%s1847 + $0xc8] sm:$0xff]
        %v1874 = vld [vmem:[%s1847 + $0xd0] sm:$0xff]
        %v1875 = vld [vmem:[%s1847 + $0xd8] sm:$0xff]
        %v1876 = vld [vmem:[%s1847 + $0xe0] sm:$0xff]
        %v1877 = vld [vmem:[%s1847 + $0xe8] sm:$0xff]
        %v1878 = vld [vmem:[%s1847 + $0xf0] sm:$0xff]
        %v1879 = vld [vmem:[%s1847 + $0xf8] sm:$0xff]
        %v1880 = vld [vmem:[%s1847 + $0x100] sm:$0xff]
        %v1881 = vld [vmem:[%s1847 + $0x108] sm:$0xff]
        %v1882 = vld [vmem:[%s1847 + $0x110] sm:$0xff]
        %s1883 = scalar_lea.vmem [#allocation2], 840
        %v1884 = vld [vmem:[%s1883] sm:$0xff]
        %v1885 = vld [vmem:[%s1883 + $0x8] sm:$0xff]
        %v1886 = vld [vmem:[%s1883 + $0x10] sm:$0xff]
        %v1887 = vld [vmem:[%s1883 + $0x18] sm:$0xff]
        %v1888 = vld [vmem:[%s1883 + $0x20] sm:$0xff]
        %v1889 = vld [vmem:[%s1883 + $0x28] sm:$0xff]
        %v1890 = vld [vmem:[%s1883 + $0x30] sm:$0xff]
        %v1891 = vld [vmem:[%s1883 + $0x38] sm:$0xff]
        %v1892 = vld [vmem:[%s1883 + $0x40] sm:$0xff]
        %v1893 = vld [vmem:[%s1883 + $0x48] sm:$0xff]
        %v1894 = vld [vmem:[%s1883 + $0x50] sm:$0xff]
        %v1895 = vld [vmem:[%s1883 + $0x58] sm:$0xff]
        %v1896 = vld [vmem:[%s1883 + $0x60] sm:$0xff]
        %v1897 = vld [vmem:[%s1883 + $0x68] sm:$0xff]
        %v1898 = vld [vmem:[%s1883 + $0x70] sm:$0xff]
        %v1899 = vld [vmem:[%s1883 + $0x78] sm:$0xff]
        %v1900 = vld [vmem:[%s1883 + $0x80] sm:$0xff]
        %v1901 = vld [vmem:[%s1883 + $0x88] sm:$0xff]
        %v1902 = vld [vmem:[%s1883 + $0x90] sm:$0xff]
        %v1903 = vld [vmem:[%s1883 + $0x98] sm:$0xff]
        %v1904 = vld [vmem:[%s1883 + $0xa0] sm:$0xff]
        %v1905 = vld [vmem:[%s1883 + $0xa8] sm:$0xff]
        %v1906 = vld [vmem:[%s1883 + $0xb0] sm:$0xff]
        %v1907 = vld [vmem:[%s1883 + $0xb8] sm:$0xff]
        %v1908 = vld [vmem:[%s1883 + $0xc0] sm:$0xff]
        %v1909 = vld [vmem:[%s1883 + $0xc8] sm:$0xff]
        %v1910 = vld [vmem:[%s1883 + $0xd0] sm:$0xff]
        %v1911 = vld [vmem:[%s1883 + $0xd8] sm:$0xff]
        %v1912 = vld [vmem:[%s1883 + $0xe0] sm:$0xff]
        %v1913 = vld [vmem:[%s1883 + $0xe8] sm:$0xff]
        %v1914 = vld [vmem:[%s1883 + $0xf0] sm:$0xff]
        %v1915 = vld [vmem:[%s1883 + $0xf8] sm:$0xff]
        %v1916 = vld [vmem:[%s1883 + $0x100] sm:$0xff]
        %v1917 = vld [vmem:[%s1883 + $0x108] sm:$0xff]
        %v1918 = vld [vmem:[%s1883 + $0x110] sm:$0xff]
        %v1954 = vunpack.c.l.b16 %v1884
        %v1955 = vunpack.c.h.b16 %v1884
        %v1956 = vunpack.c.l.b16 %v1885
        %v1957 = vunpack.c.h.b16 %v1885
        %v1958 = vunpack.c.l.b16 %v1886
        %v1959 = vunpack.c.h.b16 %v1886
        %v1960 = vunpack.c.l.b16 %v1887
        %v1961 = vunpack.c.h.b16 %v1887
        %v1962 = vunpack.c.l.b16 %v1888
        %v1963 = vunpack.c.h.b16 %v1888
        %v1964 = vunpack.c.l.b16 %v1889
        %v1965 = vunpack.c.h.b16 %v1889
        %v1966 = vunpack.c.l.b16 %v1890
        %v1967 = vunpack.c.h.b16 %v1890
        %v1968 = vunpack.c.l.b16 %v1891
        %v1969 = vunpack.c.h.b16 %v1891
        %v1970 = vunpack.c.l.b16 %v1892
        %v1971 = vunpack.c.h.b16 %v1892
        %v1972 = vunpack.c.l.b16 %v1893
        %v1973 = vunpack.c.h.b16 %v1893
        %v1974 = vunpack.c.l.b16 %v1894
        %v1975 = vunpack.c.h.b16 %v1894
        %v1976 = vunpack.c.l.b16 %v1895
        %v1977 = vunpack.c.h.b16 %v1895
        %v1978 = vunpack.c.l.b16 %v1896
        %v1979 = vunpack.c.h.b16 %v1896
        %v1980 = vunpack.c.l.b16 %v1897
        %v1981 = vunpack.c.h.b16 %v1897
        %v1982 = vunpack.c.l.b16 %v1898
        %v1983 = vunpack.c.h.b16 %v1898
        %v1984 = vunpack.c.l.b16 %v1899
        %v1985 = vunpack.c.h.b16 %v1899
        %v1986 = vunpack.c.l.b16 %v1900
        %v1987 = vunpack.c.h.b16 %v1900
        %v1988 = vunpack.c.l.b16 %v1901
        %v1989 = vunpack.c.h.b16 %v1901
        %v1990 = vunpack.c.l.b16 %v1902
        %v1991 = vunpack.c.h.b16 %v1902
        %v1992 = vunpack.c.l.b16 %v1903
        %v1993 = vunpack.c.h.b16 %v1903
        %v1994 = vunpack.c.l.b16 %v1904
        %v1995 = vunpack.c.h.b16 %v1904
        %v1996 = vunpack.c.l.b16 %v1905
        %v1997 = vunpack.c.h.b16 %v1905
        %v1998 = vunpack.c.l.b16 %v1906
        %v1999 = vunpack.c.h.b16 %v1906
        %v2000 = vunpack.c.l.b16 %v1907
        %v2001 = vunpack.c.h.b16 %v1907
        %v2002 = vunpack.c.l.b16 %v1908
        %v2003 = vunpack.c.h.b16 %v1908
        %v2004 = vunpack.c.l.b16 %v1909
        %v2005 = vunpack.c.h.b16 %v1909
        %v2006 = vunpack.c.l.b16 %v1910
        %v2007 = vunpack.c.h.b16 %v1910
        %v2008 = vunpack.c.l.b16 %v1911
        %v2009 = vunpack.c.h.b16 %v1911
        %v2010 = vunpack.c.l.b16 %v1912
        %v2011 = vunpack.c.h.b16 %v1912
        %v2012 = vunpack.c.l.b16 %v1913
        %v2013 = vunpack.c.h.b16 %v1913
        %v2014 = vunpack.c.l.b16 %v1914
        %v2015 = vunpack.c.h.b16 %v1914
        %v2016 = vunpack.c.l.b16 %v1915
        %v2017 = vunpack.c.h.b16 %v1915
        %v2018 = vunpack.c.l.b16 %v1916
        %v2019 = vunpack.c.h.b16 %v1916
        %v2020 = vunpack.c.l.b16 %v1917
        %v2021 = vunpack.c.h.b16 %v1917
        %v2022 = vunpack.c.l.b16 %v1918
        %v2023 = vunpack.c.h.b16 %v1918
        %v2024 = vpack.c.b16 %v1956, %v1954
        %v2025 = vpack.c.b16 %v1957, %v1955
        %v2026 = vpack.c.b16 %v1960, %v1958
        %v2027 = vpack.c.b16 %v1961, %v1959
        %v2028 = vpack.c.b16 %v1964, %v1962
        %v2029 = vpack.c.b16 %v1965, %v1963
        %v2030 = vpack.c.b16 %v1968, %v1966
        %v2031 = vpack.c.b16 %v1969, %v1967
        %v2032 = vpack.c.b16 %v1972, %v1970
        %v2033 = vpack.c.b16 %v1973, %v1971
        %v2034 = vpack.c.b16 %v1976, %v1974
        %v2035 = vpack.c.b16 %v1977, %v1975
        %v2036 = vpack.c.b16 %v1980, %v1978
        %v2037 = vpack.c.b16 %v1981, %v1979
        %v2038 = vpack.c.b16 %v1984, %v1982
        %v2039 = vpack.c.b16 %v1985, %v1983
        %v2040 = vpack.c.b16 %v1988, %v1986
        %v2041 = vpack.c.b16 %v1989, %v1987
        %v2042 = vpack.c.b16 %v1992, %v1990
        %v2043 = vpack.c.b16 %v1993, %v1991
        %v2044 = vpack.c.b16 %v1996, %v1994
        %v2045 = vpack.c.b16 %v1997, %v1995
        %v2046 = vpack.c.b16 %v2000, %v1998
        %v2047 = vpack.c.b16 %v2001, %v1999
        %v2048 = vpack.c.b16 %v2004, %v2002
        %v2049 = vpack.c.b16 %v2005, %v2003
        %v2050 = vpack.c.b16 %v2008, %v2006
        %v2051 = vpack.c.b16 %v2009, %v2007
        %v2052 = vpack.c.b16 %v2012, %v2010
        %v2053 = vpack.c.b16 %v2013, %v2011
        %v2054 = vpack.c.b16 %v2016, %v2014
        %v2055 = vpack.c.b16 %v2017, %v2015
        %v2056 = vpack.c.b16 %v2020, %v2018
        %v2057 = vpack.c.b16 %v2021, %v2019
        %v2058 = vpack.c.b16 %v2022, %v2022
        %v2059 = vpack.c.b16 %v2023, %v2023
        %v2095 = vsel %vm511, %v2058, 0
        %v2098 = vsel %vm511, %v2059, 0
        %2100 = vmatprep.subr.bf16.mxu0 %v2025
        %2101 = vmatpush1.bf16.msra.mxu0 %v2024
        %2102 = vmatprep.subr.bf16.mxu0 %v2027
        %2103 = vmatpush1.bf16.msra.mxu0 %v2026
        %2104 = vmatprep.subr.bf16.mxu0 %v2029
        %2105 = vmatpush1.bf16.msra.mxu0 %v2028
        %2106 = vmatprep.subr.bf16.mxu0 %v2031
        %2107 = vmatpush1.bf16.msra.mxu0 %v2030
        %2108 = vmatprep.subr.bf16.mxu0 %v2033
        %2109 = vmatpush1.bf16.msra.mxu0 %v2032
        %2110 = vmatprep.subr.bf16.mxu0 %v2035
        %2111 = vmatpush1.bf16.msra.mxu0 %v2034
        %2112 = vmatprep.subr.bf16.mxu0 %v2037
        %2113 = vmatpush1.bf16.msra.mxu0 %v2036
        %2114 = vmatprep.subr.bf16.mxu0 %v2039
        %2115 = vmatpush1.bf16.msra.mxu0 %v2038
        %2116 = vmatprep.subr.bf16.mxu0 %v2041
        %2117 = vmatpush1.bf16.msra.mxu0 %v2040
        %2118 = vmatprep.subr.bf16.mxu0 %v2043
        %2119 = vmatpush1.bf16.msra.mxu0 %v2042
        %2120 = vmatprep.subr.bf16.mxu0 %v2045
        %2121 = vmatpush1.bf16.msra.mxu0 %v2044
        %2122 = vmatprep.subr.bf16.mxu0 %v2047
        %2123 = vmatpush1.bf16.msra.mxu0 %v2046
        %2124 = vmatprep.subr.bf16.mxu0 %v2049
        %2125 = vmatpush1.bf16.msra.mxu0 %v2048
        %2126 = vmatprep.subr.bf16.mxu0 %v2051
        %2127 = vmatpush1.bf16.msra.mxu0 %v2050
        %2128 = vmatprep.subr.bf16.mxu0 %v2053
        %2129 = vmatpush1.bf16.msra.mxu0 %v2052
        %2130 = vmatprep.subr.bf16.mxu0 %v2055
        %2131 = vmatpush1.bf16.msra.mxu0 %v2054
        %2132 = vmatprep.mubr.bf16.mxu0 %v328
        %2133 = vmatmul.mubr.bf16.gmra.mrb[0].mxu0 %v327
        %v2134 = vpop.f32.mrb[0].mxu0
        %v2135 = vadd.f32 0.0, %v2134
        %v2136 = vpop.f32.mrb[0].mxu0
        %v2137 = vadd.f32 0.0, %v2136
        %v2138 = vpop.f32.mrb[0].mxu0
        %v2139 = vpop.f32.mrb[0].mxu0
        %2140 = vdwg.mxu0
        %2141 = vmatprep.subr.bf16.mxu0 %v2057
        %2142 = vmatpush1.bf16.msra.mxu0 %v2056
        %2143 = vmatprep.subr.bf16.mxu0 %v2098
        %2144 = vmatpush1.bf16.msra.mxu0 %v2095
        %2145 = vmatprep.subr.bf16.mxu0 0
        %2146 = vmatpush1.bf16.msra.mxu0 0
        %2147 = vmatprep.subr.bf16.mxu0 0
        %2148 = vmatpush1.bf16.msra.mxu0 0
        %2149 = vmatprep.subr.bf16.mxu0 0
        %2150 = vmatpush1.bf16.msra.mxu0 0
        %2151 = vmatprep.subr.bf16.mxu0 0
        %2152 = vmatpush1.bf16.msra.mxu0 0
        %2153 = vmatprep.subr.bf16.mxu0 0
        %2154 = vmatpush1.bf16.msra.mxu0 0
        %2155 = vmatprep.subr.bf16.mxu0 0
        %2156 = vmatpush1.bf16.msra.mxu0 0
        %2157 = vmatprep.subr.bf16.mxu0 0
        %2158 = vmatpush1.bf16.msra.mxu0 0
        %2159 = vmatprep.subr.bf16.mxu0 0
        %2160 = vmatpush1.bf16.msra.mxu0 0
        %2161 = vmatprep.subr.bf16.mxu0 0
        %2162 = vmatpush1.bf16.msra.mxu0 0
        %2163 = vmatprep.subr.bf16.mxu0 0
        %2164 = vmatpush1.bf16.msra.mxu0 0
        %2165 = vmatprep.subr.bf16.mxu0 0
        %2166 = vmatpush1.bf16.msra.mxu0 0
        %2167 = vmatprep.subr.bf16.mxu0 0
        %2168 = vmatpush1.bf16.msra.mxu0 0
        %2169 = vmatprep.subr.bf16.mxu0 0
        %2170 = vmatpush1.bf16.msra.mxu0 0
        %2171 = vmatprep.subr.bf16.mxu0 0
        %2172 = vmatpush1.bf16.msra.mxu0 0
        %2173 = vmatprep.mubr.bf16.mxu0 0
        %2174 = vmatmul.mubr.bf16.gmra.mrb[0].mxu0 %v509
        %v2175 = vpop.f32.mrb[0].mxu0
        %v2176 = vadd.f32 %v2135, %v2175
        %v2177 = vpop.f32.mrb[0].mxu0
        %v2178 = vadd.f32 %v2137, %v2177
        %v2179 = vpop.f32.mrb[0].mxu0
        %v2180 = vpop.f32.mrb[0].mxu0
        %2181 = vdwg.mxu0
        %v2217 = vunpack.c.l.b16 %v1848
        %v2218 = vunpack.c.h.b16 %v1848
        %v2219 = vunpack.c.l.b16 %v1849
        %v2220 = vunpack.c.h.b16 %v1849
        %v2221 = vunpack.c.l.b16 %v1850
        %v2222 = vunpack.c.h.b16 %v1850
        %v2223 = vunpack.c.l.b16 %v1851
        %v2224 = vunpack.c.h.b16 %v1851
        %v2225 = vunpack.c.l.b16 %v1852
        %v2226 = vunpack.c.h.b16 %v1852
        %v2227 = vunpack.c.l.b16 %v1853
        %v2228 = vunpack.c.h.b16 %v1853
        %v2229 = vunpack.c.l.b16 %v1854
        %v2230 = vunpack.c.h.b16 %v1854
        %v2231 = vunpack.c.l.b16 %v1855
        %v2232 = vunpack.c.h.b16 %v1855
        %v2233 = vunpack.c.l.b16 %v1856
        %v2234 = vunpack.c.h.b16 %v1856
        %v2235 = vunpack.c.l.b16 %v1857
        %v2236 = vunpack.c.h.b16 %v1857
        %v2237 = vunpack.c.l.b16 %v1858
        %v2238 = vunpack.c.h.b16 %v1858
        %v2239 = vunpack.c.l.b16 %v1859
        %v2240 = vunpack.c.h.b16 %v1859
        %v2241 = vunpack.c.l.b16 %v1860
        %v2242 = vunpack.c.h.b16 %v1860
        %v2243 = vunpack.c.l.b16 %v1861
        %v2244 = vunpack.c.h.b16 %v1861
        %v2245 = vunpack.c.l.b16 %v1862
        %v2246 = vunpack.c.h.b16 %v1862
        %v2247 = vunpack.c.l.b16 %v1863
        %v2248 = vunpack.c.h.b16 %v1863
        %v2249 = vunpack.c.l.b16 %v1864
        %v2250 = vunpack.c.h.b16 %v1864
        %v2251 = vunpack.c.l.b16 %v1865
        %v2252 = vunpack.c.h.b16 %v1865
        %v2253 = vunpack.c.l.b16 %v1866
        %v2254 = vunpack.c.h.b16 %v1866
        %v2255 = vunpack.c.l.b16 %v1867
        %v2256 = vunpack.c.h.b16 %v1867
        %v2257 = vunpack.c.l.b16 %v1868
        %v2258 = vunpack.c.h.b16 %v1868
        %v2259 = vunpack.c.l.b16 %v1869
        %v2260 = vunpack.c.h.b16 %v1869
        %v2261 = vunpack.c.l.b16 %v1870
        %v2262 = vunpack.c.h.b16 %v1870
        %v2263 = vunpack.c.l.b16 %v1871
        %v2264 = vunpack.c.h.b16 %v1871
        %v2265 = vunpack.c.l.b16 %v1872
        %v2266 = vunpack.c.h.b16 %v1872
        %v2267 = vunpack.c.l.b16 %v1873
        %v2268 = vunpack.c.h.b16 %v1873
        %v2269 = vunpack.c.l.b16 %v1874
        %v2270 = vunpack.c.h.b16 %v1874
        %v2271 = vunpack.c.l.b16 %v1875
        %v2272 = vunpack.c.h.b16 %v1875
        %v2273 = vunpack.c.l.b16 %v1876
        %v2274 = vunpack.c.h.b16 %v1876
        %v2275 = vunpack.c.l.b16 %v1877
        %v2276 = vunpack.c.h.b16 %v1877
        %v2277 = vunpack.c.l.b16 %v1878
        %v2278 = vunpack.c.h.b16 %v1878
        %v2279 = vunpack.c.l.b16 %v1879
        %v2280 = vunpack.c.h.b16 %v1879
        %v2281 = vunpack.c.l.b16 %v1880
        %v2282 = vunpack.c.h.b16 %v1880
        %v2283 = vunpack.c.l.b16 %v1881
        %v2284 = vunpack.c.h.b16 %v1881
        %v2285 = vunpack.c.l.b16 %v1882
        %v2286 = vunpack.c.h.b16 %v1882
        %v2287 = vpack.c.b16 %v2219, %v2217
        %v2288 = vpack.c.b16 %v2220, %v2218
        %v2289 = vpack.c.b16 %v2223, %v2221
        %v2290 = vpack.c.b16 %v2224, %v2222
        %v2291 = vpack.c.b16 %v2227, %v2225
        %v2292 = vpack.c.b16 %v2228, %v2226
        %v2293 = vpack.c.b16 %v2231, %v2229
        %v2294 = vpack.c.b16 %v2232, %v2230
        %v2295 = vpack.c.b16 %v2235, %v2233
        %v2296 = vpack.c.b16 %v2236, %v2234
        %v2297 = vpack.c.b16 %v2239, %v2237
        %v2298 = vpack.c.b16 %v2240, %v2238
        %v2299 = vpack.c.b16 %v2243, %v2241
        %v2300 = vpack.c.b16 %v2244, %v2242
        %v2301 = vpack.c.b16 %v2247, %v2245
        %v2302 = vpack.c.b16 %v2248, %v2246
        %v2303 = vpack.c.b16 %v2251, %v2249
        %v2304 = vpack.c.b16 %v2252, %v2250
        %v2305 = vpack.c.b16 %v2255, %v2253
        %v2306 = vpack.c.b16 %v2256, %v2254
        %v2307 = vpack.c.b16 %v2259, %v2257
        %v2308 = vpack.c.b16 %v2260, %v2258
        %v2309 = vpack.c.b16 %v2263, %v2261
        %v2310 = vpack.c.b16 %v2264, %v2262
        %v2311 = vpack.c.b16 %v2267, %v2265
        %v2312 = vpack.c.b16 %v2268, %v2266
        %v2313 = vpack.c.b16 %v2271, %v2269
        %v2314 = vpack.c.b16 %v2272, %v2270
        %v2315 = vpack.c.b16 %v2275, %v2273
        %v2316 = vpack.c.b16 %v2276, %v2274
        %v2317 = vpack.c.b16 %v2279, %v2277
        %v2318 = vpack.c.b16 %v2280, %v2278
        %v2319 = vpack.c.b16 %v2283, %v2281
        %v2320 = vpack.c.b16 %v2284, %v2282
        %v2321 = vpack.c.b16 %v2285, %v2285
        %v2322 = vpack.c.b16 %v2286, %v2286
        %v2358 = vsel %vm511, %v2321, 0
        %v2361 = vsel %vm511, %v2322, 0
        %2363 = vmatprep.subr.bf16.mxu0 %v2288
        %2364 = vmatpush1.bf16.msra.mxu0 %v2287
        %2365 = vmatprep.subr.bf16.mxu0 %v2290
        %2366 = vmatpush1.bf16.msra.mxu0 %v2289
        %2367 = vmatprep.subr.bf16.mxu0 %v2292
        %2368 = vmatpush1.bf16.msra.mxu0 %v2291
        %2369 = vmatprep.subr.bf16.mxu0 %v2294
        %2370 = vmatpush1.bf16.msra.mxu0 %v2293
        %2371 = vmatprep.subr.bf16.mxu0 %v2296
        %2372 = vmatpush1.bf16.msra.mxu0 %v2295
        %2373 = vmatprep.subr.bf16.mxu0 %v2298
        %2374 = vmatpush1.bf16.msra.mxu0 %v2297
        %2375 = vmatprep.subr.bf16.mxu0 %v2300
        %2376 = vmatpush1.bf16.msra.mxu0 %v2299
        %2377 = vmatprep.subr.bf16.mxu0 %v2302
        %2378 = vmatpush1.bf16.msra.mxu0 %v2301
        %2379 = vmatprep.subr.bf16.mxu0 %v2304
        %2380 = vmatpush1.bf16.msra.mxu0 %v2303
        %2381 = vmatprep.subr.bf16.mxu0 %v2306
        %2382 = vmatpush1.bf16.msra.mxu0 %v2305
        %2383 = vmatprep.subr.bf16.mxu0 %v2308
        %2384 = vmatpush1.bf16.msra.mxu0 %v2307
        %2385 = vmatprep.subr.bf16.mxu0 %v2310
        %2386 = vmatpush1.bf16.msra.mxu0 %v2309
        %2387 = vmatprep.subr.bf16.mxu0 %v2312
        %2388 = vmatpush1.bf16.msra.mxu0 %v2311
        %2389 = vmatprep.subr.bf16.mxu0 %v2314
        %2390 = vmatpush1.bf16.msra.mxu0 %v2313
        %2391 = vmatprep.subr.bf16.mxu0 %v2316
        %2392 = vmatpush1.bf16.msra.mxu0 %v2315
        %2393 = vmatprep.subr.bf16.mxu0 %v2318
        %2394 = vmatpush1.bf16.msra.mxu0 %v2317
        %2395 = vmatprep.mubr.bf16.mxu0 %v606
        %2396 = vmatmul.mubr.bf16.gmra.mrb[0].mxu0 %v605
        %v2397 = vpop.f32.mrb[0].mxu0
        %v2398 = vadd.f32 %v2176, %v2397
        %v2399 = vpop.f32.mrb[0].mxu0
        %v2400 = vadd.f32 %v2178, %v2399
        %v2401 = vpop.f32.mrb[0].mxu0
        %v2402 = vpop.f32.mrb[0].mxu0
        %2403 = vdwg.mxu0
        %2404 = vmatprep.subr.bf16.mxu0 %v2320
        %2405 = vmatpush1.bf16.msra.mxu0 %v2319
        %2406 = vmatprep.subr.bf16.mxu0 %v2361
        %2407 = vmatpush1.bf16.msra.mxu0 %v2358
        %2408 = vmatprep.subr.bf16.mxu0 0
        %2409 = vmatpush1.bf16.msra.mxu0 0
        %2410 = vmatprep.subr.bf16.mxu0 0
        %2411 = vmatpush1.bf16.msra.mxu0 0
        %2412 = vmatprep.subr.bf16.mxu0 0
        %2413 = vmatpush1.bf16.msra.mxu0 0
        %2414 = vmatprep.subr.bf16.mxu0 0
        %2415 = vmatpush1.bf16.msra.mxu0 0
        %2416 = vmatprep.subr.bf16.mxu0 0
        %2417 = vmatpush1.bf16.msra.mxu0 0
        %2418 = vmatprep.subr.bf16.mxu0 0
        %2419 = vmatpush1.bf16.msra.mxu0 0
        %2420 = vmatprep.subr.bf16.mxu0 0
        %2421 = vmatpush1.bf16.msra.mxu0 0
        %2422 = vmatprep.subr.bf16.mxu0 0
        %2423 = vmatpush1.bf16.msra.mxu0 0
        %2424 = vmatprep.subr.bf16.mxu0 0
        %2425 = vmatpush1.bf16.msra.mxu0 0
        %2426 = vmatprep.subr.bf16.mxu0 0
        %2427 = vmatpush1.bf16.msra.mxu0 0
        %2428 = vmatprep.subr.bf16.mxu0 0
        %2429 = vmatpush1.bf16.msra.mxu0 0
        %2430 = vmatprep.subr.bf16.mxu0 0
        %2431 = vmatpush1.bf16.msra.mxu0 0
        %2432 = vmatprep.subr.bf16.mxu0 0
        %2433 = vmatpush1.bf16.msra.mxu0 0
        %2434 = vmatprep.subr.bf16.mxu0 0
        %2435 = vmatpush1.bf16.msra.mxu0 0
        %2436 = vmatprep.mubr.bf16.mxu0 0
        %2437 = vmatmul.mubr.bf16.gmra.mrb[0].mxu0 %v786
        %v2438 = vpop.f32.mrb[0].mxu0
        %v2439 = vadd.f32 %v2398, %v2438
        %v2440 = vpop.f32.mrb[0].mxu0
        %v2441 = vadd.f32 %v2400, %v2440
        %v2442 = vpop.f32.mrb[0].mxu0
        %v2443 = vpop.f32.mrb[0].mxu0
        %2444 = vdwg.mxu0
        %s2445 = scalar_lea.vmem [#allocation2], 1400
        %v2446 = vld [vmem:[%s2445] sm:$0xff]
        %v2447 = vld [vmem:[%s2445 + $0x8] sm:$0xff]
        %v2448 = vld [vmem:[%s2445 + $0x10] sm:$0xff]
        %v2449 = vld [vmem:[%s2445 + $0x18] sm:$0xff]
        %v2450 = vld [vmem:[%s2445 + $0x20] sm:$0xff]
        %v2451 = vld [vmem:[%s2445 + $0x28] sm:$0xff]
        %v2452 = vld [vmem:[%s2445 + $0x30] sm:$0xff]
        %v2453 = vld [vmem:[%s2445 + $0x38] sm:$0xff]
        %v2454 = vld [vmem:[%s2445 + $0x40] sm:$0xff]
        %v2455 = vld [vmem:[%s2445 + $0x48] sm:$0xff]
        %v2456 = vld [vmem:[%s2445 + $0x50] sm:$0xff]
        %v2457 = vld [vmem:[%s2445 + $0x58] sm:$0xff]
        %v2458 = vld [vmem:[%s2445 + $0x60] sm:$0xff]
        %v2459 = vld [vmem:[%s2445 + $0x68] sm:$0xff]
        %v2460 = vld [vmem:[%s2445 + $0x70] sm:$0xff]
        %v2461 = vld [vmem:[%s2445 + $0x78] sm:$0xff]
        %v2462 = vld [vmem:[%s2445 + $0x80] sm:$0xff]
        %v2463 = vld [vmem:[%s2445 + $0x88] sm:$0xff]
        %v2464 = vld [vmem:[%s2445 + $0x90] sm:$0xff]
        %v2465 = vld [vmem:[%s2445 + $0x98] sm:$0xff]
        %v2466 = vld [vmem:[%s2445 + $0xa0] sm:$0xff]
        %v2467 = vld [vmem:[%s2445 + $0xa8] sm:$0xff]
        %v2468 = vld [vmem:[%s2445 + $0xb0] sm:$0xff]
        %v2469 = vld [vmem:[%s2445 + $0xb8] sm:$0xff]
        %v2470 = vld [vmem:[%s2445 + $0xc0] sm:$0xff]
        %v2471 = vld [vmem:[%s2445 + $0xc8] sm:$0xff]
        %v2472 = vld [vmem:[%s2445 + $0xd0] sm:$0xff]
        %v2473 = vld [vmem:[%s2445 + $0xd8] sm:$0xff]
        %v2474 = vld [vmem:[%s2445 + $0xe0] sm:$0xff]
        %v2475 = vld [vmem:[%s2445 + $0xe8] sm:$0xff]
        %v2476 = vld [vmem:[%s2445 + $0xf0] sm:$0xff]
        %v2477 = vld [vmem:[%s2445 + $0xf8] sm:$0xff]
        %v2478 = vld [vmem:[%s2445 + $0x100] sm:$0xff]
        %v2479 = vld [vmem:[%s2445 + $0x108] sm:$0xff]
        %v2480 = vld [vmem:[%s2445 + $0x110] sm:$0xff]
        %v2516 = vunpack.c.l.b16 %v2446
        %v2517 = vunpack.c.h.b16 %v2446
        %v2518 = vunpack.c.l.b16 %v2447
        %v2519 = vunpack.c.h.b16 %v2447
        %v2520 = vunpack.c.l.b16 %v2448
        %v2521 = vunpack.c.h.b16 %v2448
        %v2522 = vunpack.c.l.b16 %v2449
        %v2523 = vunpack.c.h.b16 %v2449
        %v2524 = vunpack.c.l.b16 %v2450
        %v2525 = vunpack.c.h.b16 %v2450
        %v2526 = vunpack.c.l.b16 %v2451
        %v2527 = vunpack.c.h.b16 %v2451
        %v2528 = vunpack.c.l.b16 %v2452
        %v2529 = vunpack.c.h.b16 %v2452
        %v2530 = vunpack.c.l.b16 %v2453
        %v2531 = vunpack.c.h.b16 %v2453
        %v2532 = vunpack.c.l.b16 %v2454
        %v2533 = vunpack.c.h.b16 %v2454
        %v2534 = vunpack.c.l.b16 %v2455
        %v2535 = vunpack.c.h.b16 %v2455
        %v2536 = vunpack.c.l.b16 %v2456
        %v2537 = vunpack.c.h.b16 %v2456
        %v2538 = vunpack.c.l.b16 %v2457
        %v2539 = vunpack.c.h.b16 %v2457
        %v2540 = vunpack.c.l.b16 %v2458
        %v2541 = vunpack.c.h.b16 %v2458
        %v2542 = vunpack.c.l.b16 %v2459
        %v2543 = vunpack.c.h.b16 %v2459
        %v2544 = vunpack.c.l.b16 %v2460
        %v2545 = vunpack.c.h.b16 %v2460
        %v2546 = vunpack.c.l.b16 %v2461
        %v2547 = vunpack.c.h.b16 %v2461
        %v2548 = vunpack.c.l.b16 %v2462
        %v2549 = vunpack.c.h.b16 %v2462
        %v2550 = vunpack.c.l.b16 %v2463
        %v2551 = vunpack.c.h.b16 %v2463
        %v2552 = vunpack.c.l.b16 %v2464
        %v2553 = vunpack.c.h.b16 %v2464
        %v2554 = vunpack.c.l.b16 %v2465
        %v2555 = vunpack.c.h.b16 %v2465
        %v2556 = vunpack.c.l.b16 %v2466
        %v2557 = vunpack.c.h.b16 %v2466
        %v2558 = vunpack.c.l.b16 %v2467
        %v2559 = vunpack.c.h.b16 %v2467
        %v2560 = vunpack.c.l.b16 %v2468
        %v2561 = vunpack.c.h.b16 %v2468
        %v2562 = vunpack.c.l.b16 %v2469
        %v2563 = vunpack.c.h.b16 %v2469
        %v2564 = vunpack.c.l.b16 %v2470
        %v2565 = vunpack.c.h.b16 %v2470
        %v2566 = vunpack.c.l.b16 %v2471
        %v2567 = vunpack.c.h.b16 %v2471
        %v2568 = vunpack.c.l.b16 %v2472
        %v2569 = vunpack.c.h.b16 %v2472
        %v2570 = vunpack.c.l.b16 %v2473
        %v2571 = vunpack.c.h.b16 %v2473
        %v2572 = vunpack.c.l.b16 %v2474
        %v2573 = vunpack.c.h.b16 %v2474
        %v2574 = vunpack.c.l.b16 %v2475
        %v2575 = vunpack.c.h.b16 %v2475
        %v2576 = vunpack.c.l.b16 %v2476
        %v2577 = vunpack.c.h.b16 %v2476
        %v2578 = vunpack.c.l.b16 %v2477
        %v2579 = vunpack.c.h.b16 %v2477
        %v2580 = vunpack.c.l.b16 %v2478
        %v2581 = vunpack.c.h.b16 %v2478
        %v2582 = vunpack.c.l.b16 %v2479
        %v2583 = vunpack.c.h.b16 %v2479
        %v2584 = vunpack.c.l.b16 %v2480
        %v2585 = vunpack.c.h.b16 %v2480
        %v2586 = vpack.c.b16 %v2518, %v2516
        %v2587 = vpack.c.b16 %v2519, %v2517
        %v2588 = vpack.c.b16 %v2522, %v2520
        %v2589 = vpack.c.b16 %v2523, %v2521
        %v2590 = vpack.c.b16 %v2526, %v2524
        %v2591 = vpack.c.b16 %v2527, %v2525
        %v2592 = vpack.c.b16 %v2530, %v2528
        %v2593 = vpack.c.b16 %v2531, %v2529
        %v2594 = vpack.c.b16 %v2534, %v2532
        %v2595 = vpack.c.b16 %v2535, %v2533
        %v2596 = vpack.c.b16 %v2538, %v2536
        %v2597 = vpack.c.b16 %v2539, %v2537
        %v2598 = vpack.c.b16 %v2542, %v2540
        %v2599 = vpack.c.b16 %v2543, %v2541
        %v2600 = vpack.c.b16 %v2546, %v2544
        %v2601 = vpack.c.b16 %v2547, %v2545
        %v2602 = vpack.c.b16 %v2550, %v2548
        %v2603 = vpack.c.b16 %v2551, %v2549
        %v2604 = vpack.c.b16 %v2554, %v2552
        %v2605 = vpack.c.b16 %v2555, %v2553
        %v2606 = vpack.c.b16 %v2558, %v2556
        %v2607 = vpack.c.b16 %v2559, %v2557
        %v2608 = vpack.c.b16 %v2562, %v2560
        %v2609 = vpack.c.b16 %v2563, %v2561
        %v2610 = vpack.c.b16 %v2566, %v2564
        %v2611 = vpack.c.b16 %v2567, %v2565
        %v2612 = vpack.c.b16 %v2570, %v2568
        %v2613 = vpack.c.b16 %v2571, %v2569
        %v2614 = vpack.c.b16 %v2574, %v2572
        %v2615 = vpack.c.b16 %v2575, %v2573
        %v2616 = vpack.c.b16 %v2578, %v2576
        %v2617 = vpack.c.b16 %v2579, %v2577
        %v2618 = vpack.c.b16 %v2582, %v2580
        %v2619 = vpack.c.b16 %v2583, %v2581
        %v2620 = vpack.c.b16 %v2584, %v2584
        %v2621 = vpack.c.b16 %v2585, %v2585
        %v2657 = vsel %vm511, %v2620, 0
        %v2660 = vsel %vm511, %v2621, 0
        %2662 = vmatprep.subr.bf16.mxu0 %v2587
        %2663 = vmatpush1.bf16.msra.mxu0 %v2586
        %2664 = vmatprep.subr.bf16.mxu0 %v2589
        %2665 = vmatpush1.bf16.msra.mxu0 %v2588
        %2666 = vmatprep.subr.bf16.mxu0 %v2591
        %2667 = vmatpush1.bf16.msra.mxu0 %v2590
        %2668 = vmatprep.subr.bf16.mxu0 %v2593
        %2669 = vmatpush1.bf16.msra.mxu0 %v2592
        %2670 = vmatprep.subr.bf16.mxu0 %v2595
        %2671 = vmatpush1.bf16.msra.mxu0 %v2594
        %2672 = vmatprep.subr.bf16.mxu0 %v2597
        %2673 = vmatpush1.bf16.msra.mxu0 %v2596
        %2674 = vmatprep.subr.bf16.mxu0 %v2599
        %2675 = vmatpush1.bf16.msra.mxu0 %v2598
        %2676 = vmatprep.subr.bf16.mxu0 %v2601
        %2677 = vmatpush1.bf16.msra.mxu0 %v2600
        %2678 = vmatprep.subr.bf16.mxu0 %v2603
        %2679 = vmatpush1.bf16.msra.mxu0 %v2602
        %2680 = vmatprep.subr.bf16.mxu0 %v2605
        %2681 = vmatpush1.bf16.msra.mxu0 %v2604
        %2682 = vmatprep.subr.bf16.mxu0 %v2607
        %2683 = vmatpush1.bf16.msra.mxu0 %v2606
        %2684 = vmatprep.subr.bf16.mxu0 %v2609
        %2685 = vmatpush1.bf16.msra.mxu0 %v2608
        %2686 = vmatprep.subr.bf16.mxu0 %v2611
        %2687 = vmatpush1.bf16.msra.mxu0 %v2610
        %2688 = vmatprep.subr.bf16.mxu0 %v2613
        %2689 = vmatpush1.bf16.msra.mxu0 %v2612
        %2690 = vmatprep.subr.bf16.mxu0 %v2615
        %2691 = vmatpush1.bf16.msra.mxu0 %v2614
        %2692 = vmatprep.subr.bf16.mxu0 %v2617
        %2693 = vmatpush1.bf16.msra.mxu0 %v2616
        %2694 = vmatprep.mubr.bf16.mxu0 %v925
        %2695 = vmatmul.mubr.bf16.gmra.mrb[0].mxu0 %v918
        %v2696 = vpop.f32.mrb[0].mxu0
        %v2697 = vadd.f32 0.0, %v2696
        %v2698 = vpop.f32.mrb[0].mxu0
        %v2699 = vadd.f32 0.0, %v2698
        %v2700 = vpop.f32.mrb[0].mxu0
        %v2701 = vpop.f32.mrb[0].mxu0
        %2702 = vdwg.mxu0
        %2703 = vmatprep.subr.bf16.mxu0 %v2619
        %2704 = vmatpush1.bf16.msra.mxu0 %v2618
        %2705 = vmatprep.subr.bf16.mxu0 %v2660
        %2706 = vmatpush1.bf16.msra.mxu0 %v2657
        %2707 = vmatprep.subr.bf16.mxu0 0
        %2708 = vmatpush1.bf16.msra.mxu0 0
        %2709 = vmatprep.subr.bf16.mxu0 0
        %2710 = vmatpush1.bf16.msra.mxu0 0
        %2711 = vmatprep.subr.bf16.mxu0 0
        %2712 = vmatpush1.bf16.msra.mxu0 0
        %2713 = vmatprep.subr.bf16.mxu0 0
        %2714 = vmatpush1.bf16.msra.mxu0 0
        %2715 = vmatprep.subr.bf16.mxu0 0
        %2716 = vmatpush1.bf16.msra.mxu0 0
        %2717 = vmatprep.subr.bf16.mxu0 0
        %2718 = vmatpush1.bf16.msra.mxu0 0
        %2719 = vmatprep.subr.bf16.mxu0 0
        %2720 = vmatpush1.bf16.msra.mxu0 0
        %2721 = vmatprep.subr.bf16.mxu0 0
        %2722 = vmatpush1.bf16.msra.mxu0 0
        %2723 = vmatprep.subr.bf16.mxu0 0
        %2724 = vmatpush1.bf16.msra.mxu0 0
        %2725 = vmatprep.subr.bf16.mxu0 0
        %2726 = vmatpush1.bf16.msra.mxu0 0
        %2727 = vmatprep.subr.bf16.mxu0 0
        %2728 = vmatpush1.bf16.msra.mxu0 0
        %2729 = vmatprep.subr.bf16.mxu0 0
        %2730 = vmatpush1.bf16.msra.mxu0 0
        %2731 = vmatprep.subr.bf16.mxu0 0
        %2732 = vmatpush1.bf16.msra.mxu0 0
        %2733 = vmatprep.subr.bf16.mxu0 0
        %2734 = vmatpush1.bf16.msra.mxu0 0
        %2735 = vmatprep.mubr.bf16.mxu0 0
        %2736 = vmatmul.mubr.bf16.gmra.mrb[0].mxu0 %v1110
        %v2737 = vpop.f32.mrb[0].mxu0
        %v2738 = vadd.f32 %v2697, %v2737
        %v2739 = vpop.f32.mrb[0].mxu0
        %v2740 = vadd.f32 %v2699, %v2739
        %v2741 = vpop.f32.mrb[0].mxu0
        %v2742 = vpop.f32.mrb[0].mxu0
        %2743 = vdwg.mxu0
        %v2744 = vadd.f32 %v2439, %v2738
        %v2745 = vadd.f32 %v2441, %v2740
        %s2746 = scalar_lea.vmem [#allocation2], 1960
        %v2747 = vld [vmem:[%s2746] sm:$0xff]
        %v2748 = vld [vmem:[%s2746 + $0x8] sm:$0xff]
        %v2749 = vld [vmem:[%s2746 + $0x10] sm:$0xff]
        %v2750 = vld [vmem:[%s2746 + $0x18] sm:$0xff]
        %v2751 = vld [vmem:[%s2746 + $0x20] sm:$0xff]
        %v2752 = vld [vmem:[%s2746 + $0x28] sm:$0xff]
        %v2753 = vld [vmem:[%s2746 + $0x30] sm:$0xff]
        %v2754 = vld [vmem:[%s2746 + $0x38] sm:$0xff]
        %v2755 = vld [vmem:[%s2746 + $0x40] sm:$0xff]
        %v2756 = vld [vmem:[%s2746 + $0x48] sm:$0xff]
        %v2757 = vld [vmem:[%s2746 + $0x50] sm:$0xff]
        %v2758 = vld [vmem:[%s2746 + $0x58] sm:$0xff]
        %v2759 = vld [vmem:[%s2746 + $0x60] sm:$0xff]
        %v2760 = vld [vmem:[%s2746 + $0x68] sm:$0xff]
        %v2761 = vld [vmem:[%s2746 + $0x70] sm:$0xff]
        %v2762 = vld [vmem:[%s2746 + $0x78] sm:$0xff]
        %v2763 = vld [vmem:[%s2746 + $0x80] sm:$0xff]
        %v2764 = vld [vmem:[%s2746 + $0x88] sm:$0xff]
        %v2765 = vld [vmem:[%s2746 + $0x90] sm:$0xff]
        %v2766 = vld [vmem:[%s2746 + $0x98] sm:$0xff]
        %v2767 = vld [vmem:[%s2746 + $0xa0] sm:$0xff]
        %v2768 = vld [vmem:[%s2746 + $0xa8] sm:$0xff]
        %v2769 = vld [vmem:[%s2746 + $0xb0] sm:$0xff]
        %v2770 = vld [vmem:[%s2746 + $0xb8] sm:$0xff]
        %v2771 = vld [vmem:[%s2746 + $0xc0] sm:$0xff]
        %v2772 = vld [vmem:[%s2746 + $0xc8] sm:$0xff]
        %v2773 = vld [vmem:[%s2746 + $0xd0] sm:$0xff]
        %v2774 = vld [vmem:[%s2746 + $0xd8] sm:$0xff]
        %v2775 = vld [vmem:[%s2746 + $0xe0] sm:$0xff]
        %v2776 = vld [vmem:[%s2746 + $0xe8] sm:$0xff]
        %v2777 = vld [vmem:[%s2746 + $0xf0] sm:$0xff]
        %v2778 = vld [vmem:[%s2746 + $0xf8] sm:$0xff]
        %v2779 = vld [vmem:[%s2746 + $0x100] sm:$0xff]
        %v2780 = vld [vmem:[%s2746 + $0x108] sm:$0xff]
        %v2781 = vld [vmem:[%s2746 + $0x110] sm:$0xff]
        %v2817 = vunpack.c.l.b16 %v2747
        %v2818 = vunpack.c.h.b16 %v2747
        %v2819 = vunpack.c.l.b16 %v2748
        %v2820 = vunpack.c.h.b16 %v2748
        %v2821 = vunpack.c.l.b16 %v2749
        %v2822 = vunpack.c.h.b16 %v2749
        %v2823 = vunpack.c.l.b16 %v2750
        %v2824 = vunpack.c.h.b16 %v2750
        %v2825 = vunpack.c.l.b16 %v2751
        %v2826 = vunpack.c.h.b16 %v2751
        %v2827 = vunpack.c.l.b16 %v2752
        %v2828 = vunpack.c.h.b16 %v2752
        %v2829 = vunpack.c.l.b16 %v2753
        %v2830 = vunpack.c.h.b16 %v2753
        %v2831 = vunpack.c.l.b16 %v2754
        %v2832 = vunpack.c.h.b16 %v2754
        %v2833 = vunpack.c.l.b16 %v2755
        %v2834 = vunpack.c.h.b16 %v2755
        %v2835 = vunpack.c.l.b16 %v2756
        %v2836 = vunpack.c.h.b16 %v2756
        %v2837 = vunpack.c.l.b16 %v2757
        %v2838 = vunpack.c.h.b16 %v2757
        %v2839 = vunpack.c.l.b16 %v2758
        %v2840 = vunpack.c.h.b16 %v2758
        %v2841 = vunpack.c.l.b16 %v2759
        %v2842 = vunpack.c.h.b16 %v2759
        %v2843 = vunpack.c.l.b16 %v2760
        %v2844 = vunpack.c.h.b16 %v2760
        %v2845 = vunpack.c.l.b16 %v2761
        %v2846 = vunpack.c.h.b16 %v2761
        %v2847 = vunpack.c.l.b16 %v2762
        %v2848 = vunpack.c.h.b16 %v2762
        %v2849 = vunpack.c.l.b16 %v2763
        %v2850 = vunpack.c.h.b16 %v2763
        %v2851 = vunpack.c.l.b16 %v2764
        %v2852 = vunpack.c.h.b16 %v2764
        %v2853 = vunpack.c.l.b16 %v2765
        %v2854 = vunpack.c.h.b16 %v2765
        %v2855 = vunpack.c.l.b16 %v2766
        %v2856 = vunpack.c.h.b16 %v2766
        %v2857 = vunpack.c.l.b16 %v2767
        %v2858 = vunpack.c.h.b16 %v2767
        %v2859 = vunpack.c.l.b16 %v2768
        %v2860 = vunpack.c.h.b16 %v2768
        %v2861 = vunpack.c.l.b16 %v2769
        %v2862 = vunpack.c.h.b16 %v2769
        %v2863 = vunpack.c.l.b16 %v2770
        %v2864 = vunpack.c.h.b16 %v2770
        %v2865 = vunpack.c.l.b16 %v2771
        %v2866 = vunpack.c.h.b16 %v2771
        %v2867 = vunpack.c.l.b16 %v2772
        %v2868 = vunpack.c.h.b16 %v2772
        %v2869 = vunpack.c.l.b16 %v2773
        %v2870 = vunpack.c.h.b16 %v2773
        %v2871 = vunpack.c.l.b16 %v2774
        %v2872 = vunpack.c.h.b16 %v2774
        %v2873 = vunpack.c.l.b16 %v2775
        %v2874 = vunpack.c.h.b16 %v2775
        %v2875 = vunpack.c.l.b16 %v2776
        %v2876 = vunpack.c.h.b16 %v2776
        %v2877 = vunpack.c.l.b16 %v2777
        %v2878 = vunpack.c.h.b16 %v2777
        %v2879 = vunpack.c.l.b16 %v2778
        %v2880 = vunpack.c.h.b16 %v2778
        %v2881 = vunpack.c.l.b16 %v2779
        %v2882 = vunpack.c.h.b16 %v2779
        %v2883 = vunpack.c.l.b16 %v2780
        %v2884 = vunpack.c.h.b16 %v2780
        %v2885 = vunpack.c.l.b16 %v2781
        %v2886 = vunpack.c.h.b16 %v2781
        %v2887 = vpack.c.b16 %v2819, %v2817
        %v2888 = vpack.c.b16 %v2820, %v2818
        %v2889 = vpack.c.b16 %v2823, %v2821
        %v2890 = vpack.c.b16 %v2824, %v2822
        %v2891 = vpack.c.b16 %v2827, %v2825
        %v2892 = vpack.c.b16 %v2828, %v2826
        %v2893 = vpack.c.b16 %v2831, %v2829
        %v2894 = vpack.c.b16 %v2832, %v2830
        %v2895 = vpack.c.b16 %v2835, %v2833
        %v2896 = vpack.c.b16 %v2836, %v2834
        %v2897 = vpack.c.b16 %v2839, %v2837
        %v2898 = vpack.c.b16 %v2840, %v2838
        %v2899 = vpack.c.b16 %v2843, %v2841
        %v2900 = vpack.c.b16 %v2844, %v2842
        %v2901 = vpack.c.b16 %v2847, %v2845
        %v2902 = vpack.c.b16 %v2848, %v2846
        %v2903 = vpack.c.b16 %v2851, %v2849
        %v2904 = vpack.c.b16 %v2852, %v2850
        %v2905 = vpack.c.b16 %v2855, %v2853
        %v2906 = vpack.c.b16 %v2856, %v2854
        %v2907 = vpack.c.b16 %v2859, %v2857
        %v2908 = vpack.c.b16 %v2860, %v2858
        %v2909 = vpack.c.b16 %v2863, %v2861
        %v2910 = vpack.c.b16 %v2864, %v2862
        %v2911 = vpack.c.b16 %v2867, %v2865
        %v2912 = vpack.c.b16 %v2868, %v2866
        %v2913 = vpack.c.b16 %v2871, %v2869
        %v2914 = vpack.c.b16 %v2872, %v2870
        %v2915 = vpack.c.b16 %v2875, %v2873
        %v2916 = vpack.c.b16 %v2876, %v2874
        %v2917 = vpack.c.b16 %v2879, %v2877
        %v2918 = vpack.c.b16 %v2880, %v2878
        %v2919 = vpack.c.b16 %v2883, %v2881
        %v2920 = vpack.c.b16 %v2884, %v2882
        %v2921 = vpack.c.b16 %v2885, %v2885
        %v2922 = vpack.c.b16 %v2886, %v2886
        %v2958 = vsel %vm511, %v2921, 0
        %v2961 = vsel %vm511, %v2922, 0
        %2963 = vmatprep.subr.bf16.mxu0 %v2888
        %2964 = vmatpush1.bf16.msra.mxu0 %v2887
        %2965 = vmatprep.subr.bf16.mxu0 %v2890
        %2966 = vmatpush1.bf16.msra.mxu0 %v2889
        %2967 = vmatprep.subr.bf16.mxu0 %v2892
        %2968 = vmatpush1.bf16.msra.mxu0 %v2891
        %2969 = vmatprep.subr.bf16.mxu0 %v2894
        %2970 = vmatpush1.bf16.msra.mxu0 %v2893
        %2971 = vmatprep.subr.bf16.mxu0 %v2896
        %2972 = vmatpush1.bf16.msra.mxu0 %v2895
        %2973 = vmatprep.subr.bf16.mxu0 %v2898
        %2974 = vmatpush1.bf16.msra.mxu0 %v2897
        %2975 = vmatprep.subr.bf16.mxu0 %v2900
        %2976 = vmatpush1.bf16.msra.mxu0 %v2899
        %2977 = vmatprep.subr.bf16.mxu0 %v2902
        %2978 = vmatpush1.bf16.msra.mxu0 %v2901
        %2979 = vmatprep.subr.bf16.mxu0 %v2904
        %2980 = vmatpush1.bf16.msra.mxu0 %v2903
        %2981 = vmatprep.subr.bf16.mxu0 %v2906
        %2982 = vmatpush1.bf16.msra.mxu0 %v2905
        %2983 = vmatprep.subr.bf16.mxu0 %v2908
        %2984 = vmatpush1.bf16.msra.mxu0 %v2907
        %2985 = vmatprep.subr.bf16.mxu0 %v2910
        %2986 = vmatpush1.bf16.msra.mxu0 %v2909
        %2987 = vmatprep.subr.bf16.mxu0 %v2912
        %2988 = vmatpush1.bf16.msra.mxu0 %v2911
        %2989 = vmatprep.subr.bf16.mxu0 %v2914
        %2990 = vmatpush1.bf16.msra.mxu0 %v2913
        %2991 = vmatprep.subr.bf16.mxu0 %v2916
        %2992 = vmatpush1.bf16.msra.mxu0 %v2915
        %2993 = vmatprep.subr.bf16.mxu0 %v2918
        %2994 = vmatpush1.bf16.msra.mxu0 %v2917
        %2995 = vmatprep.mubr.bf16.mxu0 %v1251
        %2996 = vmatmul.mubr.bf16.gmra.mrb[0].mxu0 %v1244
        %v2997 = vpop.f32.mrb[0].mxu0
        %v2998 = vadd.f32 0.0, %v2997
        %v2999 = vpop.f32.mrb[0].mxu0
        %v3000 = vadd.f32 0.0, %v2999
        %v3001 = vpop.f32.mrb[0].mxu0
        %v3002 = vpop.f32.mrb[0].mxu0
        %3003 = vdwg.mxu0
        %3004 = vmatprep.subr.bf16.mxu0 %v2920
        %3005 = vmatpush1.bf16.msra.mxu0 %v2919
        %3006 = vmatprep.subr.bf16.mxu0 %v2961
        %3007 = vmatpush1.bf16.msra.mxu0 %v2958
        %3008 = vmatprep.subr.bf16.mxu0 0
        %3009 = vmatpush1.bf16.msra.mxu0 0
        %3010 = vmatprep.subr.bf16.mxu0 0
        %3011 = vmatpush1.bf16.msra.mxu0 0
        %3012 = vmatprep.subr.bf16.mxu0 0
        %3013 = vmatpush1.bf16.msra.mxu0 0
        %3014 = vmatprep.subr.bf16.mxu0 0
        %3015 = vmatpush1.bf16.msra.mxu0 0
        %3016 = vmatprep.subr.bf16.mxu0 0
        %3017 = vmatpush1.bf16.msra.mxu0 0
        %3018 = vmatprep.subr.bf16.mxu0 0
        %3019 = vmatpush1.bf16.msra.mxu0 0
        %3020 = vmatprep.subr.bf16.mxu0 0
        %3021 = vmatpush1.bf16.msra.mxu0 0
        %3022 = vmatprep.subr.bf16.mxu0 0
        %3023 = vmatpush1.bf16.msra.mxu0 0
        %3024 = vmatprep.subr.bf16.mxu0 0
        %3025 = vmatpush1.bf16.msra.mxu0 0
        %3026 = vmatprep.subr.bf16.mxu0 0
        %3027 = vmatpush1.bf16.msra.mxu0 0
        %3028 = vmatprep.subr.bf16.mxu0 0
        %3029 = vmatpush1.bf16.msra.mxu0 0
        %3030 = vmatprep.subr.bf16.mxu0 0
        %3031 = vmatpush1.bf16.msra.mxu0 0
        %3032 = vmatprep.subr.bf16.mxu0 0
        %3033 = vmatpush1.bf16.msra.mxu0 0
        %3034 = vmatprep.subr.bf16.mxu0 0
        %3035 = vmatpush1.bf16.msra.mxu0 0
        %3036 = vmatprep.mubr.bf16.mxu0 0
        %3037 = vmatmul.mubr.bf16.gmra.mrb[0].mxu0 %v1436
        %v3038 = vpop.f32.mrb[0].mxu0
        %v3039 = vadd.f32 %v2998, %v3038
        %v3040 = vpop.f32.mrb[0].mxu0
        %v3041 = vadd.f32 %v3000, %v3040
        %v3042 = vpop.f32.mrb[0].mxu0
        %v3043 = vpop.f32.mrb[0].mxu0
        %3044 = vdwg.mxu0
        %v3045 = vadd.f32 %v2744, %v3039
        %v3046 = vadd.f32 %v2745, %v3041
        %s3047 = scalar_lea.vmem [#allocation2], 2520
        %v3048 = vld [vmem:[%s3047] sm:$0xff]
        %v3049 = vld [vmem:[%s3047 + $0x8] sm:$0xff]
        %v3050 = vld [vmem:[%s3047 + $0x10] sm:$0xff]
        %v3051 = vld [vmem:[%s3047 + $0x18] sm:$0xff]
        %v3052 = vld [vmem:[%s3047 + $0x20] sm:$0xff]
        %v3053 = vld [vmem:[%s3047 + $0x28] sm:$0xff]
        %v3054 = vld [vmem:[%s3047 + $0x30] sm:$0xff]
        %v3055 = vld [vmem:[%s3047 + $0x38] sm:$0xff]
        %v3056 = vld [vmem:[%s3047 + $0x40] sm:$0xff]
        %v3057 = vld [vmem:[%s3047 + $0x48] sm:$0xff]
        %v3058 = vld [vmem:[%s3047 + $0x50] sm:$0xff]
        %v3059 = vld [vmem:[%s3047 + $0x58] sm:$0xff]
        %v3060 = vld [vmem:[%s3047 + $0x60] sm:$0xff]
        %v3061 = vld [vmem:[%s3047 + $0x68] sm:$0xff]
        %v3062 = vld [vmem:[%s3047 + $0x70] sm:$0xff]
        %v3063 = vld [vmem:[%s3047 + $0x78] sm:$0xff]
        %v3064 = vld [vmem:[%s3047 + $0x80] sm:$0xff]
        %v3065 = vld [vmem:[%s3047 + $0x88] sm:$0xff]
        %v3066 = vld [vmem:[%s3047 + $0x90] sm:$0xff]
        %v3067 = vld [vmem:[%s3047 + $0x98] sm:$0xff]
        %v3068 = vld [vmem:[%s3047 + $0xa0] sm:$0xff]
        %v3069 = vld [vmem:[%s3047 + $0xa8] sm:$0xff]
        %v3070 = vld [vmem:[%s3047 + $0xb0] sm:$0xff]
        %v3071 = vld [vmem:[%s3047 + $0xb8] sm:$0xff]
        %v3072 = vld [vmem:[%s3047 + $0xc0] sm:$0xff]
        %v3073 = vld [vmem:[%s3047 + $0xc8] sm:$0xff]
        %v3074 = vld [vmem:[%s3047 + $0xd0] sm:$0xff]
        %v3075 = vld [vmem:[%s3047 + $0xd8] sm:$0xff]
        %v3076 = vld [vmem:[%s3047 + $0xe0] sm:$0xff]
        %v3077 = vld [vmem:[%s3047 + $0xe8] sm:$0xff]
        %v3078 = vld [vmem:[%s3047 + $0xf0] sm:$0xff]
        %v3079 = vld [vmem:[%s3047 + $0xf8] sm:$0xff]
        %v3080 = vld [vmem:[%s3047 + $0x100] sm:$0xff]
        %v3081 = vld [vmem:[%s3047 + $0x108] sm:$0xff]
        %v3082 = vld [vmem:[%s3047 + $0x110] sm:$0xff]
        %v3118 = vunpack.c.l.b16 %v3048
        %v3119 = vunpack.c.h.b16 %v3048
        %v3120 = vunpack.c.l.b16 %v3049
        %v3121 = vunpack.c.h.b16 %v3049
        %v3122 = vunpack.c.l.b16 %v3050
        %v3123 = vunpack.c.h.b16 %v3050
        %v3124 = vunpack.c.l.b16 %v3051
        %v3125 = vunpack.c.h.b16 %v3051
        %v3126 = vunpack.c.l.b16 %v3052
        %v3127 = vunpack.c.h.b16 %v3052
        %v3128 = vunpack.c.l.b16 %v3053
        %v3129 = vunpack.c.h.b16 %v3053
        %v3130 = vunpack.c.l.b16 %v3054
        %v3131 = vunpack.c.h.b16 %v3054
        %v3132 = vunpack.c.l.b16 %v3055
        %v3133 = vunpack.c.h.b16 %v3055
        %v3134 = vunpack.c.l.b16 %v3056
        %v3135 = vunpack.c.h.b16 %v3056
        %v3136 = vunpack.c.l.b16 %v3057
        %v3137 = vunpack.c.h.b16 %v3057
        %v3138 = vunpack.c.l.b16 %v3058
        %v3139 = vunpack.c.h.b16 %v3058
        %v3140 = vunpack.c.l.b16 %v3059
        %v3141 = vunpack.c.h.b16 %v3059
        %v3142 = vunpack.c.l.b16 %v3060
        %v3143 = vunpack.c.h.b16 %v3060
        %v3144 = vunpack.c.l.b16 %v3061
        %v3145 = vunpack.c.h.b16 %v3061
        %v3146 = vunpack.c.l.b16 %v3062
        %v3147 = vunpack.c.h.b16 %v3062
        %v3148 = vunpack.c.l.b16 %v3063
        %v3149 = vunpack.c.h.b16 %v3063
        %v3150 = vunpack.c.l.b16 %v3064
        %v3151 = vunpack.c.h.b16 %v3064
        %v3152 = vunpack.c.l.b16 %v3065
        %v3153 = vunpack.c.h.b16 %v3065
        %v3154 = vunpack.c.l.b16 %v3066
        %v3155 = vunpack.c.h.b16 %v3066
        %v3156 = vunpack.c.l.b16 %v3067
        %v3157 = vunpack.c.h.b16 %v3067
        %v3158 = vunpack.c.l.b16 %v3068
        %v3159 = vunpack.c.h.b16 %v3068
        %v3160 = vunpack.c.l.b16 %v3069
        %v3161 = vunpack.c.h.b16 %v3069
        %v3162 = vunpack.c.l.b16 %v3070
        %v3163 = vunpack.c.h.b16 %v3070
        %v3164 = vunpack.c.l.b16 %v3071
        %v3165 = vunpack.c.h.b16 %v3071
        %v3166 = vunpack.c.l.b16 %v3072
        %v3167 = vunpack.c.h.b16 %v3072
        %v3168 = vunpack.c.l.b16 %v3073
        %v3169 = vunpack.c.h.b16 %v3073
        %v3170 = vunpack.c.l.b16 %v3074
        %v3171 = vunpack.c.h.b16 %v3074
        %v3172 = vunpack.c.l.b16 %v3075
        %v3173 = vunpack.c.h.b16 %v3075
        %v3174 = vunpack.c.l.b16 %v3076
        %v3175 = vunpack.c.h.b16 %v3076
        %v3176 = vunpack.c.l.b16 %v3077
        %v3177 = vunpack.c.h.b16 %v3077
        %v3178 = vunpack.c.l.b16 %v3078
        %v3179 = vunpack.c.h.b16 %v3078
        %v3180 = vunpack.c.l.b16 %v3079
        %v3181 = vunpack.c.h.b16 %v3079
        %v3182 = vunpack.c.l.b16 %v3080
        %v3183 = vunpack.c.h.b16 %v3080
        %v3184 = vunpack.c.l.b16 %v3081
        %v3185 = vunpack.c.h.b16 %v3081
        %v3186 = vunpack.c.l.b16 %v3082
        %v3187 = vunpack.c.h.b16 %v3082
        %v3188 = vpack.c.b16 %v3120, %v3118
        %v3189 = vpack.c.b16 %v3121, %v3119
        %v3190 = vpack.c.b16 %v3124, %v3122
        %v3191 = vpack.c.b16 %v3125, %v3123
        %v3192 = vpack.c.b16 %v3128, %v3126
        %v3193 = vpack.c.b16 %v3129, %v3127
        %v3194 = vpack.c.b16 %v3132, %v3130
        %v3195 = vpack.c.b16 %v3133, %v3131
        %v3196 = vpack.c.b16 %v3136, %v3134
        %v3197 = vpack.c.b16 %v3137, %v3135
        %v3198 = vpack.c.b16 %v3140, %v3138
        %v3199 = vpack.c.b16 %v3141, %v3139
        %v3200 = vpack.c.b16 %v3144, %v3142
        %v3201 = vpack.c.b16 %v3145, %v3143
        %v3202 = vpack.c.b16 %v3148, %v3146
        %v3203 = vpack.c.b16 %v3149, %v3147
        %v3204 = vpack.c.b16 %v3152, %v3150
        %v3205 = vpack.c.b16 %v3153, %v3151
        %v3206 = vpack.c.b16 %v3156, %v3154
        %v3207 = vpack.c.b16 %v3157, %v3155
        %v3208 = vpack.c.b16 %v3160, %v3158
        %v3209 = vpack.c.b16 %v3161, %v3159
        %v3210 = vpack.c.b16 %v3164, %v3162
        %v3211 = vpack.c.b16 %v3165, %v3163
        %v3212 = vpack.c.b16 %v3168, %v3166
        %v3213 = vpack.c.b16 %v3169, %v3167
        %v3214 = vpack.c.b16 %v3172, %v3170
        %v3215 = vpack.c.b16 %v3173, %v3171
        %v3216 = vpack.c.b16 %v3176, %v3174
        %v3217 = vpack.c.b16 %v3177, %v3175
        %v3218 = vpack.c.b16 %v3180, %v3178
        %v3219 = vpack.c.b16 %v3181, %v3179
        %v3220 = vpack.c.b16 %v3184, %v3182
        %v3221 = vpack.c.b16 %v3185, %v3183
        %v3222 = vpack.c.b16 %v3186, %v3186
        %v3223 = vpack.c.b16 %v3187, %v3187
        %v3259 = vsel %vm511, %v3222, 0
        %v3262 = vsel %vm511, %v3223, 0
        %3264 = vmatprep.subr.bf16.mxu0 %v3189
        %3265 = vmatpush1.bf16.msra.mxu0 %v3188
        %3266 = vmatprep.subr.bf16.mxu0 %v3191
        %3267 = vmatpush1.bf16.msra.mxu0 %v3190
        %3268 = vmatprep.subr.bf16.mxu0 %v3193
        %3269 = vmatpush1.bf16.msra.mxu0 %v3192
        %3270 = vmatprep.subr.bf16.mxu0 %v3195
        %3271 = vmatpush1.bf16.msra.mxu0 %v3194
        %3272 = vmatprep.subr.bf16.mxu0 %v3197
        %3273 = vmatpush1.bf16.msra.mxu0 %v3196
        %3274 = vmatprep.subr.bf16.mxu0 %v3199
        %3275 = vmatpush1.bf16.msra.mxu0 %v3198
        %3276 = vmatprep.subr.bf16.mxu0 %v3201
        %3277 = vmatpush1.bf16.msra.mxu0 %v3200
        %3278 = vmatprep.subr.bf16.mxu0 %v3203
        %3279 = vmatpush1.bf16.msra.mxu0 %v3202
        %3280 = vmatprep.subr.bf16.mxu0 %v3205
        %3281 = vmatpush1.bf16.msra.mxu0 %v3204
        %3282 = vmatprep.subr.bf16.mxu0 %v3207
        %3283 = vmatpush1.bf16.msra.mxu0 %v3206
        %3284 = vmatprep.subr.bf16.mxu0 %v3209
        %3285 = vmatpush1.bf16.msra.mxu0 %v3208
        %3286 = vmatprep.subr.bf16.mxu0 %v3211
        %3287 = vmatpush1.bf16.msra.mxu0 %v3210
        %3288 = vmatprep.subr.bf16.mxu0 %v3213
        %3289 = vmatpush1.bf16.msra.mxu0 %v3212
        %3290 = vmatprep.subr.bf16.mxu0 %v3215
        %3291 = vmatpush1.bf16.msra.mxu0 %v3214
        %3292 = vmatprep.subr.bf16.mxu0 %v3217
        %3293 = vmatpush1.bf16.msra.mxu0 %v3216
        %3294 = vmatprep.subr.bf16.mxu0 %v3219
        %3295 = vmatpush1.bf16.msra.mxu0 %v3218
        %3296 = vmatprep.mubr.bf16.mxu0 %v1575
        %3297 = vmatmul.mubr.bf16.gmra.mrb[0].mxu0 %v1574
        %v3298 = vpop.f32.mrb[0].mxu0
        %v3299 = vadd.f32 0.0, %v3298
        %v3300 = vpop.f32.mrb[0].mxu0
        %v3301 = vadd.f32 0.0, %v3300
        %v3302 = vpop.f32.mrb[0].mxu0
        %v3303 = vpop.f32.mrb[0].mxu0
        %3304 = vdwg.mxu0
        %3305 = vmatprep.subr.bf16.mxu0 %v3221
        %3306 = vmatpush1.bf16.msra.mxu0 %v3220
        %3307 = vmatprep.subr.bf16.mxu0 %v3262
        %3308 = vmatpush1.bf16.msra.mxu0 %v3259
        %3309 = vmatprep.subr.bf16.mxu0 0
        %3310 = vmatpush1.bf16.msra.mxu0 0
        %3311 = vmatprep.subr.bf16.mxu0 0
        %3312 = vmatpush1.bf16.msra.mxu0 0
        %3313 = vmatprep.subr.bf16.mxu0 0
        %3314 = vmatpush1.bf16.msra.mxu0 0
        %3315 = vmatprep.subr.bf16.mxu0 0
        %3316 = vmatpush1.bf16.msra.mxu0 0
        %3317 = vmatprep.subr.bf16.mxu0 0
        %3318 = vmatpush1.bf16.msra.mxu0 0
        %3319 = vmatprep.subr.bf16.mxu0 0
        %3320 = vmatpush1.bf16.msra.mxu0 0
        %3321 = vmatprep.subr.bf16.mxu0 0
        %3322 = vmatpush1.bf16.msra.mxu0 0
        %3323 = vmatprep.subr.bf16.mxu0 0
        %3324 = vmatpush1.bf16.msra.mxu0 0
        %3325 = vmatprep.subr.bf16.mxu0 0
        %3326 = vmatpush1.bf16.msra.mxu0 0
        %3327 = vmatprep.subr.bf16.mxu0 0
        %3328 = vmatpush1.bf16.msra.mxu0 0
        %3329 = vmatprep.subr.bf16.mxu0 0
        %3330 = vmatpush1.bf16.msra.mxu0 0
        %3331 = vmatprep.subr.bf16.mxu0 0
        %3332 = vmatpush1.bf16.msra.mxu0 0
        %3333 = vmatprep.subr.bf16.mxu0 0
        %3334 = vmatpush1.bf16.msra.mxu0 0
        %3335 = vmatprep.subr.bf16.mxu0 0
        %3336 = vmatpush1.bf16.msra.mxu0 0
        %3337 = vmatprep.mubr.bf16.mxu0 0
        %3338 = vmatmul.mubr.bf16.gmra.mrb[0].mxu0 %v1755
        %v3339 = vpop.f32.mrb[0].mxu0
        %v3340 = vadd.f32 %v3299, %v3339
        %v3341 = vpop.f32.mrb[0].mxu0
        %v3342 = vadd.f32 %v3301, %v3341
        %v3343 = vpop.f32.mrb[0].mxu0
        %v3344 = vpop.f32.mrb[0].mxu0
        %3345 = vdwg.mxu0
        %v3346 = vadd.f32 %v3045, %v3340
        %v3347 = vadd.f32 %v3046, %v3342
        %v3348 = vmax.f32 %v1845, %v3346
        %v3349 = vmax.f32 %v1846, %v3347
        %3350 = vmatprep.subr.bf16.mxu0 %v438
        %3351 = vmatpush1.bf16.msra.mxu0 %v437
        %3352 = vmatprep.subr.bf16.mxu0 %v440
        %3353 = vmatpush1.bf16.msra.mxu0 %v439
        %3354 = vmatprep.subr.bf16.mxu0 %v442
        %3355 = vmatpush1.bf16.msra.mxu0 %v441
        %3356 = vmatprep.subr.bf16.mxu0 %v444
        %3357 = vmatpush1.bf16.msra.mxu0 %v443
        %3358 = vmatprep.subr.bf16.mxu0 %v446
        %3359 = vmatpush1.bf16.msra.mxu0 %v445
        %3360 = vmatprep.subr.bf16.mxu0 %v448
        %3361 = vmatpush1.bf16.msra.mxu0 %v447
        %3362 = vmatprep.subr.bf16.mxu0 %v450
        %3363 = vmatpush1.bf16.msra.mxu0 %v449
        %3364 = vmatprep.subr.bf16.mxu0 %v452
        %3365 = vmatpush1.bf16.msra.mxu0 %v451
        %3366 = vmatprep.subr.bf16.mxu0 %v454
        %3367 = vmatpush1.bf16.msra.mxu0 %v453
        %3368 = vmatprep.subr.bf16.mxu0 %v456
        %3369 = vmatpush1.bf16.msra.mxu0 %v455
        %3370 = vmatprep.subr.bf16.mxu0 %v458
        %3371 = vmatpush1.bf16.msra.mxu0 %v457
        %3372 = vmatprep.subr.bf16.mxu0 %v460
        %3373 = vmatpush1.bf16.msra.mxu0 %v459
        %3374 = vmatprep.subr.bf16.mxu0 %v462
        %3375 = vmatpush1.bf16.msra.mxu0 %v461
        %3376 = vmatprep.subr.bf16.mxu0 %v464
        %3377 = vmatpush1.bf16.msra.mxu0 %v463
        %3378 = vmatprep.subr.bf16.mxu0 %v466
        %3379 = vmatpush1.bf16.msra.mxu0 %v465
        %3380 = vmatprep.subr.bf16.mxu0 %v468
        %3381 = vmatpush1.bf16.msra.mxu0 %v467
        %3382 = vmatprep.mubr.bf16.mxu0 %v925
        %3383 = vmatmul.mubr.bf16.gmra.mrb[0].mxu0 %v918
        %v3384 = vpop.f32.mrb[0].mxu0
        %v3385 = vadd.f32 0.0, %v3384
        %v3386 = vpop.f32.mrb[0].mxu0
        %v3387 = vadd.f32 0.0, %v3386
        %v3388 = vpop.f32.mrb[0].mxu0
        %v3389 = vpop.f32.mrb[0].mxu0
        %3390 = vdwg.mxu0
        %3391 = vmatprep.subr.bf16.mxu0 %v470
        %3392 = vmatpush1.bf16.msra.mxu0 %v469
        %3393 = vmatprep.subr.bf16.mxu0 %v516
        %3394 = vmatpush1.bf16.msra.mxu0 %v513
        %3395 = vmatprep.subr.bf16.mxu0 0
        %3396 = vmatpush1.bf16.msra.mxu0 0
        %3397 = vmatprep.subr.bf16.mxu0 0
        %3398 = vmatpush1.bf16.msra.mxu0 0
        %3399 = vmatprep.subr.bf16.mxu0 0
        %3400 = vmatpush1.bf16.msra.mxu0 0
        %3401 = vmatprep.subr.bf16.mxu0 0
        %3402 = vmatpush1.bf16.msra.mxu0 0
        %3403 = vmatprep.subr.bf16.mxu0 0
        %3404 = vmatpush1.bf16.msra.mxu0 0
        %3405 = vmatprep.subr.bf16.mxu0 0
        %3406 = vmatpush1.bf16.msra.mxu0 0
        %3407 = vmatprep.subr.bf16.mxu0 0
        %3408 = vmatpush1.bf16.msra.mxu0 0
        %3409 = vmatprep.subr.bf16.mxu0 0
        %3410 = vmatpush1.bf16.msra.mxu0 0
        %3411 = vmatprep.subr.bf16.mxu0 0
        %3412 = vmatpush1.bf16.msra.mxu0 0
        %3413 = vmatprep.subr.bf16.mxu0 0
        %3414 = vmatpush1.bf16.msra.mxu0 0
        %3415 = vmatprep.subr.bf16.mxu0 0
        %3416 = vmatpush1.bf16.msra.mxu0 0
        %3417 = vmatprep.subr.bf16.mxu0 0
        %3418 = vmatpush1.bf16.msra.mxu0 0
        %3419 = vmatprep.subr.bf16.mxu0 0
        %3420 = vmatpush1.bf16.msra.mxu0 0
        %3421 = vmatprep.subr.bf16.mxu0 0
        %3422 = vmatpush1.bf16.msra.mxu0 0
        %3423 = vmatprep.mubr.bf16.mxu0 0
        %3424 = vmatmul.mubr.bf16.gmra.mrb[0].mxu0 %v1110
        %v3425 = vpop.f32.mrb[0].mxu0
        %v3426 = vadd.f32 %v3385, %v3425
        %v3427 = vpop.f32.mrb[0].mxu0
        %v3428 = vadd.f32 %v3387, %v3427
        %v3429 = vpop.f32.mrb[0].mxu0
        %v3430 = vpop.f32.mrb[0].mxu0
        %3431 = vdwg.mxu0
        %3432 = vmatprep.subr.bf16.mxu0 %v716
        %3433 = vmatpush1.bf16.msra.mxu0 %v715
        %3434 = vmatprep.subr.bf16.mxu0 %v718
        %3435 = vmatpush1.bf16.msra.mxu0 %v717
        %3436 = vmatprep.subr.bf16.mxu0 %v720
        %3437 = vmatpush1.bf16.msra.mxu0 %v719
        %3438 = vmatprep.subr.bf16.mxu0 %v722
        %3439 = vmatpush1.bf16.msra.mxu0 %v721
        %3440 = vmatprep.subr.bf16.mxu0 %v724
        %3441 = vmatpush1.bf16.msra.mxu0 %v723
        %3442 = vmatprep.subr.bf16.mxu0 %v726
        %3443 = vmatpush1.bf16.msra.mxu0 %v725
        %3444 = vmatprep.subr.bf16.mxu0 %v728
        %3445 = vmatpush1.bf16.msra.mxu0 %v727
        %3446 = vmatprep.subr.bf16.mxu0 %v730
        %3447 = vmatpush1.bf16.msra.mxu0 %v729
        %3448 = vmatprep.subr.bf16.mxu0 %v732
        %3449 = vmatpush1.bf16.msra.mxu0 %v731
        %3450 = vmatprep.subr.bf16.mxu0 %v734
        %3451 = vmatpush1.bf16.msra.mxu0 %v733
        %3452 = vmatprep.subr.bf16.mxu0 %v736
        %3453 = vmatpush1.bf16.msra.mxu0 %v735
        %3454 = vmatprep.subr.bf16.mxu0 %v738
        %3455 = vmatpush1.bf16.msra.mxu0 %v737
        %3456 = vmatprep.subr.bf16.mxu0 %v740
        %3457 = vmatpush1.bf16.msra.mxu0 %v739
        %3458 = vmatprep.subr.bf16.mxu0 %v742
        %3459 = vmatpush1.bf16.msra.mxu0 %v741
        %3460 = vmatprep.subr.bf16.mxu0 %v744
        %3461 = vmatpush1.bf16.msra.mxu0 %v743
        %3462 = vmatprep.subr.bf16.mxu0 %v746
        %3463 = vmatpush1.bf16.msra.mxu0 %v745
        %3464 = vmatprep.mubr.bf16.mxu0 %v328
        %3465 = vmatmul.mubr.bf16.gmra.mrb[0].mxu0 %v327
        %v3466 = vpop.f32.mrb[0].mxu0
        %v3467 = vadd.f32 %v3426, %v3466
        %v3468 = vpop.f32.mrb[0].mxu0
        %v3469 = vadd.f32 %v3428, %v3468
        %v3470 = vpop.f32.mrb[0].mxu0
        %v3471 = vpop.f32.mrb[0].mxu0
        %3472 = vdwg.mxu0
        %3473 = vmatprep.subr.bf16.mxu0 %v748
        %3474 = vmatpush1.bf16.msra.mxu0 %v747
        %3475 = vmatprep.subr.bf16.mxu0 %v792
        %3476 = vmatpush1.bf16.msra.mxu0 %v789
        %3477 = vmatprep.subr.bf16.mxu0 0
        %3478 = vmatpush1.bf16.msra.mxu0 0
        %3479 = vmatprep.subr.bf16.mxu0 0
        %3480 = vmatpush1.bf16.msra.mxu0 0
        %3481 = vmatprep.subr.bf16.mxu0 0
        %3482 = vmatpush1.bf16.msra.mxu0 0
        %3483 = vmatprep.subr.bf16.mxu0 0
        %3484 = vmatpush1.bf16.msra.mxu0 0
        %3485 = vmatprep.subr.bf16.mxu0 0
        %3486 = vmatpush1.bf16.msra.mxu0 0
        %3487 = vmatprep.subr.bf16.mxu0 0
        %3488 = vmatpush1.bf16.msra.mxu0 0
        %3489 = vmatprep.subr.bf16.mxu0 0
        %3490 = vmatpush1.bf16.msra.mxu0 0
        %3491 = vmatprep.subr.bf16.mxu0 0
        %3492 = vmatpush1.bf16.msra.mxu0 0
        %3493 = vmatprep.subr.bf16.mxu0 0
        %3494 = vmatpush1.bf16.msra.mxu0 0
        %3495 = vmatprep.subr.bf16.mxu0 0
        %3496 = vmatpush1.bf16.msra.mxu0 0
        %3497 = vmatprep.subr.bf16.mxu0 0
        %3498 = vmatpush1.bf16.msra.mxu0 0
        %3499 = vmatprep.subr.bf16.mxu0 0
        %3500 = vmatpush1.bf16.msra.mxu0 0
        %3501 = vmatprep.subr.bf16.mxu0 0
        %3502 = vmatpush1.bf16.msra.mxu0 0
        %3503 = vmatprep.subr.bf16.mxu0 0
        %3504 = vmatpush1.bf16.msra.mxu0 0
        %3505 = vmatprep.mubr.bf16.mxu0 0
        %3506 = vmatmul.mubr.bf16.gmra.mrb[0].mxu0 %v509
        %v3507 = vpop.f32.mrb[0].mxu0
        %v3508 = vadd.f32 %v3467, %v3507
        %v3509 = vpop.f32.mrb[0].mxu0
        %v3510 = vadd.f32 %v3469, %v3509
        %v3511 = vpop.f32.mrb[0].mxu0
        %v3512 = vpop.f32.mrb[0].mxu0
        %3513 = vdwg.mxu0
        %3514 = vmatprep.subr.bf16.mxu0 %v1040
        %3515 = vmatpush1.bf16.msra.mxu0 %v1039
        %3516 = vmatprep.subr.bf16.mxu0 %v1042
        %3517 = vmatpush1.bf16.msra.mxu0 %v1041
        %3518 = vmatprep.subr.bf16.mxu0 %v1044
        %3519 = vmatpush1.bf16.msra.mxu0 %v1043
        %3520 = vmatprep.subr.bf16.mxu0 %v1046
        %3521 = vmatpush1.bf16.msra.mxu0 %v1045
        %3522 = vmatprep.subr.bf16.mxu0 %v1048
        %3523 = vmatpush1.bf16.msra.mxu0 %v1047
        %3524 = vmatprep.subr.bf16.mxu0 %v1050
        %3525 = vmatpush1.bf16.msra.mxu0 %v1049
        %3526 = vmatprep.subr.bf16.mxu0 %v1052
        %3527 = vmatpush1.bf16.msra.mxu0 %v1051
        %3528 = vmatprep.subr.bf16.mxu0 %v1054
        %3529 = vmatpush1.bf16.msra.mxu0 %v1053
        %3530 = vmatprep.subr.bf16.mxu0 %v1056
        %3531 = vmatpush1.bf16.msra.mxu0 %v1055
        %3532 = vmatprep.subr.bf16.mxu0 %v1058
        %3533 = vmatpush1.bf16.msra.mxu0 %v1057
        %3534 = vmatprep.subr.bf16.mxu0 %v1060
        %3535 = vmatpush1.bf16.msra.mxu0 %v1059
        %3536 = vmatprep.subr.bf16.mxu0 %v1062
        %3537 = vmatpush1.bf16.msra.mxu0 %v1061
        %3538 = vmatprep.subr.bf16.mxu0 %v1064
        %3539 = vmatpush1.bf16.msra.mxu0 %v1063
        %3540 = vmatprep.subr.bf16.mxu0 %v1066
        %3541 = vmatpush1.bf16.msra.mxu0 %v1065
        %3542 = vmatprep.subr.bf16.mxu0 %v1068
        %3543 = vmatpush1.bf16.msra.mxu0 %v1067
        %3544 = vmatprep.subr.bf16.mxu0 %v1070
        %3545 = vmatpush1.bf16.msra.mxu0 %v1069
        %3546 = vmatprep.mubr.bf16.mxu0 %v1251
        %3547 = vmatmul.mubr.bf16.gmra.mrb[0].mxu0 %v1244
        %v3548 = vpop.f32.mrb[0].mxu0
        %v3549 = vadd.f32 0.0, %v3548
        %v3550 = vpop.f32.mrb[0].mxu0
        %v3551 = vadd.f32 0.0, %v3550
        %v3552 = vpop.f32.mrb[0].mxu0
        %v3553 = vpop.f32.mrb[0].mxu0
        %3554 = vdwg.mxu0
        %3555 = vmatprep.subr.bf16.mxu0 %v1072
        %3556 = vmatpush1.bf16.msra.mxu0 %v1071
        %3557 = vmatprep.subr.bf16.mxu0 %v1116
        %3558 = vmatpush1.bf16.msra.mxu0 %v1113
        %3559 = vmatprep.subr.bf16.mxu0 0
        %3560 = vmatpush1.bf16.msra.mxu0 0
        %3561 = vmatprep.subr.bf16.mxu0 0
        %3562 = vmatpush1.bf16.msra.mxu0 0
        %3563 = vmatprep.subr.bf16.mxu0 0
        %3564 = vmatpush1.bf16.msra.mxu0 0
        %3565 = vmatprep.subr.bf16.mxu0 0
        %3566 = vmatpush1.bf16.msra.mxu0 0
        %3567 = vmatprep.subr.bf16.mxu0 0
        %3568 = vmatpush1.bf16.msra.mxu0 0
        %3569 = vmatprep.subr.bf16.mxu0 0
        %3570 = vmatpush1.bf16.msra.mxu0 0
        %3571 = vmatprep.subr.bf16.mxu0 0
        %3572 = vmatpush1.bf16.msra.mxu0 0
        %3573 = vmatprep.subr.bf16.mxu0 0
        %3574 = vmatpush1.bf16.msra.mxu0 0
        %3575 = vmatprep.subr.bf16.mxu0 0
        %3576 = vmatpush1.bf16.msra.mxu0 0
        %3577 = vmatprep.subr.bf16.mxu0 0
        %3578 = vmatpush1.bf16.msra.mxu0 0
        %3579 = vmatprep.subr.bf16.mxu0 0
        %3580 = vmatpush1.bf16.msra.mxu0 0
        %3581 = vmatprep.subr.bf16.mxu0 0
        %3582 = vmatpush1.bf16.msra.mxu0 0
        %3583 = vmatprep.subr.bf16.mxu0 0
        %3584 = vmatpush1.bf16.msra.mxu0 0
        %3585 = vmatprep.subr.bf16.mxu0 0
        %3586 = vmatpush1.bf16.msra.mxu0 0
        %3587 = vmatprep.mubr.bf16.mxu0 0
        %3588 = vmatmul.mubr.bf16.gmra.mrb[0].mxu0 %v1436
        %v3589 = vpop.f32.mrb[0].mxu0
        %v3590 = vadd.f32 %v3549, %v3589
        %v3591 = vpop.f32.mrb[0].mxu0
        %v3592 = vadd.f32 %v3551, %v3591
        %v3593 = vpop.f32.mrb[0].mxu0
        %v3594 = vpop.f32.mrb[0].mxu0
        %3595 = vdwg.mxu0
        %v3596 = vadd.f32 %v3508, %v3590
        %v3597 = vadd.f32 %v3510, %v3592
        %3598 = vmatprep.subr.bf16.mxu0 %v1366
        %3599 = vmatpush1.bf16.msra.mxu0 %v1365
        %3600 = vmatprep.subr.bf16.mxu0 %v1368
        %3601 = vmatpush1.bf16.msra.mxu0 %v1367
        %3602 = vmatprep.subr.bf16.mxu0 %v1370
        %3603 = vmatpush1.bf16.msra.mxu0 %v1369
        %3604 = vmatprep.subr.bf16.mxu0 %v1372
        %3605 = vmatpush1.bf16.msra.mxu0 %v1371
        %3606 = vmatprep.subr.bf16.mxu0 %v1374
        %3607 = vmatpush1.bf16.msra.mxu0 %v1373
        %3608 = vmatprep.subr.bf16.mxu0 %v1376
        %3609 = vmatpush1.bf16.msra.mxu0 %v1375
        %3610 = vmatprep.subr.bf16.mxu0 %v1378
        %3611 = vmatpush1.bf16.msra.mxu0 %v1377
        %3612 = vmatprep.subr.bf16.mxu0 %v1380
        %3613 = vmatpush1.bf16.msra.mxu0 %v1379
        %3614 = vmatprep.subr.bf16.mxu0 %v1382
        %3615 = vmatpush1.bf16.msra.mxu0 %v1381
        %3616 = vmatprep.subr.bf16.mxu0 %v1384
        %3617 = vmatpush1.bf16.msra.mxu0 %v1383
        %3618 = vmatprep.subr.bf16.mxu0 %v1386
        %3619 = vmatpush1.bf16.msra.mxu0 %v1385
        %3620 = vmatprep.subr.bf16.mxu0 %v1388
        %3621 = vmatpush1.bf16.msra.mxu0 %v1387
        %3622 = vmatprep.subr.bf16.mxu0 %v1390
        %3623 = vmatpush1.bf16.msra.mxu0 %v1389
        %3624 = vmatprep.subr.bf16.mxu0 %v1392
        %3625 = vmatpush1.bf16.msra.mxu0 %v1391
        %3626 = vmatprep.subr.bf16.mxu0 %v1394
        %3627 = vmatpush1.bf16.msra.mxu0 %v1393
        %3628 = vmatprep.subr.bf16.mxu0 %v1396
        %3629 = vmatpush1.bf16.msra.mxu0 %v1395
        %3630 = vmatprep.mubr.bf16.mxu0 %v1575
        %3631 = vmatmul.mubr.bf16.gmra.mrb[0].mxu0 %v1574
        %v3632 = vpop.f32.mrb[0].mxu0
        %v3633 = vadd.f32 0.0, %v3632
        %v3634 = vpop.f32.mrb[0].mxu0
        %v3635 = vadd.f32 0.0, %v3634
        %v3636 = vpop.f32.mrb[0].mxu0
        %v3637 = vpop.f32.mrb[0].mxu0
        %3638 = vdwg.mxu0
        %3639 = vmatprep.subr.bf16.mxu0 %v1398
        %3640 = vmatpush1.bf16.msra.mxu0 %v1397
        %3641 = vmatprep.subr.bf16.mxu0 %v1442
        %3642 = vmatpush1.bf16.msra.mxu0 %v1439
        %3643 = vmatprep.subr.bf16.mxu0 0
        %3644 = vmatpush1.bf16.msra.mxu0 0
        %3645 = vmatprep.subr.bf16.mxu0 0
        %3646 = vmatpush1.bf16.msra.mxu0 0
        %3647 = vmatprep.subr.bf16.mxu0 0
        %3648 = vmatpush1.bf16.msra.mxu0 0
        %3649 = vmatprep.subr.bf16.mxu0 0
        %3650 = vmatpush1.bf16.msra.mxu0 0
        %3651 = vmatprep.subr.bf16.mxu0 0
        %3652 = vmatpush1.bf16.msra.mxu0 0
        %3653 = vmatprep.subr.bf16.mxu0 0
        %3654 = vmatpush1.bf16.msra.mxu0 0
        %3655 = vmatprep.subr.bf16.mxu0 0
        %3656 = vmatpush1.bf16.msra.mxu0 0
        %3657 = vmatprep.subr.bf16.mxu0 0
        %3658 = vmatpush1.bf16.msra.mxu0 0
        %3659 = vmatprep.subr.bf16.mxu0 0
        %3660 = vmatpush1.bf16.msra.mxu0 0
        %3661 = vmatprep.subr.bf16.mxu0 0
        %3662 = vmatpush1.bf16.msra.mxu0 0
        %3663 = vmatprep.subr.bf16.mxu0 0
        %3664 = vmatpush1.bf16.msra.mxu0 0
        %3665 = vmatprep.subr.bf16.mxu0 0
        %3666 = vmatpush1.bf16.msra.mxu0 0
        %3667 = vmatprep.subr.bf16.mxu0 0
        %3668 = vmatpush1.bf16.msra.mxu0 0
        %3669 = vmatprep.subr.bf16.mxu0 0
        %3670 = vmatpush1.bf16.msra.mxu0 0
        %3671 = vmatprep.mubr.bf16.mxu0 0
        %3672 = vmatmul.mubr.bf16.gmra.mrb[0].mxu0 %v1755
        %v3673 = vpop.f32.mrb[0].mxu0
        %v3674 = vadd.f32 %v3633, %v3673
        %v3675 = vpop.f32.mrb[0].mxu0
        %v3676 = vadd.f32 %v3635, %v3675
        %v3677 = vpop.f32.mrb[0].mxu0
        %v3678 = vpop.f32.mrb[0].mxu0
        %3679 = vdwg.mxu0
        %v3680 = vadd.f32 %v3596, %v3674
        %v3681 = vadd.f32 %v3597, %v3676
        %v3682 = vld [vmem:[%s240] sm:$0xee]
        %v3683 = vld [vmem:[%s240 + $0x8] sm:$0xe]
        %v3686 = vunpack.c.l.b16 %v3682
        %v3687 = vunpack.c.h.b16 %v3682
        %v3688 = vunpack.c.l.b16 %v3683
        %v3689 = vpack.c.b16 %v3686, %v3686
        %v3690 = vpack.c.b16 %v3687, %v3687
        %v3691 = vpack.c.b16 %v3688, %v3688
        %v3692 = vrot.slane %v3689, 1
        %v3693 = vrot.slane %v3690, 1
        %v3694 = vrot.slane %v3691, 1
        %v3698 = vsel %vm507, %v3694, 0
        %3700 = vmatprep.subr.bf16.mxu0 %v1685
        %3701 = vmatpush1.bf16.msra.mxu0 %v1684
        %3702 = vmatprep.subr.bf16.mxu0 %v1687
        %3703 = vmatpush1.bf16.msra.mxu0 %v1686
        %3704 = vmatprep.subr.bf16.mxu0 %v1689
        %3705 = vmatpush1.bf16.msra.mxu0 %v1688
        %3706 = vmatprep.subr.bf16.mxu0 %v1691
        %3707 = vmatpush1.bf16.msra.mxu0 %v1690
        %3708 = vmatprep.subr.bf16.mxu0 %v1693
        %3709 = vmatpush1.bf16.msra.mxu0 %v1692
        %3710 = vmatprep.subr.bf16.mxu0 %v1695
        %3711 = vmatpush1.bf16.msra.mxu0 %v1694
        %3712 = vmatprep.subr.bf16.mxu0 %v1697
        %3713 = vmatpush1.bf16.msra.mxu0 %v1696
        %3714 = vmatprep.subr.bf16.mxu0 %v1699
        %3715 = vmatpush1.bf16.msra.mxu0 %v1698
        %3716 = vmatprep.subr.bf16.mxu0 %v1701
        %3717 = vmatpush1.bf16.msra.mxu0 %v1700
        %3718 = vmatprep.subr.bf16.mxu0 %v1703
        %3719 = vmatpush1.bf16.msra.mxu0 %v1702
        %3720 = vmatprep.subr.bf16.mxu0 %v1705
        %3721 = vmatpush1.bf16.msra.mxu0 %v1704
        %3722 = vmatprep.subr.bf16.mxu0 %v1707
        %3723 = vmatpush1.bf16.msra.mxu0 %v1706
        %3724 = vmatprep.subr.bf16.mxu0 %v1709
        %3725 = vmatpush1.bf16.msra.mxu0 %v1708
        %3726 = vmatprep.subr.bf16.mxu0 %v1711
        %3727 = vmatpush1.bf16.msra.mxu0 %v1710
        %3728 = vmatprep.subr.bf16.mxu0 %v1713
        %3729 = vmatpush1.bf16.msra.mxu0 %v1712
        %3730 = vmatprep.subr.bf16.mxu0 %v1715
        %3731 = vmatpush1.bf16.msra.mxu0 %v1714
        %3732 = vmatprep.mubr.bf16.mxu0 %v3693
        %3733 = vmatmul.mubr.bf16.gmra.mrb[0].mxu0 %v3692
        %v3734 = vpop.f32.mrb[0].mxu0
        %v3735 = vadd.f32 0.0, %v3734
        %v3736 = vpop.f32.mrb[0].mxu0
        %v3737 = vadd.f32 0.0, %v3736
        %v3738 = vpop.f32.mrb[0].mxu0
        %v3739 = vpop.f32.mrb[0].mxu0
        %3740 = vdwg.mxu0
        %3741 = vmatprep.subr.bf16.mxu0 %v1717
        %3742 = vmatpush1.bf16.msra.mxu0 %v1716
        %3743 = vmatprep.subr.bf16.mxu0 %v1761
        %3744 = vmatpush1.bf16.msra.mxu0 %v1758
        %3745 = vmatprep.subr.bf16.mxu0 0
        %3746 = vmatpush1.bf16.msra.mxu0 0
        %3747 = vmatprep.subr.bf16.mxu0 0
        %3748 = vmatpush1.bf16.msra.mxu0 0
        %3749 = vmatprep.subr.bf16.mxu0 0
        %3750 = vmatpush1.bf16.msra.mxu0 0
        %3751 = vmatprep.subr.bf16.mxu0 0
        %3752 = vmatpush1.bf16.msra.mxu0 0
        %3753 = vmatprep.subr.bf16.mxu0 0
        %3754 = vmatpush1.bf16.msra.mxu0 0
        %3755 = vmatprep.subr.bf16.mxu0 0
        %3756 = vmatpush1.bf16.msra.mxu0 0
        %3757 = vmatprep.subr.bf16.mxu0 0
        %3758 = vmatpush1.bf16.msra.mxu0 0
        %3759 = vmatprep.subr.bf16.mxu0 0
        %3760 = vmatpush1.bf16.msra.mxu0 0
        %3761 = vmatprep.subr.bf16.mxu0 0
        %3762 = vmatpush1.bf16.msra.mxu0 0
        %3763 = vmatprep.subr.bf16.mxu0 0
        %3764 = vmatpush1.bf16.msra.mxu0 0
        %3765 = vmatprep.subr.bf16.mxu0 0
        %3766 = vmatpush1.bf16.msra.mxu0 0
        %3767 = vmatprep.subr.bf16.mxu0 0
        %3768 = vmatpush1.bf16.msra.mxu0 0
        %3769 = vmatprep.subr.bf16.mxu0 0
        %3770 = vmatpush1.bf16.msra.mxu0 0
        %3771 = vmatprep.subr.bf16.mxu0 0
        %3772 = vmatpush1.bf16.msra.mxu0 0
        %3773 = vmatprep.mubr.bf16.mxu0 0
        %3774 = vmatmul.mubr.bf16.gmra.mrb[0].mxu0 %v3698
        %v3775 = vpop.f32.mrb[0].mxu0
        %v3776 = vadd.f32 %v3735, %v3775
        %v3777 = vpop.f32.mrb[0].mxu0
        %v3778 = vadd.f32 %v3737, %v3777
        %v3779 = vpop.f32.mrb[0].mxu0
        %v3780 = vpop.f32.mrb[0].mxu0
        %3781 = vdwg.mxu0
        %v3782 = vadd.f32 %v3680, %v3776
        %v3783 = vadd.f32 %v3681, %v3778
        %v3784 = vmax.f32 %v3348, %v3782
        %v3785 = vmax.f32 %v3349, %v3783
        %3786 = vmatprep.subr.bf16.mxu0 %v2025
        %3787 = vmatpush1.bf16.msra.mxu0 %v2024
        %3788 = vmatprep.subr.bf16.mxu0 %v2027
        %3789 = vmatpush1.bf16.msra.mxu0 %v2026
        %3790 = vmatprep.subr.bf16.mxu0 %v2029
        %3791 = vmatpush1.bf16.msra.mxu0 %v2028
        %3792 = vmatprep.subr.bf16.mxu0 %v2031
        %3793 = vmatpush1.bf16.msra.mxu0 %v2030
        %3794 = vmatprep.subr.bf16.mxu0 %v2033
        %3795 = vmatpush1.bf16.msra.mxu0 %v2032
        %3796 = vmatprep.subr.bf16.mxu0 %v2035
        %3797 = vmatpush1.bf16.msra.mxu0 %v2034
        %3798 = vmatprep.subr.bf16.mxu0 %v2037
        %3799 = vmatpush1.bf16.msra.mxu0 %v2036
        %3800 = vmatprep.subr.bf16.mxu0 %v2039
        %3801 = vmatpush1.bf16.msra.mxu0 %v2038
        %3802 = vmatprep.subr.bf16.mxu0 %v2041
        %3803 = vmatpush1.bf16.msra.mxu0 %v2040
        %3804 = vmatprep.subr.bf16.mxu0 %v2043
        %3805 = vmatpush1.bf16.msra.mxu0 %v2042
        %3806 = vmatprep.subr.bf16.mxu0 %v2045
        %3807 = vmatpush1.bf16.msra.mxu0 %v2044
        %3808 = vmatprep.subr.bf16.mxu0 %v2047
        %3809 = vmatpush1.bf16.msra.mxu0 %v2046
        %3810 = vmatprep.subr.bf16.mxu0 %v2049
        %3811 = vmatpush1.bf16.msra.mxu0 %v2048
        %3812 = vmatprep.subr.bf16.mxu0 %v2051
        %3813 = vmatpush1.bf16.msra.mxu0 %v2050
        %3814 = vmatprep.subr.bf16.mxu0 %v2053
        %3815 = vmatpush1.bf16.msra.mxu0 %v2052
        %3816 = vmatprep.subr.bf16.mxu0 %v2055
        %3817 = vmatpush1.bf16.msra.mxu0 %v2054
        %3818 = vmatprep.mubr.bf16.mxu0 %v925
        %3819 = vmatmul.mubr.bf16.gmra.mrb[0].mxu0 %v918
        %v3820 = vpop.f32.mrb[0].mxu0
        %v3821 = vadd.f32 0.0, %v3820
        %v3822 = vpop.f32.mrb[0].mxu0
        %v3823 = vadd.f32 0.0, %v3822
        %v3824 = vpop.f32.mrb[0].mxu0
        %v3825 = vpop.f32.mrb[0].mxu0
        %3826 = vdwg.mxu0
        %3827 = vmatprep.subr.bf16.mxu0 %v2057
        %3828 = vmatpush1.bf16.msra.mxu0 %v2056
        %3829 = vmatprep.subr.bf16.mxu0 %v2098
        %3830 = vmatpush1.bf16.msra.mxu0 %v2095
        %3831 = vmatprep.subr.bf16.mxu0 0
        %3832 = vmatpush1.bf16.msra.mxu0 0
        %3833 = vmatprep.subr.bf16.mxu0 0
        %3834 = vmatpush1.bf16.msra.mxu0 0
        %3835 = vmatprep.subr.bf16.mxu0 0
        %3836 = vmatpush1.bf16.msra.mxu0 0
        %3837 = vmatprep.subr.bf16.mxu0 0
        %3838 = vmatpush1.bf16.msra.mxu0 0
        %3839 = vmatprep.subr.bf16.mxu0 0
        %3840 = vmatpush1.bf16.msra.mxu0 0
        %3841 = vmatprep.subr.bf16.mxu0 0
        %3842 = vmatpush1.bf16.msra.mxu0 0
        %3843 = vmatprep.subr.bf16.mxu0 0
        %3844 = vmatpush1.bf16.msra.mxu0 0
        %3845 = vmatprep.subr.bf16.mxu0 0
        %3846 = vmatpush1.bf16.msra.mxu0 0
        %3847 = vmatprep.subr.bf16.mxu0 0
        %3848 = vmatpush1.bf16.msra.mxu0 0
        %3849 = vmatprep.subr.bf16.mxu0 0
        %3850 = vmatpush1.bf16.msra.mxu0 0
        %3851 = vmatprep.subr.bf16.mxu0 0
        %3852 = vmatpush1.bf16.msra.mxu0 0
        %3853 = vmatprep.subr.bf16.mxu0 0
        %3854 = vmatpush1.bf16.msra.mxu0 0
        %3855 = vmatprep.subr.bf16.mxu0 0
        %3856 = vmatpush1.bf16.msra.mxu0 0
        %3857 = vmatprep.subr.bf16.mxu0 0
        %3858 = vmatpush1.bf16.msra.mxu0 0
        %3859 = vmatprep.mubr.bf16.mxu0 0
        %3860 = vmatmul.mubr.bf16.gmra.mrb[0].mxu0 %v1110
        %v3861 = vpop.f32.mrb[0].mxu0
        %v3862 = vadd.f32 %v3821, %v3861
        %v3863 = vpop.f32.mrb[0].mxu0
        %v3864 = vadd.f32 %v3823, %v3863
        %v3865 = vpop.f32.mrb[0].mxu0
        %v3866 = vpop.f32.mrb[0].mxu0
        %3867 = vdwg.mxu0
        %3868 = vmatprep.subr.bf16.mxu0 %v2288
        %3869 = vmatpush1.bf16.msra.mxu0 %v2287
        %3870 = vmatprep.subr.bf16.mxu0 %v2290
        %3871 = vmatpush1.bf16.msra.mxu0 %v2289
        %3872 = vmatprep.subr.bf16.mxu0 %v2292
        %3873 = vmatpush1.bf16.msra.mxu0 %v2291
        %3874 = vmatprep.subr.bf16.mxu0 %v2294
        %3875 = vmatpush1.bf16.msra.mxu0 %v2293
        %3876 = vmatprep.subr.bf16.mxu0 %v2296
        %3877 = vmatpush1.bf16.msra.mxu0 %v2295
        %3878 = vmatprep.subr.bf16.mxu0 %v2298
        %3879 = vmatpush1.bf16.msra.mxu0 %v2297
        %3880 = vmatprep.subr.bf16.mxu0 %v2300
        %3881 = vmatpush1.bf16.msra.mxu0 %v2299
        %3882 = vmatprep.subr.bf16.mxu0 %v2302
        %3883 = vmatpush1.bf16.msra.mxu0 %v2301
        %3884 = vmatprep.subr.bf16.mxu0 %v2304
        %3885 = vmatpush1.bf16.msra.mxu0 %v2303
        %3886 = vmatprep.subr.bf16.mxu0 %v2306
        %3887 = vmatpush1.bf16.msra.mxu0 %v2305
        %3888 = vmatprep.subr.bf16.mxu0 %v2308
        %3889 = vmatpush1.bf16.msra.mxu0 %v2307
        %3890 = vmatprep.subr.bf16.mxu0 %v2310
        %3891 = vmatpush1.bf16.msra.mxu0 %v2309
        %3892 = vmatprep.subr.bf16.mxu0 %v2312
        %3893 = vmatpush1.bf16.msra.mxu0 %v2311
        %3894 = vmatprep.subr.bf16.mxu0 %v2314
        %3895 = vmatpush1.bf16.msra.mxu0 %v2313
        %3896 = vmatprep.subr.bf16.mxu0 %v2316
        %3897 = vmatpush1.bf16.msra.mxu0 %v2315
        %3898 = vmatprep.subr.bf16.mxu0 %v2318
        %3899 = vmatpush1.bf16.msra.mxu0 %v2317
        %3900 = vmatprep.mubr.bf16.mxu0 %v328
        %3901 = vmatmul.mubr.bf16.gmra.mrb[0].mxu0 %v327
        %v3902 = vpop.f32.mrb[0].mxu0
        %v3903 = vadd.f32 %v3862, %v3902
        %v3904 = vpop.f32.mrb[0].mxu0
        %v3905 = vadd.f32 %v3864, %v3904
        %v3906 = vpop.f32.mrb[0].mxu0
        %v3907 = vpop.f32.mrb[0].mxu0
        %3908 = vdwg.mxu0
        %3909 = vmatprep.subr.bf16.mxu0 %v2320
        %3910 = vmatpush1.bf16.msra.mxu0 %v2319
        %3911 = vmatprep.subr.bf16.mxu0 %v2361
        %3912 = vmatpush1.bf16.msra.mxu0 %v2358
        %3913 = vmatprep.subr.bf16.mxu0 0
        %3914 = vmatpush1.bf16.msra.mxu0 0
        %3915 = vmatprep.subr.bf16.mxu0 0
        %3916 = vmatpush1.bf16.msra.mxu0 0
        %3917 = vmatprep.subr.bf16.mxu0 0
        %3918 = vmatpush1.bf16.msra.mxu0 0
        %3919 = vmatprep.subr.bf16.mxu0 0
        %3920 = vmatpush1.bf16.msra.mxu0 0
        %3921 = vmatprep.subr.bf16.mxu0 0
        %3922 = vmatpush1.bf16.msra.mxu0 0
        %3923 = vmatprep.subr.bf16.mxu0 0
        %3924 = vmatpush1.bf16.msra.mxu0 0
        %3925 = vmatprep.subr.bf16.mxu0 0
        %3926 = vmatpush1.bf16.msra.mxu0 0
        %3927 = vmatprep.subr.bf16.mxu0 0
        %3928 = vmatpush1.bf16.msra.mxu0 0
        %3929 = vmatprep.subr.bf16.mxu0 0
        %3930 = vmatpush1.bf16.msra.mxu0 0
        %3931 = vmatprep.subr.bf16.mxu0 0
        %3932 = vmatpush1.bf16.msra.mxu0 0
        %3933 = vmatprep.subr.bf16.mxu0 0
        %3934 = vmatpush1.bf16.msra.mxu0 0
        %3935 = vmatprep.subr.bf16.mxu0 0
        %3936 = vmatpush1.bf16.msra.mxu0 0
        %3937 = vmatprep.subr.bf16.mxu0 0
        %3938 = vmatpush1.bf16.msra.mxu0 0
        %3939 = vmatprep.subr.bf16.mxu0 0
        %3940 = vmatpush1.bf16.msra.mxu0 0
        %3941 = vmatprep.mubr.bf16.mxu0 0
        %3942 = vmatmul.mubr.bf16.gmra.mrb[0].mxu0 %v509
        %v3943 = vpop.f32.mrb[0].mxu0
        %v3944 = vadd.f32 %v3903, %v3943
        %v3945 = vpop.f32.mrb[0].mxu0
        %v3946 = vadd.f32 %v3905, %v3945
        %v3947 = vpop.f32.mrb[0].mxu0
        %v3948 = vpop.f32.mrb[0].mxu0
        %3949 = vdwg.mxu0
        %3950 = vmatprep.subr.bf16.mxu0 %v2587
        %3951 = vmatpush1.bf16.msra.mxu0 %v2586
        %3952 = vmatprep.subr.bf16.mxu0 %v2589
        %3953 = vmatpush1.bf16.msra.mxu0 %v2588
        %3954 = vmatprep.subr.bf16.mxu0 %v2591
        %3955 = vmatpush1.bf16.msra.mxu0 %v2590
        %3956 = vmatprep.subr.bf16.mxu0 %v2593
        %3957 = vmatpush1.bf16.msra.mxu0 %v2592
        %3958 = vmatprep.subr.bf16.mxu0 %v2595
        %3959 = vmatpush1.bf16.msra.mxu0 %v2594
        %3960 = vmatprep.subr.bf16.mxu0 %v2597
        %3961 = vmatpush1.bf16.msra.mxu0 %v2596
        %3962 = vmatprep.subr.bf16.mxu0 %v2599
        %3963 = vmatpush1.bf16.msra.mxu0 %v2598
        %3964 = vmatprep.subr.bf16.mxu0 %v2601
        %3965 = vmatpush1.bf16.msra.mxu0 %v2600
        %3966 = vmatprep.subr.bf16.mxu0 %v2603
        %3967 = vmatpush1.bf16.msra.mxu0 %v2602
        %3968 = vmatprep.subr.bf16.mxu0 %v2605
        %3969 = vmatpush1.bf16.msra.mxu0 %v2604
        %3970 = vmatprep.subr.bf16.mxu0 %v2607
        %3971 = vmatpush1.bf16.msra.mxu0 %v2606
        %3972 = vmatprep.subr.bf16.mxu0 %v2609
        %3973 = vmatpush1.bf16.msra.mxu0 %v2608
        %3974 = vmatprep.subr.bf16.mxu0 %v2611
        %3975 = vmatpush1.bf16.msra.mxu0 %v2610
        %3976 = vmatprep.subr.bf16.mxu0 %v2613
        %3977 = vmatpush1.bf16.msra.mxu0 %v2612
        %3978 = vmatprep.subr.bf16.mxu0 %v2615
        %3979 = vmatpush1.bf16.msra.mxu0 %v2614
        %3980 = vmatprep.subr.bf16.mxu0 %v2617
        %3981 = vmatpush1.bf16.msra.mxu0 %v2616
        %3982 = vmatprep.mubr.bf16.mxu0 %v1251
        %3983 = vmatmul.mubr.bf16.gmra.mrb[0].mxu0 %v1244
        %v3984 = vpop.f32.mrb[0].mxu0
        %v3985 = vadd.f32 0.0, %v3984
        %v3986 = vpop.f32.mrb[0].mxu0
        %v3987 = vadd.f32 0.0, %v3986
        %v3988 = vpop.f32.mrb[0].mxu0
        %v3989 = vpop.f32.mrb[0].mxu0
        %3990 = vdwg.mxu0
        %3991 = vmatprep.subr.bf16.mxu0 %v2619
        %3992 = vmatpush1.bf16.msra.mxu0 %v2618
        %3993 = vmatprep.subr.bf16.mxu0 %v2660
        %3994 = vmatpush1.bf16.msra.mxu0 %v2657
        %3995 = vmatprep.subr.bf16.mxu0 0
        %3996 = vmatpush1.bf16.msra.mxu0 0
        %3997 = vmatprep.subr.bf16.mxu0 0
        %3998 = vmatpush1.bf16.msra.mxu0 0
        %3999 = vmatprep.subr.bf16.mxu0 0
        %4000 = vmatpush1.bf16.msra.mxu0 0
        %4001 = vmatprep.subr.bf16.mxu0 0
        %4002 = vmatpush1.bf16.msra.mxu0 0
        %4003 = vmatprep.subr.bf16.mxu0 0
        %4004 = vmatpush1.bf16.msra.mxu0 0
        %4005 = vmatprep.subr.bf16.mxu0 0
        %4006 = vmatpush1.bf16.msra.mxu0 0
        %4007 = vmatprep.subr.bf16.mxu0 0
        %4008 = vmatpush1.bf16.msra.mxu0 0
        %4009 = vmatprep.subr.bf16.mxu0 0
        %4010 = vmatpush1.bf16.msra.mxu0 0
        %4011 = vmatprep.subr.bf16.mxu0 0
        %4012 = vmatpush1.bf16.msra.mxu0 0
        %4013 = vmatprep.subr.bf16.mxu0 0
        %4014 = vmatpush1.bf16.msra.mxu0 0
        %4015 = vmatprep.subr.bf16.mxu0 0
        %4016 = vmatpush1.bf16.msra.mxu0 0
        %4017 = vmatprep.subr.bf16.mxu0 0
        %4018 = vmatpush1.bf16.msra.mxu0 0
        %4019 = vmatprep.subr.bf16.mxu0 0
        %4020 = vmatpush1.bf16.msra.mxu0 0
        %4021 = vmatprep.subr.bf16.mxu0 0
        %4022 = vmatpush1.bf16.msra.mxu0 0
        %4023 = vmatprep.mubr.bf16.mxu0 0
        %4024 = vmatmul.mubr.bf16.gmra.mrb[0].mxu0 %v1436
        %v4025 = vpop.f32.mrb[0].mxu0
        %v4026 = vadd.f32 %v3985, %v4025
        %v4027 = vpop.f32.mrb[0].mxu0
        %v4028 = vadd.f32 %v3987, %v4027
        %v4029 = vpop.f32.mrb[0].mxu0
        %v4030 = vpop.f32.mrb[0].mxu0
        %4031 = vdwg.mxu0
        %v4032 = vadd.f32 %v3944, %v4026
        %v4033 = vadd.f32 %v3946, %v4028
        %4034 = vmatprep.subr.bf16.mxu0 %v2888
        %4035 = vmatpush1.bf16.msra.mxu0 %v2887
        %4036 = vmatprep.subr.bf16.mxu0 %v2890
        %4037 = vmatpush1.bf16.msra.mxu0 %v2889
        %4038 = vmatprep.subr.bf16.mxu0 %v2892
        %4039 = vmatpush1.bf16.msra.mxu0 %v2891
        %4040 = vmatprep.subr.bf16.mxu0 %v2894
        %4041 = vmatpush1.bf16.msra.mxu0 %v2893
        %4042 = vmatprep.subr.bf16.mxu0 %v2896
        %4043 = vmatpush1.bf16.msra.mxu0 %v2895
        %4044 = vmatprep.subr.bf16.mxu0 %v2898
        %4045 = vmatpush1.bf16.msra.mxu0 %v2897
        %4046 = vmatprep.subr.bf16.mxu0 %v2900
        %4047 = vmatpush1.bf16.msra.mxu0 %v2899
        %4048 = vmatprep.subr.bf16.mxu0 %v2902
        %4049 = vmatpush1.bf16.msra.mxu0 %v2901
        %4050 = vmatprep.subr.bf16.mxu0 %v2904
        %4051 = vmatpush1.bf16.msra.mxu0 %v2903
        %4052 = vmatprep.subr.bf16.mxu0 %v2906
        %4053 = vmatpush1.bf16.msra.mxu0 %v2905
        %4054 = vmatprep.subr.bf16.mxu0 %v2908
        %4055 = vmatpush1.bf16.msra.mxu0 %v2907
        %4056 = vmatprep.subr.bf16.mxu0 %v2910
        %4057 = vmatpush1.bf16.msra.mxu0 %v2909
        %4058 = vmatprep.subr.bf16.mxu0 %v2912
        %4059 = vmatpush1.bf16.msra.mxu0 %v2911
        %4060 = vmatprep.subr.bf16.mxu0 %v2914
        %4061 = vmatpush1.bf16.msra.mxu0 %v2913
        %4062 = vmatprep.subr.bf16.mxu0 %v2916
        %4063 = vmatpush1.bf16.msra.mxu0 %v2915
        %4064 = vmatprep.subr.bf16.mxu0 %v2918
        %4065 = vmatpush1.bf16.msra.mxu0 %v2917
        %4066 = vmatprep.mubr.bf16.mxu0 %v1575
        %4067 = vmatmul.mubr.bf16.gmra.mrb[0].mxu0 %v1574
        %v4068 = vpop.f32.mrb[0].mxu0
        %v4069 = vadd.f32 0.0, %v4068
        %v4070 = vpop.f32.mrb[0].mxu0
        %v4071 = vadd.f32 0.0, %v4070
        %v4072 = vpop.f32.mrb[0].mxu0
        %v4073 = vpop.f32.mrb[0].mxu0
        %4074 = vdwg.mxu0
        %4075 = vmatprep.subr.bf16.mxu0 %v2920
        %4076 = vmatpush1.bf16.msra.mxu0 %v2919
        %4077 = vmatprep.subr.bf16.mxu0 %v2961
        %4078 = vmatpush1.bf16.msra.mxu0 %v2958
        %4079 = vmatprep.subr.bf16.mxu0 0
        %4080 = vmatpush1.bf16.msra.mxu0 0
        %4081 = vmatprep.subr.bf16.mxu0 0
        %4082 = vmatpush1.bf16.msra.mxu0 0
        %4083 = vmatprep.subr.bf16.mxu0 0
        %4084 = vmatpush1.bf16.msra.mxu0 0
        %4085 = vmatprep.subr.bf16.mxu0 0
        %4086 = vmatpush1.bf16.msra.mxu0 0
        %4087 = vmatprep.subr.bf16.mxu0 0
        %4088 = vmatpush1.bf16.msra.mxu0 0
        %4089 = vmatprep.subr.bf16.mxu0 0
        %4090 = vmatpush1.bf16.msra.mxu0 0
        %4091 = vmatprep.subr.bf16.mxu0 0
        %4092 = vmatpush1.bf16.msra.mxu0 0
        %4093 = vmatprep.subr.bf16.mxu0 0
        %4094 = vmatpush1.bf16.msra.mxu0 0
        %4095 = vmatprep.subr.bf16.mxu0 0
        %4096 = vmatpush1.bf16.msra.mxu0 0
        %4097 = vmatprep.subr.bf16.mxu0 0
        %4098 = vmatpush1.bf16.msra.mxu0 0
        %4099 = vmatprep.subr.bf16.mxu0 0
        %4100 = vmatpush1.bf16.msra.mxu0 0
        %4101 = vmatprep.subr.bf16.mxu0 0
        %4102 = vmatpush1.bf16.msra.mxu0 0
        %4103 = vmatprep.subr.bf16.mxu0 0
        %4104 = vmatpush1.bf16.msra.mxu0 0
        %4105 = vmatprep.subr.bf16.mxu0 0
        %4106 = vmatpush1.bf16.msra.mxu0 0
        %4107 = vmatprep.mubr.bf16.mxu0 0
        %4108 = vmatmul.mubr.bf16.gmra.mrb[0].mxu0 %v1755
        %v4109 = vpop.f32.mrb[0].mxu0
        %v4110 = vadd.f32 %v4069, %v4109
        %v4111 = vpop.f32.mrb[0].mxu0
        %v4112 = vadd.f32 %v4071, %v4111
        %v4113 = vpop.f32.mrb[0].mxu0
        %v4114 = vpop.f32.mrb[0].mxu0
        %4115 = vdwg.mxu0
        %v4116 = vadd.f32 %v4032, %v4110
        %v4117 = vadd.f32 %v4033, %v4112
        %4118 = vmatprep.subr.bf16.mxu0 %v3189
        %4119 = vmatpush1.bf16.msra.mxu0 %v3188
        %4120 = vmatprep.subr.bf16.mxu0 %v3191
        %4121 = vmatpush1.bf16.msra.mxu0 %v3190
        %4122 = vmatprep.subr.bf16.mxu0 %v3193
        %4123 = vmatpush1.bf16.msra.mxu0 %v3192
        %4124 = vmatprep.subr.bf16.mxu0 %v3195
        %4125 = vmatpush1.bf16.msra.mxu0 %v3194
        %4126 = vmatprep.subr.bf16.mxu0 %v3197
        %4127 = vmatpush1.bf16.msra.mxu0 %v3196
        %4128 = vmatprep.subr.bf16.mxu0 %v3199
        %4129 = vmatpush1.bf16.msra.mxu0 %v3198
        %4130 = vmatprep.subr.bf16.mxu0 %v3201
        %4131 = vmatpush1.bf16.msra.mxu0 %v3200
        %4132 = vmatprep.subr.bf16.mxu0 %v3203
        %4133 = vmatpush1.bf16.msra.mxu0 %v3202
        %4134 = vmatprep.subr.bf16.mxu0 %v3205
        %4135 = vmatpush1.bf16.msra.mxu0 %v3204
        %4136 = vmatprep.subr.bf16.mxu0 %v3207
        %4137 = vmatpush1.bf16.msra.mxu0 %v3206
        %4138 = vmatprep.subr.bf16.mxu0 %v3209
        %4139 = vmatpush1.bf16.msra.mxu0 %v3208
        %4140 = vmatprep.subr.bf16.mxu0 %v3211
        %4141 = vmatpush1.bf16.msra.mxu0 %v3210
        %4142 = vmatprep.subr.bf16.mxu0 %v3213
        %4143 = vmatpush1.bf16.msra.mxu0 %v3212
        %4144 = vmatprep.subr.bf16.mxu0 %v3215
        %4145 = vmatpush1.bf16.msra.mxu0 %v3214
        %4146 = vmatprep.subr.bf16.mxu0 %v3217
        %4147 = vmatpush1.bf16.msra.mxu0 %v3216
        %4148 = vmatprep.subr.bf16.mxu0 %v3219
        %4149 = vmatpush1.bf16.msra.mxu0 %v3218
        %4150 = vmatprep.mubr.bf16.mxu0 %v3693
        %4151 = vmatmul.mubr.bf16.gmra.mrb[0].mxu0 %v3692
        %v4152 = vpop.f32.mrb[0].mxu0
        %v4153 = vadd.f32 0.0, %v4152
        %v4154 = vpop.f32.mrb[0].mxu0
        %v4155 = vadd.f32 0.0, %v4154
        %v4156 = vpop.f32.mrb[0].mxu0
        %v4157 = vpop.f32.mrb[0].mxu0
        %4158 = vdwg.mxu0
        %4159 = vmatprep.subr.bf16.mxu0 %v3221
        %4160 = vmatpush1.bf16.msra.mxu0 %v3220
        %4161 = vmatprep.subr.bf16.mxu0 %v3262
        %4162 = vmatpush1.bf16.msra.mxu0 %v3259
        %4163 = vmatprep.subr.bf16.mxu0 0
        %4164 = vmatpush1.bf16.msra.mxu0 0
        %4165 = vmatprep.subr.bf16.mxu0 0
        %4166 = vmatpush1.bf16.msra.mxu0 0
        %4167 = vmatprep.subr.bf16.mxu0 0
        %4168 = vmatpush1.bf16.msra.mxu0 0
        %4169 = vmatprep.subr.bf16.mxu0 0
        %4170 = vmatpush1.bf16.msra.mxu0 0
        %4171 = vmatprep.subr.bf16.mxu0 0
        %4172 = vmatpush1.bf16.msra.mxu0 0
        %4173 = vmatprep.subr.bf16.mxu0 0
        %4174 = vmatpush1.bf16.msra.mxu0 0
        %4175 = vmatprep.subr.bf16.mxu0 0
        %4176 = vmatpush1.bf16.msra.mxu0 0
        %4177 = vmatprep.subr.bf16.mxu0 0
        %4178 = vmatpush1.bf16.msra.mxu0 0
        %4179 = vmatprep.subr.bf16.mxu0 0
        %4180 = vmatpush1.bf16.msra.mxu0 0
        %4181 = vmatprep.subr.bf16.mxu0 0
        %4182 = vmatpush1.bf16.msra.mxu0 0
        %4183 = vmatprep.subr.bf16.mxu0 0
        %4184 = vmatpush1.bf16.msra.mxu0 0
        %4185 = vmatprep.subr.bf16.mxu0 0
        %4186 = vmatpush1.bf16.msra.mxu0 0
        %4187 = vmatprep.subr.bf16.mxu0 0
        %4188 = vmatpush1.bf16.msra.mxu0 0
        %4189 = vmatprep.subr.bf16.mxu0 0
        %4190 = vmatpush1.bf16.msra.mxu0 0
        %4191 = vmatprep.mubr.bf16.mxu0 0
        %4192 = vmatmul.mubr.bf16.gmra.mrb[0].mxu0 %v3698
        %v4193 = vpop.f32.mrb[0].mxu0
        %v4194 = vadd.f32 %v4153, %v4193
        %v4195 = vpop.f32.mrb[0].mxu0
        %v4196 = vadd.f32 %v4155, %v4195
        %v4197 = vpop.f32.mrb[0].mxu0
        %v4198 = vpop.f32.mrb[0].mxu0
        %4199 = vdwg.mxu0
        %v4200 = vadd.f32 %v4116, %v4194
        %v4201 = vadd.f32 %v4117, %v4196
        %v4202 = vmax.f32 %v3784, %v4200
        %v4203 = vmax.f32 %v3785, %v4201
        %v4204 = vld [vmem:[#allocation4] sm:$0x3]
        %v4206 = vlaneseq
        %v4207 = vshrl.u32 %v4206, 7
        %v4208 = vsub.s32 0, %v4207
        %v4209 = vrot.slane %v4204, %v4208
        %v4210 = vlaneseq
        %v4211 = vshrl.u32 %v4210, 7
        %v4212 = vsub.s32 1, %v4211
        %v4213 = vrot.slane %v4204, %v4212
        %v4216 = vadd.f32 %v4202, %v4209
        %v4217 = vadd.f32 %v4203, %v4213
        %v4218 = vmax.f32 %v4216, 0.0
        %v4219 = vmax.f32 %v4217, 0.0
        %v4220 = vpack.c.bf16 %v4218, %v4218
        %v4221 = vpack.c.bf16 %v4219, %v4219
        %v4224 = vunpack.c.l.b16 %v4220
        %v4225 = vunpack.c.l.b16 %v4221
        %v4226 = vpack.c.b16 %v4225, %v4224
        %vm4228 = vcmask 1042432
        %vm4229 = vsmask.f32 2304
        %vm4230 = vmand %vm4228, %vm4229
        %vm4231 = vcmask 997380
        %vm4232 = vsmask.f32 6400
        %vm4233 = vmand %vm4231, %vm4232
        %vm4234 = vmor %vm4233, %vm4230
        %v4235 = vld [vmem:[%s245] sm:$0x77]
        %v4236 = vsel %vm4234, %v4226, %v4235
        %4237 = vst [vmem:[%s245] sm:$0x77] %v4236
        %p4238 = scmp.lt.s32.totalorder %s17, 3
        %s4239 = scalar_select %p4238, %s17, 3
        %s4240 = smul.addr %s4239, 2
        %s4241 = smul.addr %s4240, 4
        %s4242 = scalar_lea.vmem %s4, %s4241
        // Predicated region
        $region45: #{lenet_forward.4} parent=35 // pred_check
          %p4243 = pneg %p129
        $region46: #{lenet_forward.4} parent=35 // pred_check_branch
          %4245 = sbr.rel (%p4243) target = $region48
        $region47: #{lenet_forward.4} parent=35 // pred_region
          _
        $region48: #{lenet_forward.4} parent=35 // pred_fallthru
          _
      $region36: #{lenet_forward.4} parent=5 // pred_fallthru
        _
      %p4246 = scmp.le.s32.totalorder 2, %s12
      // Predicated region
      $region49: #{lenet_forward.4} parent=5 // pred_check
        %p4247 = pneg %p4246
      $region50: #{lenet_forward.4} parent=5 // pred_check_branch
        %4249 = sbr.rel (%p4247) target = $region52
      $region51: #{lenet_forward.4} parent=5 // pred_region
        %s4250 = ssub.s32 %s12, 2
        // Predicated region
        $region53: #{lenet_forward.4} parent=51 // pred_check
          %p4251 = pneg %p135
        $region54: #{lenet_forward.4} parent=51 // pred_check_branch
          %4253 = sbr.rel (%p4251) target = $region56
        $region55: #{lenet_forward.4} parent=51 // pred_region
          %p4254 = scmp.lt.s32.totalorder %s18, 3
          %s4255 = scalar_select %p4254, %s18, 3
          %s4256 = smul.addr %s4255, 2
          %s4257 = smul.addr %s4256, 4
          %s4258 = scalar_lea.vmem %s4, %s4257
        $region56: #{lenet_forward.4} parent=51 // pred_fallthru
          _
      $region52: #{lenet_forward.4} parent=5 // pred_fallthru
        _
    $region6: #{lenet_forward.4} parent=1 // loop_footer
      %s16 = sadd.s32 1, %s12
    $region7: #{lenet_forward.4} parent=1 // loop_footer_branch
      %11 = sbr.rel target = $region3
    $region8: #{lenet_forward.4} parent=1 // loop_exit
      _
    %4259 = vsyncpa [#allocation3], 1
    %s4260 = scalar_lea.sflag [#allocation3], 1
    %4261 = vsyncpa %s4260, 1
    %4262 = vsyncpa [#allocation5], 1

</llo_original>
